<compile_context>
chip_gen: v5e
topology: v5e:2x2
jax: 0.10.0
libtpu: 0.0.40
codegen_flags: <defaults>
</compile_context>

<pallas_src>
import jax
import jax.numpy as jnp
import numpy as np
from jax.experimental import pallas as pl
from jax.experimental.pallas import tpu as pltpu

EMBED = 768
NUM_HEADS = 4
HEAD_DIM = EMBED // NUM_HEADS              # 192
VIDEO_DIM = 1024
FRAMES = 8
LABELS = 2

NGROUPS = 2                                # grid steps / v7x TensorCores
HEADS_PER_GROUP = NUM_HEADS // NGROUPS     # 2
GROUP_QKV_COLS = 3 * HEADS_PER_GROUP * HEAD_DIM   # 1152  (q|k|v for 2 heads)
GROUP_OUT = HEADS_PER_GROUP * HEAD_DIM             # 384
VP_COLS = EMBED // NGROUPS                          # 384


# ---------------------------------------------------------------------------
# One fused kernel step: half the video projection columns, 2 of the 4 heads'
# fused-QKV + attention (across the batch axis, per the torch batch_first=False
# quirk), mean over L, and this head group's slice of the folded
# out_proj+classifier weight -> partial logits.
# ---------------------------------------------------------------------------
def fused_kernel(x_ref, vid_ref, w_vp_ref, w_qkv_ref, b_qkv_ref, w_ol_ref,
                 vproj_ref, part_ref):
    LB = x_ref.shape[0]                    # rows ordered (l, t): LB = L * B
    B = part_ref.shape[1]
    L = LB // B
    D = HEAD_DIM
    GW = GROUP_OUT

    # ---- video projection (computed by the module, result later discarded) --
    # bf16 x bf16 -> f32 accumulate on the MXU.
    vproj_ref[...] = jnp.dot(vid_ref[...], w_vp_ref[...],
                             preferred_element_type=jnp.float32)

    # ---- fused QKV projection for this step's head group ---------------------
    # 1/sqrt(HEAD_DIM) is pre-folded into the q columns & bias.
    x = x_ref[...]                                               # (L*B, E) bf16
    qkv = jnp.dot(x, w_qkv_ref[...],
                  preferred_element_type=jnp.float32) + b_qkv_ref[0]
    q = qkv[:, 0:GW]                                             # (L*B, 2*D)
    k = qkv[:, GW:2 * GW]
    v = qkv[:, 2 * GW:3 * GW]

    # ---- attention across the batch axis, independently per (head, l) -------
    outs = []
    for hh in range(HEADS_PER_GROUP):        # static unroll; per-head work tiny
        sl = slice(hh * D, (hh + 1) * D)
        qh = q[:, sl].reshape(L, B, D)
        kh = k[:, sl].reshape(L, B, D)
        vh = v[:, sl].reshape(L, B, D)
        # s[l, t, t'] = sum_d q[l,t,d] * k[l,t',d]
        s = jnp.einsum('lbd,lcd->lbc', qh, kh,
                       preferred_element_type=jnp.float32)        # (L, B, B)
        s = s - jnp.max(s, axis=-1, keepdims=True)
        p = jnp.exp(s)
        # exact division: approx reciprocal would perturb the f32 comparison
        p = p / jnp.sum(p, axis=-1, keepdims=True)
        oh = jnp.einsum('lbc,lcd->lbd', p, vh,
                        preferred_element_type=jnp.float32)       # (L, B, D)
        outs.append(oh.reshape(LB, D))
    o_cat = jnp.concatenate(outs, axis=-1)                        # (L*B, 2*D)

    # ---- mean over L first, then the folded out_proj+classifier weight ------
    m = jnp.mean(o_cat.reshape(L, B, GW), axis=0)                 # (B, 2*D)
    part_ref[0] = jnp.dot(m, w_ol_ref[0],
                          preferred_element_type=jnp.float32)     # (B, LABELS)


# ---------------------------------------------------------------------------
# Host-side weight fusion / reordering / folding / bf16 cast.
# ---------------------------------------------------------------------------
def _prepare_weights(params):
    E, D = EMBED, HEAD_DIM
    NG, HG = NGROUPS, HEADS_PER_GROUP
    scale = 1.0 / float(D) ** 0.5

    in_w = params["in_proj_w"]            # (3E, E)
    in_b = params["in_proj_b"]            # (3E,)

    # (3, NG, HG, D, E): a=q/k/v, head group, head-in-group, head dim, feature
    w5 = in_w.reshape(3, NG, HG, D, E)
    b4 = in_b.reshape(3, NG, HG, D)
    # fold the 1/sqrt(D) attention scale into the q projection (weights + bias)
    w5 = w5.at[0].multiply(scale)
    b4 = b4.at[0].multiply(scale)
    # columns ordered (group, q/k/v, head-in-group, d): each group is one
    # contiguous, 128-aligned block of 1152 columns (no HBM zero padding).
    w_qkv = w5.transpose(4, 1, 0, 2, 3).reshape(E, NG * 3 * HG * D)   # (768, 2304)
    b_qkv = b4.transpose(1, 0, 2, 3).reshape(NG, 1, 3 * HG * D)       # (2, 1, 1152)

    # Fold out_proj + classifier:
    #   logits = mean_L(o) @ (Wo^T @ Wl^T) + (bo @ Wl^T + bl)
    w_ol = params["out_proj_w"].T @ params["lin_w"].T                 # (768, LABELS)
    w_ol = w_ol.reshape(NG, HG * D, LABELS)                           # (2, 384, 2)
    b_ol = params["out_proj_b"] @ params["lin_w"].T + params["lin_b"] # (LABELS,)

    return dict(
        w_vp=params["vp_w"].T.astype(jnp.bfloat16),    # (1024, 768)
        w_qkv=w_qkv.astype(jnp.bfloat16),              # (768, 2304)
        b_qkv=b_qkv.astype(jnp.float32),               # (2, 1, 1152)
        w_ol=w_ol.astype(jnp.float32),                 # (2, 384, 2)
        b_ol=b_ol.astype(jnp.float32),                 # (LABELS,)
    )


# ---------------------------------------------------------------------------
# Wrapper: single fused pallas_call over a 2-step ("parallel") head-group grid.
# ---------------------------------------------------------------------------
def video_text_classif2_forward(lang_hidden, video_hidden, params):
    """Forward of VideoTextClassif2 given the LanguageBind encoder outputs.

    lang_hidden : (B, L, 768)     = result['language_encoder']
    video_hidden: (B*8, P, 1024)  = result['video_encoder']
    """
    B, L, E = lang_hidden.shape
    w = _prepare_weights(params)

    # rows ordered (l, t) so no in-kernel transposes are needed
    x_lb = lang_hidden.transpose(1, 0, 2).reshape(L * B, E).astype(jnp.bfloat16)
    vid_cls = (video_hidden[:, 0, :]
               .reshape(B * FRAMES, VIDEO_DIM).astype(jnp.bfloat16))

    args = (x_lb, vid_cls, w["w_vp"], w["w_qkv"], w["b_qkv"], w["w_ol"])

    in_specs = [
        pl.BlockSpec((L * B, E), lambda g: (0, 0)),                    # x (bf16)
        pl.BlockSpec((B * FRAMES, VIDEO_DIM), lambda g: (0, 0)),       # vid (bf16)
        pl.BlockSpec((VIDEO_DIM, VP_COLS), lambda g: (0, g)),          # w_vp half
        pl.BlockSpec((E, GROUP_QKV_COLS), lambda g: (0, g)),           # w_qkv group
        pl.BlockSpec((1, 1, GROUP_QKV_COLS), lambda g: (g, 0, 0)),     # b_qkv group
        pl.BlockSpec((1, GROUP_OUT, LABELS), lambda g: (g, 0, 0)),     # w_ol group
    ]
    out_specs = (
        pl.BlockSpec((B * FRAMES, VP_COLS), lambda g: (0, g)),         # vproj half
        pl.BlockSpec((1, B, LABELS), lambda g: (g, 0, 0)),             # partial logits
    )

    vproj, partial = pl.pallas_call(
        fused_kernel,
        out_shape=(jax.ShapeDtypeStruct((B * FRAMES, EMBED), jnp.float32),
                   jax.ShapeDtypeStruct((NGROUPS, B, LABELS), jnp.float32)),
        grid=(NGROUPS,),
        in_specs=in_specs,
        out_specs=out_specs,
        compiler_params=pltpu.CompilerParams(
            # "parallel": on v7x the two head groups run on the two TensorCores;
            # on v5e/v6e they run back-to-back with double-buffered weight DMA.
            dimension_semantics=("parallel",)),
    )(*args)

    # tiny epilogue: sum the per-head-group partial logits and add the folded bias
    logits = partial[0] + partial[1] + w["b_ol"]
    # vproj is computed but discarded in the original forward
    # (`total_hidden_state = language_hidden_state` overrides the concat)
    return logits, vproj.reshape(B, FRAMES, EMBED)


# ---------------------------------------------------------------------------
# Pure-JAX f32 reference (mirrors the PyTorch math directly).
# ---------------------------------------------------------------------------
def reference_forward(lang, params):
    B, L, E = lang.shape
    H, D = NUM_HEADS, HEAD_DIM
    in_w, in_b = params["in_proj_w"], params["in_proj_b"]
    qkv = jnp.einsum('tne,fe->tnf', lang, in_w) + in_b
    q, k, v = qkv[..., :E], qkv[..., E:2 * E], qkv[..., 2 * E:]
    q = q.reshape(B, L, H, D) * (1.0 / float(D) ** 0.5)
    k = k.reshape(B, L, H, D)
    v = v.reshape(B, L, H, D)
    s = jnp.einsum('tnhd,snhd->nhts', q, k)
    p = jax.nn.softmax(s, axis=-1)
    o = jnp.einsum('nhts,snhd->tnhd', p, v).reshape(B, L, E)
    y = o @ params["out_proj_w"].T + params["out_proj_b"]
    m = y.mean(axis=1)
    return m @ params["lin_w"].T + params["lin_b"]


if __name__ == "__main__":
    key = jax.random.PRNGKey(0)
    keys = jax.random.split(key, 9)
    B, L, P = 2, 8, 5   # small synthetic seq/patch sizes; feature dims fixed by module

    lang_hidden = jax.random.normal(keys[0], (B, L, EMBED), jnp.float32)
    video_hidden = jax.random.normal(keys[1], (B * FRAMES, P, VIDEO_DIM), jnp.float32)

    # Large weight matrices travel to the kernel in bf16; initialize them to
    # bf16-representable values so the weight cast is lossless.  Remaining
    # error vs. the f32 reference comes from the bf16 activation rounding
    # (review item: native bf16 x bf16 MXU matmuls), ~1e-3.
    def bf16_round(x):
        return jnp.asarray(x, jnp.bfloat16).astype(jnp.float32)

    params = {
        "vp_w":       bf16_round(0.02 * jax.random.normal(keys[2], (EMBED, VIDEO_DIM), jnp.float32)),
        "in_proj_w":  bf16_round(0.02 * jax.random.normal(keys[3], (3 * EMBED, EMBED), jnp.float32)),
        "in_proj_b":  0.02 * jax.random.normal(keys[4], (3 * EMBED,), jnp.float32),
        "out_proj_w": bf16_round(0.02 * jax.random.normal(keys[5], (EMBED, EMBED), jnp.float32)),
        "out_proj_b": 0.02 * jax.random.normal(keys[6], (EMBED,), jnp.float32),
        "lin_w":      0.02 * jax.random.normal(keys[7], (LABELS, EMBED), jnp.float32),
        "lin_b":      0.02 * jax.random.normal(keys[8], (LABELS,), jnp.float32),
    }

    logits, vid_proj = video_text_classif2_forward(lang_hidden, video_hidden, params)
    logits = jax.block_until_ready(logits)
    vid_proj = jax.block_until_ready(vid_proj)

    assert logits.shape == (B, LABELS)
    assert vid_proj.shape == (B, FRAMES, EMBED)

    ref_logits = reference_forward(lang_hidden, params)
    ref_vp = (video_hidden[:, 0, :] @ params["vp_w"].T).reshape(B, FRAMES, EMBED)
    np.testing.assert_allclose(np.asarray(logits), np.asarray(ref_logits),
                               rtol=3e-3, atol=3e-3)
    np.testing.assert_allclose(np.asarray(vid_proj), np.asarray(ref_vp),
                               rtol=3e-3, atol=5e-3)
    print("KERNEL_OK")
</pallas_src>

<mosaic_0001>
module attributes {stable_mosaic.version = 11 : i64} {
  func.func @fused_kernel(%arg0: i32, %arg1: memref<16x768xbf16, #tpu.memory_space<vmem>>, %arg2: memref<16x1024xbf16, #tpu.memory_space<vmem>>, %arg3: memref<1024x384xbf16, #tpu.memory_space<vmem>>, %arg4: memref<768x1152xbf16, #tpu.memory_space<vmem>>, %arg5: memref<1x1x1152xf32, #tpu.memory_space<vmem>>, %arg6: memref<1x384x2xf32, #tpu.memory_space<vmem>>, %arg7: memref<16x384xf32, #tpu.memory_space<vmem>>, %arg8: memref<1x2x2xf32, #tpu.memory_space<vmem>>) attributes {dimension_semantics = [#tpu.dimension_semantics<parallel>], iteration_bounds = array<i64: 2>, scalar_prefetch = 0 : i64, scratch_operands = 0 : i64, tpu.core_type = #tpu.core_type<tc>, window_params = [{pipeline_mode = #tpu.pipeline_mode<synchronous>, transform_indices = @transform_0, window_bounds = array<i64: 16, 768>}, {pipeline_mode = #tpu.pipeline_mode<synchronous>, transform_indices = @transform_1, window_bounds = array<i64: 16, 1024>}, {transform_indices = @transform_2, window_bounds = array<i64: 1024, 384>}, {transform_indices = @transform_3, window_bounds = array<i64: 768, 1152>}, {transform_indices = @transform_4, window_bounds = array<i64: 1, 1, 1152>}, {transform_indices = @transform_5, window_bounds = array<i64: 1, 384, 2>}, {transform_indices = @transform_6, window_bounds = array<i64: 16, 384>}, {transform_indices = @transform_7, window_bounds = array<i64: 1, 2, 2>}]} {
    %c0 = arith.constant 0 : index
    %c0_0 = arith.constant 0 : index
    %0 = vector.load %arg2[%c0, %c0_0] : memref<16x1024xbf16, #tpu.memory_space<vmem>>, vector<16x1024xbf16>
    %c0_1 = arith.constant 0 : index
    %c0_2 = arith.constant 0 : index
    %1 = vector.load %arg3[%c0_1, %c0_2] : memref<1024x384xbf16, #tpu.memory_space<vmem>>, vector<1024x384xbf16>
    %cst = arith.constant dense<0.000000e+00> : vector<16x384xf32>
    %2 = tpu.matmul %0, %1, %cst {dimension_numbers = #tpu.dot_dimension_numbers<[1], [0], [0], [1], [0, 0, 1, 1], [], []>} : vector<16x1024xbf16>, vector<1024x384xbf16>, vector<16x384xf32> -> vector<16x384xf32>
    %c0_3 = arith.constant 0 : index
    %c0_4 = arith.constant 0 : index
    %3 = vector.load %arg7[%c0_3, %c0_4] : memref<16x384xf32, #tpu.memory_space<vmem>>, vector<16x384xf32>
    tpu.vector_store %arg7[%c0_3, %c0_4], %2 {strides = array<i32>} : memref<16x384xf32, #tpu.memory_space<vmem>>, vector<16x384xf32>,
    %c0_5 = arith.constant 0 : index
    %c0_6 = arith.constant 0 : index
    %4 = vector.load %arg1[%c0_5, %c0_6] : memref<16x768xbf16, #tpu.memory_space<vmem>>, vector<16x768xbf16>
    %c0_7 = arith.constant 0 : index
    %c0_8 = arith.constant 0 : index
    %5 = vector.load %arg4[%c0_7, %c0_8] : memref<768x1152xbf16, #tpu.memory_space<vmem>>, vector<768x1152xbf16>
    %cst_9 = arith.constant dense<0.000000e+00> : vector<16x1152xf32>
    %6 = tpu.matmul %4, %5, %cst_9 {dimension_numbers = #tpu.dot_dimension_numbers<[1], [0], [0], [1], [0, 0, 1, 1], [], []>} : vector<16x768xbf16>, vector<768x1152xbf16>, vector<16x1152xf32> -> vector<16x1152xf32>
    %c0_10 = arith.constant 0 : index
    %c0_11 = arith.constant 0 : index
    %c0_12 = arith.constant 0 : index
    %7 = vector.load %arg5[%c0_10, %c0_11, %c0_12] : memref<1x1x1152xf32, #tpu.memory_space<vmem>>, vector<1x1x1152xf32>
    %8 = vector.shape_cast %7 : vector<1x1x1152xf32> to vector<1x1152xf32>
    %9 = vector.broadcast %8 : vector<1x1152xf32> to vector<16x1152xf32>
    %10 = arith.addf %6, %9 : vector<16x1152xf32>
    %11 = vector.extract_strided_slice %10 {offsets = [0, 0], sizes = [16, 384], strides = [1, 1]} : vector<16x1152xf32> to vector<16x384xf32>
    %12 = vector.extract_strided_slice %10 {offsets = [0, 384], sizes = [16, 384], strides = [1, 1]} : vector<16x1152xf32> to vector<16x384xf32>
    %13 = vector.extract_strided_slice %10 {offsets = [0, 768], sizes = [16, 384], strides = [1, 1]} : vector<16x1152xf32> to vector<16x384xf32>
    %14 = vector.extract_strided_slice %11 {offsets = [0, 0], sizes = [16, 192], strides = [1, 1]} : vector<16x384xf32> to vector<16x192xf32>
    %15 = vector.shape_cast %14 : vector<16x192xf32> to vector<8x2x192xf32>
    %16 = vector.extract_strided_slice %12 {offsets = [0, 0], sizes = [16, 192], strides = [1, 1]} : vector<16x384xf32> to vector<16x192xf32>
    %17 = vector.shape_cast %16 : vector<16x192xf32> to vector<8x2x192xf32>
    %18 = vector.extract_strided_slice %13 {offsets = [0, 0], sizes = [16, 192], strides = [1, 1]} : vector<16x384xf32> to vector<16x192xf32>
    %19 = vector.shape_cast %18 : vector<16x192xf32> to vector<8x2x192xf32>
    "tpu.trace_start"() <{level = 10 : i32, message = "lbd,lcd->lbc"}> : () -> ()
    %cst_13 = arith.constant dense<0.000000e+00> : vector<8x2x2xf32>
    %20 = tpu.matmul %15, %17, %cst_13 {dimension_numbers = #tpu.dot_dimension_numbers<[2], [2], [1], [1], [0, 0, 0, 1, 1, 1], [0], [0]>} : vector<8x2x192xf32>, vector<8x2x192xf32>, vector<8x2x2xf32> -> vector<8x2x2xf32>
    "tpu.trace_stop"() : () -> ()
    %cst_14 = arith.constant dense<0xFF800000> : vector<8x2xf32>
    %21 = vector.multi_reduction <maximumf>, %20, %cst_14 [2] : vector<8x2x2xf32> to vector<8x2xf32>
    %22 = vector.shape_cast %21 : vector<8x2xf32> to vector<8x2x1xf32>
    %23 = vector.broadcast %22 : vector<8x2x1xf32> to vector<8x2x2xf32>
    %24 = arith.subf %20, %23 : vector<8x2x2xf32>
    %25 = math.exp %24 : vector<8x2x2xf32>
    %cst_15 = arith.constant dense<0.000000e+00> : vector<8x2xf32>
    %26 = vector.multi_reduction <add>, %25, %cst_15 [2] : vector<8x2x2xf32> to vector<8x2xf32>
    %27 = vector.shape_cast %26 : vector<8x2xf32> to vector<8x2x1xf32>
    %28 = vector.broadcast %27 : vector<8x2x1xf32> to vector<8x2x2xf32>
    %29 = arith.divf %25, %28 : vector<8x2x2xf32>
    "tpu.trace_start"() <{level = 10 : i32, message = "lbc,lcd->lbd"}> : () -> ()
    %cst_16 = arith.constant dense<0.000000e+00> : vector<8x2x192xf32>
    %30 = tpu.matmul %29, %19, %cst_16 {dimension_numbers = #tpu.dot_dimension_numbers<[2], [1], [1], [2], [0, 0, 0, 1, 1, 2], [0], [0]>} : vector<8x2x2xf32>, vector<8x2x192xf32>, vector<8x2x192xf32> -> vector<8x2x192xf32>
    "tpu.trace_stop"() : () -> ()
    %31 = vector.shape_cast %30 : vector<8x2x192xf32> to vector<16x192xf32>
    %32 = vector.extract_strided_slice %11 {offsets = [0, 192], sizes = [16, 192], strides = [1, 1]} : vector<16x384xf32> to vector<16x192xf32>
    %33 = vector.shape_cast %32 : vector<16x192xf32> to vector<8x2x192xf32>
    %34 = vector.extract_strided_slice %12 {offsets = [0, 192], sizes = [16, 192], strides = [1, 1]} : vector<16x384xf32> to vector<16x192xf32>
    %35 = vector.shape_cast %34 : vector<16x192xf32> to vector<8x2x192xf32>
    %36 = vector.extract_strided_slice %13 {offsets = [0, 192], sizes = [16, 192], strides = [1, 1]} : vector<16x384xf32> to vector<16x192xf32>
    %37 = vector.shape_cast %36 : vector<16x192xf32> to vector<8x2x192xf32>
    "tpu.trace_start"() <{level = 10 : i32, message = "lbd,lcd->lbc"}> : () -> ()
    %cst_17 = arith.constant dense<0.000000e+00> : vector<8x2x2xf32>
    %38 = tpu.matmul %33, %35, %cst_17 {dimension_numbers = #tpu.dot_dimension_numbers<[2], [2], [1], [1], [0, 0, 0, 1, 1, 1], [0], [0]>} : vector<8x2x192xf32>, vector<8x2x192xf32>, vector<8x2x2xf32> -> vector<8x2x2xf32>
    "tpu.trace_stop"() : () -> ()
    %cst_18 = arith.constant dense<0xFF800000> : vector<8x2xf32>
    %39 = vector.multi_reduction <maximumf>, %38, %cst_18 [2] : vector<8x2x2xf32> to vector<8x2xf32>
    %40 = vector.shape_cast %39 : vector<8x2xf32> to vector<8x2x1xf32>
    %41 = vector.broadcast %40 : vector<8x2x1xf32> to vector<8x2x2xf32>
    %42 = arith.subf %38, %41 : vector<8x2x2xf32>
    %43 = math.exp %42 : vector<8x2x2xf32>
    %cst_19 = arith.constant dense<0.000000e+00> : vector<8x2xf32>
    %44 = vector.multi_reduction <add>, %43, %cst_19 [2] : vector<8x2x2xf32> to vector<8x2xf32>
    %45 = vector.shape_cast %44 : vector<8x2xf32> to vector<8x2x1xf32>
    %46 = vector.broadcast %45 : vector<8x2x1xf32> to vector<8x2x2xf32>
    %47 = arith.divf %43, %46 : vector<8x2x2xf32>
    "tpu.trace_start"() <{level = 10 : i32, message = "lbc,lcd->lbd"}> : () -> ()
    %cst_20 = arith.constant dense<0.000000e+00> : vector<8x2x192xf32>
    %48 = tpu.matmul %47, %37, %cst_20 {dimension_numbers = #tpu.dot_dimension_numbers<[2], [1], [1], [2], [0, 0, 0, 1, 1, 2], [0], [0]>} : vector<8x2x2xf32>, vector<8x2x192xf32>, vector<8x2x192xf32> -> vector<8x2x192xf32>
    "tpu.trace_stop"() : () -> ()
    %49 = vector.shape_cast %48 : vector<8x2x192xf32> to vector<16x192xf32>
    %50 = tpu.concatenate %31, %49 in 1 : vector<16x192xf32>, vector<16x192xf32> -> vector<16x384xf32>
    %51 = vector.shape_cast %50 : vector<16x384xf32> to vector<8x2x384xf32>
    %cst_21 = arith.constant dense<0.000000e+00> : vector<2x384xf32>
    %52 = vector.multi_reduction <add>, %51, %cst_21 [0] : vector<8x2x384xf32> to vector<2x384xf32>
    %cst_22 = arith.constant 8.000000e+00 : f32
    %53 = vector.broadcast %cst_22 : f32 to vector<2x384xf32>
    %54 = arith.divf %52, %53 : vector<2x384xf32>
    %c0_23 = arith.constant 0 : index
    %c0_24 = arith.constant 0 : index
    %c0_25 = arith.constant 0 : index
    %55 = vector.load %arg6[%c0_23, %c0_24, %c0_25] : memref<1x384x2xf32, #tpu.memory_space<vmem>>, vector<1x384x2xf32>
    %56 = vector.shape_cast %55 : vector<1x384x2xf32> to vector<384x2xf32>
    %cst_26 = arith.constant dense<0.000000e+00> : vector<2x2xf32>
    %57 = tpu.matmul %54, %56, %cst_26 {dimension_numbers = #tpu.dot_dimension_numbers<[1], [0], [0], [1], [0, 0, 1, 1], [], []>} : vector<2x384xf32>, vector<384x2xf32>, vector<2x2xf32> -> vector<2x2xf32>
    %c0_27 = arith.constant 0 : index
    %c0_28 = arith.constant 0 : index
    %c0_29 = arith.constant 0 : index
    %58 = vector.load %arg8[%c0_27, %c0_28, %c0_29] : memref<1x2x2xf32, #tpu.memory_space<vmem>>, vector<1x2x2xf32>
    %59 = vector.shape_cast %58 : vector<1x2x2xf32> to vector<2x2xf32>
    %60 = vector.shape_cast %57 : vector<2x2xf32> to vector<1x2x2xf32>
    tpu.vector_store %arg8[%c0_27, %c0_28, %c0_29], %60 {strides = array<i32>} : memref<1x2x2xf32, #tpu.memory_space<vmem>>, vector<1x2x2xf32>,
    return
  }
  func.func @transform_0(%arg0: i32) -> (i32, i32) {
    %c0_i32 = arith.constant 0 : i32
    %c0_i32_0 = arith.constant 0 : i32
    %c0_i32_1 = arith.constant 0 : i32
    return %c0_i32, %c0_i32_0 : i32, i32
  }
  func.func @transform_1(%arg0: i32) -> (i32, i32) {
    %c0_i32 = arith.constant 0 : i32
    %c0_i32_0 = arith.constant 0 : i32
    %c0_i32_1 = arith.constant 0 : i32
    return %c0_i32, %c0_i32_0 : i32, i32
  }
  func.func @transform_2(%arg0: i32) -> (i32, i32) {
    %c0_i32 = arith.constant 0 : i32
    %c0_i32_0 = arith.constant 0 : i32
    return %c0_i32, %arg0 : i32, i32
  }
  func.func @transform_3(%arg0: i32) -> (i32, i32) {
    %c0_i32 = arith.constant 0 : i32
    %c0_i32_0 = arith.constant 0 : i32
    return %c0_i32, %arg0 : i32, i32
  }
  func.func @transform_4(%arg0: i32) -> (i32, i32, i32) {
    %c0_i32 = arith.constant 0 : i32
    %c0_i32_0 = arith.constant 0 : i32
    %c0_i32_1 = arith.constant 0 : i32
    return %arg0, %c0_i32, %c0_i32_0 : i32, i32, i32
  }
  func.func @transform_5(%arg0: i32) -> (i32, i32, i32) {
    %c0_i32 = arith.constant 0 : i32
    %c0_i32_0 = arith.constant 0 : i32
    %c0_i32_1 = arith.constant 0 : i32
    return %arg0, %c0_i32, %c0_i32_0 : i32, i32, i32
  }
  func.func @transform_6(%arg0: i32) -> (i32, i32) {
    %c0_i32 = arith.constant 0 : i32
    %c0_i32_0 = arith.constant 0 : i32
    return %c0_i32, %arg0 : i32, i32
  }
  func.func @transform_7(%arg0: i32) -> (i32, i32, i32) {
    %c0_i32 = arith.constant 0 : i32
    %c0_i32_0 = arith.constant 0 : i32
    %c0_i32_1 = arith.constant 0 : i32
    return %arg0, %c0_i32, %c0_i32_0 : i32, i32, i32
  }
}

</mosaic_0001>

<llo_original>
// kernel: tpu_custom_call.1
$region0: #{tpu_custom_call.1}
  #allocation0 [shape = 'u32[]', space=smem, size = 0x4, offset = 0x4, fixed_abs, tag = 'smem constant byte address 0x4 - core index']
  #allocation1 [shape = 'u32[72,128]{1,0:T(1,128)}', space=vmem, size = 0x9000, scoped, tag = 'internal scratch']
  %s0 = inlined_call_operand.hbm [shape: bf16[16,768], index: 0, kind: input, shape index: {}]
  %s1 = inlined_call_operand.hbm [shape: bf16[16,1024], index: 1, kind: input, shape index: {}]
  %s2 = inlined_call_operand.hbm [shape: bf16[1024,768], index: 2, kind: input, shape index: {}]
  %s3 = inlined_call_operand.hbm [shape: bf16[768,2304], index: 3, kind: input, shape index: {}]
  %s4 = inlined_call_operand.hbm [shape: f32[2,1,1152], index: 4, kind: input, shape index: {}]
  %s5 = inlined_call_operand.vmem [shape: f32[2,384,2], index: 5, kind: input, shape index: {}]
  %s6 = inlined_call_operand.hbm [shape: f32[16,768], index: 6, kind: output, shape index: {0}]
  %s7 = inlined_call_operand.hbm [shape: f32[2,2,2], index: 7, kind: output, shape index: {1}]
  %8 = xla_tuple %s6, %s7
  %s9 = sld [smem:[#allocation0]]
  $region85: #{tpu_custom_call.1} parent=0
    _
  %s11 = ssub.s32 1, %s9
  %s12 = scalar_select 0, %s11, %s9
  $region1: #{tpu_custom_call.1} parent=0
    #allocation2 [shape = 'u8[24576]{0}', space=vmem, size = 0x6000, scoped, tag = 'input window, operand 0, single buffered']
    #allocation3 [shape = 's32[2]{0}', space=sflag, size = 0x8, scoped, tag = 'scoped memory for tpu_custom_call.1']
    #allocation4 [shape = 's32[2]{0}', space=sflag, size = 0x8, scoped, tag = 'scoped memory for tpu_custom_call.1']
    #allocation5 [shape = 'u8[32768]{0}', space=vmem, size = 0x8000, scoped, tag = 'input window, operand 1, single buffered']
    #allocation6 [shape = 's32[1]{0}', space=sflag, size = 0x4, scoped, tag = 'scoped memory for tpu_custom_call.1']
    #allocation7 [shape = 'u8[1572864]{0}', space=vmem, size = 0x180000, scoped, tag = 'input window, operand 2']
    #allocation8 [shape = 'u8[3538944]{0}', space=vmem, size = 0x360000, scoped, tag = 'input window, operand 3']
    #allocation9 [shape = 'u8[9216]{0}', space=vmem, size = 0x2400, scoped, tag = 'input window, operand 4']
    #allocation10 [shape = 'u8[49152]{0}', space=vmem, size = 0xc000, scoped, tag = 'output window, operand 0']
    #allocation11 [shape = 'u8[2048]{0}', space=vmem, size = 0x800, scoped, tag = 'output window, operand 1']
    #allocation12 [shape = 's32[2]{0}', space=sflag, size = 0x8, scoped, tag = 'scoped memory for tpu_custom_call.1']
    %13 = vsyncpa [#allocation3], 0
    %14 = vsyncpa [#allocation6], 0
    %15 = vsyncpa [#allocation4], 0
    %s16 = scalar_lea.sflag [#allocation4], 1
    %17 = vsyncpa %s16, 0
    %18 = vsyncpa [#allocation12], 0
    %s19 = scalar_lea.sflag [#allocation12], 1
    %20 = vsyncpa %s19, 0
    loop: start=0, step=1, limit=4
    $region2: #{tpu_custom_call.1} parent=1 // loop_pre_header
      _
    $region3: #{tpu_custom_call.1} parent=1 // loop_header
      %s22 = sphi 0, %s26
      %p23 = scmp.ge.s32.totalorder %s22, 4
      %s30 = sphi 0, %s30
      %s32 = sphi 0, %s30
      %s33 = sphi 0, %s32
      %s47 = sphi 0, %s33
      %s51 = sphi 0, %s51
      %s53 = sphi 0, %s51
      %s54 = sphi 0, %s53
      %s68 = sphi 0, %s54
      %s74 = sphi 0, %s76
      %s77 = sphi 0, %s74
      %s78 = sphi 0, %s77
      %s94 = sphi 0, %s78
      %s100 = sphi 0, %s102
      %s103 = sphi 0, %s100
      %s104 = sphi 0, %s103
      %s120 = sphi 0, %s104
      %s126 = sphi 0, %s128
      %s129 = sphi 0, %s126
      %s130 = sphi 0, %s129
      %s146 = sphi 0, %s130
      %s152 = sphi 0, %s154
      %s155 = sphi 0, %s152
      %s156 = sphi 0, %s155
      %s172 = sphi 0, %s156
      %s178 = sphi 0, %s180
      %s181 = sphi 0, %s178
      %s182 = sphi 0, %s181
      %s198 = sphi 0, %s182
      %s204 = sphi 0, %s206
      %s207 = sphi 0, %s204
      %s208 = sphi 0, %s207
      %s224 = sphi 0, %s208
    $region4: #{tpu_custom_call.1} parent=1 // loop_header_branch
      %25 = sbr.rel (%p23) target = $region8
    $region5: #{tpu_custom_call.1} parent=1 // loop_body
      %s27 = ssub.s32 %s22, 1
      %s28 = ssub.s32 %s22, 2
      %s29 = sadd.s32 %s22, 1
      %s31 = sadd.s32 %s30, 1
      %p34 = scmp.eq.s32.totalorder %s22, 1
      %p35 = scmp.ne.s32.totalorder %s30, %s32
      %p36 = scmp.eq.s32.totalorder %s22, 0
      %p37 = por %p35, %p36
      %p38 = scmp.ne.s32.totalorder %s30, %s32
      %p39 = scmp.eq.s32.totalorder %s27, 1
      %p40 = por %p38, %p39
      %p41 = scmp.ne.s32.totalorder %s32, %s33
      %p42 = scmp.eq.s32.totalorder %s27, 0
      %p43 = por %p41, %p42
      %p44 = scmp.ne.s32.totalorder %s32, %s33
      %p45 = scmp.eq.s32.totalorder %s28, 1
      %p46 = por %p44, %p45
      %p48 = scmp.ne.s32.totalorder %s33, %s47
      %p49 = scmp.eq.s32.totalorder %s28, 0
      %p50 = por %p48, %p49
      %s52 = sadd.s32 %s51, 1
      %p55 = scmp.eq.s32.totalorder %s22, 1
      %p56 = scmp.ne.s32.totalorder %s51, %s53
      %p57 = scmp.eq.s32.totalorder %s22, 0
      %p58 = por %p56, %p57
      %p59 = scmp.ne.s32.totalorder %s51, %s53
      %p60 = scmp.eq.s32.totalorder %s27, 1
      %p61 = por %p59, %p60
      %p62 = scmp.ne.s32.totalorder %s53, %s54
      %p63 = scmp.eq.s32.totalorder %s27, 0
      %p64 = por %p62, %p63
      %p65 = scmp.ne.s32.totalorder %s53, %s54
      %p66 = scmp.eq.s32.totalorder %s28, 1
      %p67 = por %p65, %p66
      %p69 = scmp.ne.s32.totalorder %s54, %s68
      %p70 = scmp.eq.s32.totalorder %s28, 0
      %p71 = por %p69, %p70
      %s72 = ssub.s32 %s22, %s29
      %p73 = scmp.eq.s32.totalorder %s72, 0
      %s75 = sadd.s32 %s74, 1
      %s76 = scalar_select %p73, %s74, %s75
      %p79 = pneg %p73
      %p80 = scmp.eq.s32.totalorder %s22, 1
      %p81 = por %p79, %p80
      %p82 = scmp.ne.s32.totalorder %s74, %s77
      %p83 = scmp.eq.s32.totalorder %s22, 0
      %p84 = por %p82, %p83
      %p85 = scmp.ne.s32.totalorder %s74, %s77
      %p86 = scmp.eq.s32.totalorder %s27, 1
      %p87 = por %p85, %p86
      %p88 = scmp.ne.s32.totalorder %s77, %s78
      %p89 = scmp.eq.s32.totalorder %s27, 0
      %p90 = por %p88, %p89
      %p91 = scmp.ne.s32.totalorder %s77, %s78
      %p92 = scmp.eq.s32.totalorder %s28, 1
      %p93 = por %p91, %p92
      %p95 = scmp.ne.s32.totalorder %s78, %s94
      %p96 = scmp.eq.s32.totalorder %s28, 0
      %p97 = por %p95, %p96
      %s98 = ssub.s32 %s22, %s29
      %p99 = scmp.eq.s32.totalorder %s98, 0
      %s101 = sadd.s32 %s100, 1
      %s102 = scalar_select %p99, %s100, %s101
      %p105 = pneg %p99
      %p106 = scmp.eq.s32.totalorder %s22, 1
      %p107 = por %p105, %p106
      %p108 = scmp.ne.s32.totalorder %s100, %s103
      %p109 = scmp.eq.s32.totalorder %s22, 0
      %p110 = por %p108, %p109
      %p111 = scmp.ne.s32.totalorder %s100, %s103
      %p112 = scmp.eq.s32.totalorder %s27, 1
      %p113 = por %p111, %p112
      %p114 = scmp.ne.s32.totalorder %s103, %s104
      %p115 = scmp.eq.s32.totalorder %s27, 0
      %p116 = por %p114, %p115
      %p117 = scmp.ne.s32.totalorder %s103, %s104
      %p118 = scmp.eq.s32.totalorder %s28, 1
      %p119 = por %p117, %p118
      %p121 = scmp.ne.s32.totalorder %s104, %s120
      %p122 = scmp.eq.s32.totalorder %s28, 0
      %p123 = por %p121, %p122
      %s124 = ssub.s32 %s22, %s29
      %p125 = scmp.eq.s32.totalorder %s124, 0
      %s127 = sadd.s32 %s126, 1
      %s128 = scalar_select %p125, %s126, %s127
      %p131 = pneg %p125
      %p132 = scmp.eq.s32.totalorder %s22, 1
      %p133 = por %p131, %p132
      %p134 = scmp.ne.s32.totalorder %s126, %s129
      %p135 = scmp.eq.s32.totalorder %s22, 0
      %p136 = por %p134, %p135
      %p137 = scmp.ne.s32.totalorder %s126, %s129
      %p138 = scmp.eq.s32.totalorder %s27, 1
      %p139 = por %p137, %p138
      %p140 = scmp.ne.s32.totalorder %s129, %s130
      %p141 = scmp.eq.s32.totalorder %s27, 0
      %p142 = por %p140, %p141
      %p143 = scmp.ne.s32.totalorder %s129, %s130
      %p144 = scmp.eq.s32.totalorder %s28, 1
      %p145 = por %p143, %p144
      %p147 = scmp.ne.s32.totalorder %s130, %s146
      %p148 = scmp.eq.s32.totalorder %s28, 0
      %p149 = por %p147, %p148
      %s150 = ssub.s32 %s22, %s29
      %p151 = scmp.eq.s32.totalorder %s150, 0
      %s153 = sadd.s32 %s152, 1
      %s154 = scalar_select %p151, %s152, %s153
      %p157 = pneg %p151
      %p158 = scmp.eq.s32.totalorder %s22, 1
      %p159 = por %p157, %p158
      %p160 = scmp.ne.s32.totalorder %s152, %s155
      %p161 = scmp.eq.s32.totalorder %s22, 0
      %p162 = por %p160, %p161
      %p163 = scmp.ne.s32.totalorder %s152, %s155
      %p164 = scmp.eq.s32.totalorder %s27, 1
      %p165 = por %p163, %p164
      %p166 = scmp.ne.s32.totalorder %s155, %s156
      %p167 = scmp.eq.s32.totalorder %s27, 0
      %p168 = por %p166, %p167
      %p169 = scmp.ne.s32.totalorder %s155, %s156
      %p170 = scmp.eq.s32.totalorder %s28, 1
      %p171 = por %p169, %p170
      %p173 = scmp.ne.s32.totalorder %s156, %s172
      %p174 = scmp.eq.s32.totalorder %s28, 0
      %p175 = por %p173, %p174
      %s176 = ssub.s32 %s22, %s29
      %p177 = scmp.eq.s32.totalorder %s176, 0
      %s179 = sadd.s32 %s178, 1
      %s180 = scalar_select %p177, %s178, %s179
      %p183 = pneg %p177
      %p184 = scmp.eq.s32.totalorder %s22, 1
      %p185 = por %p183, %p184
      %p186 = scmp.ne.s32.totalorder %s178, %s181
      %p187 = scmp.eq.s32.totalorder %s22, 0
      %p188 = por %p186, %p187
      %p189 = scmp.ne.s32.totalorder %s178, %s181
      %p190 = scmp.eq.s32.totalorder %s27, 1
      %p191 = por %p189, %p190
      %p192 = scmp.ne.s32.totalorder %s181, %s182
      %p193 = scmp.eq.s32.totalorder %s27, 0
      %p194 = por %p192, %p193
      %p195 = scmp.ne.s32.totalorder %s181, %s182
      %p196 = scmp.eq.s32.totalorder %s28, 1
      %p197 = por %p195, %p196
      %p199 = scmp.ne.s32.totalorder %s182, %s198
      %p200 = scmp.eq.s32.totalorder %s28, 0
      %p201 = por %p199, %p200
      %s202 = ssub.s32 %s22, %s29
      %p203 = scmp.eq.s32.totalorder %s202, 0
      %s205 = sadd.s32 %s204, 1
      %s206 = scalar_select %p203, %s204, %s205
      %p209 = pneg %p203
      %p210 = scmp.eq.s32.totalorder %s22, 1
      %p211 = por %p209, %p210
      %p212 = scmp.ne.s32.totalorder %s204, %s207
      %p213 = scmp.eq.s32.totalorder %s22, 0
      %p214 = por %p212, %p213
      %p215 = scmp.ne.s32.totalorder %s204, %s207
      %p216 = scmp.eq.s32.totalorder %s27, 1
      %p217 = por %p215, %p216
      %p218 = scmp.ne.s32.totalorder %s207, %s208
      %p219 = scmp.eq.s32.totalorder %s27, 0
      %p220 = por %p218, %p219
      %p221 = scmp.ne.s32.totalorder %s207, %s208
      %p222 = scmp.eq.s32.totalorder %s28, 1
      %p223 = por %p221, %p222
      %p225 = scmp.ne.s32.totalorder %s208, %s224
      %p226 = scmp.eq.s32.totalorder %s28, 0
      %p227 = por %p225, %p226
      %p228 = scmp.le.s32.totalorder 1, %s22
      %p229 = scmp.lt.s32.totalorder %s22, 3
      %p230 = pnand %p228, %p229
      %p231 = pneg %p230
      // Predicated region
      $region9: #{tpu_custom_call.1} parent=5 // pred_check
        _
      $region10: #{tpu_custom_call.1} parent=5 // pred_check_branch
        %233 = sbr.rel (%p230) target = $region12
      $region11: #{tpu_custom_call.1} parent=5 // pred_region
        %s234 = ssub.s32 %s22, 1
        // Predicated region
        $region13: #{tpu_custom_call.1} parent=11 // pred_check
          %p235 = pneg %p43
        $region14: #{tpu_custom_call.1} parent=11 // pred_check_branch
          %237 = sbr.rel (%p235) target = $region16
        $region15: #{tpu_custom_call.1} parent=11 // pred_region
          %239 = vsyncadd [#allocation3], 0
          %s240 = sshll.u32 %s0, 4
          %s241 = int_to_ptr.hbm [resolvable:$true] %s240
          %s242 = sshll.u32 [#allocation2], 4
          %s243 = int_to_ptr.vmem [resolvable:$true] %s242
          %248 = dma.hbm_to_vmem [thread:$0]  %s241, 768, %s243, [#allocation3], 384, 384, 24
        $region16: #{tpu_custom_call.1} parent=11 // pred_fallthru
          _
        // Predicated region
        $region17: #{tpu_custom_call.1} parent=11 // pred_check
          %p249 = pneg %p64
        $region18: #{tpu_custom_call.1} parent=11 // pred_check_branch
          %251 = sbr.rel (%p249) target = $region20
        $region19: #{tpu_custom_call.1} parent=11 // pred_region
          %253 = vsyncadd [#allocation6], 0
          %s254 = sshll.u32 %s1, 4
          %s255 = int_to_ptr.hbm [resolvable:$true] %s254
          %s256 = sshll.u32 [#allocation5], 4
          %s257 = int_to_ptr.vmem [resolvable:$true] %s256
          %262 = dma.hbm_to_vmem [thread:$0]  %s255, 1024, %s257, [#allocation6], 512, 512, 32
        $region20: #{tpu_custom_call.1} parent=11 // pred_fallthru
          _
      $region12: #{tpu_custom_call.1} parent=5 // pred_fallthru
        _
      %p263 = scmp.lt.s32.totalorder %s22, 2
      // Predicated region
      $region21: #{tpu_custom_call.1} parent=5 // pred_check
        %p264 = pneg %p263
      $region22: #{tpu_custom_call.1} parent=5 // pred_check_branch
        %266 = sbr.rel (%p264) target = $region24
      $region23: #{tpu_custom_call.1} parent=5 // pred_region
        // Predicated region
        $region25: #{tpu_custom_call.1} parent=23 // pred_check
          %p267 = pneg %p84
        $region26: #{tpu_custom_call.1} parent=23 // pred_check_branch
          %269 = sbr.rel (%p267) target = $region28
        $region27: #{tpu_custom_call.1} parent=23 // pred_region
          %s270 = sand.u32 %s22, 1
          %s271 = scalar_lea.sflag [#allocation3], %s270
          %s272 = sand.u32 %s74, 1
          %s273 = smul.addr %s272, 1536
          %s274 = scalar_lea.vmem [#allocation7], %s273
          %s275 = smul.u32 3, %s22
          %277 = vsyncadd %s271, 0
          %s278 = smul.addr %s275, 4
          %s279 = scalar_lea.hbm %s2, %s278
          %s280 = sshll.u32 %s279, 4
          %s281 = int_to_ptr.hbm [resolvable:$true] %s280
          %s282 = sshll.u32 %s274, 4
          %s283 = int_to_ptr.vmem [resolvable:$true] %s282
          %288 = dma.hbm_to_vmem [thread:$0]  %s281, 24576, %s283, %s271, 384, 192, 12
        $region28: #{tpu_custom_call.1} parent=23 // pred_fallthru
          _
        // Predicated region
        $region29: #{tpu_custom_call.1} parent=23 // pred_check
          %p289 = pneg %p110
        $region30: #{tpu_custom_call.1} parent=23 // pred_check_branch
          %291 = sbr.rel (%p289) target = $region32
        $region31: #{tpu_custom_call.1} parent=23 // pred_region
          %s292 = sand.u32 %s22, 1
          %s293 = scalar_lea.sflag [#allocation3], %s292
          %s294 = sand.u32 %s100, 1
          %s295 = smul.addr %s294, 3456
          %s296 = scalar_lea.vmem [#allocation8], %s295
          %s297 = smul.u32 9, %s22
          %299 = vsyncadd %s293, 0
          %s300 = smul.addr %s297, 4
          %s301 = scalar_lea.hbm %s3, %s300
          %s302 = sshll.u32 %s301, 4
          %s303 = int_to_ptr.hbm [resolvable:$true] %s302
          %s304 = sshll.u32 %s296, 4
          %s305 = int_to_ptr.vmem [resolvable:$true] %s304
          %310 = dma.hbm_to_vmem [thread:$0]  %s303, 55296, %s305, %s293, 1152, 576, 36
        $region32: #{tpu_custom_call.1} parent=23 // pred_fallthru
          _
        // Predicated region
        $region33: #{tpu_custom_call.1} parent=23 // pred_check
          %p311 = pneg %p136
        $region34: #{tpu_custom_call.1} parent=23 // pred_check_branch
          %313 = sbr.rel (%p311) target = $region36
        $region35: #{tpu_custom_call.1} parent=23 // pred_region
          %s314 = sand.u32 %s22, 1
          %s315 = scalar_lea.sflag [#allocation3], %s314
          %s316 = sand.u32 %s126, 1
          %s317 = smul.addr %s316, 9
          %s318 = scalar_lea.vmem [#allocation9], %s317
          %320 = vsyncadd %s315, 0
          %s321 = smul.addr %s22, 9
          %s322 = scalar_lea.hbm %s4, %s321
          %s324 = sshll.u32 %s322, 4
          %s325 = int_to_ptr.hbm [resolvable:$true] %s324
          %s326 = sshll.u32 %s318, 4
          %s327 = int_to_ptr.vmem [resolvable:$true] %s326
          %329 = dma.hbm_to_vmem [thread:$0]  %s325, 144, %s327, %s315
        $region36: #{tpu_custom_call.1} parent=23 // pred_fallthru
          _
        // Predicated region
        $region37: #{tpu_custom_call.1} parent=23 // pred_check
          %p330 = pneg %p162
        $region38: #{tpu_custom_call.1} parent=23 // pred_check_branch
          %332 = sbr.rel (%p330) target = $region40
        $region39: #{tpu_custom_call.1} parent=23 // pred_region
          %p333 = scmp.lt.s32.totalorder %s22, 1
          %s334 = scalar_select %p333, %s22, 1
          %s335 = smul.addr %s334, 48
          %s336 = smul.addr %s335, 8
          %s337 = scalar_lea.vmem %s5, %s336
        $region40: #{tpu_custom_call.1} parent=23 // pred_fallthru
          _
      $region24: #{tpu_custom_call.1} parent=5 // pred_fallthru
        _
      %p338 = scmp.le.s32.totalorder 1, %s22
      %p339 = scmp.lt.s32.totalorder %s22, 3
      %p340 = pnand %p338, %p339
      %p341 = pneg %p340
      // Predicated region
      $region41: #{tpu_custom_call.1} parent=5 // pred_check
        _
      $region42: #{tpu_custom_call.1} parent=5 // pred_check_branch
        %343 = sbr.rel (%p340) target = $region44
      $region43: #{tpu_custom_call.1} parent=5 // pred_region
        %s344 = ssub.s32 %s22, 1
        // Predicated region
        $region45: #{tpu_custom_call.1} parent=43 // pred_check
          %p345 = pneg %p43
        $region46: #{tpu_custom_call.1} parent=43 // pred_check_branch
          %347 = sbr.rel (%p345) target = $region48
        $region47: #{tpu_custom_call.1} parent=43 // pred_region
          %349 = dma.done [#allocation3], 768
        $region48: #{tpu_custom_call.1} parent=43 // pred_fallthru
          _
        // Predicated region
        $region49: #{tpu_custom_call.1} parent=43 // pred_check
          %p350 = pneg %p64
        $region50: #{tpu_custom_call.1} parent=43 // pred_check_branch
          %352 = sbr.rel (%p350) target = $region52
        $region51: #{tpu_custom_call.1} parent=43 // pred_region
          %354 = dma.done [#allocation6], 1024
        $region52: #{tpu_custom_call.1} parent=43 // pred_fallthru
          _
        %s355 = sand.u32 %s27, 1
        %s356 = scalar_lea.sflag [#allocation3], %s355
        %s357 = sand.u32 %s77, 1
        %s358 = smul.addr %s357, 1536
        %s359 = scalar_lea.vmem [#allocation7], %s358
        // Predicated region
        $region53: #{tpu_custom_call.1} parent=43 // pred_check
          %p360 = pneg %p90
        $region54: #{tpu_custom_call.1} parent=43 // pred_check_branch
          %362 = sbr.rel (%p360) target = $region56
        $region55: #{tpu_custom_call.1} parent=43 // pred_region
          %364 = dma.done %s356, 24576
        $region56: #{tpu_custom_call.1} parent=43 // pred_fallthru
          _
        %s365 = sand.u32 %s27, 1
        %s366 = scalar_lea.sflag [#allocation3], %s365
        %s367 = sand.u32 %s103, 1
        %s368 = smul.addr %s367, 3456
        %s369 = scalar_lea.vmem [#allocation8], %s368
        // Predicated region
        $region57: #{tpu_custom_call.1} parent=43 // pred_check
          %p370 = pneg %p116
        $region58: #{tpu_custom_call.1} parent=43 // pred_check_branch
          %372 = sbr.rel (%p370) target = $region60
        $region59: #{tpu_custom_call.1} parent=43 // pred_region
          %374 = dma.done %s366, 55296
        $region60: #{tpu_custom_call.1} parent=43 // pred_fallthru
          _
        %s375 = sand.u32 %s27, 1
        %s376 = scalar_lea.sflag [#allocation3], %s375
        %s377 = sand.u32 %s129, 1
        %s378 = smul.addr %s377, 9
        %s379 = scalar_lea.vmem [#allocation9], %s378
        // Predicated region
        $region61: #{tpu_custom_call.1} parent=43 // pred_check
          %p380 = pneg %p142
        $region62: #{tpu_custom_call.1} parent=43 // pred_check_branch
          %382 = sbr.rel (%p380) target = $region64
        $region63: #{tpu_custom_call.1} parent=43 // pred_region
          %384 = dma.done %s376, 144
        $region64: #{tpu_custom_call.1} parent=43 // pred_fallthru
          _
        %p385 = pneg %p43
        %p386 = pneg %p40
        %p387 = pneg %p64
        %p388 = pneg %p61
        %s389 = sand.u32 %s27, 1
        %s390 = scalar_lea.sflag [#allocation3], %s389
        %s391 = sand.u32 %s77, 1
        %s392 = smul.addr %s391, 1536
        %s393 = scalar_lea.vmem [#allocation7], %s392
        %p394 = pneg %p90
        %p395 = pneg %p87
        %s396 = sand.u32 %s27, 1
        %s397 = scalar_lea.sflag [#allocation3], %s396
        %s398 = sand.u32 %s103, 1
        %s399 = smul.addr %s398, 3456
        %s400 = scalar_lea.vmem [#allocation8], %s399
        %p401 = pneg %p116
        %p402 = pneg %p113
        %s403 = sand.u32 %s27, 1
        %s404 = scalar_lea.sflag [#allocation3], %s403
        %s405 = sand.u32 %s129, 1
        %s406 = smul.addr %s405, 9
        %s407 = scalar_lea.vmem [#allocation9], %s406
        %p408 = pneg %p142
        %p409 = pneg %p139
        %p410 = scmp.lt.s32.totalorder %s27, 1
        %s411 = scalar_select %p410, %s27, 1
        %s412 = smul.addr %s411, 48
        %s413 = smul.addr %s412, 8
        %s414 = scalar_lea.vmem %s5, %s413
        %p415 = pneg %p168
        %p416 = pneg %p165
        %p417 = pneg %p194
        %p418 = pneg %p191
        %s419 = sand.u32 %s181, 1
        %s420 = scalar_lea.sflag [#allocation4], %s419
        %s421 = sand.u32 %s181, 1
        %s422 = smul.addr %s421, 48
        %s423 = scalar_lea.vmem [#allocation10], %s422
        %p424 = pneg %p220
        %p425 = pneg %p217
        %s426 = sand.u32 %s207, 1
        %s427 = scalar_lea.sflag [#allocation12], %s426
        %s428 = sand.u32 %s207, 1
        %s429 = smul.addr %s428, 2
        %s430 = scalar_lea.vmem [#allocation11], %s429
        %s431 = smul.u32 3, %s27
        %s432 = smul.u32 9, %s27
        %p433 = scmp.lt.s32.totalorder %s27, 1
        %s434 = scalar_select %p433, %s27, 1
        %s435 = smul.addr %s434, 48
        %s436 = smul.addr %s435, 8
        %s437 = scalar_lea.vmem %s5, %s436
        %s438 = smul.u32 3, %s27
        %v439 = vld [vmem:[#allocation5] sm:$0xff]
        %v440 = vld [vmem:[#allocation5 + $0x8] sm:$0xff]
        %v441 = vld [vmem:[#allocation5 + $0x10] sm:$0xff]
        %v442 = vld [vmem:[#allocation5 + $0x18] sm:$0xff]
        %v443 = vld [vmem:[#allocation5 + $0x20] sm:$0xff]
        %v444 = vld [vmem:[#allocation5 + $0x28] sm:$0xff]
        %v445 = vld [vmem:[#allocation5 + $0x30] sm:$0xff]
        %v446 = vld [vmem:[#allocation5 + $0x38] sm:$0xff]
        %v447 = vld [vmem:[%s359] sm:$0xff]
        %v448 = vld [vmem:[%s359 + $0x8] sm:$0xf]
        %v449 = vld [vmem:[%s359 + $0xc] sm:$0xff]
        %v450 = vld [vmem:[%s359 + $0x14] sm:$0xf]
        %v451 = vld [vmem:[%s359 + $0x18] sm:$0xff]
        %v452 = vld [vmem:[%s359 + $0x20] sm:$0xf]
        %v453 = vld [vmem:[%s359 + $0x24] sm:$0xff]
        %v454 = vld [vmem:[%s359 + $0x2c] sm:$0xf]
        %v455 = vld [vmem:[%s359 + $0x30] sm:$0xff]
        %v456 = vld [vmem:[%s359 + $0x38] sm:$0xf]
        %v457 = vld [vmem:[%s359 + $0x3c] sm:$0xff]
        %v458 = vld [vmem:[%s359 + $0x44] sm:$0xf]
        %v459 = vld [vmem:[%s359 + $0x48] sm:$0xff]
        %v460 = vld [vmem:[%s359 + $0x50] sm:$0xf]
        %v461 = vld [vmem:[%s359 + $0x54] sm:$0xff]
        %v462 = vld [vmem:[%s359 + $0x5c] sm:$0xf]
        %v463 = vld [vmem:[%s359 + $0x60] sm:$0xff]
        %v464 = vld [vmem:[%s359 + $0x68] sm:$0xf]
        %v465 = vld [vmem:[%s359 + $0x6c] sm:$0xff]
        %v466 = vld [vmem:[%s359 + $0x74] sm:$0xf]
        %v467 = vld [vmem:[%s359 + $0x78] sm:$0xff]
        %v468 = vld [vmem:[%s359 + $0x80] sm:$0xf]
        %v469 = vld [vmem:[%s359 + $0x84] sm:$0xff]
        %v470 = vld [vmem:[%s359 + $0x8c] sm:$0xf]
        %v471 = vld [vmem:[%s359 + $0x90] sm:$0xff]
        %v472 = vld [vmem:[%s359 + $0x98] sm:$0xf]
        %v473 = vld [vmem:[%s359 + $0x9c] sm:$0xff]
        %v474 = vld [vmem:[%s359 + $0xa4] sm:$0xf]
        %v475 = vld [vmem:[%s359 + $0xa8] sm:$0xff]
        %v476 = vld [vmem:[%s359 + $0xb0] sm:$0xf]
        %v477 = vld [vmem:[%s359 + $0xb4] sm:$0xff]
        %v478 = vld [vmem:[%s359 + $0xbc] sm:$0xf]
        %v479 = vld [vmem:[%s359 + $0xc0] sm:$0xff]
        %v480 = vld [vmem:[%s359 + $0xc8] sm:$0xf]
        %v481 = vld [vmem:[%s359 + $0xcc] sm:$0xff]
        %v482 = vld [vmem:[%s359 + $0xd4] sm:$0xf]
        %v483 = vld [vmem:[%s359 + $0xd8] sm:$0xff]
        %v484 = vld [vmem:[%s359 + $0xe0] sm:$0xf]
        %v485 = vld [vmem:[%s359 + $0xe4] sm:$0xff]
        %v486 = vld [vmem:[%s359 + $0xec] sm:$0xf]
        %v487 = vld [vmem:[%s359 + $0xf0] sm:$0xff]
        %v488 = vld [vmem:[%s359 + $0xf8] sm:$0xf]
        %v489 = vld [vmem:[%s359 + $0xfc] sm:$0xff]
        %v490 = vld [vmem:[%s359 + $0x104] sm:$0xf]
        %v491 = vld [vmem:[%s359 + $0x108] sm:$0xff]
        %v492 = vld [vmem:[%s359 + $0x110] sm:$0xf]
        %v493 = vld [vmem:[%s359 + $0x114] sm:$0xff]
        %v494 = vld [vmem:[%s359 + $0x11c] sm:$0xf]
        %v495 = vld [vmem:[%s359 + $0x120] sm:$0xff]
        %v496 = vld [vmem:[%s359 + $0x128] sm:$0xf]
        %v497 = vld [vmem:[%s359 + $0x12c] sm:$0xff]
        %v498 = vld [vmem:[%s359 + $0x134] sm:$0xf]
        %v499 = vld [vmem:[%s359 + $0x138] sm:$0xff]
        %v500 = vld [vmem:[%s359 + $0x140] sm:$0xf]
        %v501 = vld [vmem:[%s359 + $0x144] sm:$0xff]
        %v502 = vld [vmem:[%s359 + $0x14c] sm:$0xf]
        %v503 = vld [vmem:[%s359 + $0x150] sm:$0xff]
        %v504 = vld [vmem:[%s359 + $0x158] sm:$0xf]
        %v505 = vld [vmem:[%s359 + $0x15c] sm:$0xff]
        %v506 = vld [vmem:[%s359 + $0x164] sm:$0xf]
        %v507 = vld [vmem:[%s359 + $0x168] sm:$0xff]
        %v508 = vld [vmem:[%s359 + $0x170] sm:$0xf]
        %v509 = vld [vmem:[%s359 + $0x174] sm:$0xff]
        %v510 = vld [vmem:[%s359 + $0x17c] sm:$0xf]
        %v511 = vld [vmem:[%s359 + $0x180] sm:$0xff]
        %v512 = vld [vmem:[%s359 + $0x188] sm:$0xf]
        %v513 = vld [vmem:[%s359 + $0x18c] sm:$0xff]
        %v514 = vld [vmem:[%s359 + $0x194] sm:$0xf]
        %v515 = vld [vmem:[%s359 + $0x198] sm:$0xff]
        %v516 = vld [vmem:[%s359 + $0x1a0] sm:$0xf]
        %v517 = vld [vmem:[%s359 + $0x1a4] sm:$0xff]
        %v518 = vld [vmem:[%s359 + $0x1ac] sm:$0xf]
        %v519 = vld [vmem:[%s359 + $0x1b0] sm:$0xff]
        %v520 = vld [vmem:[%s359 + $0x1b8] sm:$0xf]
        %v521 = vld [vmem:[%s359 + $0x1bc] sm:$0xff]
        %v522 = vld [vmem:[%s359 + $0x1c4] sm:$0xf]
        %v523 = vld [vmem:[%s359 + $0x1c8] sm:$0xff]
        %v524 = vld [vmem:[%s359 + $0x1d0] sm:$0xf]
        %v525 = vld [vmem:[%s359 + $0x1d4] sm:$0xff]
        %v526 = vld [vmem:[%s359 + $0x1dc] sm:$0xf]
        %v527 = vld [vmem:[%s359 + $0x1e0] sm:$0xff]
        %v528 = vld [vmem:[%s359 + $0x1e8] sm:$0xf]
        %v529 = vld [vmem:[%s359 + $0x1ec] sm:$0xff]
        %v530 = vld [vmem:[%s359 + $0x1f4] sm:$0xf]
        %v531 = vld [vmem:[%s359 + $0x1f8] sm:$0xff]
        %v532 = vld [vmem:[%s359 + $0x200] sm:$0xf]
        %v533 = vld [vmem:[%s359 + $0x204] sm:$0xff]
        %v534 = vld [vmem:[%s359 + $0x20c] sm:$0xf]
        %v535 = vld [vmem:[%s359 + $0x210] sm:$0xff]
        %v536 = vld [vmem:[%s359 + $0x218] sm:$0xf]
        %v537 = vld [vmem:[%s359 + $0x21c] sm:$0xff]
        %v538 = vld [vmem:[%s359 + $0x224] sm:$0xf]
        %v539 = vld [vmem:[%s359 + $0x228] sm:$0xff]
        %v540 = vld [vmem:[%s359 + $0x230] sm:$0xf]
        %v541 = vld [vmem:[%s359 + $0x234] sm:$0xff]
        %v542 = vld [vmem:[%s359 + $0x23c] sm:$0xf]
        %v543 = vld [vmem:[%s359 + $0x240] sm:$0xff]
        %v544 = vld [vmem:[%s359 + $0x248] sm:$0xf]
        %v545 = vld [vmem:[%s359 + $0x24c] sm:$0xff]
        %v546 = vld [vmem:[%s359 + $0x254] sm:$0xf]
        %v547 = vld [vmem:[%s359 + $0x258] sm:$0xff]
        %v548 = vld [vmem:[%s359 + $0x260] sm:$0xf]
        %v549 = vld [vmem:[%s359 + $0x264] sm:$0xff]
        %v550 = vld [vmem:[%s359 + $0x26c] sm:$0xf]
        %v551 = vld [vmem:[%s359 + $0x270] sm:$0xff]
        %v552 = vld [vmem:[%s359 + $0x278] sm:$0xf]
        %v553 = vld [vmem:[%s359 + $0x27c] sm:$0xff]
        %v554 = vld [vmem:[%s359 + $0x284] sm:$0xf]
        %v555 = vld [vmem:[%s359 + $0x288] sm:$0xff]
        %v556 = vld [vmem:[%s359 + $0x290] sm:$0xf]
        %v557 = vld [vmem:[%s359 + $0x294] sm:$0xff]
        %v558 = vld [vmem:[%s359 + $0x29c] sm:$0xf]
        %v559 = vld [vmem:[%s359 + $0x2a0] sm:$0xff]
        %v560 = vld [vmem:[%s359 + $0x2a8] sm:$0xf]
        %v561 = vld [vmem:[%s359 + $0x2ac] sm:$0xff]
        %v562 = vld [vmem:[%s359 + $0x2b4] sm:$0xf]
        %v563 = vld [vmem:[%s359 + $0x2b8] sm:$0xff]
        %v564 = vld [vmem:[%s359 + $0x2c0] sm:$0xf]
        %v565 = vld [vmem:[%s359 + $0x2c4] sm:$0xff]
        %v566 = vld [vmem:[%s359 + $0x2cc] sm:$0xf]
        %v567 = vld [vmem:[%s359 + $0x2d0] sm:$0xff]
        %v568 = vld [vmem:[%s359 + $0x2d8] sm:$0xf]
        %v569 = vld [vmem:[%s359 + $0x2dc] sm:$0xff]
        %v570 = vld [vmem:[%s359 + $0x2e4] sm:$0xf]
        %v571 = vld [vmem:[%s359 + $0x2e8] sm:$0xff]
        %v572 = vld [vmem:[%s359 + $0x2f0] sm:$0xf]
        %v573 = vld [vmem:[%s359 + $0x2f4] sm:$0xff]
        %v574 = vld [vmem:[%s359 + $0x2fc] sm:$0xf]
        %v575 = vld [vmem:[%s359 + $0x300] sm:$0xff]
        %v576 = vld [vmem:[%s359 + $0x308] sm:$0xf]
        %v577 = vld [vmem:[%s359 + $0x30c] sm:$0xff]
        %v578 = vld [vmem:[%s359 + $0x314] sm:$0xf]
        %v579 = vld [vmem:[%s359 + $0x318] sm:$0xff]
        %v580 = vld [vmem:[%s359 + $0x320] sm:$0xf]
        %v581 = vld [vmem:[%s359 + $0x324] sm:$0xff]
        %v582 = vld [vmem:[%s359 + $0x32c] sm:$0xf]
        %v583 = vld [vmem:[%s359 + $0x330] sm:$0xff]
        %v584 = vld [vmem:[%s359 + $0x338] sm:$0xf]
        %v585 = vld [vmem:[%s359 + $0x33c] sm:$0xff]
        %v586 = vld [vmem:[%s359 + $0x344] sm:$0xf]
        %v587 = vld [vmem:[%s359 + $0x348] sm:$0xff]
        %v588 = vld [vmem:[%s359 + $0x350] sm:$0xf]
        %v589 = vld [vmem:[%s359 + $0x354] sm:$0xff]
        %v590 = vld [vmem:[%s359 + $0x35c] sm:$0xf]
        %v591 = vld [vmem:[%s359 + $0x360] sm:$0xff]
        %v592 = vld [vmem:[%s359 + $0x368] sm:$0xf]
        %v593 = vld [vmem:[%s359 + $0x36c] sm:$0xff]
        %v594 = vld [vmem:[%s359 + $0x374] sm:$0xf]
        %v595 = vld [vmem:[%s359 + $0x378] sm:$0xff]
        %v596 = vld [vmem:[%s359 + $0x380] sm:$0xf]
        %v597 = vld [vmem:[%s359 + $0x384] sm:$0xff]
        %v598 = vld [vmem:[%s359 + $0x38c] sm:$0xf]
        %v599 = vld [vmem:[%s359 + $0x390] sm:$0xff]
        %v600 = vld [vmem:[%s359 + $0x398] sm:$0xf]
        %v601 = vld [vmem:[%s359 + $0x39c] sm:$0xff]
        %v602 = vld [vmem:[%s359 + $0x3a4] sm:$0xf]
        %v603 = vld [vmem:[%s359 + $0x3a8] sm:$0xff]
        %v604 = vld [vmem:[%s359 + $0x3b0] sm:$0xf]
        %v605 = vld [vmem:[%s359 + $0x3b4] sm:$0xff]
        %v606 = vld [vmem:[%s359 + $0x3bc] sm:$0xf]
        %v607 = vld [vmem:[%s359 + $0x3c0] sm:$0xff]
        %v608 = vld [vmem:[%s359 + $0x3c8] sm:$0xf]
        %v609 = vld [vmem:[%s359 + $0x3cc] sm:$0xff]
        %v610 = vld [vmem:[%s359 + $0x3d4] sm:$0xf]
        %v611 = vld [vmem:[%s359 + $0x3d8] sm:$0xff]
        %v612 = vld [vmem:[%s359 + $0x3e0] sm:$0xf]
        %v613 = vld [vmem:[%s359 + $0x3e4] sm:$0xff]
        %v614 = vld [vmem:[%s359 + $0x3ec] sm:$0xf]
        %v615 = vld [vmem:[%s359 + $0x3f0] sm:$0xff]
        %v616 = vld [vmem:[%s359 + $0x3f8] sm:$0xf]
        %v617 = vld [vmem:[%s359 + $0x3fc] sm:$0xff]
        %v618 = vld [vmem:[%s359 + $0x404] sm:$0xf]
        %v619 = vld [vmem:[%s359 + $0x408] sm:$0xff]
        %v620 = vld [vmem:[%s359 + $0x410] sm:$0xf]
        %v621 = vld [vmem:[%s359 + $0x414] sm:$0xff]
        %v622 = vld [vmem:[%s359 + $0x41c] sm:$0xf]
        %v623 = vld [vmem:[%s359 + $0x420] sm:$0xff]
        %v624 = vld [vmem:[%s359 + $0x428] sm:$0xf]
        %v625 = vld [vmem:[%s359 + $0x42c] sm:$0xff]
        %v626 = vld [vmem:[%s359 + $0x434] sm:$0xf]
        %v627 = vld [vmem:[%s359 + $0x438] sm:$0xff]
        %v628 = vld [vmem:[%s359 + $0x440] sm:$0xf]
        %v629 = vld [vmem:[%s359 + $0x444] sm:$0xff]
        %v630 = vld [vmem:[%s359 + $0x44c] sm:$0xf]
        %v631 = vld [vmem:[%s359 + $0x450] sm:$0xff]
        %v632 = vld [vmem:[%s359 + $0x458] sm:$0xf]
        %v633 = vld [vmem:[%s359 + $0x45c] sm:$0xff]
        %v634 = vld [vmem:[%s359 + $0x464] sm:$0xf]
        %v635 = vld [vmem:[%s359 + $0x468] sm:$0xff]
        %v636 = vld [vmem:[%s359 + $0x470] sm:$0xf]
        %v637 = vld [vmem:[%s359 + $0x474] sm:$0xff]
        %v638 = vld [vmem:[%s359 + $0x47c] sm:$0xf]
        %v639 = vld [vmem:[%s359 + $0x480] sm:$0xff]
        %v640 = vld [vmem:[%s359 + $0x488] sm:$0xf]
        %v641 = vld [vmem:[%s359 + $0x48c] sm:$0xff]
        %v642 = vld [vmem:[%s359 + $0x494] sm:$0xf]
        %v643 = vld [vmem:[%s359 + $0x498] sm:$0xff]
        %v644 = vld [vmem:[%s359 + $0x4a0] sm:$0xf]
        %v645 = vld [vmem:[%s359 + $0x4a4] sm:$0xff]
        %v646 = vld [vmem:[%s359 + $0x4ac] sm:$0xf]
        %v647 = vld [vmem:[%s359 + $0x4b0] sm:$0xff]
        %v648 = vld [vmem:[%s359 + $0x4b8] sm:$0xf]
        %v649 = vld [vmem:[%s359 + $0x4bc] sm:$0xff]
        %v650 = vld [vmem:[%s359 + $0x4c4] sm:$0xf]
        %v651 = vld [vmem:[%s359 + $0x4c8] sm:$0xff]
        %v652 = vld [vmem:[%s359 + $0x4d0] sm:$0xf]
        %v653 = vld [vmem:[%s359 + $0x4d4] sm:$0xff]
        %v654 = vld [vmem:[%s359 + $0x4dc] sm:$0xf]
        %v655 = vld [vmem:[%s359 + $0x4e0] sm:$0xff]
        %v656 = vld [vmem:[%s359 + $0x4e8] sm:$0xf]
        %v657 = vld [vmem:[%s359 + $0x4ec] sm:$0xff]
        %v658 = vld [vmem:[%s359 + $0x4f4] sm:$0xf]
        %v659 = vld [vmem:[%s359 + $0x4f8] sm:$0xff]
        %v660 = vld [vmem:[%s359 + $0x500] sm:$0xf]
        %v661 = vld [vmem:[%s359 + $0x504] sm:$0xff]
        %v662 = vld [vmem:[%s359 + $0x50c] sm:$0xf]
        %v663 = vld [vmem:[%s359 + $0x510] sm:$0xff]
        %v664 = vld [vmem:[%s359 + $0x518] sm:$0xf]
        %v665 = vld [vmem:[%s359 + $0x51c] sm:$0xff]
        %v666 = vld [vmem:[%s359 + $0x524] sm:$0xf]
        %v667 = vld [vmem:[%s359 + $0x528] sm:$0xff]
        %v668 = vld [vmem:[%s359 + $0x530] sm:$0xf]
        %v669 = vld [vmem:[%s359 + $0x534] sm:$0xff]
        %v670 = vld [vmem:[%s359 + $0x53c] sm:$0xf]
        %v671 = vld [vmem:[%s359 + $0x540] sm:$0xff]
        %v672 = vld [vmem:[%s359 + $0x548] sm:$0xf]
        %v673 = vld [vmem:[%s359 + $0x54c] sm:$0xff]
        %v674 = vld [vmem:[%s359 + $0x554] sm:$0xf]
        %v675 = vld [vmem:[%s359 + $0x558] sm:$0xff]
        %v676 = vld [vmem:[%s359 + $0x560] sm:$0xf]
        %v677 = vld [vmem:[%s359 + $0x564] sm:$0xff]
        %v678 = vld [vmem:[%s359 + $0x56c] sm:$0xf]
        %v679 = vld [vmem:[%s359 + $0x570] sm:$0xff]
        %v680 = vld [vmem:[%s359 + $0x578] sm:$0xf]
        %v681 = vld [vmem:[%s359 + $0x57c] sm:$0xff]
        %v682 = vld [vmem:[%s359 + $0x584] sm:$0xf]
        %v683 = vld [vmem:[%s359 + $0x588] sm:$0xff]
        %v684 = vld [vmem:[%s359 + $0x590] sm:$0xf]
        %v685 = vld [vmem:[%s359 + $0x594] sm:$0xff]
        %v686 = vld [vmem:[%s359 + $0x59c] sm:$0xf]
        %v687 = vld [vmem:[%s359 + $0x5a0] sm:$0xff]
        %v688 = vld [vmem:[%s359 + $0x5a8] sm:$0xf]
        %v689 = vld [vmem:[%s359 + $0x5ac] sm:$0xff]
        %v690 = vld [vmem:[%s359 + $0x5b4] sm:$0xf]
        %v691 = vld [vmem:[%s359 + $0x5b8] sm:$0xff]
        %v692 = vld [vmem:[%s359 + $0x5c0] sm:$0xf]
        %v693 = vld [vmem:[%s359 + $0x5c4] sm:$0xff]
        %v694 = vld [vmem:[%s359 + $0x5cc] sm:$0xf]
        %v695 = vld [vmem:[%s359 + $0x5d0] sm:$0xff]
        %v696 = vld [vmem:[%s359 + $0x5d8] sm:$0xf]
        %v697 = vld [vmem:[%s359 + $0x5dc] sm:$0xff]
        %v698 = vld [vmem:[%s359 + $0x5e4] sm:$0xf]
        %v699 = vld [vmem:[%s359 + $0x5e8] sm:$0xff]
        %v700 = vld [vmem:[%s359 + $0x5f0] sm:$0xf]
        %v701 = vld [vmem:[%s359 + $0x5f4] sm:$0xff]
        %v702 = vld [vmem:[%s359 + $0x5fc] sm:$0xf]
        %v711 = vunpack.c.l.b16 %v439
        %v712 = vunpack.c.h.b16 %v439
        %v713 = vunpack.c.l.b16 %v440
        %v714 = vunpack.c.h.b16 %v440
        %v715 = vunpack.c.l.b16 %v441
        %v716 = vunpack.c.h.b16 %v441
        %v717 = vunpack.c.l.b16 %v442
        %v718 = vunpack.c.h.b16 %v442
        %v719 = vunpack.c.l.b16 %v443
        %v720 = vunpack.c.h.b16 %v443
        %v721 = vunpack.c.l.b16 %v444
        %v722 = vunpack.c.h.b16 %v444
        %v723 = vunpack.c.l.b16 %v445
        %v724 = vunpack.c.h.b16 %v445
        %v725 = vunpack.c.l.b16 %v446
        %v726 = vunpack.c.h.b16 %v446
        %v727 = vpack.c.b16 %v719, %v711
        %v728 = vpack.c.b16 %v720, %v712
        %v729 = vpack.c.b16 %v721, %v713
        %v730 = vpack.c.b16 %v722, %v714
        %v731 = vpack.c.b16 %v723, %v715
        %v732 = vpack.c.b16 %v724, %v716
        %v733 = vpack.c.b16 %v725, %v717
        %v734 = vpack.c.b16 %v726, %v718
        %v999 = vunpack.c.l.b16 %v447
        %v1000 = vunpack.c.h.b16 %v447
        %v1001 = vunpack.c.l.b16 %v448
        %v1002 = vunpack.c.l.b16 %v449
        %v1003 = vunpack.c.h.b16 %v449
        %v1004 = vunpack.c.l.b16 %v450
        %v1005 = vunpack.c.l.b16 %v451
        %v1006 = vunpack.c.h.b16 %v451
        %v1007 = vunpack.c.l.b16 %v452
        %v1008 = vunpack.c.l.b16 %v453
        %v1009 = vunpack.c.h.b16 %v453
        %v1010 = vunpack.c.l.b16 %v454
        %v1011 = vunpack.c.l.b16 %v455
        %v1012 = vunpack.c.h.b16 %v455
        %v1013 = vunpack.c.l.b16 %v456
        %v1014 = vunpack.c.l.b16 %v457
        %v1015 = vunpack.c.h.b16 %v457
        %v1016 = vunpack.c.l.b16 %v458
        %v1017 = vunpack.c.l.b16 %v459
        %v1018 = vunpack.c.h.b16 %v459
        %v1019 = vunpack.c.l.b16 %v460
        %v1020 = vunpack.c.l.b16 %v461
        %v1021 = vunpack.c.h.b16 %v461
        %v1022 = vunpack.c.l.b16 %v462
        %v1023 = vunpack.c.l.b16 %v463
        %v1024 = vunpack.c.h.b16 %v463
        %v1025 = vunpack.c.l.b16 %v464
        %v1026 = vunpack.c.l.b16 %v465
        %v1027 = vunpack.c.h.b16 %v465
        %v1028 = vunpack.c.l.b16 %v466
        %v1029 = vunpack.c.l.b16 %v467
        %v1030 = vunpack.c.h.b16 %v467
        %v1031 = vunpack.c.l.b16 %v468
        %v1032 = vunpack.c.l.b16 %v469
        %v1033 = vunpack.c.h.b16 %v469
        %v1034 = vunpack.c.l.b16 %v470
        %v1035 = vunpack.c.l.b16 %v471
        %v1036 = vunpack.c.h.b16 %v471
        %v1037 = vunpack.c.l.b16 %v472
        %v1038 = vunpack.c.l.b16 %v473
        %v1039 = vunpack.c.h.b16 %v473
        %v1040 = vunpack.c.l.b16 %v474
        %v1041 = vunpack.c.l.b16 %v475
        %v1042 = vunpack.c.h.b16 %v475
        %v1043 = vunpack.c.l.b16 %v476
        %v1044 = vunpack.c.l.b16 %v477
        %v1045 = vunpack.c.h.b16 %v477
        %v1046 = vunpack.c.l.b16 %v478
        %v1047 = vunpack.c.l.b16 %v479
        %v1048 = vunpack.c.h.b16 %v479
        %v1049 = vunpack.c.l.b16 %v480
        %v1050 = vunpack.c.l.b16 %v481
        %v1051 = vunpack.c.h.b16 %v481
        %v1052 = vunpack.c.l.b16 %v482
        %v1053 = vunpack.c.l.b16 %v483
        %v1054 = vunpack.c.h.b16 %v483
        %v1055 = vunpack.c.l.b16 %v484
        %v1056 = vunpack.c.l.b16 %v485
        %v1057 = vunpack.c.h.b16 %v485
        %v1058 = vunpack.c.l.b16 %v486
        %v1059 = vunpack.c.l.b16 %v487
        %v1060 = vunpack.c.h.b16 %v487
        %v1061 = vunpack.c.l.b16 %v488
        %v1062 = vunpack.c.l.b16 %v489
        %v1063 = vunpack.c.h.b16 %v489
        %v1064 = vunpack.c.l.b16 %v490
        %v1065 = vunpack.c.l.b16 %v491
        %v1066 = vunpack.c.h.b16 %v491
        %v1067 = vunpack.c.l.b16 %v492
        %v1068 = vunpack.c.l.b16 %v493
        %v1069 = vunpack.c.h.b16 %v493
        %v1070 = vunpack.c.l.b16 %v494
        %v1071 = vunpack.c.l.b16 %v495
        %v1072 = vunpack.c.h.b16 %v495
        %v1073 = vunpack.c.l.b16 %v496
        %v1074 = vunpack.c.l.b16 %v497
        %v1075 = vunpack.c.h.b16 %v497
        %v1076 = vunpack.c.l.b16 %v498
        %v1077 = vunpack.c.l.b16 %v499
        %v1078 = vunpack.c.h.b16 %v499
        %v1079 = vunpack.c.l.b16 %v500
        %v1080 = vunpack.c.l.b16 %v501
        %v1081 = vunpack.c.h.b16 %v501
        %v1082 = vunpack.c.l.b16 %v502
        %v1083 = vunpack.c.l.b16 %v503
        %v1084 = vunpack.c.h.b16 %v503
        %v1085 = vunpack.c.l.b16 %v504
        %v1086 = vunpack.c.l.b16 %v505
        %v1087 = vunpack.c.h.b16 %v505
        %v1088 = vunpack.c.l.b16 %v506
        %v1089 = vunpack.c.l.b16 %v507
        %v1090 = vunpack.c.h.b16 %v507
        %v1091 = vunpack.c.l.b16 %v508
        %v1092 = vunpack.c.l.b16 %v509
        %v1093 = vunpack.c.h.b16 %v509
        %v1094 = vunpack.c.l.b16 %v510
        %v1095 = vunpack.c.l.b16 %v511
        %v1096 = vunpack.c.h.b16 %v511
        %v1097 = vunpack.c.l.b16 %v512
        %v1098 = vunpack.c.l.b16 %v513
        %v1099 = vunpack.c.h.b16 %v513
        %v1100 = vunpack.c.l.b16 %v514
        %v1101 = vunpack.c.l.b16 %v515
        %v1102 = vunpack.c.h.b16 %v515
        %v1103 = vunpack.c.l.b16 %v516
        %v1104 = vunpack.c.l.b16 %v517
        %v1105 = vunpack.c.h.b16 %v517
        %v1106 = vunpack.c.l.b16 %v518
        %v1107 = vunpack.c.l.b16 %v519
        %v1108 = vunpack.c.h.b16 %v519
        %v1109 = vunpack.c.l.b16 %v520
        %v1110 = vunpack.c.l.b16 %v521
        %v1111 = vunpack.c.h.b16 %v521
        %v1112 = vunpack.c.l.b16 %v522
        %v1113 = vunpack.c.l.b16 %v523
        %v1114 = vunpack.c.h.b16 %v523
        %v1115 = vunpack.c.l.b16 %v524
        %v1116 = vunpack.c.l.b16 %v525
        %v1117 = vunpack.c.h.b16 %v525
        %v1118 = vunpack.c.l.b16 %v526
        %v1119 = vunpack.c.l.b16 %v527
        %v1120 = vunpack.c.h.b16 %v527
        %v1121 = vunpack.c.l.b16 %v528
        %v1122 = vunpack.c.l.b16 %v529
        %v1123 = vunpack.c.h.b16 %v529
        %v1124 = vunpack.c.l.b16 %v530
        %v1125 = vunpack.c.l.b16 %v531
        %v1126 = vunpack.c.h.b16 %v531
        %v1127 = vunpack.c.l.b16 %v532
        %v1128 = vunpack.c.l.b16 %v533
        %v1129 = vunpack.c.h.b16 %v533
        %v1130 = vunpack.c.l.b16 %v534
        %v1131 = vunpack.c.l.b16 %v535
        %v1132 = vunpack.c.h.b16 %v535
        %v1133 = vunpack.c.l.b16 %v536
        %v1134 = vunpack.c.l.b16 %v537
        %v1135 = vunpack.c.h.b16 %v537
        %v1136 = vunpack.c.l.b16 %v538
        %v1137 = vunpack.c.l.b16 %v539
        %v1138 = vunpack.c.h.b16 %v539
        %v1139 = vunpack.c.l.b16 %v540
        %v1140 = vunpack.c.l.b16 %v541
        %v1141 = vunpack.c.h.b16 %v541
        %v1142 = vunpack.c.l.b16 %v542
        %v1143 = vunpack.c.l.b16 %v543
        %v1144 = vunpack.c.h.b16 %v543
        %v1145 = vunpack.c.l.b16 %v544
        %v1146 = vunpack.c.l.b16 %v545
        %v1147 = vunpack.c.h.b16 %v545
        %v1148 = vunpack.c.l.b16 %v546
        %v1149 = vunpack.c.l.b16 %v547
        %v1150 = vunpack.c.h.b16 %v547
        %v1151 = vunpack.c.l.b16 %v548
        %v1152 = vunpack.c.l.b16 %v549
        %v1153 = vunpack.c.h.b16 %v549
        %v1154 = vunpack.c.l.b16 %v550
        %v1155 = vunpack.c.l.b16 %v551
        %v1156 = vunpack.c.h.b16 %v551
        %v1157 = vunpack.c.l.b16 %v552
        %v1158 = vunpack.c.l.b16 %v553
        %v1159 = vunpack.c.h.b16 %v553
        %v1160 = vunpack.c.l.b16 %v554
        %v1161 = vunpack.c.l.b16 %v555
        %v1162 = vunpack.c.h.b16 %v555
        %v1163 = vunpack.c.l.b16 %v556
        %v1164 = vunpack.c.l.b16 %v557
        %v1165 = vunpack.c.h.b16 %v557
        %v1166 = vunpack.c.l.b16 %v558
        %v1167 = vunpack.c.l.b16 %v559
        %v1168 = vunpack.c.h.b16 %v559
        %v1169 = vunpack.c.l.b16 %v560
        %v1170 = vunpack.c.l.b16 %v561
        %v1171 = vunpack.c.h.b16 %v561
        %v1172 = vunpack.c.l.b16 %v562
        %v1173 = vunpack.c.l.b16 %v563
        %v1174 = vunpack.c.h.b16 %v563
        %v1175 = vunpack.c.l.b16 %v564
        %v1176 = vunpack.c.l.b16 %v565
        %v1177 = vunpack.c.h.b16 %v565
        %v1178 = vunpack.c.l.b16 %v566
        %v1179 = vunpack.c.l.b16 %v567
        %v1180 = vunpack.c.h.b16 %v567
        %v1181 = vunpack.c.l.b16 %v568
        %v1182 = vunpack.c.l.b16 %v569
        %v1183 = vunpack.c.h.b16 %v569
        %v1184 = vunpack.c.l.b16 %v570
        %v1185 = vunpack.c.l.b16 %v571
        %v1186 = vunpack.c.h.b16 %v571
        %v1187 = vunpack.c.l.b16 %v572
        %v1188 = vunpack.c.l.b16 %v573
        %v1189 = vunpack.c.h.b16 %v573
        %v1190 = vunpack.c.l.b16 %v574
        %v1191 = vunpack.c.l.b16 %v575
        %v1192 = vunpack.c.h.b16 %v575
        %v1193 = vunpack.c.l.b16 %v576
        %v1194 = vunpack.c.l.b16 %v577
        %v1195 = vunpack.c.h.b16 %v577
        %v1196 = vunpack.c.l.b16 %v578
        %v1197 = vunpack.c.l.b16 %v579
        %v1198 = vunpack.c.h.b16 %v579
        %v1199 = vunpack.c.l.b16 %v580
        %v1200 = vunpack.c.l.b16 %v581
        %v1201 = vunpack.c.h.b16 %v581
        %v1202 = vunpack.c.l.b16 %v582
        %v1203 = vunpack.c.l.b16 %v583
        %v1204 = vunpack.c.h.b16 %v583
        %v1205 = vunpack.c.l.b16 %v584
        %v1206 = vunpack.c.l.b16 %v585
        %v1207 = vunpack.c.h.b16 %v585
        %v1208 = vunpack.c.l.b16 %v586
        %v1209 = vunpack.c.l.b16 %v587
        %v1210 = vunpack.c.h.b16 %v587
        %v1211 = vunpack.c.l.b16 %v588
        %v1212 = vunpack.c.l.b16 %v589
        %v1213 = vunpack.c.h.b16 %v589
        %v1214 = vunpack.c.l.b16 %v590
        %v1215 = vunpack.c.l.b16 %v591
        %v1216 = vunpack.c.h.b16 %v591
        %v1217 = vunpack.c.l.b16 %v592
        %v1218 = vunpack.c.l.b16 %v593
        %v1219 = vunpack.c.h.b16 %v593
        %v1220 = vunpack.c.l.b16 %v594
        %v1221 = vunpack.c.l.b16 %v595
        %v1222 = vunpack.c.h.b16 %v595
        %v1223 = vunpack.c.l.b16 %v596
        %v1224 = vunpack.c.l.b16 %v597
        %v1225 = vunpack.c.h.b16 %v597
        %v1226 = vunpack.c.l.b16 %v598
        %v1227 = vunpack.c.l.b16 %v599
        %v1228 = vunpack.c.h.b16 %v599
        %v1229 = vunpack.c.l.b16 %v600
        %v1230 = vunpack.c.l.b16 %v601
        %v1231 = vunpack.c.h.b16 %v601
        %v1232 = vunpack.c.l.b16 %v602
        %v1233 = vunpack.c.l.b16 %v603
        %v1234 = vunpack.c.h.b16 %v603
        %v1235 = vunpack.c.l.b16 %v604
        %v1236 = vunpack.c.l.b16 %v605
        %v1237 = vunpack.c.h.b16 %v605
        %v1238 = vunpack.c.l.b16 %v606
        %v1239 = vunpack.c.l.b16 %v607
        %v1240 = vunpack.c.h.b16 %v607
        %v1241 = vunpack.c.l.b16 %v608
        %v1242 = vunpack.c.l.b16 %v609
        %v1243 = vunpack.c.h.b16 %v609
        %v1244 = vunpack.c.l.b16 %v610
        %v1245 = vunpack.c.l.b16 %v611
        %v1246 = vunpack.c.h.b16 %v611
        %v1247 = vunpack.c.l.b16 %v612
        %v1248 = vunpack.c.l.b16 %v613
        %v1249 = vunpack.c.h.b16 %v613
        %v1250 = vunpack.c.l.b16 %v614
        %v1251 = vunpack.c.l.b16 %v615
        %v1252 = vunpack.c.h.b16 %v615
        %v1253 = vunpack.c.l.b16 %v616
        %v1254 = vunpack.c.l.b16 %v617
        %v1255 = vunpack.c.h.b16 %v617
        %v1256 = vunpack.c.l.b16 %v618
        %v1257 = vunpack.c.l.b16 %v619
        %v1258 = vunpack.c.h.b16 %v619
        %v1259 = vunpack.c.l.b16 %v620
        %v1260 = vunpack.c.l.b16 %v621
        %v1261 = vunpack.c.h.b16 %v621
        %v1262 = vunpack.c.l.b16 %v622
        %v1263 = vunpack.c.l.b16 %v623
        %v1264 = vunpack.c.h.b16 %v623
        %v1265 = vunpack.c.l.b16 %v624
        %v1266 = vunpack.c.l.b16 %v625
        %v1267 = vunpack.c.h.b16 %v625
        %v1268 = vunpack.c.l.b16 %v626
        %v1269 = vunpack.c.l.b16 %v627
        %v1270 = vunpack.c.h.b16 %v627
        %v1271 = vunpack.c.l.b16 %v628
        %v1272 = vunpack.c.l.b16 %v629
        %v1273 = vunpack.c.h.b16 %v629
        %v1274 = vunpack.c.l.b16 %v630
        %v1275 = vunpack.c.l.b16 %v631
        %v1276 = vunpack.c.h.b16 %v631
        %v1277 = vunpack.c.l.b16 %v632
        %v1278 = vunpack.c.l.b16 %v633
        %v1279 = vunpack.c.h.b16 %v633
        %v1280 = vunpack.c.l.b16 %v634
        %v1281 = vunpack.c.l.b16 %v635
        %v1282 = vunpack.c.h.b16 %v635
        %v1283 = vunpack.c.l.b16 %v636
        %v1284 = vunpack.c.l.b16 %v637
        %v1285 = vunpack.c.h.b16 %v637
        %v1286 = vunpack.c.l.b16 %v638
        %v1287 = vunpack.c.l.b16 %v639
        %v1288 = vunpack.c.h.b16 %v639
        %v1289 = vunpack.c.l.b16 %v640
        %v1290 = vunpack.c.l.b16 %v641
        %v1291 = vunpack.c.h.b16 %v641
        %v1292 = vunpack.c.l.b16 %v642
        %v1293 = vunpack.c.l.b16 %v643
        %v1294 = vunpack.c.h.b16 %v643
        %v1295 = vunpack.c.l.b16 %v644
        %v1296 = vunpack.c.l.b16 %v645
        %v1297 = vunpack.c.h.b16 %v645
        %v1298 = vunpack.c.l.b16 %v646
        %v1299 = vunpack.c.l.b16 %v647
        %v1300 = vunpack.c.h.b16 %v647
        %v1301 = vunpack.c.l.b16 %v648
        %v1302 = vunpack.c.l.b16 %v649
        %v1303 = vunpack.c.h.b16 %v649
        %v1304 = vunpack.c.l.b16 %v650
        %v1305 = vunpack.c.l.b16 %v651
        %v1306 = vunpack.c.h.b16 %v651
        %v1307 = vunpack.c.l.b16 %v652
        %v1308 = vunpack.c.l.b16 %v653
        %v1309 = vunpack.c.h.b16 %v653
        %v1310 = vunpack.c.l.b16 %v654
        %v1311 = vunpack.c.l.b16 %v655
        %v1312 = vunpack.c.h.b16 %v655
        %v1313 = vunpack.c.l.b16 %v656
        %v1314 = vunpack.c.l.b16 %v657
        %v1315 = vunpack.c.h.b16 %v657
        %v1316 = vunpack.c.l.b16 %v658
        %v1317 = vunpack.c.l.b16 %v659
        %v1318 = vunpack.c.h.b16 %v659
        %v1319 = vunpack.c.l.b16 %v660
        %v1320 = vunpack.c.l.b16 %v661
        %v1321 = vunpack.c.h.b16 %v661
        %v1322 = vunpack.c.l.b16 %v662
        %v1323 = vunpack.c.l.b16 %v663
        %v1324 = vunpack.c.h.b16 %v663
        %v1325 = vunpack.c.l.b16 %v664
        %v1326 = vunpack.c.l.b16 %v665
        %v1327 = vunpack.c.h.b16 %v665
        %v1328 = vunpack.c.l.b16 %v666
        %v1329 = vunpack.c.l.b16 %v667
        %v1330 = vunpack.c.h.b16 %v667
        %v1331 = vunpack.c.l.b16 %v668
        %v1332 = vunpack.c.l.b16 %v669
        %v1333 = vunpack.c.h.b16 %v669
        %v1334 = vunpack.c.l.b16 %v670
        %v1335 = vunpack.c.l.b16 %v671
        %v1336 = vunpack.c.h.b16 %v671
        %v1337 = vunpack.c.l.b16 %v672
        %v1338 = vunpack.c.l.b16 %v673
        %v1339 = vunpack.c.h.b16 %v673
        %v1340 = vunpack.c.l.b16 %v674
        %v1341 = vunpack.c.l.b16 %v675
        %v1342 = vunpack.c.h.b16 %v675
        %v1343 = vunpack.c.l.b16 %v676
        %v1344 = vunpack.c.l.b16 %v677
        %v1345 = vunpack.c.h.b16 %v677
        %v1346 = vunpack.c.l.b16 %v678
        %v1347 = vunpack.c.l.b16 %v679
        %v1348 = vunpack.c.h.b16 %v679
        %v1349 = vunpack.c.l.b16 %v680
        %v1350 = vunpack.c.l.b16 %v681
        %v1351 = vunpack.c.h.b16 %v681
        %v1352 = vunpack.c.l.b16 %v682
        %v1353 = vunpack.c.l.b16 %v683
        %v1354 = vunpack.c.h.b16 %v683
        %v1355 = vunpack.c.l.b16 %v684
        %v1356 = vunpack.c.l.b16 %v685
        %v1357 = vunpack.c.h.b16 %v685
        %v1358 = vunpack.c.l.b16 %v686
        %v1359 = vunpack.c.l.b16 %v687
        %v1360 = vunpack.c.h.b16 %v687
        %v1361 = vunpack.c.l.b16 %v688
        %v1362 = vunpack.c.l.b16 %v689
        %v1363 = vunpack.c.h.b16 %v689
        %v1364 = vunpack.c.l.b16 %v690
        %v1365 = vunpack.c.l.b16 %v691
        %v1366 = vunpack.c.h.b16 %v691
        %v1367 = vunpack.c.l.b16 %v692
        %v1368 = vunpack.c.l.b16 %v693
        %v1369 = vunpack.c.h.b16 %v693
        %v1370 = vunpack.c.l.b16 %v694
        %v1371 = vunpack.c.l.b16 %v695
        %v1372 = vunpack.c.h.b16 %v695
        %v1373 = vunpack.c.l.b16 %v696
        %v1374 = vunpack.c.l.b16 %v697
        %v1375 = vunpack.c.h.b16 %v697
        %v1376 = vunpack.c.l.b16 %v698
        %v1377 = vunpack.c.l.b16 %v699
        %v1378 = vunpack.c.h.b16 %v699
        %v1379 = vunpack.c.l.b16 %v700
        %v1380 = vunpack.c.l.b16 %v701
        %v1381 = vunpack.c.h.b16 %v701
        %v1382 = vunpack.c.l.b16 %v702
        %v1383 = vpack.c.b16 %v1002, %v999
        %v1384 = vpack.c.b16 %v1003, %v1000
        %v1385 = vpack.c.b16 %v1004, %v1001
        %v1386 = vpack.c.b16 %v1008, %v1005
        %v1387 = vpack.c.b16 %v1009, %v1006
        %v1388 = vpack.c.b16 %v1010, %v1007
        %v1389 = vpack.c.b16 %v1014, %v1011
        %v1390 = vpack.c.b16 %v1015, %v1012
        %v1391 = vpack.c.b16 %v1016, %v1013
        %v1392 = vpack.c.b16 %v1020, %v1017
        %v1393 = vpack.c.b16 %v1021, %v1018
        %v1394 = vpack.c.b16 %v1022, %v1019
        %v1395 = vpack.c.b16 %v1026, %v1023
        %v1396 = vpack.c.b16 %v1027, %v1024
        %v1397 = vpack.c.b16 %v1028, %v1025
        %v1398 = vpack.c.b16 %v1032, %v1029
        %v1399 = vpack.c.b16 %v1033, %v1030
        %v1400 = vpack.c.b16 %v1034, %v1031
        %v1401 = vpack.c.b16 %v1038, %v1035
        %v1402 = vpack.c.b16 %v1039, %v1036
        %v1403 = vpack.c.b16 %v1040, %v1037
        %v1404 = vpack.c.b16 %v1044, %v1041
        %v1405 = vpack.c.b16 %v1045, %v1042
        %v1406 = vpack.c.b16 %v1046, %v1043
        %v1407 = vpack.c.b16 %v1050, %v1047
        %v1408 = vpack.c.b16 %v1051, %v1048
        %v1409 = vpack.c.b16 %v1052, %v1049
        %v1410 = vpack.c.b16 %v1056, %v1053
        %v1411 = vpack.c.b16 %v1057, %v1054
        %v1412 = vpack.c.b16 %v1058, %v1055
        %v1413 = vpack.c.b16 %v1062, %v1059
        %v1414 = vpack.c.b16 %v1063, %v1060
        %v1415 = vpack.c.b16 %v1064, %v1061
        %v1416 = vpack.c.b16 %v1068, %v1065
        %v1417 = vpack.c.b16 %v1069, %v1066
        %v1418 = vpack.c.b16 %v1070, %v1067
        %v1419 = vpack.c.b16 %v1074, %v1071
        %v1420 = vpack.c.b16 %v1075, %v1072
        %v1421 = vpack.c.b16 %v1076, %v1073
        %v1422 = vpack.c.b16 %v1080, %v1077
        %v1423 = vpack.c.b16 %v1081, %v1078
        %v1424 = vpack.c.b16 %v1082, %v1079
        %v1425 = vpack.c.b16 %v1086, %v1083
        %v1426 = vpack.c.b16 %v1087, %v1084
        %v1427 = vpack.c.b16 %v1088, %v1085
        %v1428 = vpack.c.b16 %v1092, %v1089
        %v1429 = vpack.c.b16 %v1093, %v1090
        %v1430 = vpack.c.b16 %v1094, %v1091
        %v1431 = vpack.c.b16 %v1098, %v1095
        %v1432 = vpack.c.b16 %v1099, %v1096
        %v1433 = vpack.c.b16 %v1100, %v1097
        %v1434 = vpack.c.b16 %v1104, %v1101
        %v1435 = vpack.c.b16 %v1105, %v1102
        %v1436 = vpack.c.b16 %v1106, %v1103
        %v1437 = vpack.c.b16 %v1110, %v1107
        %v1438 = vpack.c.b16 %v1111, %v1108
        %v1439 = vpack.c.b16 %v1112, %v1109
        %v1440 = vpack.c.b16 %v1116, %v1113
        %v1441 = vpack.c.b16 %v1117, %v1114
        %v1442 = vpack.c.b16 %v1118, %v1115
        %v1443 = vpack.c.b16 %v1122, %v1119
        %v1444 = vpack.c.b16 %v1123, %v1120
        %v1445 = vpack.c.b16 %v1124, %v1121
        %v1446 = vpack.c.b16 %v1128, %v1125
        %v1447 = vpack.c.b16 %v1129, %v1126
        %v1448 = vpack.c.b16 %v1130, %v1127
        %v1449 = vpack.c.b16 %v1134, %v1131
        %v1450 = vpack.c.b16 %v1135, %v1132
        %v1451 = vpack.c.b16 %v1136, %v1133
        %v1452 = vpack.c.b16 %v1140, %v1137
        %v1453 = vpack.c.b16 %v1141, %v1138
        %v1454 = vpack.c.b16 %v1142, %v1139
        %v1455 = vpack.c.b16 %v1146, %v1143
        %v1456 = vpack.c.b16 %v1147, %v1144
        %v1457 = vpack.c.b16 %v1148, %v1145
        %v1458 = vpack.c.b16 %v1152, %v1149
        %v1459 = vpack.c.b16 %v1153, %v1150
        %v1460 = vpack.c.b16 %v1154, %v1151
        %v1461 = vpack.c.b16 %v1158, %v1155
        %v1462 = vpack.c.b16 %v1159, %v1156
        %v1463 = vpack.c.b16 %v1160, %v1157
        %v1464 = vpack.c.b16 %v1164, %v1161
        %v1465 = vpack.c.b16 %v1165, %v1162
        %v1466 = vpack.c.b16 %v1166, %v1163
        %v1467 = vpack.c.b16 %v1170, %v1167
        %v1468 = vpack.c.b16 %v1171, %v1168
        %v1469 = vpack.c.b16 %v1172, %v1169
        %v1470 = vpack.c.b16 %v1176, %v1173
        %v1471 = vpack.c.b16 %v1177, %v1174
        %v1472 = vpack.c.b16 %v1178, %v1175
        %v1473 = vpack.c.b16 %v1182, %v1179
        %v1474 = vpack.c.b16 %v1183, %v1180
        %v1475 = vpack.c.b16 %v1184, %v1181
        %v1476 = vpack.c.b16 %v1188, %v1185
        %v1477 = vpack.c.b16 %v1189, %v1186
        %v1478 = vpack.c.b16 %v1190, %v1187
        %v1479 = vpack.c.b16 %v1194, %v1191
        %v1480 = vpack.c.b16 %v1195, %v1192
        %v1481 = vpack.c.b16 %v1196, %v1193
        %v1482 = vpack.c.b16 %v1200, %v1197
        %v1483 = vpack.c.b16 %v1201, %v1198
        %v1484 = vpack.c.b16 %v1202, %v1199
        %v1485 = vpack.c.b16 %v1206, %v1203
        %v1486 = vpack.c.b16 %v1207, %v1204
        %v1487 = vpack.c.b16 %v1208, %v1205
        %v1488 = vpack.c.b16 %v1212, %v1209
        %v1489 = vpack.c.b16 %v1213, %v1210
        %v1490 = vpack.c.b16 %v1214, %v1211
        %v1491 = vpack.c.b16 %v1218, %v1215
        %v1492 = vpack.c.b16 %v1219, %v1216
        %v1493 = vpack.c.b16 %v1220, %v1217
        %v1494 = vpack.c.b16 %v1224, %v1221
        %v1495 = vpack.c.b16 %v1225, %v1222
        %v1496 = vpack.c.b16 %v1226, %v1223
        %v1497 = vpack.c.b16 %v1230, %v1227
        %v1498 = vpack.c.b16 %v1231, %v1228
        %v1499 = vpack.c.b16 %v1232, %v1229
        %v1500 = vpack.c.b16 %v1236, %v1233
        %v1501 = vpack.c.b16 %v1237, %v1234
        %v1502 = vpack.c.b16 %v1238, %v1235
        %v1503 = vpack.c.b16 %v1242, %v1239
        %v1504 = vpack.c.b16 %v1243, %v1240
        %v1505 = vpack.c.b16 %v1244, %v1241
        %v1506 = vpack.c.b16 %v1248, %v1245
        %v1507 = vpack.c.b16 %v1249, %v1246
        %v1508 = vpack.c.b16 %v1250, %v1247
        %v1509 = vpack.c.b16 %v1254, %v1251
        %v1510 = vpack.c.b16 %v1255, %v1252
        %v1511 = vpack.c.b16 %v1256, %v1253
        %v1512 = vpack.c.b16 %v1260, %v1257
        %v1513 = vpack.c.b16 %v1261, %v1258
        %v1514 = vpack.c.b16 %v1262, %v1259
        %v1515 = vpack.c.b16 %v1266, %v1263
        %v1516 = vpack.c.b16 %v1267, %v1264
        %v1517 = vpack.c.b16 %v1268, %v1265
        %v1518 = vpack.c.b16 %v1272, %v1269
        %v1519 = vpack.c.b16 %v1273, %v1270
        %v1520 = vpack.c.b16 %v1274, %v1271
        %v1521 = vpack.c.b16 %v1278, %v1275
        %v1522 = vpack.c.b16 %v1279, %v1276
        %v1523 = vpack.c.b16 %v1280, %v1277
        %v1524 = vpack.c.b16 %v1284, %v1281
        %v1525 = vpack.c.b16 %v1285, %v1282
        %v1526 = vpack.c.b16 %v1286, %v1283
        %v1527 = vpack.c.b16 %v1290, %v1287
        %v1528 = vpack.c.b16 %v1291, %v1288
        %v1529 = vpack.c.b16 %v1292, %v1289
        %v1530 = vpack.c.b16 %v1296, %v1293
        %v1531 = vpack.c.b16 %v1297, %v1294
        %v1532 = vpack.c.b16 %v1298, %v1295
        %v1533 = vpack.c.b16 %v1302, %v1299
        %v1534 = vpack.c.b16 %v1303, %v1300
        %v1535 = vpack.c.b16 %v1304, %v1301
        %v1536 = vpack.c.b16 %v1308, %v1305
        %v1537 = vpack.c.b16 %v1309, %v1306
        %v1538 = vpack.c.b16 %v1310, %v1307
        %v1539 = vpack.c.b16 %v1314, %v1311
        %v1540 = vpack.c.b16 %v1315, %v1312
        %v1541 = vpack.c.b16 %v1316, %v1313
        %v1542 = vpack.c.b16 %v1320, %v1317
        %v1543 = vpack.c.b16 %v1321, %v1318
        %v1544 = vpack.c.b16 %v1322, %v1319
        %v1545 = vpack.c.b16 %v1326, %v1323
        %v1546 = vpack.c.b16 %v1327, %v1324
        %v1547 = vpack.c.b16 %v1328, %v1325
        %v1548 = vpack.c.b16 %v1332, %v1329
        %v1549 = vpack.c.b16 %v1333, %v1330
        %v1550 = vpack.c.b16 %v1334, %v1331
        %v1551 = vpack.c.b16 %v1338, %v1335
        %v1552 = vpack.c.b16 %v1339, %v1336
        %v1553 = vpack.c.b16 %v1340, %v1337
        %v1554 = vpack.c.b16 %v1344, %v1341
        %v1555 = vpack.c.b16 %v1345, %v1342
        %v1556 = vpack.c.b16 %v1346, %v1343
        %v1557 = vpack.c.b16 %v1350, %v1347
        %v1558 = vpack.c.b16 %v1351, %v1348
        %v1559 = vpack.c.b16 %v1352, %v1349
        %v1560 = vpack.c.b16 %v1356, %v1353
        %v1561 = vpack.c.b16 %v1357, %v1354
        %v1562 = vpack.c.b16 %v1358, %v1355
        %v1563 = vpack.c.b16 %v1362, %v1359
        %v1564 = vpack.c.b16 %v1363, %v1360
        %v1565 = vpack.c.b16 %v1364, %v1361
        %v1566 = vpack.c.b16 %v1368, %v1365
        %v1567 = vpack.c.b16 %v1369, %v1366
        %v1568 = vpack.c.b16 %v1370, %v1367
        %v1569 = vpack.c.b16 %v1374, %v1371
        %v1570 = vpack.c.b16 %v1375, %v1372
        %v1571 = vpack.c.b16 %v1376, %v1373
        %v1572 = vpack.c.b16 %v1380, %v1377
        %v1573 = vpack.c.b16 %v1381, %v1378
        %v1574 = vpack.c.b16 %v1382, %v1379
        %1767 = vmatpush.bf16.msra.mxu0 %v1404
        %1768 = vmatpush.bf16.msra.mxu0 %v1401
        %1769 = vmatpush.bf16.msra.mxu0 %v1398
        %1770 = vmatpush.bf16.msra.mxu0 %v1395
        %1771 = vmatpush.bf16.msra.mxu0 %v1392
        %1772 = vmatpush.bf16.msra.mxu0 %v1389
        %1773 = vmatpush.bf16.msra.mxu0 %v1386
        %1774 = vmatpush.bf16.msra.mxu0 %v1383
        %1775 = vmatmul.bf16.gmra.mxu0 %v727
        %v1776 = vpop.f32.mrf.mxu0
        %v1777 = vadd.f32 0.0, %v1776
        %v1778 = vpop.f32.mrf.mxu0
        %v1779 = vadd.f32 0.0, %v1778
        %1780 = vdwg.mxu0
        %1781 = vmatpush.bf16.msra.mxu0 %v1428
        %1782 = vmatpush.bf16.msra.mxu0 %v1425
        %1783 = vmatpush.bf16.msra.mxu0 %v1422
        %1784 = vmatpush.bf16.msra.mxu0 %v1419
        %1785 = vmatpush.bf16.msra.mxu0 %v1416
        %1786 = vmatpush.bf16.msra.mxu0 %v1413
        %1787 = vmatpush.bf16.msra.mxu0 %v1410
        %1788 = vmatpush.bf16.msra.mxu0 %v1407
        %1789 = vmatmul.bf16.gmra.mxu0 %v728
        %v1790 = vpop.f32.mrf.mxu0
        %v1791 = vadd.f32 %v1777, %v1790
        %v1792 = vpop.f32.mrf.mxu0
        %v1793 = vadd.f32 %v1779, %v1792
        %1794 = vdwg.mxu0
        %1795 = vmatpush.bf16.msra.mxu0 %v1452
        %1796 = vmatpush.bf16.msra.mxu0 %v1449
        %1797 = vmatpush.bf16.msra.mxu0 %v1446
        %1798 = vmatpush.bf16.msra.mxu0 %v1443
        %1799 = vmatpush.bf16.msra.mxu0 %v1440
        %1800 = vmatpush.bf16.msra.mxu0 %v1437
        %1801 = vmatpush.bf16.msra.mxu0 %v1434
        %1802 = vmatpush.bf16.msra.mxu0 %v1431
        %1803 = vmatmul.bf16.gmra.mxu0 %v729
        %v1804 = vpop.f32.mrf.mxu0
        %v1805 = vadd.f32 %v1791, %v1804
        %v1806 = vpop.f32.mrf.mxu0
        %v1807 = vadd.f32 %v1793, %v1806
        %1808 = vdwg.mxu0
        %1809 = vmatpush.bf16.msra.mxu0 %v1476
        %1810 = vmatpush.bf16.msra.mxu0 %v1473
        %1811 = vmatpush.bf16.msra.mxu0 %v1470
        %1812 = vmatpush.bf16.msra.mxu0 %v1467
        %1813 = vmatpush.bf16.msra.mxu0 %v1464
        %1814 = vmatpush.bf16.msra.mxu0 %v1461
        %1815 = vmatpush.bf16.msra.mxu0 %v1458
        %1816 = vmatpush.bf16.msra.mxu0 %v1455
        %1817 = vmatmul.bf16.gmra.mxu0 %v730
        %v1818 = vpop.f32.mrf.mxu0
        %v1819 = vadd.f32 %v1805, %v1818
        %v1820 = vpop.f32.mrf.mxu0
        %v1821 = vadd.f32 %v1807, %v1820
        %1822 = vdwg.mxu0
        %1823 = vmatpush.bf16.msra.mxu0 %v1500
        %1824 = vmatpush.bf16.msra.mxu0 %v1497
        %1825 = vmatpush.bf16.msra.mxu0 %v1494
        %1826 = vmatpush.bf16.msra.mxu0 %v1491
        %1827 = vmatpush.bf16.msra.mxu0 %v1488
        %1828 = vmatpush.bf16.msra.mxu0 %v1485
        %1829 = vmatpush.bf16.msra.mxu0 %v1482
        %1830 = vmatpush.bf16.msra.mxu0 %v1479
        %1831 = vmatmul.bf16.gmra.mxu0 %v731
        %v1832 = vpop.f32.mrf.mxu0
        %v1833 = vadd.f32 %v1819, %v1832
        %v1834 = vpop.f32.mrf.mxu0
        %v1835 = vadd.f32 %v1821, %v1834
        %1836 = vdwg.mxu0
        %1837 = vmatpush.bf16.msra.mxu0 %v1524
        %1838 = vmatpush.bf16.msra.mxu0 %v1521
        %1839 = vmatpush.bf16.msra.mxu0 %v1518
        %1840 = vmatpush.bf16.msra.mxu0 %v1515
        %1841 = vmatpush.bf16.msra.mxu0 %v1512
        %1842 = vmatpush.bf16.msra.mxu0 %v1509
        %1843 = vmatpush.bf16.msra.mxu0 %v1506
        %1844 = vmatpush.bf16.msra.mxu0 %v1503
        %1845 = vmatmul.bf16.gmra.mxu0 %v732
        %v1846 = vpop.f32.mrf.mxu0
        %v1847 = vadd.f32 %v1833, %v1846
        %v1848 = vpop.f32.mrf.mxu0
        %v1849 = vadd.f32 %v1835, %v1848
        %1850 = vdwg.mxu0
        %1851 = vmatpush.bf16.msra.mxu0 %v1548
        %1852 = vmatpush.bf16.msra.mxu0 %v1545
        %1853 = vmatpush.bf16.msra.mxu0 %v1542
        %1854 = vmatpush.bf16.msra.mxu0 %v1539
        %1855 = vmatpush.bf16.msra.mxu0 %v1536
        %1856 = vmatpush.bf16.msra.mxu0 %v1533
        %1857 = vmatpush.bf16.msra.mxu0 %v1530
        %1858 = vmatpush.bf16.msra.mxu0 %v1527
        %1859 = vmatmul.bf16.gmra.mxu0 %v733
        %v1860 = vpop.f32.mrf.mxu0
        %v1861 = vadd.f32 %v1847, %v1860
        %v1862 = vpop.f32.mrf.mxu0
        %v1863 = vadd.f32 %v1849, %v1862
        %1864 = vdwg.mxu0
        %1865 = vmatpush.bf16.msra.mxu0 %v1572
        %1866 = vmatpush.bf16.msra.mxu0 %v1569
        %1867 = vmatpush.bf16.msra.mxu0 %v1566
        %1868 = vmatpush.bf16.msra.mxu0 %v1563
        %1869 = vmatpush.bf16.msra.mxu0 %v1560
        %1870 = vmatpush.bf16.msra.mxu0 %v1557
        %1871 = vmatpush.bf16.msra.mxu0 %v1554
        %1872 = vmatpush.bf16.msra.mxu0 %v1551
        %1873 = vmatmul.bf16.gmra.mxu0 %v734
        %v1874 = vpop.f32.mrf.mxu0
        %v1875 = vadd.f32 %v1861, %v1874
        %v1876 = vpop.f32.mrf.mxu0
        %v1877 = vadd.f32 %v1863, %v1876
        %1878 = vdwg.mxu0
        %1879 = vmatpush.bf16.msra.mxu0 %v1405
        %1880 = vmatpush.bf16.msra.mxu0 %v1402
        %1881 = vmatpush.bf16.msra.mxu0 %v1399
        %1882 = vmatpush.bf16.msra.mxu0 %v1396
        %1883 = vmatpush.bf16.msra.mxu0 %v1393
        %1884 = vmatpush.bf16.msra.mxu0 %v1390
        %1885 = vmatpush.bf16.msra.mxu0 %v1387
        %1886 = vmatpush.bf16.msra.mxu0 %v1384
        %1887 = vmatmul.bf16.gmra.mxu0 %v727
        %v1888 = vpop.f32.mrf.mxu0
        %v1889 = vadd.f32 0.0, %v1888
        %v1890 = vpop.f32.mrf.mxu0
        %v1891 = vadd.f32 0.0, %v1890
        %1892 = vdwg.mxu0
        %1893 = vmatpush.bf16.msra.mxu0 %v1429
        %1894 = vmatpush.bf16.msra.mxu0 %v1426
        %1895 = vmatpush.bf16.msra.mxu0 %v1423
        %1896 = vmatpush.bf16.msra.mxu0 %v1420
        %1897 = vmatpush.bf16.msra.mxu0 %v1417
        %1898 = vmatpush.bf16.msra.mxu0 %v1414
        %1899 = vmatpush.bf16.msra.mxu0 %v1411
        %1900 = vmatpush.bf16.msra.mxu0 %v1408
        %1901 = vmatmul.bf16.gmra.mxu0 %v728
        %v1902 = vpop.f32.mrf.mxu0
        %v1903 = vadd.f32 %v1889, %v1902
        %v1904 = vpop.f32.mrf.mxu0
        %v1905 = vadd.f32 %v1891, %v1904
        %1906 = vdwg.mxu0
        %1907 = vmatpush.bf16.msra.mxu0 %v1453
        %1908 = vmatpush.bf16.msra.mxu0 %v1450
        %1909 = vmatpush.bf16.msra.mxu0 %v1447
        %1910 = vmatpush.bf16.msra.mxu0 %v1444
        %1911 = vmatpush.bf16.msra.mxu0 %v1441
        %1912 = vmatpush.bf16.msra.mxu0 %v1438
        %1913 = vmatpush.bf16.msra.mxu0 %v1435
        %1914 = vmatpush.bf16.msra.mxu0 %v1432
        %1915 = vmatmul.bf16.gmra.mxu0 %v729
        %v1916 = vpop.f32.mrf.mxu0
        %v1917 = vadd.f32 %v1903, %v1916
        %v1918 = vpop.f32.mrf.mxu0
        %v1919 = vadd.f32 %v1905, %v1918
        %1920 = vdwg.mxu0
        %1921 = vmatpush.bf16.msra.mxu0 %v1477
        %1922 = vmatpush.bf16.msra.mxu0 %v1474
        %1923 = vmatpush.bf16.msra.mxu0 %v1471
        %1924 = vmatpush.bf16.msra.mxu0 %v1468
        %1925 = vmatpush.bf16.msra.mxu0 %v1465
        %1926 = vmatpush.bf16.msra.mxu0 %v1462
        %1927 = vmatpush.bf16.msra.mxu0 %v1459
        %1928 = vmatpush.bf16.msra.mxu0 %v1456
        %1929 = vmatmul.bf16.gmra.mxu0 %v730
        %v1930 = vpop.f32.mrf.mxu0
        %v1931 = vadd.f32 %v1917, %v1930
        %v1932 = vpop.f32.mrf.mxu0
        %v1933 = vadd.f32 %v1919, %v1932
        %1934 = vdwg.mxu0
        %1935 = vmatpush.bf16.msra.mxu0 %v1501
        %1936 = vmatpush.bf16.msra.mxu0 %v1498
        %1937 = vmatpush.bf16.msra.mxu0 %v1495
        %1938 = vmatpush.bf16.msra.mxu0 %v1492
        %1939 = vmatpush.bf16.msra.mxu0 %v1489
        %1940 = vmatpush.bf16.msra.mxu0 %v1486
        %1941 = vmatpush.bf16.msra.mxu0 %v1483
        %1942 = vmatpush.bf16.msra.mxu0 %v1480
        %1943 = vmatmul.bf16.gmra.mxu0 %v731
        %v1944 = vpop.f32.mrf.mxu0
        %v1945 = vadd.f32 %v1931, %v1944
        %v1946 = vpop.f32.mrf.mxu0
        %v1947 = vadd.f32 %v1933, %v1946
        %1948 = vdwg.mxu0
        %1949 = vmatpush.bf16.msra.mxu0 %v1525
        %1950 = vmatpush.bf16.msra.mxu0 %v1522
        %1951 = vmatpush.bf16.msra.mxu0 %v1519
        %1952 = vmatpush.bf16.msra.mxu0 %v1516
        %1953 = vmatpush.bf16.msra.mxu0 %v1513
        %1954 = vmatpush.bf16.msra.mxu0 %v1510
        %1955 = vmatpush.bf16.msra.mxu0 %v1507
        %1956 = vmatpush.bf16.msra.mxu0 %v1504
        %1957 = vmatmul.bf16.gmra.mxu0 %v732
        %v1958 = vpop.f32.mrf.mxu0
        %v1959 = vadd.f32 %v1945, %v1958
        %v1960 = vpop.f32.mrf.mxu0
        %v1961 = vadd.f32 %v1947, %v1960
        %1962 = vdwg.mxu0
        %1963 = vmatpush.bf16.msra.mxu0 %v1549
        %1964 = vmatpush.bf16.msra.mxu0 %v1546
        %1965 = vmatpush.bf16.msra.mxu0 %v1543
        %1966 = vmatpush.bf16.msra.mxu0 %v1540
        %1967 = vmatpush.bf16.msra.mxu0 %v1537
        %1968 = vmatpush.bf16.msra.mxu0 %v1534
        %1969 = vmatpush.bf16.msra.mxu0 %v1531
        %1970 = vmatpush.bf16.msra.mxu0 %v1528
        %1971 = vmatmul.bf16.gmra.mxu0 %v733
        %v1972 = vpop.f32.mrf.mxu0
        %v1973 = vadd.f32 %v1959, %v1972
        %v1974 = vpop.f32.mrf.mxu0
        %v1975 = vadd.f32 %v1961, %v1974
        %1976 = vdwg.mxu0
        %1977 = vmatpush.bf16.msra.mxu0 %v1573
        %1978 = vmatpush.bf16.msra.mxu0 %v1570
        %1979 = vmatpush.bf16.msra.mxu0 %v1567
        %1980 = vmatpush.bf16.msra.mxu0 %v1564
        %1981 = vmatpush.bf16.msra.mxu0 %v1561
        %1982 = vmatpush.bf16.msra.mxu0 %v1558
        %1983 = vmatpush.bf16.msra.mxu0 %v1555
        %1984 = vmatpush.bf16.msra.mxu0 %v1552
        %1985 = vmatmul.bf16.gmra.mxu0 %v734
        %v1986 = vpop.f32.mrf.mxu0
        %v1987 = vadd.f32 %v1973, %v1986
        %v1988 = vpop.f32.mrf.mxu0
        %v1989 = vadd.f32 %v1975, %v1988
        %1990 = vdwg.mxu0
        %1991 = vmatpush.bf16.msra.mxu0 %v1406
        %1992 = vmatpush.bf16.msra.mxu0 %v1403
        %1993 = vmatpush.bf16.msra.mxu0 %v1400
        %1994 = vmatpush.bf16.msra.mxu0 %v1397
        %1995 = vmatpush.bf16.msra.mxu0 %v1394
        %1996 = vmatpush.bf16.msra.mxu0 %v1391
        %1997 = vmatpush.bf16.msra.mxu0 %v1388
        %1998 = vmatpush.bf16.msra.mxu0 %v1385
        %1999 = vmatmul.bf16.gmra.mxu0 %v727
        %v2000 = vpop.f32.mrf.mxu0
        %v2001 = vadd.f32 0.0, %v2000
        %v2002 = vpop.f32.mrf.mxu0
        %v2003 = vadd.f32 0.0, %v2002
        %2004 = vdwg.mxu0
        %2005 = vmatpush.bf16.msra.mxu0 %v1430
        %2006 = vmatpush.bf16.msra.mxu0 %v1427
        %2007 = vmatpush.bf16.msra.mxu0 %v1424
        %2008 = vmatpush.bf16.msra.mxu0 %v1421
        %2009 = vmatpush.bf16.msra.mxu0 %v1418
        %2010 = vmatpush.bf16.msra.mxu0 %v1415
        %2011 = vmatpush.bf16.msra.mxu0 %v1412
        %2012 = vmatpush.bf16.msra.mxu0 %v1409
        %2013 = vmatmul.bf16.gmra.mxu0 %v728
        %v2014 = vpop.f32.mrf.mxu0
        %v2015 = vadd.f32 %v2001, %v2014
        %v2016 = vpop.f32.mrf.mxu0
        %v2017 = vadd.f32 %v2003, %v2016
        %2018 = vdwg.mxu0
        %2019 = vmatpush.bf16.msra.mxu0 %v1454
        %2020 = vmatpush.bf16.msra.mxu0 %v1451
        %2021 = vmatpush.bf16.msra.mxu0 %v1448
        %2022 = vmatpush.bf16.msra.mxu0 %v1445
        %2023 = vmatpush.bf16.msra.mxu0 %v1442
        %2024 = vmatpush.bf16.msra.mxu0 %v1439
        %2025 = vmatpush.bf16.msra.mxu0 %v1436
        %2026 = vmatpush.bf16.msra.mxu0 %v1433
        %2027 = vmatmul.bf16.gmra.mxu0 %v729
        %v2028 = vpop.f32.mrf.mxu0
        %v2029 = vadd.f32 %v2015, %v2028
        %v2030 = vpop.f32.mrf.mxu0
        %v2031 = vadd.f32 %v2017, %v2030
        %2032 = vdwg.mxu0
        %2033 = vmatpush.bf16.msra.mxu0 %v1478
        %2034 = vmatpush.bf16.msra.mxu0 %v1475
        %2035 = vmatpush.bf16.msra.mxu0 %v1472
        %2036 = vmatpush.bf16.msra.mxu0 %v1469
        %2037 = vmatpush.bf16.msra.mxu0 %v1466
        %2038 = vmatpush.bf16.msra.mxu0 %v1463
        %2039 = vmatpush.bf16.msra.mxu0 %v1460
        %2040 = vmatpush.bf16.msra.mxu0 %v1457
        %2041 = vmatmul.bf16.gmra.mxu0 %v730
        %v2042 = vpop.f32.mrf.mxu0
        %v2043 = vadd.f32 %v2029, %v2042
        %v2044 = vpop.f32.mrf.mxu0
        %v2045 = vadd.f32 %v2031, %v2044
        %2046 = vdwg.mxu0
        %2047 = vmatpush.bf16.msra.mxu0 %v1502
        %2048 = vmatpush.bf16.msra.mxu0 %v1499
        %2049 = vmatpush.bf16.msra.mxu0 %v1496
        %2050 = vmatpush.bf16.msra.mxu0 %v1493
        %2051 = vmatpush.bf16.msra.mxu0 %v1490
        %2052 = vmatpush.bf16.msra.mxu0 %v1487
        %2053 = vmatpush.bf16.msra.mxu0 %v1484
        %2054 = vmatpush.bf16.msra.mxu0 %v1481
        %2055 = vmatmul.bf16.gmra.mxu0 %v731
        %v2056 = vpop.f32.mrf.mxu0
        %v2057 = vadd.f32 %v2043, %v2056
        %v2058 = vpop.f32.mrf.mxu0
        %v2059 = vadd.f32 %v2045, %v2058
        %2060 = vdwg.mxu0
        %2061 = vmatpush.bf16.msra.mxu0 %v1526
        %2062 = vmatpush.bf16.msra.mxu0 %v1523
        %2063 = vmatpush.bf16.msra.mxu0 %v1520
        %2064 = vmatpush.bf16.msra.mxu0 %v1517
        %2065 = vmatpush.bf16.msra.mxu0 %v1514
        %2066 = vmatpush.bf16.msra.mxu0 %v1511
        %2067 = vmatpush.bf16.msra.mxu0 %v1508
        %2068 = vmatpush.bf16.msra.mxu0 %v1505
        %2069 = vmatmul.bf16.gmra.mxu0 %v732
        %v2070 = vpop.f32.mrf.mxu0
        %v2071 = vadd.f32 %v2057, %v2070
        %v2072 = vpop.f32.mrf.mxu0
        %v2073 = vadd.f32 %v2059, %v2072
        %2074 = vdwg.mxu0
        %2075 = vmatpush.bf16.msra.mxu0 %v1550
        %2076 = vmatpush.bf16.msra.mxu0 %v1547
        %2077 = vmatpush.bf16.msra.mxu0 %v1544
        %2078 = vmatpush.bf16.msra.mxu0 %v1541
        %2079 = vmatpush.bf16.msra.mxu0 %v1538
        %2080 = vmatpush.bf16.msra.mxu0 %v1535
        %2081 = vmatpush.bf16.msra.mxu0 %v1532
        %2082 = vmatpush.bf16.msra.mxu0 %v1529
        %2083 = vmatmul.bf16.gmra.mxu0 %v733
        %v2084 = vpop.f32.mrf.mxu0
        %v2085 = vadd.f32 %v2071, %v2084
        %v2086 = vpop.f32.mrf.mxu0
        %v2087 = vadd.f32 %v2073, %v2086
        %2088 = vdwg.mxu0
        %2089 = vmatpush.bf16.msra.mxu0 %v1574
        %2090 = vmatpush.bf16.msra.mxu0 %v1571
        %2091 = vmatpush.bf16.msra.mxu0 %v1568
        %2092 = vmatpush.bf16.msra.mxu0 %v1565
        %2093 = vmatpush.bf16.msra.mxu0 %v1562
        %2094 = vmatpush.bf16.msra.mxu0 %v1559
        %2095 = vmatpush.bf16.msra.mxu0 %v1556
        %2096 = vmatpush.bf16.msra.mxu0 %v1553
        %2097 = vmatmul.bf16.gmra.mxu0 %v734
        %v2098 = vpop.f32.mrf.mxu0
        %v2099 = vadd.f32 %v2085, %v2098
        %v2100 = vpop.f32.mrf.mxu0
        %v2101 = vadd.f32 %v2087, %v2100
        %2102 = vdwg.mxu0
        %2103 = vst [vmem:[%s423] sm:$0xff] %v1875
        %2104 = vst [vmem:[%s423 + $0x8] sm:$0xff] %v1987
        %2105 = vst [vmem:[%s423 + $0x10] sm:$0xff] %v2099
        %2106 = vst [vmem:[%s423 + $0x18] sm:$0xff] %v1877
        %2107 = vst [vmem:[%s423 + $0x20] sm:$0xff] %v1989
        %2108 = vst [vmem:[%s423 + $0x28] sm:$0xff] %v2101
        %v2109 = vld [vmem:[#allocation2] sm:$0xff]
        %v2110 = vld [vmem:[#allocation2 + $0x8] sm:$0xff]
        %v2111 = vld [vmem:[#allocation2 + $0x10] sm:$0xff]
        %v2112 = vld [vmem:[#allocation2 + $0x18] sm:$0xff]
        %v2113 = vld [vmem:[#allocation2 + $0x20] sm:$0xff]
        %v2114 = vld [vmem:[#allocation2 + $0x28] sm:$0xff]
        %v2115 = vld [vmem:[%s369] sm:$0xff]
        %v2116 = vld [vmem:[%s369 + $0x8] sm:$0xff]
        %v2117 = vld [vmem:[%s369 + $0x10] sm:$0xff]
        %v2118 = vld [vmem:[%s369 + $0x18] sm:$0xff]
        %v2119 = vld [vmem:[%s369 + $0x20] sm:$0xf]
        %v2120 = vld [vmem:[%s369 + $0x24] sm:$0xff]
        %v2121 = vld [vmem:[%s369 + $0x2c] sm:$0xff]
        %v2122 = vld [vmem:[%s369 + $0x34] sm:$0xff]
        %v2123 = vld [vmem:[%s369 + $0x3c] sm:$0xff]
        %v2124 = vld [vmem:[%s369 + $0x44] sm:$0xf]
        %v2125 = vld [vmem:[%s369 + $0x48] sm:$0xff]
        %v2126 = vld [vmem:[%s369 + $0x50] sm:$0xff]
        %v2127 = vld [vmem:[%s369 + $0x58] sm:$0xff]
        %v2128 = vld [vmem:[%s369 + $0x60] sm:$0xff]
        %v2129 = vld [vmem:[%s369 + $0x68] sm:$0xf]
        %v2130 = vld [vmem:[%s369 + $0x6c] sm:$0xff]
        %v2131 = vld [vmem:[%s369 + $0x74] sm:$0xff]
        %v2132 = vld [vmem:[%s369 + $0x7c] sm:$0xff]
        %v2133 = vld [vmem:[%s369 + $0x84] sm:$0xff]
        %v2134 = vld [vmem:[%s369 + $0x8c] sm:$0xf]
        %v2135 = vld [vmem:[%s369 + $0x90] sm:$0xff]
        %v2136 = vld [vmem:[%s369 + $0x98] sm:$0xff]
        %v2137 = vld [vmem:[%s369 + $0xa0] sm:$0xff]
        %v2138 = vld [vmem:[%s369 + $0xa8] sm:$0xff]
        %v2139 = vld [vmem:[%s369 + $0xb0] sm:$0xf]
        %v2140 = vld [vmem:[%s369 + $0xb4] sm:$0xff]
        %v2141 = vld [vmem:[%s369 + $0xbc] sm:$0xff]
        %v2142 = vld [vmem:[%s369 + $0xc4] sm:$0xff]
        %v2143 = vld [vmem:[%s369 + $0xcc] sm:$0xff]
        %v2144 = vld [vmem:[%s369 + $0xd4] sm:$0xf]
        %v2145 = vld [vmem:[%s369 + $0xd8] sm:$0xff]
        %v2146 = vld [vmem:[%s369 + $0xe0] sm:$0xff]
        %v2147 = vld [vmem:[%s369 + $0xe8] sm:$0xff]
        %v2148 = vld [vmem:[%s369 + $0xf0] sm:$0xff]
        %v2149 = vld [vmem:[%s369 + $0xf8] sm:$0xf]
        %v2150 = vld [vmem:[%s369 + $0xfc] sm:$0xff]
        %v2151 = vld [vmem:[%s369 + $0x104] sm:$0xff]
        %v2152 = vld [vmem:[%s369 + $0x10c] sm:$0xff]
        %v2153 = vld [vmem:[%s369 + $0x114] sm:$0xff]
        %v2154 = vld [vmem:[%s369 + $0x11c] sm:$0xf]
        %v2155 = vld [vmem:[%s369 + $0x120] sm:$0xff]
        %v2156 = vld [vmem:[%s369 + $0x128] sm:$0xff]
        %v2157 = vld [vmem:[%s369 + $0x130] sm:$0xff]
        %v2158 = vld [vmem:[%s369 + $0x138] sm:$0xff]
        %v2159 = vld [vmem:[%s369 + $0x140] sm:$0xf]
        %v2160 = vld [vmem:[%s369 + $0x144] sm:$0xff]
        %v2161 = vld [vmem:[%s369 + $0x14c] sm:$0xff]
        %v2162 = vld [vmem:[%s369 + $0x154] sm:$0xff]
        %v2163 = vld [vmem:[%s369 + $0x15c] sm:$0xff]
        %v2164 = vld [vmem:[%s369 + $0x164] sm:$0xf]
        %v2165 = vld [vmem:[%s369 + $0x168] sm:$0xff]
        %v2166 = vld [vmem:[%s369 + $0x170] sm:$0xff]
        %v2167 = vld [vmem:[%s369 + $0x178] sm:$0xff]
        %v2168 = vld [vmem:[%s369 + $0x180] sm:$0xff]
        %v2169 = vld [vmem:[%s369 + $0x188] sm:$0xf]
        %v2170 = vld [vmem:[%s369 + $0x18c] sm:$0xff]
        %v2171 = vld [vmem:[%s369 + $0x194] sm:$0xff]
        %v2172 = vld [vmem:[%s369 + $0x19c] sm:$0xff]
        %v2173 = vld [vmem:[%s369 + $0x1a4] sm:$0xff]
        %v2174 = vld [vmem:[%s369 + $0x1ac] sm:$0xf]
        %v2175 = vld [vmem:[%s369 + $0x1b0] sm:$0xff]
        %v2176 = vld [vmem:[%s369 + $0x1b8] sm:$0xff]
        %v2177 = vld [vmem:[%s369 + $0x1c0] sm:$0xff]
        %v2178 = vld [vmem:[%s369 + $0x1c8] sm:$0xff]
        %v2179 = vld [vmem:[%s369 + $0x1d0] sm:$0xf]
        %v2180 = vld [vmem:[%s369 + $0x1d4] sm:$0xff]
        %v2181 = vld [vmem:[%s369 + $0x1dc] sm:$0xff]
        %v2182 = vld [vmem:[%s369 + $0x1e4] sm:$0xff]
        %v2183 = vld [vmem:[%s369 + $0x1ec] sm:$0xff]
        %v2184 = vld [vmem:[%s369 + $0x1f4] sm:$0xf]
        %v2185 = vld [vmem:[%s369 + $0x1f8] sm:$0xff]
        %v2186 = vld [vmem:[%s369 + $0x200] sm:$0xff]
        %v2187 = vld [vmem:[%s369 + $0x208] sm:$0xff]
        %v2188 = vld [vmem:[%s369 + $0x210] sm:$0xff]
        %v2189 = vld [vmem:[%s369 + $0x218] sm:$0xf]
        %v2190 = vld [vmem:[%s369 + $0x21c] sm:$0xff]
        %v2191 = vld [vmem:[%s369 + $0x224] sm:$0xff]
        %v2192 = vld [vmem:[%s369 + $0x22c] sm:$0xff]
        %v2193 = vld [vmem:[%s369 + $0x234] sm:$0xff]
        %v2194 = vld [vmem:[%s369 + $0x23c] sm:$0xf]
        %v2195 = vld [vmem:[%s369 + $0x240] sm:$0xff]
        %v2196 = vld [vmem:[%s369 + $0x248] sm:$0xff]
        %v2197 = vld [vmem:[%s369 + $0x250] sm:$0xff]
        %v2198 = vld [vmem:[%s369 + $0x258] sm:$0xff]
        %v2199 = vld [vmem:[%s369 + $0x260] sm:$0xf]
        %v2200 = vld [vmem:[%s369 + $0x264] sm:$0xff]
        %v2201 = vld [vmem:[%s369 + $0x26c] sm:$0xff]
        %v2202 = vld [vmem:[%s369 + $0x274] sm:$0xff]
        %v2203 = vld [vmem:[%s369 + $0x27c] sm:$0xff]
        %v2204 = vld [vmem:[%s369 + $0x284] sm:$0xf]
        %v2205 = vld [vmem:[%s369 + $0x288] sm:$0xff]
        %v2206 = vld [vmem:[%s369 + $0x290] sm:$0xff]
        %v2207 = vld [vmem:[%s369 + $0x298] sm:$0xff]
        %v2208 = vld [vmem:[%s369 + $0x2a0] sm:$0xff]
        %v2209 = vld [vmem:[%s369 + $0x2a8] sm:$0xf]
        %v2210 = vld [vmem:[%s369 + $0x2ac] sm:$0xff]
        %v2211 = vld [vmem:[%s369 + $0x2b4] sm:$0xff]
        %v2212 = vld [vmem:[%s369 + $0x2bc] sm:$0xff]
        %v2213 = vld [vmem:[%s369 + $0x2c4] sm:$0xff]
        %v2214 = vld [vmem:[%s369 + $0x2cc] sm:$0xf]
        %v2215 = vld [vmem:[%s369 + $0x2d0] sm:$0xff]
        %v2216 = vld [vmem:[%s369 + $0x2d8] sm:$0xff]
        %v2217 = vld [vmem:[%s369 + $0x2e0] sm:$0xff]
        %v2218 = vld [vmem:[%s369 + $0x2e8] sm:$0xff]
        %v2219 = vld [vmem:[%s369 + $0x2f0] sm:$0xf]
        %v2220 = vld [vmem:[%s369 + $0x2f4] sm:$0xff]
        %v2221 = vld [vmem:[%s369 + $0x2fc] sm:$0xff]
        %v2222 = vld [vmem:[%s369 + $0x304] sm:$0xff]
        %v2223 = vld [vmem:[%s369 + $0x30c] sm:$0xff]
        %v2224 = vld [vmem:[%s369 + $0x314] sm:$0xf]
        %v2225 = vld [vmem:[%s369 + $0x318] sm:$0xff]
        %v2226 = vld [vmem:[%s369 + $0x320] sm:$0xff]
        %v2227 = vld [vmem:[%s369 + $0x328] sm:$0xff]
        %v2228 = vld [vmem:[%s369 + $0x330] sm:$0xff]
        %v2229 = vld [vmem:[%s369 + $0x338] sm:$0xf]
        %v2230 = vld [vmem:[%s369 + $0x33c] sm:$0xff]
        %v2231 = vld [vmem:[%s369 + $0x344] sm:$0xff]
        %v2232 = vld [vmem:[%s369 + $0x34c] sm:$0xff]
        %v2233 = vld [vmem:[%s369 + $0x354] sm:$0xff]
        %v2234 = vld [vmem:[%s369 + $0x35c] sm:$0xf]
        %v2235 = vld [vmem:[%s369 + $0x360] sm:$0xff]
        %v2236 = vld [vmem:[%s369 + $0x368] sm:$0xff]
        %v2237 = vld [vmem:[%s369 + $0x370] sm:$0xff]
        %v2238 = vld [vmem:[%s369 + $0x378] sm:$0xff]
        %v2239 = vld [vmem:[%s369 + $0x380] sm:$0xf]
        %v2240 = vld [vmem:[%s369 + $0x384] sm:$0xff]
        %v2241 = vld [vmem:[%s369 + $0x38c] sm:$0xff]
        %v2242 = vld [vmem:[%s369 + $0x394] sm:$0xff]
        %v2243 = vld [vmem:[%s369 + $0x39c] sm:$0xff]
        %v2244 = vld [vmem:[%s369 + $0x3a4] sm:$0xf]
        %v2245 = vld [vmem:[%s369 + $0x3a8] sm:$0xff]
        %v2246 = vld [vmem:[%s369 + $0x3b0] sm:$0xff]
        %v2247 = vld [vmem:[%s369 + $0x3b8] sm:$0xff]
        %v2248 = vld [vmem:[%s369 + $0x3c0] sm:$0xff]
        %v2249 = vld [vmem:[%s369 + $0x3c8] sm:$0xf]
        %v2250 = vld [vmem:[%s369 + $0x3cc] sm:$0xff]
        %v2251 = vld [vmem:[%s369 + $0x3d4] sm:$0xff]
        %v2252 = vld [vmem:[%s369 + $0x3dc] sm:$0xff]
        %v2253 = vld [vmem:[%s369 + $0x3e4] sm:$0xff]
        %v2254 = vld [vmem:[%s369 + $0x3ec] sm:$0xf]
        %v2255 = vld [vmem:[%s369 + $0x3f0] sm:$0xff]
        %v2256 = vld [vmem:[%s369 + $0x3f8] sm:$0xff]
        %v2257 = vld [vmem:[%s369 + $0x400] sm:$0xff]
        %v2258 = vld [vmem:[%s369 + $0x408] sm:$0xff]
        %v2259 = vld [vmem:[%s369 + $0x410] sm:$0xf]
        %v2260 = vld [vmem:[%s369 + $0x414] sm:$0xff]
        %v2261 = vld [vmem:[%s369 + $0x41c] sm:$0xff]
        %v2262 = vld [vmem:[%s369 + $0x424] sm:$0xff]
        %v2263 = vld [vmem:[%s369 + $0x42c] sm:$0xff]
        %v2264 = vld [vmem:[%s369 + $0x434] sm:$0xf]
        %v2265 = vld [vmem:[%s369 + $0x438] sm:$0xff]
        %v2266 = vld [vmem:[%s369 + $0x440] sm:$0xff]
        %v2267 = vld [vmem:[%s369 + $0x448] sm:$0xff]
        %v2268 = vld [vmem:[%s369 + $0x450] sm:$0xff]
        %v2269 = vld [vmem:[%s369 + $0x458] sm:$0xf]
        %v2270 = vld [vmem:[%s369 + $0x45c] sm:$0xff]
        %v2271 = vld [vmem:[%s369 + $0x464] sm:$0xff]
        %v2272 = vld [vmem:[%s369 + $0x46c] sm:$0xff]
        %v2273 = vld [vmem:[%s369 + $0x474] sm:$0xff]
        %v2274 = vld [vmem:[%s369 + $0x47c] sm:$0xf]
        %v2275 = vld [vmem:[%s369 + $0x480] sm:$0xff]
        %v2276 = vld [vmem:[%s369 + $0x488] sm:$0xff]
        %v2277 = vld [vmem:[%s369 + $0x490] sm:$0xff]
        %v2278 = vld [vmem:[%s369 + $0x498] sm:$0xff]
        %v2279 = vld [vmem:[%s369 + $0x4a0] sm:$0xf]
        %v2280 = vld [vmem:[%s369 + $0x4a4] sm:$0xff]
        %v2281 = vld [vmem:[%s369 + $0x4ac] sm:$0xff]
        %v2282 = vld [vmem:[%s369 + $0x4b4] sm:$0xff]
        %v2283 = vld [vmem:[%s369 + $0x4bc] sm:$0xff]
        %v2284 = vld [vmem:[%s369 + $0x4c4] sm:$0xf]
        %v2285 = vld [vmem:[%s369 + $0x4c8] sm:$0xff]
        %v2286 = vld [vmem:[%s369 + $0x4d0] sm:$0xff]
        %v2287 = vld [vmem:[%s369 + $0x4d8] sm:$0xff]
        %v2288 = vld [vmem:[%s369 + $0x4e0] sm:$0xff]
        %v2289 = vld [vmem:[%s369 + $0x4e8] sm:$0xf]
        %v2290 = vld [vmem:[%s369 + $0x4ec] sm:$0xff]
        %v2291 = vld [vmem:[%s369 + $0x4f4] sm:$0xff]
        %v2292 = vld [vmem:[%s369 + $0x4fc] sm:$0xff]
        %v2293 = vld [vmem:[%s369 + $0x504] sm:$0xff]
        %v2294 = vld [vmem:[%s369 + $0x50c] sm:$0xf]
        %v2295 = vld [vmem:[%s369 + $0x510] sm:$0xff]
        %v2296 = vld [vmem:[%s369 + $0x518] sm:$0xff]
        %v2297 = vld [vmem:[%s369 + $0x520] sm:$0xff]
        %v2298 = vld [vmem:[%s369 + $0x528] sm:$0xff]
        %v2299 = vld [vmem:[%s369 + $0x530] sm:$0xf]
        %v2300 = vld [vmem:[%s369 + $0x534] sm:$0xff]
        %v2301 = vld [vmem:[%s369 + $0x53c] sm:$0xff]
        %v2302 = vld [vmem:[%s369 + $0x544] sm:$0xff]
        %v2303 = vld [vmem:[%s369 + $0x54c] sm:$0xff]
        %v2304 = vld [vmem:[%s369 + $0x554] sm:$0xf]
        %v2305 = vld [vmem:[%s369 + $0x558] sm:$0xff]
        %v2306 = vld [vmem:[%s369 + $0x560] sm:$0xff]
        %v2307 = vld [vmem:[%s369 + $0x568] sm:$0xff]
        %v2308 = vld [vmem:[%s369 + $0x570] sm:$0xff]
        %v2309 = vld [vmem:[%s369 + $0x578] sm:$0xf]
        %v2310 = vld [vmem:[%s369 + $0x57c] sm:$0xff]
        %v2311 = vld [vmem:[%s369 + $0x584] sm:$0xff]
        %v2312 = vld [vmem:[%s369 + $0x58c] sm:$0xff]
        %v2313 = vld [vmem:[%s369 + $0x594] sm:$0xff]
        %v2314 = vld [vmem:[%s369 + $0x59c] sm:$0xf]
        %v2315 = vld [vmem:[%s369 + $0x5a0] sm:$0xff]
        %v2316 = vld [vmem:[%s369 + $0x5a8] sm:$0xff]
        %v2317 = vld [vmem:[%s369 + $0x5b0] sm:$0xff]
        %v2318 = vld [vmem:[%s369 + $0x5b8] sm:$0xff]
        %v2319 = vld [vmem:[%s369 + $0x5c0] sm:$0xf]
        %v2320 = vld [vmem:[%s369 + $0x5c4] sm:$0xff]
        %v2321 = vld [vmem:[%s369 + $0x5cc] sm:$0xff]
        %v2322 = vld [vmem:[%s369 + $0x5d4] sm:$0xff]
        %v2323 = vld [vmem:[%s369 + $0x5dc] sm:$0xff]
        %v2324 = vld [vmem:[%s369 + $0x5e4] sm:$0xf]
        %v2325 = vld [vmem:[%s369 + $0x5e8] sm:$0xff]
        %v2326 = vld [vmem:[%s369 + $0x5f0] sm:$0xff]
        %v2327 = vld [vmem:[%s369 + $0x5f8] sm:$0xff]
        %v2328 = vld [vmem:[%s369 + $0x600] sm:$0xff]
        %v2329 = vld [vmem:[%s369 + $0x608] sm:$0xf]
        %v2330 = vld [vmem:[%s369 + $0x60c] sm:$0xff]
        %v2331 = vld [vmem:[%s369 + $0x614] sm:$0xff]
        %v2332 = vld [vmem:[%s369 + $0x61c] sm:$0xff]
        %v2333 = vld [vmem:[%s369 + $0x624] sm:$0xff]
        %v2334 = vld [vmem:[%s369 + $0x62c] sm:$0xf]
        %v2335 = vld [vmem:[%s369 + $0x630] sm:$0xff]
        %v2336 = vld [vmem:[%s369 + $0x638] sm:$0xff]
        %v2337 = vld [vmem:[%s369 + $0x640] sm:$0xff]
        %v2338 = vld [vmem:[%s369 + $0x648] sm:$0xff]
        %v2339 = vld [vmem:[%s369 + $0x650] sm:$0xf]
        %v2340 = vld [vmem:[%s369 + $0x654] sm:$0xff]
        %v2341 = vld [vmem:[%s369 + $0x65c] sm:$0xff]
        %v2342 = vld [vmem:[%s369 + $0x664] sm:$0xff]
        %v2343 = vld [vmem:[%s369 + $0x66c] sm:$0xff]
        %v2344 = vld [vmem:[%s369 + $0x674] sm:$0xf]
        %v2345 = vld [vmem:[%s369 + $0x678] sm:$0xff]
        %v2346 = vld [vmem:[%s369 + $0x680] sm:$0xff]
        %v2347 = vld [vmem:[%s369 + $0x688] sm:$0xff]
        %v2348 = vld [vmem:[%s369 + $0x690] sm:$0xff]
        %v2349 = vld [vmem:[%s369 + $0x698] sm:$0xf]
        %v2350 = vld [vmem:[%s369 + $0x69c] sm:$0xff]
        %v2351 = vld [vmem:[%s369 + $0x6a4] sm:$0xff]
        %v2352 = vld [vmem:[%s369 + $0x6ac] sm:$0xff]
        %v2353 = vld [vmem:[%s369 + $0x6b4] sm:$0xff]
        %v2354 = vld [vmem:[%s369 + $0x6bc] sm:$0xf]
        %v2355 = vld [vmem:[%s369 + $0x6c0] sm:$0xff]
        %v2356 = vld [vmem:[%s369 + $0x6c8] sm:$0xff]
        %v2357 = vld [vmem:[%s369 + $0x6d0] sm:$0xff]
        %v2358 = vld [vmem:[%s369 + $0x6d8] sm:$0xff]
        %v2359 = vld [vmem:[%s369 + $0x6e0] sm:$0xf]
        %v2360 = vld [vmem:[%s369 + $0x6e4] sm:$0xff]
        %v2361 = vld [vmem:[%s369 + $0x6ec] sm:$0xff]
        %v2362 = vld [vmem:[%s369 + $0x6f4] sm:$0xff]
        %v2363 = vld [vmem:[%s369 + $0x6fc] sm:$0xff]
        %v2364 = vld [vmem:[%s369 + $0x704] sm:$0xf]
        %v2365 = vld [vmem:[%s369 + $0x708] sm:$0xff]
        %v2366 = vld [vmem:[%s369 + $0x710] sm:$0xff]
        %v2367 = vld [vmem:[%s369 + $0x718] sm:$0xff]
        %v2368 = vld [vmem:[%s369 + $0x720] sm:$0xff]
        %v2369 = vld [vmem:[%s369 + $0x728] sm:$0xf]
        %v2370 = vld [vmem:[%s369 + $0x72c] sm:$0xff]
        %v2371 = vld [vmem:[%s369 + $0x734] sm:$0xff]
        %v2372 = vld [vmem:[%s369 + $0x73c] sm:$0xff]
        %v2373 = vld [vmem:[%s369 + $0x744] sm:$0xff]
        %v2374 = vld [vmem:[%s369 + $0x74c] sm:$0xf]
        %v2375 = vld [vmem:[%s369 + $0x750] sm:$0xff]
        %v2376 = vld [vmem:[%s369 + $0x758] sm:$0xff]
        %v2377 = vld [vmem:[%s369 + $0x760] sm:$0xff]
        %v2378 = vld [vmem:[%s369 + $0x768] sm:$0xff]
        %v2379 = vld [vmem:[%s369 + $0x770] sm:$0xf]
        %v2380 = vld [vmem:[%s369 + $0x774] sm:$0xff]
        %v2381 = vld [vmem:[%s369 + $0x77c] sm:$0xff]
        %v2382 = vld [vmem:[%s369 + $0x784] sm:$0xff]
        %v2383 = vld [vmem:[%s369 + $0x78c] sm:$0xff]
        %v2384 = vld [vmem:[%s369 + $0x794] sm:$0xf]
        %v2385 = vld [vmem:[%s369 + $0x798] sm:$0xff]
        %v2386 = vld [vmem:[%s369 + $0x7a0] sm:$0xff]
        %v2387 = vld [vmem:[%s369 + $0x7a8] sm:$0xff]
        %v2388 = vld [vmem:[%s369 + $0x7b0] sm:$0xff]
        %v2389 = vld [vmem:[%s369 + $0x7b8] sm:$0xf]
        %v2390 = vld [vmem:[%s369 + $0x7bc] sm:$0xff]
        %v2391 = vld [vmem:[%s369 + $0x7c4] sm:$0xff]
        %v2392 = vld [vmem:[%s369 + $0x7cc] sm:$0xff]
        %v2393 = vld [vmem:[%s369 + $0x7d4] sm:$0xff]
        %v2394 = vld [vmem:[%s369 + $0x7dc] sm:$0xf]
        %v2395 = vld [vmem:[%s369 + $0x7e0] sm:$0xff]
        %v2396 = vld [vmem:[%s369 + $0x7e8] sm:$0xff]
        %v2397 = vld [vmem:[%s369 + $0x7f0] sm:$0xff]
        %v2398 = vld [vmem:[%s369 + $0x7f8] sm:$0xff]
        %v2399 = vld [vmem:[%s369 + $0x800] sm:$0xf]
        %v2400 = vld [vmem:[%s369 + $0x804] sm:$0xff]
        %v2401 = vld [vmem:[%s369 + $0x80c] sm:$0xff]
        %v2402 = vld [vmem:[%s369 + $0x814] sm:$0xff]
        %v2403 = vld [vmem:[%s369 + $0x81c] sm:$0xff]
        %v2404 = vld [vmem:[%s369 + $0x824] sm:$0xf]
        %v2405 = vld [vmem:[%s369 + $0x828] sm:$0xff]
        %v2406 = vld [vmem:[%s369 + $0x830] sm:$0xff]
        %v2407 = vld [vmem:[%s369 + $0x838] sm:$0xff]
        %v2408 = vld [vmem:[%s369 + $0x840] sm:$0xff]
        %v2409 = vld [vmem:[%s369 + $0x848] sm:$0xf]
        %v2410 = vld [vmem:[%s369 + $0x84c] sm:$0xff]
        %v2411 = vld [vmem:[%s369 + $0x854] sm:$0xff]
        %v2412 = vld [vmem:[%s369 + $0x85c] sm:$0xff]
        %v2413 = vld [vmem:[%s369 + $0x864] sm:$0xff]
        %v2414 = vld [vmem:[%s369 + $0x86c] sm:$0xf]
        %v2415 = vld [vmem:[%s369 + $0x870] sm:$0xff]
        %v2416 = vld [vmem:[%s369 + $0x878] sm:$0xff]
        %v2417 = vld [vmem:[%s369 + $0x880] sm:$0xff]
        %v2418 = vld [vmem:[%s369 + $0x888] sm:$0xff]
        %v2419 = vld [vmem:[%s369 + $0x890] sm:$0xf]
        %v2420 = vld [vmem:[%s369 + $0x894] sm:$0xff]
        %v2421 = vld [vmem:[%s369 + $0x89c] sm:$0xff]
        %v2422 = vld [vmem:[%s369 + $0x8a4] sm:$0xff]
        %v2423 = vld [vmem:[%s369 + $0x8ac] sm:$0xff]
        %v2424 = vld [vmem:[%s369 + $0x8b4] sm:$0xf]
        %v2425 = vld [vmem:[%s369 + $0x8b8] sm:$0xff]
        %v2426 = vld [vmem:[%s369 + $0x8c0] sm:$0xff]
        %v2427 = vld [vmem:[%s369 + $0x8c8] sm:$0xff]
        %v2428 = vld [vmem:[%s369 + $0x8d0] sm:$0xff]
        %v2429 = vld [vmem:[%s369 + $0x8d8] sm:$0xf]
        %v2430 = vld [vmem:[%s369 + $0x8dc] sm:$0xff]
        %v2431 = vld [vmem:[%s369 + $0x8e4] sm:$0xff]
        %v2432 = vld [vmem:[%s369 + $0x8ec] sm:$0xff]
        %v2433 = vld [vmem:[%s369 + $0x8f4] sm:$0xff]
        %v2434 = vld [vmem:[%s369 + $0x8fc] sm:$0xf]
        %v2435 = vld [vmem:[%s369 + $0x900] sm:$0xff]
        %v2436 = vld [vmem:[%s369 + $0x908] sm:$0xff]
        %v2437 = vld [vmem:[%s369 + $0x910] sm:$0xff]
        %v2438 = vld [vmem:[%s369 + $0x918] sm:$0xff]
        %v2439 = vld [vmem:[%s369 + $0x920] sm:$0xf]
        %v2440 = vld [vmem:[%s369 + $0x924] sm:$0xff]
        %v2441 = vld [vmem:[%s369 + $0x92c] sm:$0xff]
        %v2442 = vld [vmem:[%s369 + $0x934] sm:$0xff]
        %v2443 = vld [vmem:[%s369 + $0x93c] sm:$0xff]
        %v2444 = vld [vmem:[%s369 + $0x944] sm:$0xf]
        %v2445 = vld [vmem:[%s369 + $0x948] sm:$0xff]
        %v2446 = vld [vmem:[%s369 + $0x950] sm:$0xff]
        %v2447 = vld [vmem:[%s369 + $0x958] sm:$0xff]
        %v2448 = vld [vmem:[%s369 + $0x960] sm:$0xff]
        %v2449 = vld [vmem:[%s369 + $0x968] sm:$0xf]
        %v2450 = vld [vmem:[%s369 + $0x96c] sm:$0xff]
        %v2451 = vld [vmem:[%s369 + $0x974] sm:$0xff]
        %v2452 = vld [vmem:[%s369 + $0x97c] sm:$0xff]
        %v2453 = vld [vmem:[%s369 + $0x984] sm:$0xff]
        %v2454 = vld [vmem:[%s369 + $0x98c] sm:$0xf]
        %v2455 = vld [vmem:[%s369 + $0x990] sm:$0xff]
        %v2456 = vld [vmem:[%s369 + $0x998] sm:$0xff]
        %v2457 = vld [vmem:[%s369 + $0x9a0] sm:$0xff]
        %v2458 = vld [vmem:[%s369 + $0x9a8] sm:$0xff]
        %v2459 = vld [vmem:[%s369 + $0x9b0] sm:$0xf]
        %v2460 = vld [vmem:[%s369 + $0x9b4] sm:$0xff]
        %v2461 = vld [vmem:[%s369 + $0x9bc] sm:$0xff]
        %v2462 = vld [vmem:[%s369 + $0x9c4] sm:$0xff]
        %v2463 = vld [vmem:[%s369 + $0x9cc] sm:$0xff]
        %v2464 = vld [vmem:[%s369 + $0x9d4] sm:$0xf]
        %v2465 = vld [vmem:[%s369 + $0x9d8] sm:$0xff]
        %v2466 = vld [vmem:[%s369 + $0x9e0] sm:$0xff]
        %v2467 = vld [vmem:[%s369 + $0x9e8] sm:$0xff]
        %v2468 = vld [vmem:[%s369 + $0x9f0] sm:$0xff]
        %v2469 = vld [vmem:[%s369 + $0x9f8] sm:$0xf]
        %v2470 = vld [vmem:[%s369 + $0x9fc] sm:$0xff]
        %v2471 = vld [vmem:[%s369 + $0xa04] sm:$0xff]
        %v2472 = vld [vmem:[%s369 + $0xa0c] sm:$0xff]
        %v2473 = vld [vmem:[%s369 + $0xa14] sm:$0xff]
        %v2474 = vld [vmem:[%s369 + $0xa1c] sm:$0xf]
        %v2475 = vld [vmem:[%s369 + $0xa20] sm:$0xff]
        %v2476 = vld [vmem:[%s369 + $0xa28] sm:$0xff]
        %v2477 = vld [vmem:[%s369 + $0xa30] sm:$0xff]
        %v2478 = vld [vmem:[%s369 + $0xa38] sm:$0xff]
        %v2479 = vld [vmem:[%s369 + $0xa40] sm:$0xf]
        %v2480 = vld [vmem:[%s369 + $0xa44] sm:$0xff]
        %v2481 = vld [vmem:[%s369 + $0xa4c] sm:$0xff]
        %v2482 = vld [vmem:[%s369 + $0xa54] sm:$0xff]
        %v2483 = vld [vmem:[%s369 + $0xa5c] sm:$0xff]
        %v2484 = vld [vmem:[%s369 + $0xa64] sm:$0xf]
        %v2485 = vld [vmem:[%s369 + $0xa68] sm:$0xff]
        %v2486 = vld [vmem:[%s369 + $0xa70] sm:$0xff]
        %v2487 = vld [vmem:[%s369 + $0xa78] sm:$0xff]
        %v2488 = vld [vmem:[%s369 + $0xa80] sm:$0xff]
        %v2489 = vld [vmem:[%s369 + $0xa88] sm:$0xf]
        %v2490 = vld [vmem:[%s369 + $0xa8c] sm:$0xff]
        %v2491 = vld [vmem:[%s369 + $0xa94] sm:$0xff]
        %v2492 = vld [vmem:[%s369 + $0xa9c] sm:$0xff]
        %v2493 = vld [vmem:[%s369 + $0xaa4] sm:$0xff]
        %v2494 = vld [vmem:[%s369 + $0xaac] sm:$0xf]
        %v2495 = vld [vmem:[%s369 + $0xab0] sm:$0xff]
        %v2496 = vld [vmem:[%s369 + $0xab8] sm:$0xff]
        %v2497 = vld [vmem:[%s369 + $0xac0] sm:$0xff]
        %v2498 = vld [vmem:[%s369 + $0xac8] sm:$0xff]
        %v2499 = vld [vmem:[%s369 + $0xad0] sm:$0xf]
        %v2500 = vld [vmem:[%s369 + $0xad4] sm:$0xff]
        %v2501 = vld [vmem:[%s369 + $0xadc] sm:$0xff]
        %v2502 = vld [vmem:[%s369 + $0xae4] sm:$0xff]
        %v2503 = vld [vmem:[%s369 + $0xaec] sm:$0xff]
        %v2504 = vld [vmem:[%s369 + $0xaf4] sm:$0xf]
        %v2505 = vld [vmem:[%s369 + $0xaf8] sm:$0xff]
        %v2506 = vld [vmem:[%s369 + $0xb00] sm:$0xff]
        %v2507 = vld [vmem:[%s369 + $0xb08] sm:$0xff]
        %v2508 = vld [vmem:[%s369 + $0xb10] sm:$0xff]
        %v2509 = vld [vmem:[%s369 + $0xb18] sm:$0xf]
        %v2510 = vld [vmem:[%s369 + $0xb1c] sm:$0xff]
        %v2511 = vld [vmem:[%s369 + $0xb24] sm:$0xff]
        %v2512 = vld [vmem:[%s369 + $0xb2c] sm:$0xff]
        %v2513 = vld [vmem:[%s369 + $0xb34] sm:$0xff]
        %v2514 = vld [vmem:[%s369 + $0xb3c] sm:$0xf]
        %v2515 = vld [vmem:[%s369 + $0xb40] sm:$0xff]
        %v2516 = vld [vmem:[%s369 + $0xb48] sm:$0xff]
        %v2517 = vld [vmem:[%s369 + $0xb50] sm:$0xff]
        %v2518 = vld [vmem:[%s369 + $0xb58] sm:$0xff]
        %v2519 = vld [vmem:[%s369 + $0xb60] sm:$0xf]
        %v2520 = vld [vmem:[%s369 + $0xb64] sm:$0xff]
        %v2521 = vld [vmem:[%s369 + $0xb6c] sm:$0xff]
        %v2522 = vld [vmem:[%s369 + $0xb74] sm:$0xff]
        %v2523 = vld [vmem:[%s369 + $0xb7c] sm:$0xff]
        %v2524 = vld [vmem:[%s369 + $0xb84] sm:$0xf]
        %v2525 = vld [vmem:[%s369 + $0xb88] sm:$0xff]
        %v2526 = vld [vmem:[%s369 + $0xb90] sm:$0xff]
        %v2527 = vld [vmem:[%s369 + $0xb98] sm:$0xff]
        %v2528 = vld [vmem:[%s369 + $0xba0] sm:$0xff]
        %v2529 = vld [vmem:[%s369 + $0xba8] sm:$0xf]
        %v2530 = vld [vmem:[%s369 + $0xbac] sm:$0xff]
        %v2531 = vld [vmem:[%s369 + $0xbb4] sm:$0xff]
        %v2532 = vld [vmem:[%s369 + $0xbbc] sm:$0xff]
        %v2533 = vld [vmem:[%s369 + $0xbc4] sm:$0xff]
        %v2534 = vld [vmem:[%s369 + $0xbcc] sm:$0xf]
        %v2535 = vld [vmem:[%s369 + $0xbd0] sm:$0xff]
        %v2536 = vld [vmem:[%s369 + $0xbd8] sm:$0xff]
        %v2537 = vld [vmem:[%s369 + $0xbe0] sm:$0xff]
        %v2538 = vld [vmem:[%s369 + $0xbe8] sm:$0xff]
        %v2539 = vld [vmem:[%s369 + $0xbf0] sm:$0xf]
        %v2540 = vld [vmem:[%s369 + $0xbf4] sm:$0xff]
        %v2541 = vld [vmem:[%s369 + $0xbfc] sm:$0xff]
        %v2542 = vld [vmem:[%s369 + $0xc04] sm:$0xff]
        %v2543 = vld [vmem:[%s369 + $0xc0c] sm:$0xff]
        %v2544 = vld [vmem:[%s369 + $0xc14] sm:$0xf]
        %v2545 = vld [vmem:[%s369 + $0xc18] sm:$0xff]
        %v2546 = vld [vmem:[%s369 + $0xc20] sm:$0xff]
        %v2547 = vld [vmem:[%s369 + $0xc28] sm:$0xff]
        %v2548 = vld [vmem:[%s369 + $0xc30] sm:$0xff]
        %v2549 = vld [vmem:[%s369 + $0xc38] sm:$0xf]
        %v2550 = vld [vmem:[%s369 + $0xc3c] sm:$0xff]
        %v2551 = vld [vmem:[%s369 + $0xc44] sm:$0xff]
        %v2552 = vld [vmem:[%s369 + $0xc4c] sm:$0xff]
        %v2553 = vld [vmem:[%s369 + $0xc54] sm:$0xff]
        %v2554 = vld [vmem:[%s369 + $0xc5c] sm:$0xf]
        %v2555 = vld [vmem:[%s369 + $0xc60] sm:$0xff]
        %v2556 = vld [vmem:[%s369 + $0xc68] sm:$0xff]
        %v2557 = vld [vmem:[%s369 + $0xc70] sm:$0xff]
        %v2558 = vld [vmem:[%s369 + $0xc78] sm:$0xff]
        %v2559 = vld [vmem:[%s369 + $0xc80] sm:$0xf]
        %v2560 = vld [vmem:[%s369 + $0xc84] sm:$0xff]
        %v2561 = vld [vmem:[%s369 + $0xc8c] sm:$0xff]
        %v2562 = vld [vmem:[%s369 + $0xc94] sm:$0xff]
        %v2563 = vld [vmem:[%s369 + $0xc9c] sm:$0xff]
        %v2564 = vld [vmem:[%s369 + $0xca4] sm:$0xf]
        %v2565 = vld [vmem:[%s369 + $0xca8] sm:$0xff]
        %v2566 = vld [vmem:[%s369 + $0xcb0] sm:$0xff]
        %v2567 = vld [vmem:[%s369 + $0xcb8] sm:$0xff]
        %v2568 = vld [vmem:[%s369 + $0xcc0] sm:$0xff]
        %v2569 = vld [vmem:[%s369 + $0xcc8] sm:$0xf]
        %v2570 = vld [vmem:[%s369 + $0xccc] sm:$0xff]
        %v2571 = vld [vmem:[%s369 + $0xcd4] sm:$0xff]
        %v2572 = vld [vmem:[%s369 + $0xcdc] sm:$0xff]
        %v2573 = vld [vmem:[%s369 + $0xce4] sm:$0xff]
        %v2574 = vld [vmem:[%s369 + $0xcec] sm:$0xf]
        %v2575 = vld [vmem:[%s369 + $0xcf0] sm:$0xff]
        %v2576 = vld [vmem:[%s369 + $0xcf8] sm:$0xff]
        %v2577 = vld [vmem:[%s369 + $0xd00] sm:$0xff]
        %v2578 = vld [vmem:[%s369 + $0xd08] sm:$0xff]
        %v2579 = vld [vmem:[%s369 + $0xd10] sm:$0xf]
        %v2580 = vld [vmem:[%s369 + $0xd14] sm:$0xff]
        %v2581 = vld [vmem:[%s369 + $0xd1c] sm:$0xff]
        %v2582 = vld [vmem:[%s369 + $0xd24] sm:$0xff]
        %v2583 = vld [vmem:[%s369 + $0xd2c] sm:$0xff]
        %v2584 = vld [vmem:[%s369 + $0xd34] sm:$0xf]
        %v2585 = vld [vmem:[%s369 + $0xd38] sm:$0xff]
        %v2586 = vld [vmem:[%s369 + $0xd40] sm:$0xff]
        %v2587 = vld [vmem:[%s369 + $0xd48] sm:$0xff]
        %v2588 = vld [vmem:[%s369 + $0xd50] sm:$0xff]
        %v2589 = vld [vmem:[%s369 + $0xd58] sm:$0xf]
        %v2590 = vld [vmem:[%s369 + $0xd5c] sm:$0xff]
        %v2591 = vld [vmem:[%s369 + $0xd64] sm:$0xff]
        %v2592 = vld [vmem:[%s369 + $0xd6c] sm:$0xff]
        %v2593 = vld [vmem:[%s369 + $0xd74] sm:$0xff]
        %v2594 = vld [vmem:[%s369 + $0xd7c] sm:$0xf]
        %v2595 = vld [vmem:[%s379] sm:$0xff]
        %v2596 = vld [vmem:[%s379 + $0x8] sm:$0x1]
        %v2599 = vperm.slane %v2595, 0
        %v2600 = vperm.slane %v2595, 1
        %v2601 = vperm.slane %v2595, 2
        %v2602 = vperm.slane %v2595, 3
        %v2603 = vperm.slane %v2595, 4
        %v2604 = vperm.slane %v2595, 5
        %v2605 = vperm.slane %v2595, 6
        %v2606 = vperm.slane %v2595, 7
        %v2607 = vperm.slane %v2596, 0
        %v2623 = vunpack.c.l.b16 %v2109
        %v2624 = vunpack.c.h.b16 %v2109
        %v2625 = vunpack.c.l.b16 %v2110
        %v2626 = vunpack.c.h.b16 %v2110
        %v2627 = vunpack.c.l.b16 %v2111
        %v2628 = vunpack.c.h.b16 %v2111
        %v2629 = vunpack.c.l.b16 %v2112
        %v2630 = vunpack.c.h.b16 %v2112
        %v2631 = vunpack.c.l.b16 %v2113
        %v2632 = vunpack.c.h.b16 %v2113
        %v2633 = vunpack.c.l.b16 %v2114
        %v2634 = vunpack.c.h.b16 %v2114
        %v2635 = vpack.c.b16 %v2629, %v2623
        %v2636 = vpack.c.b16 %v2630, %v2624
        %v2637 = vpack.c.b16 %v2631, %v2625
        %v2638 = vpack.c.b16 %v2632, %v2626
        %v2639 = vpack.c.b16 %v2633, %v2627
        %v2640 = vpack.c.b16 %v2634, %v2628
        %v3127 = vunpack.c.l.b16 %v2115
        %v3128 = vunpack.c.h.b16 %v2115
        %v3129 = vunpack.c.l.b16 %v2116
        %v3130 = vunpack.c.h.b16 %v2116
        %v3131 = vunpack.c.l.b16 %v2117
        %v3132 = vunpack.c.h.b16 %v2117
        %v3133 = vunpack.c.l.b16 %v2118
        %v3134 = vunpack.c.h.b16 %v2118
        %v3135 = vunpack.c.l.b16 %v2119
        %v3136 = vunpack.c.l.b16 %v2120
        %v3137 = vunpack.c.h.b16 %v2120
        %v3138 = vunpack.c.l.b16 %v2121
        %v3139 = vunpack.c.h.b16 %v2121
        %v3140 = vunpack.c.l.b16 %v2122
        %v3141 = vunpack.c.h.b16 %v2122
        %v3142 = vunpack.c.l.b16 %v2123
        %v3143 = vunpack.c.h.b16 %v2123
        %v3144 = vunpack.c.l.b16 %v2124
        %v3145 = vunpack.c.l.b16 %v2125
        %v3146 = vunpack.c.h.b16 %v2125
        %v3147 = vunpack.c.l.b16 %v2126
        %v3148 = vunpack.c.h.b16 %v2126
        %v3149 = vunpack.c.l.b16 %v2127
        %v3150 = vunpack.c.h.b16 %v2127
        %v3151 = vunpack.c.l.b16 %v2128
        %v3152 = vunpack.c.h.b16 %v2128
        %v3153 = vunpack.c.l.b16 %v2129
        %v3154 = vunpack.c.l.b16 %v2130
        %v3155 = vunpack.c.h.b16 %v2130
        %v3156 = vunpack.c.l.b16 %v2131
        %v3157 = vunpack.c.h.b16 %v2131
        %v3158 = vunpack.c.l.b16 %v2132
        %v3159 = vunpack.c.h.b16 %v2132
        %v3160 = vunpack.c.l.b16 %v2133
        %v3161 = vunpack.c.h.b16 %v2133
        %v3162 = vunpack.c.l.b16 %v2134
        %v3163 = vunpack.c.l.b16 %v2135
        %v3164 = vunpack.c.h.b16 %v2135
        %v3165 = vunpack.c.l.b16 %v2136
        %v3166 = vunpack.c.h.b16 %v2136
        %v3167 = vunpack.c.l.b16 %v2137
        %v3168 = vunpack.c.h.b16 %v2137
        %v3169 = vunpack.c.l.b16 %v2138
        %v3170 = vunpack.c.h.b16 %v2138
        %v3171 = vunpack.c.l.b16 %v2139
        %v3172 = vunpack.c.l.b16 %v2140
        %v3173 = vunpack.c.h.b16 %v2140
        %v3174 = vunpack.c.l.b16 %v2141
        %v3175 = vunpack.c.h.b16 %v2141
        %v3176 = vunpack.c.l.b16 %v2142
        %v3177 = vunpack.c.h.b16 %v2142
        %v3178 = vunpack.c.l.b16 %v2143
        %v3179 = vunpack.c.h.b16 %v2143
        %v3180 = vunpack.c.l.b16 %v2144
        %v3181 = vunpack.c.l.b16 %v2145
        %v3182 = vunpack.c.h.b16 %v2145
        %v3183 = vunpack.c.l.b16 %v2146
        %v3184 = vunpack.c.h.b16 %v2146
        %v3185 = vunpack.c.l.b16 %v2147
        %v3186 = vunpack.c.h.b16 %v2147
        %v3187 = vunpack.c.l.b16 %v2148
        %v3188 = vunpack.c.h.b16 %v2148
        %v3189 = vunpack.c.l.b16 %v2149
        %v3190 = vunpack.c.l.b16 %v2150
        %v3191 = vunpack.c.h.b16 %v2150
        %v3192 = vunpack.c.l.b16 %v2151
        %v3193 = vunpack.c.h.b16 %v2151
        %v3194 = vunpack.c.l.b16 %v2152
        %v3195 = vunpack.c.h.b16 %v2152
        %v3196 = vunpack.c.l.b16 %v2153
        %v3197 = vunpack.c.h.b16 %v2153
        %v3198 = vunpack.c.l.b16 %v2154
        %v3199 = vunpack.c.l.b16 %v2155
        %v3200 = vunpack.c.h.b16 %v2155
        %v3201 = vunpack.c.l.b16 %v2156
        %v3202 = vunpack.c.h.b16 %v2156
        %v3203 = vunpack.c.l.b16 %v2157
        %v3204 = vunpack.c.h.b16 %v2157
        %v3205 = vunpack.c.l.b16 %v2158
        %v3206 = vunpack.c.h.b16 %v2158
        %v3207 = vunpack.c.l.b16 %v2159
        %v3208 = vunpack.c.l.b16 %v2160
        %v3209 = vunpack.c.h.b16 %v2160
        %v3210 = vunpack.c.l.b16 %v2161
        %v3211 = vunpack.c.h.b16 %v2161
        %v3212 = vunpack.c.l.b16 %v2162
        %v3213 = vunpack.c.h.b16 %v2162
        %v3214 = vunpack.c.l.b16 %v2163
        %v3215 = vunpack.c.h.b16 %v2163
        %v3216 = vunpack.c.l.b16 %v2164
        %v3217 = vunpack.c.l.b16 %v2165
        %v3218 = vunpack.c.h.b16 %v2165
        %v3219 = vunpack.c.l.b16 %v2166
        %v3220 = vunpack.c.h.b16 %v2166
        %v3221 = vunpack.c.l.b16 %v2167
        %v3222 = vunpack.c.h.b16 %v2167
        %v3223 = vunpack.c.l.b16 %v2168
        %v3224 = vunpack.c.h.b16 %v2168
        %v3225 = vunpack.c.l.b16 %v2169
        %v3226 = vunpack.c.l.b16 %v2170
        %v3227 = vunpack.c.h.b16 %v2170
        %v3228 = vunpack.c.l.b16 %v2171
        %v3229 = vunpack.c.h.b16 %v2171
        %v3230 = vunpack.c.l.b16 %v2172
        %v3231 = vunpack.c.h.b16 %v2172
        %v3232 = vunpack.c.l.b16 %v2173
        %v3233 = vunpack.c.h.b16 %v2173
        %v3234 = vunpack.c.l.b16 %v2174
        %v3235 = vunpack.c.l.b16 %v2175
        %v3236 = vunpack.c.h.b16 %v2175
        %v3237 = vunpack.c.l.b16 %v2176
        %v3238 = vunpack.c.h.b16 %v2176
        %v3239 = vunpack.c.l.b16 %v2177
        %v3240 = vunpack.c.h.b16 %v2177
        %v3241 = vunpack.c.l.b16 %v2178
        %v3242 = vunpack.c.h.b16 %v2178
        %v3243 = vunpack.c.l.b16 %v2179
        %v3244 = vunpack.c.l.b16 %v2180
        %v3245 = vunpack.c.h.b16 %v2180
        %v3246 = vunpack.c.l.b16 %v2181
        %v3247 = vunpack.c.h.b16 %v2181
        %v3248 = vunpack.c.l.b16 %v2182
        %v3249 = vunpack.c.h.b16 %v2182
        %v3250 = vunpack.c.l.b16 %v2183
        %v3251 = vunpack.c.h.b16 %v2183
        %v3252 = vunpack.c.l.b16 %v2184
        %v3253 = vunpack.c.l.b16 %v2185
        %v3254 = vunpack.c.h.b16 %v2185
        %v3255 = vunpack.c.l.b16 %v2186
        %v3256 = vunpack.c.h.b16 %v2186
        %v3257 = vunpack.c.l.b16 %v2187
        %v3258 = vunpack.c.h.b16 %v2187
        %v3259 = vunpack.c.l.b16 %v2188
        %v3260 = vunpack.c.h.b16 %v2188
        %v3261 = vunpack.c.l.b16 %v2189
        %v3262 = vunpack.c.l.b16 %v2190
        %v3263 = vunpack.c.h.b16 %v2190
        %v3264 = vunpack.c.l.b16 %v2191
        %v3265 = vunpack.c.h.b16 %v2191
        %v3266 = vunpack.c.l.b16 %v2192
        %v3267 = vunpack.c.h.b16 %v2192
        %v3268 = vunpack.c.l.b16 %v2193
        %v3269 = vunpack.c.h.b16 %v2193
        %v3270 = vunpack.c.l.b16 %v2194
        %v3271 = vunpack.c.l.b16 %v2195
        %v3272 = vunpack.c.h.b16 %v2195
        %v3273 = vunpack.c.l.b16 %v2196
        %v3274 = vunpack.c.h.b16 %v2196
        %v3275 = vunpack.c.l.b16 %v2197
        %v3276 = vunpack.c.h.b16 %v2197
        %v3277 = vunpack.c.l.b16 %v2198
        %v3278 = vunpack.c.h.b16 %v2198
        %v3279 = vunpack.c.l.b16 %v2199
        %v3280 = vunpack.c.l.b16 %v2200
        %v3281 = vunpack.c.h.b16 %v2200
        %v3282 = vunpack.c.l.b16 %v2201
        %v3283 = vunpack.c.h.b16 %v2201
        %v3284 = vunpack.c.l.b16 %v2202
        %v3285 = vunpack.c.h.b16 %v2202
        %v3286 = vunpack.c.l.b16 %v2203
        %v3287 = vunpack.c.h.b16 %v2203
        %v3288 = vunpack.c.l.b16 %v2204
        %v3289 = vunpack.c.l.b16 %v2205
        %v3290 = vunpack.c.h.b16 %v2205
        %v3291 = vunpack.c.l.b16 %v2206
        %v3292 = vunpack.c.h.b16 %v2206
        %v3293 = vunpack.c.l.b16 %v2207
        %v3294 = vunpack.c.h.b16 %v2207
        %v3295 = vunpack.c.l.b16 %v2208
        %v3296 = vunpack.c.h.b16 %v2208
        %v3297 = vunpack.c.l.b16 %v2209
        %v3298 = vunpack.c.l.b16 %v2210
        %v3299 = vunpack.c.h.b16 %v2210
        %v3300 = vunpack.c.l.b16 %v2211
        %v3301 = vunpack.c.h.b16 %v2211
        %v3302 = vunpack.c.l.b16 %v2212
        %v3303 = vunpack.c.h.b16 %v2212
        %v3304 = vunpack.c.l.b16 %v2213
        %v3305 = vunpack.c.h.b16 %v2213
        %v3306 = vunpack.c.l.b16 %v2214
        %v3307 = vunpack.c.l.b16 %v2215
        %v3308 = vunpack.c.h.b16 %v2215
        %v3309 = vunpack.c.l.b16 %v2216
        %v3310 = vunpack.c.h.b16 %v2216
        %v3311 = vunpack.c.l.b16 %v2217
        %v3312 = vunpack.c.h.b16 %v2217
        %v3313 = vunpack.c.l.b16 %v2218
        %v3314 = vunpack.c.h.b16 %v2218
        %v3315 = vunpack.c.l.b16 %v2219
        %v3316 = vunpack.c.l.b16 %v2220
        %v3317 = vunpack.c.h.b16 %v2220
        %v3318 = vunpack.c.l.b16 %v2221
        %v3319 = vunpack.c.h.b16 %v2221
        %v3320 = vunpack.c.l.b16 %v2222
        %v3321 = vunpack.c.h.b16 %v2222
        %v3322 = vunpack.c.l.b16 %v2223
        %v3323 = vunpack.c.h.b16 %v2223
        %v3324 = vunpack.c.l.b16 %v2224
        %v3325 = vunpack.c.l.b16 %v2225
        %v3326 = vunpack.c.h.b16 %v2225
        %v3327 = vunpack.c.l.b16 %v2226
        %v3328 = vunpack.c.h.b16 %v2226
        %v3329 = vunpack.c.l.b16 %v2227
        %v3330 = vunpack.c.h.b16 %v2227
        %v3331 = vunpack.c.l.b16 %v2228
        %v3332 = vunpack.c.h.b16 %v2228
        %v3333 = vunpack.c.l.b16 %v2229
        %v3334 = vunpack.c.l.b16 %v2230
        %v3335 = vunpack.c.h.b16 %v2230
        %v3336 = vunpack.c.l.b16 %v2231
        %v3337 = vunpack.c.h.b16 %v2231
        %v3338 = vunpack.c.l.b16 %v2232
        %v3339 = vunpack.c.h.b16 %v2232
        %v3340 = vunpack.c.l.b16 %v2233
        %v3341 = vunpack.c.h.b16 %v2233
        %v3342 = vunpack.c.l.b16 %v2234
        %v3343 = vunpack.c.l.b16 %v2235
        %v3344 = vunpack.c.h.b16 %v2235
        %v3345 = vunpack.c.l.b16 %v2236
        %v3346 = vunpack.c.h.b16 %v2236
        %v3347 = vunpack.c.l.b16 %v2237
        %v3348 = vunpack.c.h.b16 %v2237
        %v3349 = vunpack.c.l.b16 %v2238
        %v3350 = vunpack.c.h.b16 %v2238
        %v3351 = vunpack.c.l.b16 %v2239
        %v3352 = vunpack.c.l.b16 %v2240
        %v3353 = vunpack.c.h.b16 %v2240
        %v3354 = vunpack.c.l.b16 %v2241
        %v3355 = vunpack.c.h.b16 %v2241
        %v3356 = vunpack.c.l.b16 %v2242
        %v3357 = vunpack.c.h.b16 %v2242
        %v3358 = vunpack.c.l.b16 %v2243
        %v3359 = vunpack.c.h.b16 %v2243
        %v3360 = vunpack.c.l.b16 %v2244
        %v3361 = vunpack.c.l.b16 %v2245
        %v3362 = vunpack.c.h.b16 %v2245
        %v3363 = vunpack.c.l.b16 %v2246
        %v3364 = vunpack.c.h.b16 %v2246
        %v3365 = vunpack.c.l.b16 %v2247
        %v3366 = vunpack.c.h.b16 %v2247
        %v3367 = vunpack.c.l.b16 %v2248
        %v3368 = vunpack.c.h.b16 %v2248
        %v3369 = vunpack.c.l.b16 %v2249
        %v3370 = vunpack.c.l.b16 %v2250
        %v3371 = vunpack.c.h.b16 %v2250
        %v3372 = vunpack.c.l.b16 %v2251
        %v3373 = vunpack.c.h.b16 %v2251
        %v3374 = vunpack.c.l.b16 %v2252
        %v3375 = vunpack.c.h.b16 %v2252
        %v3376 = vunpack.c.l.b16 %v2253
        %v3377 = vunpack.c.h.b16 %v2253
        %v3378 = vunpack.c.l.b16 %v2254
        %v3379 = vunpack.c.l.b16 %v2255
        %v3380 = vunpack.c.h.b16 %v2255
        %v3381 = vunpack.c.l.b16 %v2256
        %v3382 = vunpack.c.h.b16 %v2256
        %v3383 = vunpack.c.l.b16 %v2257
        %v3384 = vunpack.c.h.b16 %v2257
        %v3385 = vunpack.c.l.b16 %v2258
        %v3386 = vunpack.c.h.b16 %v2258
        %v3387 = vunpack.c.l.b16 %v2259
        %v3388 = vunpack.c.l.b16 %v2260
        %v3389 = vunpack.c.h.b16 %v2260
        %v3390 = vunpack.c.l.b16 %v2261
        %v3391 = vunpack.c.h.b16 %v2261
        %v3392 = vunpack.c.l.b16 %v2262
        %v3393 = vunpack.c.h.b16 %v2262
        %v3394 = vunpack.c.l.b16 %v2263
        %v3395 = vunpack.c.h.b16 %v2263
        %v3396 = vunpack.c.l.b16 %v2264
        %v3397 = vunpack.c.l.b16 %v2265
        %v3398 = vunpack.c.h.b16 %v2265
        %v3399 = vunpack.c.l.b16 %v2266
        %v3400 = vunpack.c.h.b16 %v2266
        %v3401 = vunpack.c.l.b16 %v2267
        %v3402 = vunpack.c.h.b16 %v2267
        %v3403 = vunpack.c.l.b16 %v2268
        %v3404 = vunpack.c.h.b16 %v2268
        %v3405 = vunpack.c.l.b16 %v2269
        %v3406 = vunpack.c.l.b16 %v2270
        %v3407 = vunpack.c.h.b16 %v2270
        %v3408 = vunpack.c.l.b16 %v2271
        %v3409 = vunpack.c.h.b16 %v2271
        %v3410 = vunpack.c.l.b16 %v2272
        %v3411 = vunpack.c.h.b16 %v2272
        %v3412 = vunpack.c.l.b16 %v2273
        %v3413 = vunpack.c.h.b16 %v2273
        %v3414 = vunpack.c.l.b16 %v2274
        %v3415 = vunpack.c.l.b16 %v2275
        %v3416 = vunpack.c.h.b16 %v2275
        %v3417 = vunpack.c.l.b16 %v2276
        %v3418 = vunpack.c.h.b16 %v2276
        %v3419 = vunpack.c.l.b16 %v2277
        %v3420 = vunpack.c.h.b16 %v2277
        %v3421 = vunpack.c.l.b16 %v2278
        %v3422 = vunpack.c.h.b16 %v2278
        %v3423 = vunpack.c.l.b16 %v2279
        %v3424 = vunpack.c.l.b16 %v2280
        %v3425 = vunpack.c.h.b16 %v2280
        %v3426 = vunpack.c.l.b16 %v2281
        %v3427 = vunpack.c.h.b16 %v2281
        %v3428 = vunpack.c.l.b16 %v2282
        %v3429 = vunpack.c.h.b16 %v2282
        %v3430 = vunpack.c.l.b16 %v2283
        %v3431 = vunpack.c.h.b16 %v2283
        %v3432 = vunpack.c.l.b16 %v2284
        %v3433 = vunpack.c.l.b16 %v2285
        %v3434 = vunpack.c.h.b16 %v2285
        %v3435 = vunpack.c.l.b16 %v2286
        %v3436 = vunpack.c.h.b16 %v2286
        %v3437 = vunpack.c.l.b16 %v2287
        %v3438 = vunpack.c.h.b16 %v2287
        %v3439 = vunpack.c.l.b16 %v2288
        %v3440 = vunpack.c.h.b16 %v2288
        %v3441 = vunpack.c.l.b16 %v2289
        %v3442 = vunpack.c.l.b16 %v2290
        %v3443 = vunpack.c.h.b16 %v2290
        %v3444 = vunpack.c.l.b16 %v2291
        %v3445 = vunpack.c.h.b16 %v2291
        %v3446 = vunpack.c.l.b16 %v2292
        %v3447 = vunpack.c.h.b16 %v2292
        %v3448 = vunpack.c.l.b16 %v2293
        %v3449 = vunpack.c.h.b16 %v2293
        %v3450 = vunpack.c.l.b16 %v2294
        %v3451 = vunpack.c.l.b16 %v2295
        %v3452 = vunpack.c.h.b16 %v2295
        %v3453 = vunpack.c.l.b16 %v2296
        %v3454 = vunpack.c.h.b16 %v2296
        %v3455 = vunpack.c.l.b16 %v2297
        %v3456 = vunpack.c.h.b16 %v2297
        %v3457 = vunpack.c.l.b16 %v2298
        %v3458 = vunpack.c.h.b16 %v2298
        %v3459 = vunpack.c.l.b16 %v2299
        %v3460 = vunpack.c.l.b16 %v2300
        %v3461 = vunpack.c.h.b16 %v2300
        %v3462 = vunpack.c.l.b16 %v2301
        %v3463 = vunpack.c.h.b16 %v2301
        %v3464 = vunpack.c.l.b16 %v2302
        %v3465 = vunpack.c.h.b16 %v2302
        %v3466 = vunpack.c.l.b16 %v2303
        %v3467 = vunpack.c.h.b16 %v2303
        %v3468 = vunpack.c.l.b16 %v2304
        %v3469 = vunpack.c.l.b16 %v2305
        %v3470 = vunpack.c.h.b16 %v2305
        %v3471 = vunpack.c.l.b16 %v2306
        %v3472 = vunpack.c.h.b16 %v2306
        %v3473 = vunpack.c.l.b16 %v2307
        %v3474 = vunpack.c.h.b16 %v2307
        %v3475 = vunpack.c.l.b16 %v2308
        %v3476 = vunpack.c.h.b16 %v2308
        %v3477 = vunpack.c.l.b16 %v2309
        %v3478 = vunpack.c.l.b16 %v2310
        %v3479 = vunpack.c.h.b16 %v2310
        %v3480 = vunpack.c.l.b16 %v2311
        %v3481 = vunpack.c.h.b16 %v2311
        %v3482 = vunpack.c.l.b16 %v2312
        %v3483 = vunpack.c.h.b16 %v2312
        %v3484 = vunpack.c.l.b16 %v2313
        %v3485 = vunpack.c.h.b16 %v2313
        %v3486 = vunpack.c.l.b16 %v2314
        %v3487 = vunpack.c.l.b16 %v2315
        %v3488 = vunpack.c.h.b16 %v2315
        %v3489 = vunpack.c.l.b16 %v2316
        %v3490 = vunpack.c.h.b16 %v2316
        %v3491 = vunpack.c.l.b16 %v2317
        %v3492 = vunpack.c.h.b16 %v2317
        %v3493 = vunpack.c.l.b16 %v2318
        %v3494 = vunpack.c.h.b16 %v2318
        %v3495 = vunpack.c.l.b16 %v2319
        %v3496 = vunpack.c.l.b16 %v2320
        %v3497 = vunpack.c.h.b16 %v2320
        %v3498 = vunpack.c.l.b16 %v2321
        %v3499 = vunpack.c.h.b16 %v2321
        %v3500 = vunpack.c.l.b16 %v2322
        %v3501 = vunpack.c.h.b16 %v2322
        %v3502 = vunpack.c.l.b16 %v2323
        %v3503 = vunpack.c.h.b16 %v2323
        %v3504 = vunpack.c.l.b16 %v2324
        %v3505 = vunpack.c.l.b16 %v2325
        %v3506 = vunpack.c.h.b16 %v2325
        %v3507 = vunpack.c.l.b16 %v2326
        %v3508 = vunpack.c.h.b16 %v2326
        %v3509 = vunpack.c.l.b16 %v2327
        %v3510 = vunpack.c.h.b16 %v2327
        %v3511 = vunpack.c.l.b16 %v2328
        %v3512 = vunpack.c.h.b16 %v2328
        %v3513 = vunpack.c.l.b16 %v2329
        %v3514 = vunpack.c.l.b16 %v2330
        %v3515 = vunpack.c.h.b16 %v2330
        %v3516 = vunpack.c.l.b16 %v2331
        %v3517 = vunpack.c.h.b16 %v2331
        %v3518 = vunpack.c.l.b16 %v2332
        %v3519 = vunpack.c.h.b16 %v2332
        %v3520 = vunpack.c.l.b16 %v2333
        %v3521 = vunpack.c.h.b16 %v2333
        %v3522 = vunpack.c.l.b16 %v2334
        %v3523 = vunpack.c.l.b16 %v2335
        %v3524 = vunpack.c.h.b16 %v2335
        %v3525 = vunpack.c.l.b16 %v2336
        %v3526 = vunpack.c.h.b16 %v2336
        %v3527 = vunpack.c.l.b16 %v2337
        %v3528 = vunpack.c.h.b16 %v2337
        %v3529 = vunpack.c.l.b16 %v2338
        %v3530 = vunpack.c.h.b16 %v2338
        %v3531 = vunpack.c.l.b16 %v2339
        %v3532 = vunpack.c.l.b16 %v2340
        %v3533 = vunpack.c.h.b16 %v2340
        %v3534 = vunpack.c.l.b16 %v2341
        %v3535 = vunpack.c.h.b16 %v2341
        %v3536 = vunpack.c.l.b16 %v2342
        %v3537 = vunpack.c.h.b16 %v2342
        %v3538 = vunpack.c.l.b16 %v2343
        %v3539 = vunpack.c.h.b16 %v2343
        %v3540 = vunpack.c.l.b16 %v2344
        %v3541 = vunpack.c.l.b16 %v2345
        %v3542 = vunpack.c.h.b16 %v2345
        %v3543 = vunpack.c.l.b16 %v2346
        %v3544 = vunpack.c.h.b16 %v2346
        %v3545 = vunpack.c.l.b16 %v2347
        %v3546 = vunpack.c.h.b16 %v2347
        %v3547 = vunpack.c.l.b16 %v2348
        %v3548 = vunpack.c.h.b16 %v2348
        %v3549 = vunpack.c.l.b16 %v2349
        %v3550 = vunpack.c.l.b16 %v2350
        %v3551 = vunpack.c.h.b16 %v2350
        %v3552 = vunpack.c.l.b16 %v2351
        %v3553 = vunpack.c.h.b16 %v2351
        %v3554 = vunpack.c.l.b16 %v2352
        %v3555 = vunpack.c.h.b16 %v2352
        %v3556 = vunpack.c.l.b16 %v2353
        %v3557 = vunpack.c.h.b16 %v2353
        %v3558 = vunpack.c.l.b16 %v2354
        %v3559 = vunpack.c.l.b16 %v2355
        %v3560 = vunpack.c.h.b16 %v2355
        %v3561 = vunpack.c.l.b16 %v2356
        %v3562 = vunpack.c.h.b16 %v2356
        %v3563 = vunpack.c.l.b16 %v2357
        %v3564 = vunpack.c.h.b16 %v2357
        %v3565 = vunpack.c.l.b16 %v2358
        %v3566 = vunpack.c.h.b16 %v2358
        %v3567 = vunpack.c.l.b16 %v2359
        %v3568 = vunpack.c.l.b16 %v2360
        %v3569 = vunpack.c.h.b16 %v2360
        %v3570 = vunpack.c.l.b16 %v2361
        %v3571 = vunpack.c.h.b16 %v2361
        %v3572 = vunpack.c.l.b16 %v2362
        %v3573 = vunpack.c.h.b16 %v2362
        %v3574 = vunpack.c.l.b16 %v2363
        %v3575 = vunpack.c.h.b16 %v2363
        %v3576 = vunpack.c.l.b16 %v2364
        %v3577 = vunpack.c.l.b16 %v2365
        %v3578 = vunpack.c.h.b16 %v2365
        %v3579 = vunpack.c.l.b16 %v2366
        %v3580 = vunpack.c.h.b16 %v2366
        %v3581 = vunpack.c.l.b16 %v2367
        %v3582 = vunpack.c.h.b16 %v2367
        %v3583 = vunpack.c.l.b16 %v2368
        %v3584 = vunpack.c.h.b16 %v2368
        %v3585 = vunpack.c.l.b16 %v2369
        %v3586 = vunpack.c.l.b16 %v2370
        %v3587 = vunpack.c.h.b16 %v2370
        %v3588 = vunpack.c.l.b16 %v2371
        %v3589 = vunpack.c.h.b16 %v2371
        %v3590 = vunpack.c.l.b16 %v2372
        %v3591 = vunpack.c.h.b16 %v2372
        %v3592 = vunpack.c.l.b16 %v2373
        %v3593 = vunpack.c.h.b16 %v2373
        %v3594 = vunpack.c.l.b16 %v2374
        %v3595 = vunpack.c.l.b16 %v2375
        %v3596 = vunpack.c.h.b16 %v2375
        %v3597 = vunpack.c.l.b16 %v2376
        %v3598 = vunpack.c.h.b16 %v2376
        %v3599 = vunpack.c.l.b16 %v2377
        %v3600 = vunpack.c.h.b16 %v2377
        %v3601 = vunpack.c.l.b16 %v2378
        %v3602 = vunpack.c.h.b16 %v2378
        %v3603 = vunpack.c.l.b16 %v2379
        %v3604 = vunpack.c.l.b16 %v2380
        %v3605 = vunpack.c.h.b16 %v2380
        %v3606 = vunpack.c.l.b16 %v2381
        %v3607 = vunpack.c.h.b16 %v2381
        %v3608 = vunpack.c.l.b16 %v2382
        %v3609 = vunpack.c.h.b16 %v2382
        %v3610 = vunpack.c.l.b16 %v2383
        %v3611 = vunpack.c.h.b16 %v2383
        %v3612 = vunpack.c.l.b16 %v2384
        %v3613 = vunpack.c.l.b16 %v2385
        %v3614 = vunpack.c.h.b16 %v2385
        %v3615 = vunpack.c.l.b16 %v2386
        %v3616 = vunpack.c.h.b16 %v2386
        %v3617 = vunpack.c.l.b16 %v2387
        %v3618 = vunpack.c.h.b16 %v2387
        %v3619 = vunpack.c.l.b16 %v2388
        %v3620 = vunpack.c.h.b16 %v2388
        %v3621 = vunpack.c.l.b16 %v2389
        %v3622 = vunpack.c.l.b16 %v2390
        %v3623 = vunpack.c.h.b16 %v2390
        %v3624 = vunpack.c.l.b16 %v2391
        %v3625 = vunpack.c.h.b16 %v2391
        %v3626 = vunpack.c.l.b16 %v2392
        %v3627 = vunpack.c.h.b16 %v2392
        %v3628 = vunpack.c.l.b16 %v2393
        %v3629 = vunpack.c.h.b16 %v2393
        %v3630 = vunpack.c.l.b16 %v2394
        %v3631 = vunpack.c.l.b16 %v2395
        %v3632 = vunpack.c.h.b16 %v2395
        %v3633 = vunpack.c.l.b16 %v2396
        %v3634 = vunpack.c.h.b16 %v2396
        %v3635 = vunpack.c.l.b16 %v2397
        %v3636 = vunpack.c.h.b16 %v2397
        %v3637 = vunpack.c.l.b16 %v2398
        %v3638 = vunpack.c.h.b16 %v2398
        %v3639 = vunpack.c.l.b16 %v2399
        %v3640 = vunpack.c.l.b16 %v2400
        %v3641 = vunpack.c.h.b16 %v2400
        %v3642 = vunpack.c.l.b16 %v2401
        %v3643 = vunpack.c.h.b16 %v2401
        %v3644 = vunpack.c.l.b16 %v2402
        %v3645 = vunpack.c.h.b16 %v2402
        %v3646 = vunpack.c.l.b16 %v2403
        %v3647 = vunpack.c.h.b16 %v2403
        %v3648 = vunpack.c.l.b16 %v2404
        %v3649 = vunpack.c.l.b16 %v2405
        %v3650 = vunpack.c.h.b16 %v2405
        %v3651 = vunpack.c.l.b16 %v2406
        %v3652 = vunpack.c.h.b16 %v2406
        %v3653 = vunpack.c.l.b16 %v2407
        %v3654 = vunpack.c.h.b16 %v2407
        %v3655 = vunpack.c.l.b16 %v2408
        %v3656 = vunpack.c.h.b16 %v2408
        %v3657 = vunpack.c.l.b16 %v2409
        %v3658 = vunpack.c.l.b16 %v2410
        %v3659 = vunpack.c.h.b16 %v2410
        %v3660 = vunpack.c.l.b16 %v2411
        %v3661 = vunpack.c.h.b16 %v2411
        %v3662 = vunpack.c.l.b16 %v2412
        %v3663 = vunpack.c.h.b16 %v2412
        %v3664 = vunpack.c.l.b16 %v2413
        %v3665 = vunpack.c.h.b16 %v2413
        %v3666 = vunpack.c.l.b16 %v2414
        %v3667 = vunpack.c.l.b16 %v2415
        %v3668 = vunpack.c.h.b16 %v2415
        %v3669 = vunpack.c.l.b16 %v2416
        %v3670 = vunpack.c.h.b16 %v2416
        %v3671 = vunpack.c.l.b16 %v2417
        %v3672 = vunpack.c.h.b16 %v2417
        %v3673 = vunpack.c.l.b16 %v2418
        %v3674 = vunpack.c.h.b16 %v2418
        %v3675 = vunpack.c.l.b16 %v2419
        %v3676 = vunpack.c.l.b16 %v2420
        %v3677 = vunpack.c.h.b16 %v2420
        %v3678 = vunpack.c.l.b16 %v2421
        %v3679 = vunpack.c.h.b16 %v2421
        %v3680 = vunpack.c.l.b16 %v2422
        %v3681 = vunpack.c.h.b16 %v2422
        %v3682 = vunpack.c.l.b16 %v2423
        %v3683 = vunpack.c.h.b16 %v2423
        %v3684 = vunpack.c.l.b16 %v2424
        %v3685 = vunpack.c.l.b16 %v2425
        %v3686 = vunpack.c.h.b16 %v2425
        %v3687 = vunpack.c.l.b16 %v2426
        %v3688 = vunpack.c.h.b16 %v2426
        %v3689 = vunpack.c.l.b16 %v2427
        %v3690 = vunpack.c.h.b16 %v2427
        %v3691 = vunpack.c.l.b16 %v2428
        %v3692 = vunpack.c.h.b16 %v2428
        %v3693 = vunpack.c.l.b16 %v2429
        %v3694 = vunpack.c.l.b16 %v2430
        %v3695 = vunpack.c.h.b16 %v2430
        %v3696 = vunpack.c.l.b16 %v2431
        %v3697 = vunpack.c.h.b16 %v2431
        %v3698 = vunpack.c.l.b16 %v2432
        %v3699 = vunpack.c.h.b16 %v2432
        %v3700 = vunpack.c.l.b16 %v2433
        %v3701 = vunpack.c.h.b16 %v2433
        %v3702 = vunpack.c.l.b16 %v2434
        %v3703 = vunpack.c.l.b16 %v2435
        %v3704 = vunpack.c.h.b16 %v2435
        %v3705 = vunpack.c.l.b16 %v2436
        %v3706 = vunpack.c.h.b16 %v2436
        %v3707 = vunpack.c.l.b16 %v2437
        %v3708 = vunpack.c.h.b16 %v2437
        %v3709 = vunpack.c.l.b16 %v2438
        %v3710 = vunpack.c.h.b16 %v2438
        %v3711 = vunpack.c.l.b16 %v2439
        %v3712 = vunpack.c.l.b16 %v2440
        %v3713 = vunpack.c.h.b16 %v2440
        %v3714 = vunpack.c.l.b16 %v2441
        %v3715 = vunpack.c.h.b16 %v2441
        %v3716 = vunpack.c.l.b16 %v2442
        %v3717 = vunpack.c.h.b16 %v2442
        %v3718 = vunpack.c.l.b16 %v2443
        %v3719 = vunpack.c.h.b16 %v2443
        %v3720 = vunpack.c.l.b16 %v2444
        %v3721 = vunpack.c.l.b16 %v2445
        %v3722 = vunpack.c.h.b16 %v2445
        %v3723 = vunpack.c.l.b16 %v2446
        %v3724 = vunpack.c.h.b16 %v2446
        %v3725 = vunpack.c.l.b16 %v2447
        %v3726 = vunpack.c.h.b16 %v2447
        %v3727 = vunpack.c.l.b16 %v2448
        %v3728 = vunpack.c.h.b16 %v2448
        %v3729 = vunpack.c.l.b16 %v2449
        %v3730 = vunpack.c.l.b16 %v2450
        %v3731 = vunpack.c.h.b16 %v2450
        %v3732 = vunpack.c.l.b16 %v2451
        %v3733 = vunpack.c.h.b16 %v2451
        %v3734 = vunpack.c.l.b16 %v2452
        %v3735 = vunpack.c.h.b16 %v2452
        %v3736 = vunpack.c.l.b16 %v2453
        %v3737 = vunpack.c.h.b16 %v2453
        %v3738 = vunpack.c.l.b16 %v2454
        %v3739 = vunpack.c.l.b16 %v2455
        %v3740 = vunpack.c.h.b16 %v2455
        %v3741 = vunpack.c.l.b16 %v2456
        %v3742 = vunpack.c.h.b16 %v2456
        %v3743 = vunpack.c.l.b16 %v2457
        %v3744 = vunpack.c.h.b16 %v2457
        %v3745 = vunpack.c.l.b16 %v2458
        %v3746 = vunpack.c.h.b16 %v2458
        %v3747 = vunpack.c.l.b16 %v2459
        %v3748 = vunpack.c.l.b16 %v2460
        %v3749 = vunpack.c.h.b16 %v2460
        %v3750 = vunpack.c.l.b16 %v2461
        %v3751 = vunpack.c.h.b16 %v2461
        %v3752 = vunpack.c.l.b16 %v2462
        %v3753 = vunpack.c.h.b16 %v2462
        %v3754 = vunpack.c.l.b16 %v2463
        %v3755 = vunpack.c.h.b16 %v2463
        %v3756 = vunpack.c.l.b16 %v2464
        %v3757 = vunpack.c.l.b16 %v2465
        %v3758 = vunpack.c.h.b16 %v2465
        %v3759 = vunpack.c.l.b16 %v2466
        %v3760 = vunpack.c.h.b16 %v2466
        %v3761 = vunpack.c.l.b16 %v2467
        %v3762 = vunpack.c.h.b16 %v2467
        %v3763 = vunpack.c.l.b16 %v2468
        %v3764 = vunpack.c.h.b16 %v2468
        %v3765 = vunpack.c.l.b16 %v2469
        %v3766 = vunpack.c.l.b16 %v2470
        %v3767 = vunpack.c.h.b16 %v2470
        %v3768 = vunpack.c.l.b16 %v2471
        %v3769 = vunpack.c.h.b16 %v2471
        %v3770 = vunpack.c.l.b16 %v2472
        %v3771 = vunpack.c.h.b16 %v2472
        %v3772 = vunpack.c.l.b16 %v2473
        %v3773 = vunpack.c.h.b16 %v2473
        %v3774 = vunpack.c.l.b16 %v2474
        %v3775 = vunpack.c.l.b16 %v2475
        %v3776 = vunpack.c.h.b16 %v2475
        %v3777 = vunpack.c.l.b16 %v2476
        %v3778 = vunpack.c.h.b16 %v2476
        %v3779 = vunpack.c.l.b16 %v2477
        %v3780 = vunpack.c.h.b16 %v2477
        %v3781 = vunpack.c.l.b16 %v2478
        %v3782 = vunpack.c.h.b16 %v2478
        %v3783 = vunpack.c.l.b16 %v2479
        %v3784 = vunpack.c.l.b16 %v2480
        %v3785 = vunpack.c.h.b16 %v2480
        %v3786 = vunpack.c.l.b16 %v2481
        %v3787 = vunpack.c.h.b16 %v2481
        %v3788 = vunpack.c.l.b16 %v2482
        %v3789 = vunpack.c.h.b16 %v2482
        %v3790 = vunpack.c.l.b16 %v2483
        %v3791 = vunpack.c.h.b16 %v2483
        %v3792 = vunpack.c.l.b16 %v2484
        %v3793 = vunpack.c.l.b16 %v2485
        %v3794 = vunpack.c.h.b16 %v2485
        %v3795 = vunpack.c.l.b16 %v2486
        %v3796 = vunpack.c.h.b16 %v2486
        %v3797 = vunpack.c.l.b16 %v2487
        %v3798 = vunpack.c.h.b16 %v2487
        %v3799 = vunpack.c.l.b16 %v2488
        %v3800 = vunpack.c.h.b16 %v2488
        %v3801 = vunpack.c.l.b16 %v2489
        %v3802 = vunpack.c.l.b16 %v2490
        %v3803 = vunpack.c.h.b16 %v2490
        %v3804 = vunpack.c.l.b16 %v2491
        %v3805 = vunpack.c.h.b16 %v2491
        %v3806 = vunpack.c.l.b16 %v2492
        %v3807 = vunpack.c.h.b16 %v2492
        %v3808 = vunpack.c.l.b16 %v2493
        %v3809 = vunpack.c.h.b16 %v2493
        %v3810 = vunpack.c.l.b16 %v2494
        %v3811 = vunpack.c.l.b16 %v2495
        %v3812 = vunpack.c.h.b16 %v2495
        %v3813 = vunpack.c.l.b16 %v2496
        %v3814 = vunpack.c.h.b16 %v2496
        %v3815 = vunpack.c.l.b16 %v2497
        %v3816 = vunpack.c.h.b16 %v2497
        %v3817 = vunpack.c.l.b16 %v2498
        %v3818 = vunpack.c.h.b16 %v2498
        %v3819 = vunpack.c.l.b16 %v2499
        %v3820 = vunpack.c.l.b16 %v2500
        %v3821 = vunpack.c.h.b16 %v2500
        %v3822 = vunpack.c.l.b16 %v2501
        %v3823 = vunpack.c.h.b16 %v2501
        %v3824 = vunpack.c.l.b16 %v2502
        %v3825 = vunpack.c.h.b16 %v2502
        %v3826 = vunpack.c.l.b16 %v2503
        %v3827 = vunpack.c.h.b16 %v2503
        %v3828 = vunpack.c.l.b16 %v2504
        %v3829 = vunpack.c.l.b16 %v2505
        %v3830 = vunpack.c.h.b16 %v2505
        %v3831 = vunpack.c.l.b16 %v2506
        %v3832 = vunpack.c.h.b16 %v2506
        %v3833 = vunpack.c.l.b16 %v2507
        %v3834 = vunpack.c.h.b16 %v2507
        %v3835 = vunpack.c.l.b16 %v2508
        %v3836 = vunpack.c.h.b16 %v2508
        %v3837 = vunpack.c.l.b16 %v2509
        %v3838 = vunpack.c.l.b16 %v2510
        %v3839 = vunpack.c.h.b16 %v2510
        %v3840 = vunpack.c.l.b16 %v2511
        %v3841 = vunpack.c.h.b16 %v2511
        %v3842 = vunpack.c.l.b16 %v2512
        %v3843 = vunpack.c.h.b16 %v2512
        %v3844 = vunpack.c.l.b16 %v2513
        %v3845 = vunpack.c.h.b16 %v2513
        %v3846 = vunpack.c.l.b16 %v2514
        %v3847 = vunpack.c.l.b16 %v2515
        %v3848 = vunpack.c.h.b16 %v2515
        %v3849 = vunpack.c.l.b16 %v2516
        %v3850 = vunpack.c.h.b16 %v2516
        %v3851 = vunpack.c.l.b16 %v2517
        %v3852 = vunpack.c.h.b16 %v2517
        %v3853 = vunpack.c.l.b16 %v2518
        %v3854 = vunpack.c.h.b16 %v2518
        %v3855 = vunpack.c.l.b16 %v2519
        %v3856 = vunpack.c.l.b16 %v2520
        %v3857 = vunpack.c.h.b16 %v2520
        %v3858 = vunpack.c.l.b16 %v2521
        %v3859 = vunpack.c.h.b16 %v2521
        %v3860 = vunpack.c.l.b16 %v2522
        %v3861 = vunpack.c.h.b16 %v2522
        %v3862 = vunpack.c.l.b16 %v2523
        %v3863 = vunpack.c.h.b16 %v2523
        %v3864 = vunpack.c.l.b16 %v2524
        %v3865 = vunpack.c.l.b16 %v2525
        %v3866 = vunpack.c.h.b16 %v2525
        %v3867 = vunpack.c.l.b16 %v2526
        %v3868 = vunpack.c.h.b16 %v2526
        %v3869 = vunpack.c.l.b16 %v2527
        %v3870 = vunpack.c.h.b16 %v2527
        %v3871 = vunpack.c.l.b16 %v2528
        %v3872 = vunpack.c.h.b16 %v2528
        %v3873 = vunpack.c.l.b16 %v2529
        %v3874 = vunpack.c.l.b16 %v2530
        %v3875 = vunpack.c.h.b16 %v2530
        %v3876 = vunpack.c.l.b16 %v2531
        %v3877 = vunpack.c.h.b16 %v2531
        %v3878 = vunpack.c.l.b16 %v2532
        %v3879 = vunpack.c.h.b16 %v2532
        %v3880 = vunpack.c.l.b16 %v2533
        %v3881 = vunpack.c.h.b16 %v2533
        %v3882 = vunpack.c.l.b16 %v2534
        %v3883 = vunpack.c.l.b16 %v2535
        %v3884 = vunpack.c.h.b16 %v2535
        %v3885 = vunpack.c.l.b16 %v2536
        %v3886 = vunpack.c.h.b16 %v2536
        %v3887 = vunpack.c.l.b16 %v2537
        %v3888 = vunpack.c.h.b16 %v2537
        %v3889 = vunpack.c.l.b16 %v2538
        %v3890 = vunpack.c.h.b16 %v2538
        %v3891 = vunpack.c.l.b16 %v2539
        %v3892 = vunpack.c.l.b16 %v2540
        %v3893 = vunpack.c.h.b16 %v2540
        %v3894 = vunpack.c.l.b16 %v2541
        %v3895 = vunpack.c.h.b16 %v2541
        %v3896 = vunpack.c.l.b16 %v2542
        %v3897 = vunpack.c.h.b16 %v2542
        %v3898 = vunpack.c.l.b16 %v2543
        %v3899 = vunpack.c.h.b16 %v2543
        %v3900 = vunpack.c.l.b16 %v2544
        %v3901 = vunpack.c.l.b16 %v2545
        %v3902 = vunpack.c.h.b16 %v2545
        %v3903 = vunpack.c.l.b16 %v2546
        %v3904 = vunpack.c.h.b16 %v2546
        %v3905 = vunpack.c.l.b16 %v2547
        %v3906 = vunpack.c.h.b16 %v2547
        %v3907 = vunpack.c.l.b16 %v2548
        %v3908 = vunpack.c.h.b16 %v2548
        %v3909 = vunpack.c.l.b16 %v2549
        %v3910 = vunpack.c.l.b16 %v2550
        %v3911 = vunpack.c.h.b16 %v2550
        %v3912 = vunpack.c.l.b16 %v2551
        %v3913 = vunpack.c.h.b16 %v2551
        %v3914 = vunpack.c.l.b16 %v2552
        %v3915 = vunpack.c.h.b16 %v2552
        %v3916 = vunpack.c.l.b16 %v2553
        %v3917 = vunpack.c.h.b16 %v2553
        %v3918 = vunpack.c.l.b16 %v2554
        %v3919 = vunpack.c.l.b16 %v2555
        %v3920 = vunpack.c.h.b16 %v2555
        %v3921 = vunpack.c.l.b16 %v2556
        %v3922 = vunpack.c.h.b16 %v2556
        %v3923 = vunpack.c.l.b16 %v2557
        %v3924 = vunpack.c.h.b16 %v2557
        %v3925 = vunpack.c.l.b16 %v2558
        %v3926 = vunpack.c.h.b16 %v2558
        %v3927 = vunpack.c.l.b16 %v2559
        %v3928 = vunpack.c.l.b16 %v2560
        %v3929 = vunpack.c.h.b16 %v2560
        %v3930 = vunpack.c.l.b16 %v2561
        %v3931 = vunpack.c.h.b16 %v2561
        %v3932 = vunpack.c.l.b16 %v2562
        %v3933 = vunpack.c.h.b16 %v2562
        %v3934 = vunpack.c.l.b16 %v2563
        %v3935 = vunpack.c.h.b16 %v2563
        %v3936 = vunpack.c.l.b16 %v2564
        %v3937 = vunpack.c.l.b16 %v2565
        %v3938 = vunpack.c.h.b16 %v2565
        %v3939 = vunpack.c.l.b16 %v2566
        %v3940 = vunpack.c.h.b16 %v2566
        %v3941 = vunpack.c.l.b16 %v2567
        %v3942 = vunpack.c.h.b16 %v2567
        %v3943 = vunpack.c.l.b16 %v2568
        %v3944 = vunpack.c.h.b16 %v2568
        %v3945 = vunpack.c.l.b16 %v2569
        %v3946 = vunpack.c.l.b16 %v2570
        %v3947 = vunpack.c.h.b16 %v2570
        %v3948 = vunpack.c.l.b16 %v2571
        %v3949 = vunpack.c.h.b16 %v2571
        %v3950 = vunpack.c.l.b16 %v2572
        %v3951 = vunpack.c.h.b16 %v2572
        %v3952 = vunpack.c.l.b16 %v2573
        %v3953 = vunpack.c.h.b16 %v2573
        %v3954 = vunpack.c.l.b16 %v2574
        %v3955 = vunpack.c.l.b16 %v2575
        %v3956 = vunpack.c.h.b16 %v2575
        %v3957 = vunpack.c.l.b16 %v2576
        %v3958 = vunpack.c.h.b16 %v2576
        %v3959 = vunpack.c.l.b16 %v2577
        %v3960 = vunpack.c.h.b16 %v2577
        %v3961 = vunpack.c.l.b16 %v2578
        %v3962 = vunpack.c.h.b16 %v2578
        %v3963 = vunpack.c.l.b16 %v2579
        %v3964 = vunpack.c.l.b16 %v2580
        %v3965 = vunpack.c.h.b16 %v2580
        %v3966 = vunpack.c.l.b16 %v2581
        %v3967 = vunpack.c.h.b16 %v2581
        %v3968 = vunpack.c.l.b16 %v2582
        %v3969 = vunpack.c.h.b16 %v2582
        %v3970 = vunpack.c.l.b16 %v2583
        %v3971 = vunpack.c.h.b16 %v2583
        %v3972 = vunpack.c.l.b16 %v2584
        %v3973 = vunpack.c.l.b16 %v2585
        %v3974 = vunpack.c.h.b16 %v2585
        %v3975 = vunpack.c.l.b16 %v2586
        %v3976 = vunpack.c.h.b16 %v2586
        %v3977 = vunpack.c.l.b16 %v2587
        %v3978 = vunpack.c.h.b16 %v2587
        %v3979 = vunpack.c.l.b16 %v2588
        %v3980 = vunpack.c.h.b16 %v2588
        %v3981 = vunpack.c.l.b16 %v2589
        %v3982 = vunpack.c.l.b16 %v2590
        %v3983 = vunpack.c.h.b16 %v2590
        %v3984 = vunpack.c.l.b16 %v2591
        %v3985 = vunpack.c.h.b16 %v2591
        %v3986 = vunpack.c.l.b16 %v2592
        %v3987 = vunpack.c.h.b16 %v2592
        %v3988 = vunpack.c.l.b16 %v2593
        %v3989 = vunpack.c.h.b16 %v2593
        %v3990 = vunpack.c.l.b16 %v2594
        %v3991 = vpack.c.b16 %v3136, %v3127
        %v3992 = vpack.c.b16 %v3137, %v3128
        %v3993 = vpack.c.b16 %v3138, %v3129
        %v3994 = vpack.c.b16 %v3139, %v3130
        %v3995 = vpack.c.b16 %v3140, %v3131
        %v3996 = vpack.c.b16 %v3141, %v3132
        %v3997 = vpack.c.b16 %v3142, %v3133
        %v3998 = vpack.c.b16 %v3143, %v3134
        %v3999 = vpack.c.b16 %v3144, %v3135
        %v4000 = vpack.c.b16 %v3154, %v3145
        %v4001 = vpack.c.b16 %v3155, %v3146
        %v4002 = vpack.c.b16 %v3156, %v3147
        %v4003 = vpack.c.b16 %v3157, %v3148
        %v4004 = vpack.c.b16 %v3158, %v3149
        %v4005 = vpack.c.b16 %v3159, %v3150
        %v4006 = vpack.c.b16 %v3160, %v3151
        %v4007 = vpack.c.b16 %v3161, %v3152
        %v4008 = vpack.c.b16 %v3162, %v3153
        %v4009 = vpack.c.b16 %v3172, %v3163
        %v4010 = vpack.c.b16 %v3173, %v3164
        %v4011 = vpack.c.b16 %v3174, %v3165
        %v4012 = vpack.c.b16 %v3175, %v3166
        %v4013 = vpack.c.b16 %v3176, %v3167
        %v4014 = vpack.c.b16 %v3177, %v3168
        %v4015 = vpack.c.b16 %v3178, %v3169
        %v4016 = vpack.c.b16 %v3179, %v3170
        %v4017 = vpack.c.b16 %v3180, %v3171
        %v4018 = vpack.c.b16 %v3190, %v3181
        %v4019 = vpack.c.b16 %v3191, %v3182
        %v4020 = vpack.c.b16 %v3192, %v3183
        %v4021 = vpack.c.b16 %v3193, %v3184
        %v4022 = vpack.c.b16 %v3194, %v3185
        %v4023 = vpack.c.b16 %v3195, %v3186
        %v4024 = vpack.c.b16 %v3196, %v3187
        %v4025 = vpack.c.b16 %v3197, %v3188
        %v4026 = vpack.c.b16 %v3198, %v3189
        %v4027 = vpack.c.b16 %v3208, %v3199
        %v4028 = vpack.c.b16 %v3209, %v3200
        %v4029 = vpack.c.b16 %v3210, %v3201
        %v4030 = vpack.c.b16 %v3211, %v3202
        %v4031 = vpack.c.b16 %v3212, %v3203
        %v4032 = vpack.c.b16 %v3213, %v3204
        %v4033 = vpack.c.b16 %v3214, %v3205
        %v4034 = vpack.c.b16 %v3215, %v3206
        %v4035 = vpack.c.b16 %v3216, %v3207
        %v4036 = vpack.c.b16 %v3226, %v3217
        %v4037 = vpack.c.b16 %v3227, %v3218
        %v4038 = vpack.c.b16 %v3228, %v3219
        %v4039 = vpack.c.b16 %v3229, %v3220
        %v4040 = vpack.c.b16 %v3230, %v3221
        %v4041 = vpack.c.b16 %v3231, %v3222
        %v4042 = vpack.c.b16 %v3232, %v3223
        %v4043 = vpack.c.b16 %v3233, %v3224
        %v4044 = vpack.c.b16 %v3234, %v3225
        %v4045 = vpack.c.b16 %v3244, %v3235
        %v4046 = vpack.c.b16 %v3245, %v3236
        %v4047 = vpack.c.b16 %v3246, %v3237
        %v4048 = vpack.c.b16 %v3247, %v3238
        %v4049 = vpack.c.b16 %v3248, %v3239
        %v4050 = vpack.c.b16 %v3249, %v3240
        %v4051 = vpack.c.b16 %v3250, %v3241
        %v4052 = vpack.c.b16 %v3251, %v3242
        %v4053 = vpack.c.b16 %v3252, %v3243
        %v4054 = vpack.c.b16 %v3262, %v3253
        %v4055 = vpack.c.b16 %v3263, %v3254
        %v4056 = vpack.c.b16 %v3264, %v3255
        %v4057 = vpack.c.b16 %v3265, %v3256
        %v4058 = vpack.c.b16 %v3266, %v3257
        %v4059 = vpack.c.b16 %v3267, %v3258
        %v4060 = vpack.c.b16 %v3268, %v3259
        %v4061 = vpack.c.b16 %v3269, %v3260
        %v4062 = vpack.c.b16 %v3270, %v3261
        %v4063 = vpack.c.b16 %v3280, %v3271
        %v4064 = vpack.c.b16 %v3281, %v3272
        %v4065 = vpack.c.b16 %v3282, %v3273
        %v4066 = vpack.c.b16 %v3283, %v3274
        %v4067 = vpack.c.b16 %v3284, %v3275
        %v4068 = vpack.c.b16 %v3285, %v3276
        %v4069 = vpack.c.b16 %v3286, %v3277
        %v4070 = vpack.c.b16 %v3287, %v3278
        %v4071 = vpack.c.b16 %v3288, %v3279
        %v4072 = vpack.c.b16 %v3298, %v3289
        %v4073 = vpack.c.b16 %v3299, %v3290
        %v4074 = vpack.c.b16 %v3300, %v3291
        %v4075 = vpack.c.b16 %v3301, %v3292
        %v4076 = vpack.c.b16 %v3302, %v3293
        %v4077 = vpack.c.b16 %v3303, %v3294
        %v4078 = vpack.c.b16 %v3304, %v3295
        %v4079 = vpack.c.b16 %v3305, %v3296
        %v4080 = vpack.c.b16 %v3306, %v3297
        %v4081 = vpack.c.b16 %v3316, %v3307
        %v4082 = vpack.c.b16 %v3317, %v3308
        %v4083 = vpack.c.b16 %v3318, %v3309
        %v4084 = vpack.c.b16 %v3319, %v3310
        %v4085 = vpack.c.b16 %v3320, %v3311
        %v4086 = vpack.c.b16 %v3321, %v3312
        %v4087 = vpack.c.b16 %v3322, %v3313
        %v4088 = vpack.c.b16 %v3323, %v3314
        %v4089 = vpack.c.b16 %v3324, %v3315
        %v4090 = vpack.c.b16 %v3334, %v3325
        %v4091 = vpack.c.b16 %v3335, %v3326
        %v4092 = vpack.c.b16 %v3336, %v3327
        %v4093 = vpack.c.b16 %v3337, %v3328
        %v4094 = vpack.c.b16 %v3338, %v3329
        %v4095 = vpack.c.b16 %v3339, %v3330
        %v4096 = vpack.c.b16 %v3340, %v3331
        %v4097 = vpack.c.b16 %v3341, %v3332
        %v4098 = vpack.c.b16 %v3342, %v3333
        %v4099 = vpack.c.b16 %v3352, %v3343
        %v4100 = vpack.c.b16 %v3353, %v3344
        %v4101 = vpack.c.b16 %v3354, %v3345
        %v4102 = vpack.c.b16 %v3355, %v3346
        %v4103 = vpack.c.b16 %v3356, %v3347
        %v4104 = vpack.c.b16 %v3357, %v3348
        %v4105 = vpack.c.b16 %v3358, %v3349
        %v4106 = vpack.c.b16 %v3359, %v3350
        %v4107 = vpack.c.b16 %v3360, %v3351
        %v4108 = vpack.c.b16 %v3370, %v3361
        %v4109 = vpack.c.b16 %v3371, %v3362
        %v4110 = vpack.c.b16 %v3372, %v3363
        %v4111 = vpack.c.b16 %v3373, %v3364
        %v4112 = vpack.c.b16 %v3374, %v3365
        %v4113 = vpack.c.b16 %v3375, %v3366
        %v4114 = vpack.c.b16 %v3376, %v3367
        %v4115 = vpack.c.b16 %v3377, %v3368
        %v4116 = vpack.c.b16 %v3378, %v3369
        %v4117 = vpack.c.b16 %v3388, %v3379
        %v4118 = vpack.c.b16 %v3389, %v3380
        %v4119 = vpack.c.b16 %v3390, %v3381
        %v4120 = vpack.c.b16 %v3391, %v3382
        %v4121 = vpack.c.b16 %v3392, %v3383
        %v4122 = vpack.c.b16 %v3393, %v3384
        %v4123 = vpack.c.b16 %v3394, %v3385
        %v4124 = vpack.c.b16 %v3395, %v3386
        %v4125 = vpack.c.b16 %v3396, %v3387
        %v4126 = vpack.c.b16 %v3406, %v3397
        %v4127 = vpack.c.b16 %v3407, %v3398
        %v4128 = vpack.c.b16 %v3408, %v3399
        %v4129 = vpack.c.b16 %v3409, %v3400
        %v4130 = vpack.c.b16 %v3410, %v3401
        %v4131 = vpack.c.b16 %v3411, %v3402
        %v4132 = vpack.c.b16 %v3412, %v3403
        %v4133 = vpack.c.b16 %v3413, %v3404
        %v4134 = vpack.c.b16 %v3414, %v3405
        %v4135 = vpack.c.b16 %v3424, %v3415
        %v4136 = vpack.c.b16 %v3425, %v3416
        %v4137 = vpack.c.b16 %v3426, %v3417
        %v4138 = vpack.c.b16 %v3427, %v3418
        %v4139 = vpack.c.b16 %v3428, %v3419
        %v4140 = vpack.c.b16 %v3429, %v3420
        %v4141 = vpack.c.b16 %v3430, %v3421
        %v4142 = vpack.c.b16 %v3431, %v3422
        %v4143 = vpack.c.b16 %v3432, %v3423
        %v4144 = vpack.c.b16 %v3442, %v3433
        %v4145 = vpack.c.b16 %v3443, %v3434
        %v4146 = vpack.c.b16 %v3444, %v3435
        %v4147 = vpack.c.b16 %v3445, %v3436
        %v4148 = vpack.c.b16 %v3446, %v3437
        %v4149 = vpack.c.b16 %v3447, %v3438
        %v4150 = vpack.c.b16 %v3448, %v3439
        %v4151 = vpack.c.b16 %v3449, %v3440
        %v4152 = vpack.c.b16 %v3450, %v3441
        %v4153 = vpack.c.b16 %v3460, %v3451
        %v4154 = vpack.c.b16 %v3461, %v3452
        %v4155 = vpack.c.b16 %v3462, %v3453
        %v4156 = vpack.c.b16 %v3463, %v3454
        %v4157 = vpack.c.b16 %v3464, %v3455
        %v4158 = vpack.c.b16 %v3465, %v3456
        %v4159 = vpack.c.b16 %v3466, %v3457
        %v4160 = vpack.c.b16 %v3467, %v3458
        %v4161 = vpack.c.b16 %v3468, %v3459
        %v4162 = vpack.c.b16 %v3478, %v3469
        %v4163 = vpack.c.b16 %v3479, %v3470
        %v4164 = vpack.c.b16 %v3480, %v3471
        %v4165 = vpack.c.b16 %v3481, %v3472
        %v4166 = vpack.c.b16 %v3482, %v3473
        %v4167 = vpack.c.b16 %v3483, %v3474
        %v4168 = vpack.c.b16 %v3484, %v3475
        %v4169 = vpack.c.b16 %v3485, %v3476
        %v4170 = vpack.c.b16 %v3486, %v3477
        %v4171 = vpack.c.b16 %v3496, %v3487
        %v4172 = vpack.c.b16 %v3497, %v3488
        %v4173 = vpack.c.b16 %v3498, %v3489
        %v4174 = vpack.c.b16 %v3499, %v3490
        %v4175 = vpack.c.b16 %v3500, %v3491
        %v4176 = vpack.c.b16 %v3501, %v3492
        %v4177 = vpack.c.b16 %v3502, %v3493
        %v4178 = vpack.c.b16 %v3503, %v3494
        %v4179 = vpack.c.b16 %v3504, %v3495
        %v4180 = vpack.c.b16 %v3514, %v3505
        %v4181 = vpack.c.b16 %v3515, %v3506
        %v4182 = vpack.c.b16 %v3516, %v3507
        %v4183 = vpack.c.b16 %v3517, %v3508
        %v4184 = vpack.c.b16 %v3518, %v3509
        %v4185 = vpack.c.b16 %v3519, %v3510
        %v4186 = vpack.c.b16 %v3520, %v3511
        %v4187 = vpack.c.b16 %v3521, %v3512
        %v4188 = vpack.c.b16 %v3522, %v3513
        %v4189 = vpack.c.b16 %v3532, %v3523
        %v4190 = vpack.c.b16 %v3533, %v3524
        %v4191 = vpack.c.b16 %v3534, %v3525
        %v4192 = vpack.c.b16 %v3535, %v3526
        %v4193 = vpack.c.b16 %v3536, %v3527
        %v4194 = vpack.c.b16 %v3537, %v3528
        %v4195 = vpack.c.b16 %v3538, %v3529
        %v4196 = vpack.c.b16 %v3539, %v3530
        %v4197 = vpack.c.b16 %v3540, %v3531
        %v4198 = vpack.c.b16 %v3550, %v3541
        %v4199 = vpack.c.b16 %v3551, %v3542
        %v4200 = vpack.c.b16 %v3552, %v3543
        %v4201 = vpack.c.b16 %v3553, %v3544
        %v4202 = vpack.c.b16 %v3554, %v3545
        %v4203 = vpack.c.b16 %v3555, %v3546
        %v4204 = vpack.c.b16 %v3556, %v3547
        %v4205 = vpack.c.b16 %v3557, %v3548
        %v4206 = vpack.c.b16 %v3558, %v3549
        %v4207 = vpack.c.b16 %v3568, %v3559
        %v4208 = vpack.c.b16 %v3569, %v3560
        %v4209 = vpack.c.b16 %v3570, %v3561
        %v4210 = vpack.c.b16 %v3571, %v3562
        %v4211 = vpack.c.b16 %v3572, %v3563
        %v4212 = vpack.c.b16 %v3573, %v3564
        %v4213 = vpack.c.b16 %v3574, %v3565
        %v4214 = vpack.c.b16 %v3575, %v3566
        %v4215 = vpack.c.b16 %v3576, %v3567
        %v4216 = vpack.c.b16 %v3586, %v3577
        %v4217 = vpack.c.b16 %v3587, %v3578
        %v4218 = vpack.c.b16 %v3588, %v3579
        %v4219 = vpack.c.b16 %v3589, %v3580
        %v4220 = vpack.c.b16 %v3590, %v3581
        %v4221 = vpack.c.b16 %v3591, %v3582
        %v4222 = vpack.c.b16 %v3592, %v3583
        %v4223 = vpack.c.b16 %v3593, %v3584
        %v4224 = vpack.c.b16 %v3594, %v3585
        %v4225 = vpack.c.b16 %v3604, %v3595
        %v4226 = vpack.c.b16 %v3605, %v3596
        %v4227 = vpack.c.b16 %v3606, %v3597
        %v4228 = vpack.c.b16 %v3607, %v3598
        %v4229 = vpack.c.b16 %v3608, %v3599
        %v4230 = vpack.c.b16 %v3609, %v3600
        %v4231 = vpack.c.b16 %v3610, %v3601
        %v4232 = vpack.c.b16 %v3611, %v3602
        %v4233 = vpack.c.b16 %v3612, %v3603
        %v4234 = vpack.c.b16 %v3622, %v3613
        %v4235 = vpack.c.b16 %v3623, %v3614
        %v4236 = vpack.c.b16 %v3624, %v3615
        %v4237 = vpack.c.b16 %v3625, %v3616
        %v4238 = vpack.c.b16 %v3626, %v3617
        %v4239 = vpack.c.b16 %v3627, %v3618
        %v4240 = vpack.c.b16 %v3628, %v3619
        %v4241 = vpack.c.b16 %v3629, %v3620
        %v4242 = vpack.c.b16 %v3630, %v3621
        %v4243 = vpack.c.b16 %v3640, %v3631
        %v4244 = vpack.c.b16 %v3641, %v3632
        %v4245 = vpack.c.b16 %v3642, %v3633
        %v4246 = vpack.c.b16 %v3643, %v3634
        %v4247 = vpack.c.b16 %v3644, %v3635
        %v4248 = vpack.c.b16 %v3645, %v3636
        %v4249 = vpack.c.b16 %v3646, %v3637
        %v4250 = vpack.c.b16 %v3647, %v3638
        %v4251 = vpack.c.b16 %v3648, %v3639
        %v4252 = vpack.c.b16 %v3658, %v3649
        %v4253 = vpack.c.b16 %v3659, %v3650
        %v4254 = vpack.c.b16 %v3660, %v3651
        %v4255 = vpack.c.b16 %v3661, %v3652
        %v4256 = vpack.c.b16 %v3662, %v3653
        %v4257 = vpack.c.b16 %v3663, %v3654
        %v4258 = vpack.c.b16 %v3664, %v3655
        %v4259 = vpack.c.b16 %v3665, %v3656
        %v4260 = vpack.c.b16 %v3666, %v3657
        %v4261 = vpack.c.b16 %v3676, %v3667
        %v4262 = vpack.c.b16 %v3677, %v3668
        %v4263 = vpack.c.b16 %v3678, %v3669
        %v4264 = vpack.c.b16 %v3679, %v3670
        %v4265 = vpack.c.b16 %v3680, %v3671
        %v4266 = vpack.c.b16 %v3681, %v3672
        %v4267 = vpack.c.b16 %v3682, %v3673
        %v4268 = vpack.c.b16 %v3683, %v3674
        %v4269 = vpack.c.b16 %v3684, %v3675
        %v4270 = vpack.c.b16 %v3694, %v3685
        %v4271 = vpack.c.b16 %v3695, %v3686
        %v4272 = vpack.c.b16 %v3696, %v3687
        %v4273 = vpack.c.b16 %v3697, %v3688
        %v4274 = vpack.c.b16 %v3698, %v3689
        %v4275 = vpack.c.b16 %v3699, %v3690
        %v4276 = vpack.c.b16 %v3700, %v3691
        %v4277 = vpack.c.b16 %v3701, %v3692
        %v4278 = vpack.c.b16 %v3702, %v3693
        %v4279 = vpack.c.b16 %v3712, %v3703
        %v4280 = vpack.c.b16 %v3713, %v3704
        %v4281 = vpack.c.b16 %v3714, %v3705
        %v4282 = vpack.c.b16 %v3715, %v3706
        %v4283 = vpack.c.b16 %v3716, %v3707
        %v4284 = vpack.c.b16 %v3717, %v3708
        %v4285 = vpack.c.b16 %v3718, %v3709
        %v4286 = vpack.c.b16 %v3719, %v3710
        %v4287 = vpack.c.b16 %v3720, %v3711
        %v4288 = vpack.c.b16 %v3730, %v3721
        %v4289 = vpack.c.b16 %v3731, %v3722
        %v4290 = vpack.c.b16 %v3732, %v3723
        %v4291 = vpack.c.b16 %v3733, %v3724
        %v4292 = vpack.c.b16 %v3734, %v3725
        %v4293 = vpack.c.b16 %v3735, %v3726
        %v4294 = vpack.c.b16 %v3736, %v3727
        %v4295 = vpack.c.b16 %v3737, %v3728
        %v4296 = vpack.c.b16 %v3738, %v3729
        %v4297 = vpack.c.b16 %v3748, %v3739
        %v4298 = vpack.c.b16 %v3749, %v3740
        %v4299 = vpack.c.b16 %v3750, %v3741
        %v4300 = vpack.c.b16 %v3751, %v3742
        %v4301 = vpack.c.b16 %v3752, %v3743
        %v4302 = vpack.c.b16 %v3753, %v3744
        %v4303 = vpack.c.b16 %v3754, %v3745
        %v4304 = vpack.c.b16 %v3755, %v3746
        %v4305 = vpack.c.b16 %v3756, %v3747
        %v4306 = vpack.c.b16 %v3766, %v3757
        %v4307 = vpack.c.b16 %v3767, %v3758
        %v4308 = vpack.c.b16 %v3768, %v3759
        %v4309 = vpack.c.b16 %v3769, %v3760
        %v4310 = vpack.c.b16 %v3770, %v3761
        %v4311 = vpack.c.b16 %v3771, %v3762
        %v4312 = vpack.c.b16 %v3772, %v3763
        %v4313 = vpack.c.b16 %v3773, %v3764
        %v4314 = vpack.c.b16 %v3774, %v3765
        %v4315 = vpack.c.b16 %v3784, %v3775
        %v4316 = vpack.c.b16 %v3785, %v3776
        %v4317 = vpack.c.b16 %v3786, %v3777
        %v4318 = vpack.c.b16 %v3787, %v3778
        %v4319 = vpack.c.b16 %v3788, %v3779
        %v4320 = vpack.c.b16 %v3789, %v3780
        %v4321 = vpack.c.b16 %v3790, %v3781
        %v4322 = vpack.c.b16 %v3791, %v3782
        %v4323 = vpack.c.b16 %v3792, %v3783
        %v4324 = vpack.c.b16 %v3802, %v3793
        %v4325 = vpack.c.b16 %v3803, %v3794
        %v4326 = vpack.c.b16 %v3804, %v3795
        %v4327 = vpack.c.b16 %v3805, %v3796
        %v4328 = vpack.c.b16 %v3806, %v3797
        %v4329 = vpack.c.b16 %v3807, %v3798
        %v4330 = vpack.c.b16 %v3808, %v3799
        %v4331 = vpack.c.b16 %v3809, %v3800
        %v4332 = vpack.c.b16 %v3810, %v3801
        %v4333 = vpack.c.b16 %v3820, %v3811
        %v4334 = vpack.c.b16 %v3821, %v3812
        %v4335 = vpack.c.b16 %v3822, %v3813
        %v4336 = vpack.c.b16 %v3823, %v3814
        %v4337 = vpack.c.b16 %v3824, %v3815
        %v4338 = vpack.c.b16 %v3825, %v3816
        %v4339 = vpack.c.b16 %v3826, %v3817
        %v4340 = vpack.c.b16 %v3827, %v3818
        %v4341 = vpack.c.b16 %v3828, %v3819
        %v4342 = vpack.c.b16 %v3838, %v3829
        %v4343 = vpack.c.b16 %v3839, %v3830
        %v4344 = vpack.c.b16 %v3840, %v3831
        %v4345 = vpack.c.b16 %v3841, %v3832
        %v4346 = vpack.c.b16 %v3842, %v3833
        %v4347 = vpack.c.b16 %v3843, %v3834
        %v4348 = vpack.c.b16 %v3844, %v3835
        %v4349 = vpack.c.b16 %v3845, %v3836
        %v4350 = vpack.c.b16 %v3846, %v3837
        %v4351 = vpack.c.b16 %v3856, %v3847
        %v4352 = vpack.c.b16 %v3857, %v3848
        %v4353 = vpack.c.b16 %v3858, %v3849
        %v4354 = vpack.c.b16 %v3859, %v3850
        %v4355 = vpack.c.b16 %v3860, %v3851
        %v4356 = vpack.c.b16 %v3861, %v3852
        %v4357 = vpack.c.b16 %v3862, %v3853
        %v4358 = vpack.c.b16 %v3863, %v3854
        %v4359 = vpack.c.b16 %v3864, %v3855
        %v4360 = vpack.c.b16 %v3874, %v3865
        %v4361 = vpack.c.b16 %v3875, %v3866
        %v4362 = vpack.c.b16 %v3876, %v3867
        %v4363 = vpack.c.b16 %v3877, %v3868
        %v4364 = vpack.c.b16 %v3878, %v3869
        %v4365 = vpack.c.b16 %v3879, %v3870
        %v4366 = vpack.c.b16 %v3880, %v3871
        %v4367 = vpack.c.b16 %v3881, %v3872
        %v4368 = vpack.c.b16 %v3882, %v3873
        %v4369 = vpack.c.b16 %v3892, %v3883
        %v4370 = vpack.c.b16 %v3893, %v3884
        %v4371 = vpack.c.b16 %v3894, %v3885
        %v4372 = vpack.c.b16 %v3895, %v3886
        %v4373 = vpack.c.b16 %v3896, %v3887
        %v4374 = vpack.c.b16 %v3897, %v3888
        %v4375 = vpack.c.b16 %v3898, %v3889
        %v4376 = vpack.c.b16 %v3899, %v3890
        %v4377 = vpack.c.b16 %v3900, %v3891
        %v4378 = vpack.c.b16 %v3910, %v3901
        %v4379 = vpack.c.b16 %v3911, %v3902
        %v4380 = vpack.c.b16 %v3912, %v3903
        %v4381 = vpack.c.b16 %v3913, %v3904
        %v4382 = vpack.c.b16 %v3914, %v3905
        %v4383 = vpack.c.b16 %v3915, %v3906
        %v4384 = vpack.c.b16 %v3916, %v3907
        %v4385 = vpack.c.b16 %v3917, %v3908
        %v4386 = vpack.c.b16 %v3918, %v3909
        %v4387 = vpack.c.b16 %v3928, %v3919
        %v4388 = vpack.c.b16 %v3929, %v3920
        %v4389 = vpack.c.b16 %v3930, %v3921
        %v4390 = vpack.c.b16 %v3931, %v3922
        %v4391 = vpack.c.b16 %v3932, %v3923
        %v4392 = vpack.c.b16 %v3933, %v3924
        %v4393 = vpack.c.b16 %v3934, %v3925
        %v4394 = vpack.c.b16 %v3935, %v3926
        %v4395 = vpack.c.b16 %v3936, %v3927
        %v4396 = vpack.c.b16 %v3946, %v3937
        %v4397 = vpack.c.b16 %v3947, %v3938
        %v4398 = vpack.c.b16 %v3948, %v3939
        %v4399 = vpack.c.b16 %v3949, %v3940
        %v4400 = vpack.c.b16 %v3950, %v3941
        %v4401 = vpack.c.b16 %v3951, %v3942
        %v4402 = vpack.c.b16 %v3952, %v3943
        %v4403 = vpack.c.b16 %v3953, %v3944
        %v4404 = vpack.c.b16 %v3954, %v3945
        %v4405 = vpack.c.b16 %v3964, %v3955
        %v4406 = vpack.c.b16 %v3965, %v3956
        %v4407 = vpack.c.b16 %v3966, %v3957
        %v4408 = vpack.c.b16 %v3967, %v3958
        %v4409 = vpack.c.b16 %v3968, %v3959
        %v4410 = vpack.c.b16 %v3969, %v3960
        %v4411 = vpack.c.b16 %v3970, %v3961
        %v4412 = vpack.c.b16 %v3971, %v3962
        %v4413 = vpack.c.b16 %v3972, %v3963
        %v4414 = vpack.c.b16 %v3982, %v3973
        %v4415 = vpack.c.b16 %v3983, %v3974
        %v4416 = vpack.c.b16 %v3984, %v3975
        %v4417 = vpack.c.b16 %v3985, %v3976
        %v4418 = vpack.c.b16 %v3986, %v3977
        %v4419 = vpack.c.b16 %v3987, %v3978
        %v4420 = vpack.c.b16 %v3988, %v3979
        %v4421 = vpack.c.b16 %v3989, %v3980
        %v4422 = vpack.c.b16 %v3990, %v3981
        %4855 = vmatpush.bf16.msra.mxu0 %v4054
        %4856 = vmatpush.bf16.msra.mxu0 %v4045
        %4857 = vmatpush.bf16.msra.mxu0 %v4036
        %4858 = vmatpush.bf16.msra.mxu0 %v4027
        %4859 = vmatpush.bf16.msra.mxu0 %v4018
        %4860 = vmatpush.bf16.msra.mxu0 %v4009
        %4861 = vmatpush.bf16.msra.mxu0 %v4000
        %4862 = vmatpush.bf16.msra.mxu0 %v3991
        %4863 = vmatmul.bf16.gmra.mxu0 %v2635
        %v4864 = vpop.f32.mrf.mxu0
        %v4865 = vadd.f32 %v2599, %v4864
        %v4866 = vpop.f32.mrf.mxu0
        %v4867 = vadd.f32 %v2599, %v4866
        %4868 = vdwg.mxu0
        %4869 = vmatpush.bf16.msra.mxu0 %v4126
        %4870 = vmatpush.bf16.msra.mxu0 %v4117
        %4871 = vmatpush.bf16.msra.mxu0 %v4108
        %4872 = vmatpush.bf16.msra.mxu0 %v4099
        %4873 = vmatpush.bf16.msra.mxu0 %v4090
        %4874 = vmatpush.bf16.msra.mxu0 %v4081
        %4875 = vmatpush.bf16.msra.mxu0 %v4072
        %4876 = vmatpush.bf16.msra.mxu0 %v4063
        %4877 = vmatmul.bf16.gmra.mxu0 %v2636
        %v4878 = vpop.f32.mrf.mxu0
        %v4879 = vadd.f32 %v4865, %v4878
        %v4880 = vpop.f32.mrf.mxu0
        %v4881 = vadd.f32 %v4867, %v4880
        %4882 = vdwg.mxu0
        %4883 = vmatpush.bf16.msra.mxu0 %v4198
        %4884 = vmatpush.bf16.msra.mxu0 %v4189
        %4885 = vmatpush.bf16.msra.mxu0 %v4180
        %4886 = vmatpush.bf16.msra.mxu0 %v4171
        %4887 = vmatpush.bf16.msra.mxu0 %v4162
        %4888 = vmatpush.bf16.msra.mxu0 %v4153
        %4889 = vmatpush.bf16.msra.mxu0 %v4144
        %4890 = vmatpush.bf16.msra.mxu0 %v4135
        %4891 = vmatmul.bf16.gmra.mxu0 %v2637
        %v4892 = vpop.f32.mrf.mxu0
        %v4893 = vadd.f32 %v4879, %v4892
        %v4894 = vpop.f32.mrf.mxu0
        %v4895 = vadd.f32 %v4881, %v4894
        %4896 = vdwg.mxu0
        %4897 = vmatpush.bf16.msra.mxu0 %v4270
        %4898 = vmatpush.bf16.msra.mxu0 %v4261
        %4899 = vmatpush.bf16.msra.mxu0 %v4252
        %4900 = vmatpush.bf16.msra.mxu0 %v4243
        %4901 = vmatpush.bf16.msra.mxu0 %v4234
        %4902 = vmatpush.bf16.msra.mxu0 %v4225
        %4903 = vmatpush.bf16.msra.mxu0 %v4216
        %4904 = vmatpush.bf16.msra.mxu0 %v4207
        %4905 = vmatmul.bf16.gmra.mxu0 %v2638
        %v4906 = vpop.f32.mrf.mxu0
        %v4907 = vadd.f32 %v4893, %v4906
        %v4908 = vpop.f32.mrf.mxu0
        %v4909 = vadd.f32 %v4895, %v4908
        %4910 = vdwg.mxu0
        %4911 = vmatpush.bf16.msra.mxu0 %v4342
        %4912 = vmatpush.bf16.msra.mxu0 %v4333
        %4913 = vmatpush.bf16.msra.mxu0 %v4324
        %4914 = vmatpush.bf16.msra.mxu0 %v4315
        %4915 = vmatpush.bf16.msra.mxu0 %v4306
        %4916 = vmatpush.bf16.msra.mxu0 %v4297
        %4917 = vmatpush.bf16.msra.mxu0 %v4288
        %4918 = vmatpush.bf16.msra.mxu0 %v4279
        %4919 = vmatmul.bf16.gmra.mxu0 %v2639
        %v4920 = vpop.f32.mrf.mxu0
        %v4921 = vadd.f32 %v4907, %v4920
        %v4922 = vpop.f32.mrf.mxu0
        %v4923 = vadd.f32 %v4909, %v4922
        %4924 = vdwg.mxu0
        %4925 = vmatpush.bf16.msra.mxu0 %v4414
        %4926 = vmatpush.bf16.msra.mxu0 %v4405
        %4927 = vmatpush.bf16.msra.mxu0 %v4396
        %4928 = vmatpush.bf16.msra.mxu0 %v4387
        %4929 = vmatpush.bf16.msra.mxu0 %v4378
        %4930 = vmatpush.bf16.msra.mxu0 %v4369
        %4931 = vmatpush.bf16.msra.mxu0 %v4360
        %4932 = vmatpush.bf16.msra.mxu0 %v4351
        %4933 = vmatmul.bf16.gmra.mxu0 %v2640
        %v4934 = vpop.f32.mrf.mxu0
        %v4935 = vadd.f32 %v4921, %v4934
        %v4936 = vpop.f32.mrf.mxu0
        %v4937 = vadd.f32 %v4923, %v4936
        %4938 = vdwg.mxu0
        %4939 = vmatpush.bf16.msra.mxu0 %v4055
        %4940 = vmatpush.bf16.msra.mxu0 %v4046
        %4941 = vmatpush.bf16.msra.mxu0 %v4037
        %4942 = vmatpush.bf16.msra.mxu0 %v4028
        %4943 = vmatpush.bf16.msra.mxu0 %v4019
        %4944 = vmatpush.bf16.msra.mxu0 %v4010
        %4945 = vmatpush.bf16.msra.mxu0 %v4001
        %4946 = vmatpush.bf16.msra.mxu0 %v3992
        %4947 = vmatmul.bf16.gmra.mxu0 %v2635
        %v4948 = vpop.f32.mrf.mxu0
        %v4949 = vadd.f32 %v2600, %v4948
        %v4950 = vpop.f32.mrf.mxu0
        %v4951 = vadd.f32 %v2600, %v4950
        %4952 = vdwg.mxu0
        %4953 = vmatpush.bf16.msra.mxu0 %v4127
        %4954 = vmatpush.bf16.msra.mxu0 %v4118
        %4955 = vmatpush.bf16.msra.mxu0 %v4109
        %4956 = vmatpush.bf16.msra.mxu0 %v4100
        %4957 = vmatpush.bf16.msra.mxu0 %v4091
        %4958 = vmatpush.bf16.msra.mxu0 %v4082
        %4959 = vmatpush.bf16.msra.mxu0 %v4073
        %4960 = vmatpush.bf16.msra.mxu0 %v4064
        %4961 = vmatmul.bf16.gmra.mxu0 %v2636
        %v4962 = vpop.f32.mrf.mxu0
        %v4963 = vadd.f32 %v4949, %v4962
        %v4964 = vpop.f32.mrf.mxu0
        %v4965 = vadd.f32 %v4951, %v4964
        %4966 = vdwg.mxu0
        %4967 = vmatpush.bf16.msra.mxu0 %v4199
        %4968 = vmatpush.bf16.msra.mxu0 %v4190
        %4969 = vmatpush.bf16.msra.mxu0 %v4181
        %4970 = vmatpush.bf16.msra.mxu0 %v4172
        %4971 = vmatpush.bf16.msra.mxu0 %v4163
        %4972 = vmatpush.bf16.msra.mxu0 %v4154
        %4973 = vmatpush.bf16.msra.mxu0 %v4145
        %4974 = vmatpush.bf16.msra.mxu0 %v4136
        %4975 = vmatmul.bf16.gmra.mxu0 %v2637
        %v4976 = vpop.f32.mrf.mxu0
        %v4977 = vadd.f32 %v4963, %v4976
        %v4978 = vpop.f32.mrf.mxu0
        %v4979 = vadd.f32 %v4965, %v4978
        %4980 = vdwg.mxu0
        %4981 = vmatpush.bf16.msra.mxu0 %v4271
        %4982 = vmatpush.bf16.msra.mxu0 %v4262
        %4983 = vmatpush.bf16.msra.mxu0 %v4253
        %4984 = vmatpush.bf16.msra.mxu0 %v4244
        %4985 = vmatpush.bf16.msra.mxu0 %v4235
        %4986 = vmatpush.bf16.msra.mxu0 %v4226
        %4987 = vmatpush.bf16.msra.mxu0 %v4217
        %4988 = vmatpush.bf16.msra.mxu0 %v4208
        %4989 = vmatmul.bf16.gmra.mxu0 %v2638
        %v4990 = vpop.f32.mrf.mxu0
        %v4991 = vadd.f32 %v4977, %v4990
        %v4992 = vpop.f32.mrf.mxu0
        %v4993 = vadd.f32 %v4979, %v4992
        %4994 = vdwg.mxu0
        %4995 = vmatpush.bf16.msra.mxu0 %v4343
        %4996 = vmatpush.bf16.msra.mxu0 %v4334
        %4997 = vmatpush.bf16.msra.mxu0 %v4325
        %4998 = vmatpush.bf16.msra.mxu0 %v4316
        %4999 = vmatpush.bf16.msra.mxu0 %v4307
        %5000 = vmatpush.bf16.msra.mxu0 %v4298
        %5001 = vmatpush.bf16.msra.mxu0 %v4289
        %5002 = vmatpush.bf16.msra.mxu0 %v4280
        %5003 = vmatmul.bf16.gmra.mxu0 %v2639
        %v5004 = vpop.f32.mrf.mxu0
        %v5005 = vadd.f32 %v4991, %v5004
        %v5006 = vpop.f32.mrf.mxu0
        %v5007 = vadd.f32 %v4993, %v5006
        %5008 = vdwg.mxu0
        %5009 = vmatpush.bf16.msra.mxu0 %v4415
        %5010 = vmatpush.bf16.msra.mxu0 %v4406
        %5011 = vmatpush.bf16.msra.mxu0 %v4397
        %5012 = vmatpush.bf16.msra.mxu0 %v4388
        %5013 = vmatpush.bf16.msra.mxu0 %v4379
        %5014 = vmatpush.bf16.msra.mxu0 %v4370
        %5015 = vmatpush.bf16.msra.mxu0 %v4361
        %5016 = vmatpush.bf16.msra.mxu0 %v4352
        %5017 = vmatmul.bf16.gmra.mxu0 %v2640
        %v5018 = vpop.f32.mrf.mxu0
        %v5019 = vadd.f32 %v5005, %v5018
        %v5020 = vpop.f32.mrf.mxu0
        %v5021 = vadd.f32 %v5007, %v5020
        %5022 = vdwg.mxu0
        %5023 = vmatpush.bf16.msra.mxu0 %v4056
        %5024 = vmatpush.bf16.msra.mxu0 %v4047
        %5025 = vmatpush.bf16.msra.mxu0 %v4038
        %5026 = vmatpush.bf16.msra.mxu0 %v4029
        %5027 = vmatpush.bf16.msra.mxu0 %v4020
        %5028 = vmatpush.bf16.msra.mxu0 %v4011
        %5029 = vmatpush.bf16.msra.mxu0 %v4002
        %5030 = vmatpush.bf16.msra.mxu0 %v3993
        %5031 = vmatmul.bf16.gmra.mxu0 %v2635
        %v5032 = vpop.f32.mrf.mxu0
        %v5033 = vadd.f32 %v2601, %v5032
        %v5034 = vpop.f32.mrf.mxu0
        %v5035 = vadd.f32 %v2601, %v5034
        %5036 = vdwg.mxu0
        %5037 = vmatpush.bf16.msra.mxu0 %v4128
        %5038 = vmatpush.bf16.msra.mxu0 %v4119
        %5039 = vmatpush.bf16.msra.mxu0 %v4110
        %5040 = vmatpush.bf16.msra.mxu0 %v4101
        %5041 = vmatpush.bf16.msra.mxu0 %v4092
        %5042 = vmatpush.bf16.msra.mxu0 %v4083
        %5043 = vmatpush.bf16.msra.mxu0 %v4074
        %5044 = vmatpush.bf16.msra.mxu0 %v4065
        %5045 = vmatmul.bf16.gmra.mxu0 %v2636
        %v5046 = vpop.f32.mrf.mxu0
        %v5047 = vadd.f32 %v5033, %v5046
        %v5048 = vpop.f32.mrf.mxu0
        %v5049 = vadd.f32 %v5035, %v5048
        %5050 = vdwg.mxu0
        %5051 = vmatpush.bf16.msra.mxu0 %v4200
        %5052 = vmatpush.bf16.msra.mxu0 %v4191
        %5053 = vmatpush.bf16.msra.mxu0 %v4182
        %5054 = vmatpush.bf16.msra.mxu0 %v4173
        %5055 = vmatpush.bf16.msra.mxu0 %v4164
        %5056 = vmatpush.bf16.msra.mxu0 %v4155
        %5057 = vmatpush.bf16.msra.mxu0 %v4146
        %5058 = vmatpush.bf16.msra.mxu0 %v4137
        %5059 = vmatmul.bf16.gmra.mxu0 %v2637
        %v5060 = vpop.f32.mrf.mxu0
        %v5061 = vadd.f32 %v5047, %v5060
        %v5062 = vpop.f32.mrf.mxu0
        %v5063 = vadd.f32 %v5049, %v5062
        %5064 = vdwg.mxu0
        %5065 = vmatpush.bf16.msra.mxu0 %v4272
        %5066 = vmatpush.bf16.msra.mxu0 %v4263
        %5067 = vmatpush.bf16.msra.mxu0 %v4254
        %5068 = vmatpush.bf16.msra.mxu0 %v4245
        %5069 = vmatpush.bf16.msra.mxu0 %v4236
        %5070 = vmatpush.bf16.msra.mxu0 %v4227
        %5071 = vmatpush.bf16.msra.mxu0 %v4218
        %5072 = vmatpush.bf16.msra.mxu0 %v4209
        %5073 = vmatmul.bf16.gmra.mxu0 %v2638
        %v5074 = vpop.f32.mrf.mxu0
        %v5075 = vadd.f32 %v5061, %v5074
        %v5076 = vpop.f32.mrf.mxu0
        %v5077 = vadd.f32 %v5063, %v5076
        %5078 = vdwg.mxu0
        %5079 = vmatpush.bf16.msra.mxu0 %v4344
        %5080 = vmatpush.bf16.msra.mxu0 %v4335
        %5081 = vmatpush.bf16.msra.mxu0 %v4326
        %5082 = vmatpush.bf16.msra.mxu0 %v4317
        %5083 = vmatpush.bf16.msra.mxu0 %v4308
        %5084 = vmatpush.bf16.msra.mxu0 %v4299
        %5085 = vmatpush.bf16.msra.mxu0 %v4290
        %5086 = vmatpush.bf16.msra.mxu0 %v4281
        %5087 = vmatmul.bf16.gmra.mxu0 %v2639
        %v5088 = vpop.f32.mrf.mxu0
        %v5089 = vadd.f32 %v5075, %v5088
        %v5090 = vpop.f32.mrf.mxu0
        %v5091 = vadd.f32 %v5077, %v5090
        %5092 = vdwg.mxu0
        %5093 = vmatpush.bf16.msra.mxu0 %v4416
        %5094 = vmatpush.bf16.msra.mxu0 %v4407
        %5095 = vmatpush.bf16.msra.mxu0 %v4398
        %5096 = vmatpush.bf16.msra.mxu0 %v4389
        %5097 = vmatpush.bf16.msra.mxu0 %v4380
        %5098 = vmatpush.bf16.msra.mxu0 %v4371
        %5099 = vmatpush.bf16.msra.mxu0 %v4362
        %5100 = vmatpush.bf16.msra.mxu0 %v4353
        %5101 = vmatmul.bf16.gmra.mxu0 %v2640
        %v5102 = vpop.f32.mrf.mxu0
        %v5103 = vadd.f32 %v5089, %v5102
        %v5104 = vpop.f32.mrf.mxu0
        %v5105 = vadd.f32 %v5091, %v5104
        %5106 = vdwg.mxu0
        %5107 = vmatpush.bf16.msra.mxu0 %v4057
        %5108 = vmatpush.bf16.msra.mxu0 %v4048
        %5109 = vmatpush.bf16.msra.mxu0 %v4039
        %5110 = vmatpush.bf16.msra.mxu0 %v4030
        %5111 = vmatpush.bf16.msra.mxu0 %v4021
        %5112 = vmatpush.bf16.msra.mxu0 %v4012
        %5113 = vmatpush.bf16.msra.mxu0 %v4003
        %5114 = vmatpush.bf16.msra.mxu0 %v3994
        %5115 = vmatmul.bf16.gmra.mxu0 %v2635
        %v5116 = vpop.f32.mrf.mxu0
        %v5117 = vadd.f32 %v2602, %v5116
        %v5118 = vpop.f32.mrf.mxu0
        %v5119 = vadd.f32 %v2602, %v5118
        %5120 = vdwg.mxu0
        %5121 = vmatpush.bf16.msra.mxu0 %v4129
        %5122 = vmatpush.bf16.msra.mxu0 %v4120
        %5123 = vmatpush.bf16.msra.mxu0 %v4111
        %5124 = vmatpush.bf16.msra.mxu0 %v4102
        %5125 = vmatpush.bf16.msra.mxu0 %v4093
        %5126 = vmatpush.bf16.msra.mxu0 %v4084
        %5127 = vmatpush.bf16.msra.mxu0 %v4075
        %5128 = vmatpush.bf16.msra.mxu0 %v4066
        %5129 = vmatmul.bf16.gmra.mxu0 %v2636
        %v5130 = vpop.f32.mrf.mxu0
        %v5131 = vadd.f32 %v5117, %v5130
        %v5132 = vpop.f32.mrf.mxu0
        %v5133 = vadd.f32 %v5119, %v5132
        %5134 = vdwg.mxu0
        %5135 = vmatpush.bf16.msra.mxu0 %v4201
        %5136 = vmatpush.bf16.msra.mxu0 %v4192
        %5137 = vmatpush.bf16.msra.mxu0 %v4183
        %5138 = vmatpush.bf16.msra.mxu0 %v4174
        %5139 = vmatpush.bf16.msra.mxu0 %v4165
        %5140 = vmatpush.bf16.msra.mxu0 %v4156
        %5141 = vmatpush.bf16.msra.mxu0 %v4147
        %5142 = vmatpush.bf16.msra.mxu0 %v4138
        %5143 = vmatmul.bf16.gmra.mxu0 %v2637
        %v5144 = vpop.f32.mrf.mxu0
        %v5145 = vadd.f32 %v5131, %v5144
        %v5146 = vpop.f32.mrf.mxu0
        %v5147 = vadd.f32 %v5133, %v5146
        %5148 = vdwg.mxu0
        %5149 = vmatpush.bf16.msra.mxu0 %v4273
        %5150 = vmatpush.bf16.msra.mxu0 %v4264
        %5151 = vmatpush.bf16.msra.mxu0 %v4255
        %5152 = vmatpush.bf16.msra.mxu0 %v4246
        %5153 = vmatpush.bf16.msra.mxu0 %v4237
        %5154 = vmatpush.bf16.msra.mxu0 %v4228
        %5155 = vmatpush.bf16.msra.mxu0 %v4219
        %5156 = vmatpush.bf16.msra.mxu0 %v4210
        %5157 = vmatmul.bf16.gmra.mxu0 %v2638
        %v5158 = vpop.f32.mrf.mxu0
        %v5159 = vadd.f32 %v5145, %v5158
        %v5160 = vpop.f32.mrf.mxu0
        %v5161 = vadd.f32 %v5147, %v5160
        %5162 = vdwg.mxu0
        %5163 = vmatpush.bf16.msra.mxu0 %v4345
        %5164 = vmatpush.bf16.msra.mxu0 %v4336
        %5165 = vmatpush.bf16.msra.mxu0 %v4327
        %5166 = vmatpush.bf16.msra.mxu0 %v4318
        %5167 = vmatpush.bf16.msra.mxu0 %v4309
        %5168 = vmatpush.bf16.msra.mxu0 %v4300
        %5169 = vmatpush.bf16.msra.mxu0 %v4291
        %5170 = vmatpush.bf16.msra.mxu0 %v4282
        %5171 = vmatmul.bf16.gmra.mxu0 %v2639
        %v5172 = vpop.f32.mrf.mxu0
        %v5173 = vadd.f32 %v5159, %v5172
        %v5174 = vpop.f32.mrf.mxu0
        %v5175 = vadd.f32 %v5161, %v5174
        %5176 = vdwg.mxu0
        %5177 = vmatpush.bf16.msra.mxu0 %v4417
        %5178 = vmatpush.bf16.msra.mxu0 %v4408
        %5179 = vmatpush.bf16.msra.mxu0 %v4399
        %5180 = vmatpush.bf16.msra.mxu0 %v4390
        %5181 = vmatpush.bf16.msra.mxu0 %v4381
        %5182 = vmatpush.bf16.msra.mxu0 %v4372
        %5183 = vmatpush.bf16.msra.mxu0 %v4363
        %5184 = vmatpush.bf16.msra.mxu0 %v4354
        %5185 = vmatmul.bf16.gmra.mxu0 %v2640
        %v5186 = vpop.f32.mrf.mxu0
        %v5187 = vadd.f32 %v5173, %v5186
        %v5188 = vpop.f32.mrf.mxu0
        %v5189 = vadd.f32 %v5175, %v5188
        %5190 = vdwg.mxu0
        %5191 = vmatpush.bf16.msra.mxu0 %v4058
        %5192 = vmatpush.bf16.msra.mxu0 %v4049
        %5193 = vmatpush.bf16.msra.mxu0 %v4040
        %5194 = vmatpush.bf16.msra.mxu0 %v4031
        %5195 = vmatpush.bf16.msra.mxu0 %v4022
        %5196 = vmatpush.bf16.msra.mxu0 %v4013
        %5197 = vmatpush.bf16.msra.mxu0 %v4004
        %5198 = vmatpush.bf16.msra.mxu0 %v3995
        %5199 = vmatmul.bf16.gmra.mxu0 %v2635
        %v5200 = vpop.f32.mrf.mxu0
        %v5201 = vadd.f32 %v2603, %v5200
        %v5202 = vpop.f32.mrf.mxu0
        %v5203 = vadd.f32 %v2603, %v5202
        %5204 = vdwg.mxu0
        %5205 = vmatpush.bf16.msra.mxu0 %v4130
        %5206 = vmatpush.bf16.msra.mxu0 %v4121
        %5207 = vmatpush.bf16.msra.mxu0 %v4112
        %5208 = vmatpush.bf16.msra.mxu0 %v4103
        %5209 = vmatpush.bf16.msra.mxu0 %v4094
        %5210 = vmatpush.bf16.msra.mxu0 %v4085
        %5211 = vmatpush.bf16.msra.mxu0 %v4076
        %5212 = vmatpush.bf16.msra.mxu0 %v4067
        %5213 = vmatmul.bf16.gmra.mxu0 %v2636
        %v5214 = vpop.f32.mrf.mxu0
        %v5215 = vadd.f32 %v5201, %v5214
        %v5216 = vpop.f32.mrf.mxu0
        %v5217 = vadd.f32 %v5203, %v5216
        %5218 = vdwg.mxu0
        %5219 = vmatpush.bf16.msra.mxu0 %v4202
        %5220 = vmatpush.bf16.msra.mxu0 %v4193
        %5221 = vmatpush.bf16.msra.mxu0 %v4184
        %5222 = vmatpush.bf16.msra.mxu0 %v4175
        %5223 = vmatpush.bf16.msra.mxu0 %v4166
        %5224 = vmatpush.bf16.msra.mxu0 %v4157
        %5225 = vmatpush.bf16.msra.mxu0 %v4148
        %5226 = vmatpush.bf16.msra.mxu0 %v4139
        %5227 = vmatmul.bf16.gmra.mxu0 %v2637
        %v5228 = vpop.f32.mrf.mxu0
        %v5229 = vadd.f32 %v5215, %v5228
        %v5230 = vpop.f32.mrf.mxu0
        %v5231 = vadd.f32 %v5217, %v5230
        %5232 = vdwg.mxu0
        %5233 = vmatpush.bf16.msra.mxu0 %v4274
        %5234 = vmatpush.bf16.msra.mxu0 %v4265
        %5235 = vmatpush.bf16.msra.mxu0 %v4256
        %5236 = vmatpush.bf16.msra.mxu0 %v4247
        %5237 = vmatpush.bf16.msra.mxu0 %v4238
        %5238 = vmatpush.bf16.msra.mxu0 %v4229
        %5239 = vmatpush.bf16.msra.mxu0 %v4220
        %5240 = vmatpush.bf16.msra.mxu0 %v4211
        %5241 = vmatmul.bf16.gmra.mxu0 %v2638
        %v5242 = vpop.f32.mrf.mxu0
        %v5243 = vadd.f32 %v5229, %v5242
        %v5244 = vpop.f32.mrf.mxu0
        %v5245 = vadd.f32 %v5231, %v5244
        %5246 = vdwg.mxu0
        %5247 = vmatpush.bf16.msra.mxu0 %v4346
        %5248 = vmatpush.bf16.msra.mxu0 %v4337
        %5249 = vmatpush.bf16.msra.mxu0 %v4328
        %5250 = vmatpush.bf16.msra.mxu0 %v4319
        %5251 = vmatpush.bf16.msra.mxu0 %v4310
        %5252 = vmatpush.bf16.msra.mxu0 %v4301
        %5253 = vmatpush.bf16.msra.mxu0 %v4292
        %5254 = vmatpush.bf16.msra.mxu0 %v4283
        %5255 = vmatmul.bf16.gmra.mxu0 %v2639
        %v5256 = vpop.f32.mrf.mxu0
        %v5257 = vadd.f32 %v5243, %v5256
        %v5258 = vpop.f32.mrf.mxu0
        %v5259 = vadd.f32 %v5245, %v5258
        %5260 = vdwg.mxu0
        %5261 = vmatpush.bf16.msra.mxu0 %v4418
        %5262 = vmatpush.bf16.msra.mxu0 %v4409
        %5263 = vmatpush.bf16.msra.mxu0 %v4400
        %5264 = vmatpush.bf16.msra.mxu0 %v4391
        %5265 = vmatpush.bf16.msra.mxu0 %v4382
        %5266 = vmatpush.bf16.msra.mxu0 %v4373
        %5267 = vmatpush.bf16.msra.mxu0 %v4364
        %5268 = vmatpush.bf16.msra.mxu0 %v4355
        %5269 = vmatmul.bf16.gmra.mxu0 %v2640
        %v5270 = vpop.f32.mrf.mxu0
        %v5271 = vadd.f32 %v5257, %v5270
        %v5272 = vpop.f32.mrf.mxu0
        %v5273 = vadd.f32 %v5259, %v5272
        %5274 = vdwg.mxu0
        %5275 = vmatpush.bf16.msra.mxu0 %v4059
        %5276 = vmatpush.bf16.msra.mxu0 %v4050
        %5277 = vmatpush.bf16.msra.mxu0 %v4041
        %5278 = vmatpush.bf16.msra.mxu0 %v4032
        %5279 = vmatpush.bf16.msra.mxu0 %v4023
        %5280 = vmatpush.bf16.msra.mxu0 %v4014
        %5281 = vmatpush.bf16.msra.mxu0 %v4005
        %5282 = vmatpush.bf16.msra.mxu0 %v3996
        %5283 = vmatmul.bf16.gmra.mxu0 %v2635
        %v5284 = vpop.f32.mrf.mxu0
        %v5285 = vadd.f32 %v2604, %v5284
        %v5286 = vpop.f32.mrf.mxu0
        %v5287 = vadd.f32 %v2604, %v5286
        %5288 = vdwg.mxu0
        %5289 = vmatpush.bf16.msra.mxu0 %v4131
        %5290 = vmatpush.bf16.msra.mxu0 %v4122
        %5291 = vmatpush.bf16.msra.mxu0 %v4113
        %5292 = vmatpush.bf16.msra.mxu0 %v4104
        %5293 = vmatpush.bf16.msra.mxu0 %v4095
        %5294 = vmatpush.bf16.msra.mxu0 %v4086
        %5295 = vmatpush.bf16.msra.mxu0 %v4077
        %5296 = vmatpush.bf16.msra.mxu0 %v4068
        %5297 = vmatmul.bf16.gmra.mxu0 %v2636
        %v5298 = vpop.f32.mrf.mxu0
        %v5299 = vadd.f32 %v5285, %v5298
        %v5300 = vpop.f32.mrf.mxu0
        %v5301 = vadd.f32 %v5287, %v5300
        %5302 = vdwg.mxu0
        %5303 = vmatpush.bf16.msra.mxu0 %v4203
        %5304 = vmatpush.bf16.msra.mxu0 %v4194
        %5305 = vmatpush.bf16.msra.mxu0 %v4185
        %5306 = vmatpush.bf16.msra.mxu0 %v4176
        %5307 = vmatpush.bf16.msra.mxu0 %v4167
        %5308 = vmatpush.bf16.msra.mxu0 %v4158
        %5309 = vmatpush.bf16.msra.mxu0 %v4149
        %5310 = vmatpush.bf16.msra.mxu0 %v4140
        %5311 = vmatmul.bf16.gmra.mxu0 %v2637
        %v5312 = vpop.f32.mrf.mxu0
        %v5313 = vadd.f32 %v5299, %v5312
        %v5314 = vpop.f32.mrf.mxu0
        %v5315 = vadd.f32 %v5301, %v5314
        %5316 = vdwg.mxu0
        %5317 = vmatpush.bf16.msra.mxu0 %v4275
        %5318 = vmatpush.bf16.msra.mxu0 %v4266
        %5319 = vmatpush.bf16.msra.mxu0 %v4257
        %5320 = vmatpush.bf16.msra.mxu0 %v4248
        %5321 = vmatpush.bf16.msra.mxu0 %v4239
        %5322 = vmatpush.bf16.msra.mxu0 %v4230
        %5323 = vmatpush.bf16.msra.mxu0 %v4221
        %5324 = vmatpush.bf16.msra.mxu0 %v4212
        %5325 = vmatmul.bf16.gmra.mxu0 %v2638
        %v5326 = vpop.f32.mrf.mxu0
        %v5327 = vadd.f32 %v5313, %v5326
        %v5328 = vpop.f32.mrf.mxu0
        %v5329 = vadd.f32 %v5315, %v5328
        %5330 = vdwg.mxu0
        %5331 = vmatpush.bf16.msra.mxu0 %v4347
        %5332 = vmatpush.bf16.msra.mxu0 %v4338
        %5333 = vmatpush.bf16.msra.mxu0 %v4329
        %5334 = vmatpush.bf16.msra.mxu0 %v4320
        %5335 = vmatpush.bf16.msra.mxu0 %v4311
        %5336 = vmatpush.bf16.msra.mxu0 %v4302
        %5337 = vmatpush.bf16.msra.mxu0 %v4293
        %5338 = vmatpush.bf16.msra.mxu0 %v4284
        %5339 = vmatmul.bf16.gmra.mxu0 %v2639
        %v5340 = vpop.f32.mrf.mxu0
        %v5341 = vadd.f32 %v5327, %v5340
        %v5342 = vpop.f32.mrf.mxu0
        %v5343 = vadd.f32 %v5329, %v5342
        %5344 = vdwg.mxu0
        %5345 = vmatpush.bf16.msra.mxu0 %v4419
        %5346 = vmatpush.bf16.msra.mxu0 %v4410
        %5347 = vmatpush.bf16.msra.mxu0 %v4401
        %5348 = vmatpush.bf16.msra.mxu0 %v4392
        %5349 = vmatpush.bf16.msra.mxu0 %v4383
        %5350 = vmatpush.bf16.msra.mxu0 %v4374
        %5351 = vmatpush.bf16.msra.mxu0 %v4365
        %5352 = vmatpush.bf16.msra.mxu0 %v4356
        %5353 = vmatmul.bf16.gmra.mxu0 %v2640
        %v5354 = vpop.f32.mrf.mxu0
        %v5355 = vadd.f32 %v5341, %v5354
        %v5356 = vpop.f32.mrf.mxu0
        %v5357 = vadd.f32 %v5343, %v5356
        %5358 = vdwg.mxu0
        %5359 = vmatpush.bf16.msra.mxu0 %v4060
        %5360 = vmatpush.bf16.msra.mxu0 %v4051
        %5361 = vmatpush.bf16.msra.mxu0 %v4042
        %5362 = vmatpush.bf16.msra.mxu0 %v4033
        %5363 = vmatpush.bf16.msra.mxu0 %v4024
        %5364 = vmatpush.bf16.msra.mxu0 %v4015
        %5365 = vmatpush.bf16.msra.mxu0 %v4006
        %5366 = vmatpush.bf16.msra.mxu0 %v3997
        %5367 = vmatmul.bf16.gmra.mxu0 %v2635
        %v5368 = vpop.f32.mrf.mxu0
        %v5369 = vadd.f32 %v2605, %v5368
        %v5370 = vpop.f32.mrf.mxu0
        %v5371 = vadd.f32 %v2605, %v5370
        %5372 = vdwg.mxu0
        %5373 = vmatpush.bf16.msra.mxu0 %v4132
        %5374 = vmatpush.bf16.msra.mxu0 %v4123
        %5375 = vmatpush.bf16.msra.mxu0 %v4114
        %5376 = vmatpush.bf16.msra.mxu0 %v4105
        %5377 = vmatpush.bf16.msra.mxu0 %v4096
        %5378 = vmatpush.bf16.msra.mxu0 %v4087
        %5379 = vmatpush.bf16.msra.mxu0 %v4078
        %5380 = vmatpush.bf16.msra.mxu0 %v4069
        %5381 = vmatmul.bf16.gmra.mxu0 %v2636
        %v5382 = vpop.f32.mrf.mxu0
        %v5383 = vadd.f32 %v5369, %v5382
        %v5384 = vpop.f32.mrf.mxu0
        %v5385 = vadd.f32 %v5371, %v5384
        %5386 = vdwg.mxu0
        %5387 = vmatpush.bf16.msra.mxu0 %v4204
        %5388 = vmatpush.bf16.msra.mxu0 %v4195
        %5389 = vmatpush.bf16.msra.mxu0 %v4186
        %5390 = vmatpush.bf16.msra.mxu0 %v4177
        %5391 = vmatpush.bf16.msra.mxu0 %v4168
        %5392 = vmatpush.bf16.msra.mxu0 %v4159
        %5393 = vmatpush.bf16.msra.mxu0 %v4150
        %5394 = vmatpush.bf16.msra.mxu0 %v4141
        %5395 = vmatmul.bf16.gmra.mxu0 %v2637
        %v5396 = vpop.f32.mrf.mxu0
        %v5397 = vadd.f32 %v5383, %v5396
        %v5398 = vpop.f32.mrf.mxu0
        %v5399 = vadd.f32 %v5385, %v5398
        %5400 = vdwg.mxu0
        %5401 = vmatpush.bf16.msra.mxu0 %v4276
        %5402 = vmatpush.bf16.msra.mxu0 %v4267
        %5403 = vmatpush.bf16.msra.mxu0 %v4258
        %5404 = vmatpush.bf16.msra.mxu0 %v4249
        %5405 = vmatpush.bf16.msra.mxu0 %v4240
        %5406 = vmatpush.bf16.msra.mxu0 %v4231
        %5407 = vmatpush.bf16.msra.mxu0 %v4222
        %5408 = vmatpush.bf16.msra.mxu0 %v4213
        %5409 = vmatmul.bf16.gmra.mxu0 %v2638
        %v5410 = vpop.f32.mrf.mxu0
        %v5411 = vadd.f32 %v5397, %v5410
        %v5412 = vpop.f32.mrf.mxu0
        %v5413 = vadd.f32 %v5399, %v5412
        %5414 = vdwg.mxu0
        %5415 = vmatpush.bf16.msra.mxu0 %v4348
        %5416 = vmatpush.bf16.msra.mxu0 %v4339
        %5417 = vmatpush.bf16.msra.mxu0 %v4330
        %5418 = vmatpush.bf16.msra.mxu0 %v4321
        %5419 = vmatpush.bf16.msra.mxu0 %v4312
        %5420 = vmatpush.bf16.msra.mxu0 %v4303
        %5421 = vmatpush.bf16.msra.mxu0 %v4294
        %5422 = vmatpush.bf16.msra.mxu0 %v4285
        %5423 = vmatmul.bf16.gmra.mxu0 %v2639
        %v5424 = vpop.f32.mrf.mxu0
        %v5425 = vadd.f32 %v5411, %v5424
        %v5426 = vpop.f32.mrf.mxu0
        %v5427 = vadd.f32 %v5413, %v5426
        %5428 = vdwg.mxu0
        %5429 = vmatpush.bf16.msra.mxu0 %v4420
        %5430 = vmatpush.bf16.msra.mxu0 %v4411
        %5431 = vmatpush.bf16.msra.mxu0 %v4402
        %5432 = vmatpush.bf16.msra.mxu0 %v4393
        %5433 = vmatpush.bf16.msra.mxu0 %v4384
        %5434 = vmatpush.bf16.msra.mxu0 %v4375
        %5435 = vmatpush.bf16.msra.mxu0 %v4366
        %5436 = vmatpush.bf16.msra.mxu0 %v4357
        %5437 = vmatmul.bf16.gmra.mxu0 %v2640
        %v5438 = vpop.f32.mrf.mxu0
        %v5439 = vadd.f32 %v5425, %v5438
        %v5440 = vpop.f32.mrf.mxu0
        %v5441 = vadd.f32 %v5427, %v5440
        %5442 = vdwg.mxu0
        %5443 = vmatpush.bf16.msra.mxu0 %v4061
        %5444 = vmatpush.bf16.msra.mxu0 %v4052
        %5445 = vmatpush.bf16.msra.mxu0 %v4043
        %5446 = vmatpush.bf16.msra.mxu0 %v4034
        %5447 = vmatpush.bf16.msra.mxu0 %v4025
        %5448 = vmatpush.bf16.msra.mxu0 %v4016
        %5449 = vmatpush.bf16.msra.mxu0 %v4007
        %5450 = vmatpush.bf16.msra.mxu0 %v3998
        %5451 = vmatmul.bf16.gmra.mxu0 %v2635
        %v5452 = vpop.f32.mrf.mxu0
        %v5453 = vadd.f32 %v2606, %v5452
        %v5454 = vpop.f32.mrf.mxu0
        %v5455 = vadd.f32 %v2606, %v5454
        %5456 = vdwg.mxu0
        %5457 = vmatpush.bf16.msra.mxu0 %v4133
        %5458 = vmatpush.bf16.msra.mxu0 %v4124
        %5459 = vmatpush.bf16.msra.mxu0 %v4115
        %5460 = vmatpush.bf16.msra.mxu0 %v4106
        %5461 = vmatpush.bf16.msra.mxu0 %v4097
        %5462 = vmatpush.bf16.msra.mxu0 %v4088
        %5463 = vmatpush.bf16.msra.mxu0 %v4079
        %5464 = vmatpush.bf16.msra.mxu0 %v4070
        %5465 = vmatmul.bf16.gmra.mxu0 %v2636
        %v5466 = vpop.f32.mrf.mxu0
        %v5467 = vadd.f32 %v5453, %v5466
        %v5468 = vpop.f32.mrf.mxu0
        %v5469 = vadd.f32 %v5455, %v5468
        %5470 = vdwg.mxu0
        %5471 = vmatpush.bf16.msra.mxu0 %v4205
        %5472 = vmatpush.bf16.msra.mxu0 %v4196
        %5473 = vmatpush.bf16.msra.mxu0 %v4187
        %5474 = vmatpush.bf16.msra.mxu0 %v4178
        %5475 = vmatpush.bf16.msra.mxu0 %v4169
        %5476 = vmatpush.bf16.msra.mxu0 %v4160
        %5477 = vmatpush.bf16.msra.mxu0 %v4151
        %5478 = vmatpush.bf16.msra.mxu0 %v4142
        %5479 = vmatmul.bf16.gmra.mxu0 %v2637
        %v5480 = vpop.f32.mrf.mxu0
        %v5481 = vadd.f32 %v5467, %v5480
        %v5482 = vpop.f32.mrf.mxu0
        %v5483 = vadd.f32 %v5469, %v5482
        %5484 = vdwg.mxu0
        %5485 = vmatpush.bf16.msra.mxu0 %v4277
        %5486 = vmatpush.bf16.msra.mxu0 %v4268
        %5487 = vmatpush.bf16.msra.mxu0 %v4259
        %5488 = vmatpush.bf16.msra.mxu0 %v4250
        %5489 = vmatpush.bf16.msra.mxu0 %v4241
        %5490 = vmatpush.bf16.msra.mxu0 %v4232
        %5491 = vmatpush.bf16.msra.mxu0 %v4223
        %5492 = vmatpush.bf16.msra.mxu0 %v4214
        %5493 = vmatmul.bf16.gmra.mxu0 %v2638
        %v5494 = vpop.f32.mrf.mxu0
        %v5495 = vadd.f32 %v5481, %v5494
        %v5496 = vpop.f32.mrf.mxu0
        %v5497 = vadd.f32 %v5483, %v5496
        %5498 = vdwg.mxu0
        %5499 = vmatpush.bf16.msra.mxu0 %v4349
        %5500 = vmatpush.bf16.msra.mxu0 %v4340
        %5501 = vmatpush.bf16.msra.mxu0 %v4331
        %5502 = vmatpush.bf16.msra.mxu0 %v4322
        %5503 = vmatpush.bf16.msra.mxu0 %v4313
        %5504 = vmatpush.bf16.msra.mxu0 %v4304
        %5505 = vmatpush.bf16.msra.mxu0 %v4295
        %5506 = vmatpush.bf16.msra.mxu0 %v4286
        %5507 = vmatmul.bf16.gmra.mxu0 %v2639
        %v5508 = vpop.f32.mrf.mxu0
        %v5509 = vadd.f32 %v5495, %v5508
        %v5510 = vpop.f32.mrf.mxu0
        %v5511 = vadd.f32 %v5497, %v5510
        %5512 = vdwg.mxu0
        %5513 = vmatpush.bf16.msra.mxu0 %v4421
        %5514 = vmatpush.bf16.msra.mxu0 %v4412
        %5515 = vmatpush.bf16.msra.mxu0 %v4403
        %5516 = vmatpush.bf16.msra.mxu0 %v4394
        %5517 = vmatpush.bf16.msra.mxu0 %v4385
        %5518 = vmatpush.bf16.msra.mxu0 %v4376
        %5519 = vmatpush.bf16.msra.mxu0 %v4367
        %5520 = vmatpush.bf16.msra.mxu0 %v4358
        %5521 = vmatmul.bf16.gmra.mxu0 %v2640
        %v5522 = vpop.f32.mrf.mxu0
        %v5523 = vadd.f32 %v5509, %v5522
        %v5524 = vpop.f32.mrf.mxu0
        %v5525 = vadd.f32 %v5511, %v5524
        %5526 = vdwg.mxu0
        %5527 = vmatpush.bf16.msra.mxu0 %v4062
        %5528 = vmatpush.bf16.msra.mxu0 %v4053
        %5529 = vmatpush.bf16.msra.mxu0 %v4044
        %5530 = vmatpush.bf16.msra.mxu0 %v4035
        %5531 = vmatpush.bf16.msra.mxu0 %v4026
        %5532 = vmatpush.bf16.msra.mxu0 %v4017
        %5533 = vmatpush.bf16.msra.mxu0 %v4008
        %5534 = vmatpush.bf16.msra.mxu0 %v3999
        %5535 = vmatmul.bf16.gmra.mxu0 %v2635
        %v5536 = vpop.f32.mrf.mxu0
        %v5537 = vadd.f32 %v2607, %v5536
        %v5538 = vpop.f32.mrf.mxu0
        %v5539 = vadd.f32 %v2607, %v5538
        %5540 = vdwg.mxu0
        %5541 = vmatpush.bf16.msra.mxu0 %v4134
        %5542 = vmatpush.bf16.msra.mxu0 %v4125
        %5543 = vmatpush.bf16.msra.mxu0 %v4116
        %5544 = vmatpush.bf16.msra.mxu0 %v4107
        %5545 = vmatpush.bf16.msra.mxu0 %v4098
        %5546 = vmatpush.bf16.msra.mxu0 %v4089
        %5547 = vmatpush.bf16.msra.mxu0 %v4080
        %5548 = vmatpush.bf16.msra.mxu0 %v4071
        %5549 = vmatmul.bf16.gmra.mxu0 %v2636
        %v5550 = vpop.f32.mrf.mxu0
        %v5551 = vadd.f32 %v5537, %v5550
        %v5552 = vpop.f32.mrf.mxu0
        %v5553 = vadd.f32 %v5539, %v5552
        %5554 = vdwg.mxu0
        %5555 = vmatpush.bf16.msra.mxu0 %v4206
        %5556 = vmatpush.bf16.msra.mxu0 %v4197
        %5557 = vmatpush.bf16.msra.mxu0 %v4188
        %5558 = vmatpush.bf16.msra.mxu0 %v4179
        %5559 = vmatpush.bf16.msra.mxu0 %v4170
        %5560 = vmatpush.bf16.msra.mxu0 %v4161
        %5561 = vmatpush.bf16.msra.mxu0 %v4152
        %5562 = vmatpush.bf16.msra.mxu0 %v4143
        %5563 = vmatmul.bf16.gmra.mxu0 %v2637
        %v5564 = vpop.f32.mrf.mxu0
        %v5565 = vadd.f32 %v5551, %v5564
        %v5566 = vpop.f32.mrf.mxu0
        %v5567 = vadd.f32 %v5553, %v5566
        %5568 = vdwg.mxu0
        %5569 = vmatpush.bf16.msra.mxu0 %v4278
        %5570 = vmatpush.bf16.msra.mxu0 %v4269
        %5571 = vmatpush.bf16.msra.mxu0 %v4260
        %5572 = vmatpush.bf16.msra.mxu0 %v4251
        %5573 = vmatpush.bf16.msra.mxu0 %v4242
        %5574 = vmatpush.bf16.msra.mxu0 %v4233
        %5575 = vmatpush.bf16.msra.mxu0 %v4224
        %5576 = vmatpush.bf16.msra.mxu0 %v4215
        %5577 = vmatmul.bf16.gmra.mxu0 %v2638
        %v5578 = vpop.f32.mrf.mxu0
        %v5579 = vadd.f32 %v5565, %v5578
        %v5580 = vpop.f32.mrf.mxu0
        %v5581 = vadd.f32 %v5567, %v5580
        %5582 = vdwg.mxu0
        %5583 = vmatpush.bf16.msra.mxu0 %v4350
        %5584 = vmatpush.bf16.msra.mxu0 %v4341
        %5585 = vmatpush.bf16.msra.mxu0 %v4332
        %5586 = vmatpush.bf16.msra.mxu0 %v4323
        %5587 = vmatpush.bf16.msra.mxu0 %v4314
        %5588 = vmatpush.bf16.msra.mxu0 %v4305
        %5589 = vmatpush.bf16.msra.mxu0 %v4296
        %5590 = vmatpush.bf16.msra.mxu0 %v4287
        %5591 = vmatmul.bf16.gmra.mxu0 %v2639
        %v5592 = vpop.f32.mrf.mxu0
        %v5593 = vadd.f32 %v5579, %v5592
        %v5594 = vpop.f32.mrf.mxu0
        %v5595 = vadd.f32 %v5581, %v5594
        %5596 = vdwg.mxu0
        %5597 = vmatpush.bf16.msra.mxu0 %v4422
        %5598 = vmatpush.bf16.msra.mxu0 %v4413
        %5599 = vmatpush.bf16.msra.mxu0 %v4404
        %5600 = vmatpush.bf16.msra.mxu0 %v4395
        %5601 = vmatpush.bf16.msra.mxu0 %v4386
        %5602 = vmatpush.bf16.msra.mxu0 %v4377
        %5603 = vmatpush.bf16.msra.mxu0 %v4368
        %5604 = vmatpush.bf16.msra.mxu0 %v4359
        %5605 = vmatmul.bf16.gmra.mxu0 %v2640
        %v5606 = vpop.f32.mrf.mxu0
        %v5607 = vadd.f32 %v5593, %v5606
        %v5608 = vpop.f32.mrf.mxu0
        %v5609 = vadd.f32 %v5595, %v5608
        %5610 = vdwg.mxu0
        %v5615 = vrot.slane %v5019, 6
        %v5616 = vrot.slane %v5021, 6
        %vm5617 = vcmask 1041408
        %v5618 = vsel %vm5617, %v4935, %v5615
        %vm5619 = vcmask 1043458
        %v5620 = vsel %vm5619, %v4935, %v5615
        %v5621 = vrot.slane %v5620, 2
        %vm5622 = vcmask 1045508
        %v5623 = vsel %vm5622, %v4935, %v5615
        %v5624 = vrot.slane %v5623, 4
        %vm5625 = vcmask 1045504
        %v5626 = vsel %vm5625, %v5615, %v4935
        %v5627 = vrot.slane %v5626, 6
        %v5628 = vsel %vm5617, %v4937, %v5616
        %v5629 = vsel %vm5619, %v4937, %v5616
        %v5630 = vrot.slane %v5629, 2
        %v5631 = vsel %vm5622, %v4937, %v5616
        %v5632 = vrot.slane %v5631, 4
        %v5633 = vsel %vm5625, %v5616, %v4937
        %v5634 = vrot.slane %v5633, 6
        %v5639 = vrot.slane %v5271, 6
        %v5640 = vrot.slane %v5273, 6
        %v5641 = vsel %vm5617, %v5187, %v5639
        %v5642 = vsel %vm5619, %v5187, %v5639
        %v5643 = vrot.slane %v5642, 2
        %v5644 = vsel %vm5622, %v5187, %v5639
        %v5645 = vrot.slane %v5644, 4
        %v5646 = vsel %vm5625, %v5639, %v5187
        %v5647 = vrot.slane %v5646, 6
        %v5648 = vsel %vm5617, %v5189, %v5640
        %v5649 = vsel %vm5619, %v5189, %v5640
        %v5650 = vrot.slane %v5649, 2
        %v5651 = vsel %vm5622, %v5189, %v5640
        %v5652 = vrot.slane %v5651, 4
        %v5653 = vsel %vm5625, %v5640, %v5189
        %v5654 = vrot.slane %v5653, 6
        %v5659 = vrot.slane %v5523, 6
        %v5660 = vrot.slane %v5525, 6
        %v5661 = vsel %vm5617, %v5439, %v5659
        %v5662 = vsel %vm5619, %v5439, %v5659
        %v5663 = vrot.slane %v5662, 2
        %v5664 = vsel %vm5622, %v5439, %v5659
        %v5665 = vrot.slane %v5664, 4
        %v5666 = vsel %vm5625, %v5659, %v5439
        %v5667 = vrot.slane %v5666, 6
        %v5668 = vsel %vm5617, %v5441, %v5660
        %v5669 = vsel %vm5619, %v5441, %v5660
        %v5670 = vrot.slane %v5669, 2
        %v5671 = vsel %vm5622, %v5441, %v5660
        %v5672 = vrot.slane %v5671, 4
        %v5673 = vsel %vm5625, %v5660, %v5441
        %v5674 = vrot.slane %v5673, 6
        %5675 = vst [vmem:[#allocation1] ss:$4 sm:$0xff] %v5618
        %v5676 = vld.sshfl [vmem:[#allocation1] sm:$0xff pattern:$0x73625140]
        %v5677 = vld.sshfl [vmem:[#allocation1 + $0x8] sm:$0xff pattern:$0x73625140]
        %5679 = vst [vmem:[#allocation1] ss:$4 sm:$0xff] %v5641
        %v5680 = vld.sshfl [vmem:[#allocation1] sm:$0xff pattern:$0x73625140]
        %v5681 = vld.sshfl [vmem:[#allocation1 + $0x8] sm:$0xff pattern:$0x73625140]
        %vm5683 = vcmask 523264
        %v5684 = vsel %vm5683, %v5677, 0
        %v5686 = vsel %vm5683, %v5681, 0
        %5688 = vmatpush.xpose.msra.mxu0 0.0
        %5689 = vmatpush.xpose.msra.mxu0 0.0
        %5690 = vmatpush.xpose.msra.mxu0 0.0
        %5691 = vmatpush.xpose.msra.mxu0 0.0
        %5692 = vmatpush.xpose.msra.mxu0 0.0
        %5693 = vmatpush.xpose.msra.mxu0 0.0
        %5694 = vmatpush.xpose.msra.mxu0 0.0
        %5695 = vmatpush.xpose.msra.mxu0 0.0
        %5696 = vmatpush.xpose.msra.mxu0 0.0
        %5697 = vmatpush.xpose.msra.mxu0 0.0
        %5698 = vmatpush.xpose.msra.mxu0 0.0
        %5699 = vmatpush.xpose.msra.mxu0 0.0
        %5700 = vmatpush.xpose.msra.mxu0 0.0
        %5701 = vmatpush.xpose.msra.mxu0 0.0
        %5702 = vmatpush.xpose.msra.mxu0 0.0
        %5703 = vmatpush.xpose.msra.mxu0 %v5680
        %5704 = vmatmul.f32.gmra.mxu0 %v5676
        %v5705 = vpop.f32.mrf.mxu0
        %v5706 = vadd.f32 0.0, %v5705
        %5707 = vdwg.mxu0
        %5708 = vmatpush.xpose.msra.mxu0 0.0
        %5709 = vmatpush.xpose.msra.mxu0 0.0
        %5710 = vmatpush.xpose.msra.mxu0 0.0
        %5711 = vmatpush.xpose.msra.mxu0 0.0
        %5712 = vmatpush.xpose.msra.mxu0 0.0
        %5713 = vmatpush.xpose.msra.mxu0 0.0
        %5714 = vmatpush.xpose.msra.mxu0 0.0
        %5715 = vmatpush.xpose.msra.mxu0 0.0
        %5716 = vmatpush.xpose.msra.mxu0 0.0
        %5717 = vmatpush.xpose.msra.mxu0 0.0
        %5718 = vmatpush.xpose.msra.mxu0 0.0
        %5719 = vmatpush.xpose.msra.mxu0 0.0
        %5720 = vmatpush.xpose.msra.mxu0 0.0
        %5721 = vmatpush.xpose.msra.mxu0 0.0
        %5722 = vmatpush.xpose.msra.mxu0 0.0
        %5723 = vmatpush.xpose.msra.mxu0 %v5686
        %5724 = vmatmul.f32.gmra.mxu0 %v5684
        %v5725 = vpop.f32.mrf.mxu0
        %v5726 = vadd.f32 %v5706, %v5725
        %5727 = vdwg.mxu0
        %5728 = vst [vmem:[#allocation1] ss:$4 sm:$0xff] %v5621
        %v5729 = vld.sshfl [vmem:[#allocation1] sm:$0xff pattern:$0x73625140]
        %v5730 = vld.sshfl [vmem:[#allocation1 + $0x8] sm:$0xff pattern:$0x73625140]
        %5732 = vst [vmem:[#allocation1] ss:$4 sm:$0xff] %v5643
        %v5733 = vld.sshfl [vmem:[#allocation1] sm:$0xff pattern:$0x73625140]
        %v5734 = vld.sshfl [vmem:[#allocation1 + $0x8] sm:$0xff pattern:$0x73625140]
        %v5736 = vsel %vm5683, %v5730, 0
        %v5738 = vsel %vm5683, %v5734, 0
        %5740 = vmatpush.xpose.msra.mxu0 0.0
        %5741 = vmatpush.xpose.msra.mxu0 0.0
        %5742 = vmatpush.xpose.msra.mxu0 0.0
        %5743 = vmatpush.xpose.msra.mxu0 0.0
        %5744 = vmatpush.xpose.msra.mxu0 0.0
        %5745 = vmatpush.xpose.msra.mxu0 0.0
        %5746 = vmatpush.xpose.msra.mxu0 0.0
        %5747 = vmatpush.xpose.msra.mxu0 0.0
        %5748 = vmatpush.xpose.msra.mxu0 0.0
        %5749 = vmatpush.xpose.msra.mxu0 0.0
        %5750 = vmatpush.xpose.msra.mxu0 0.0
        %5751 = vmatpush.xpose.msra.mxu0 0.0
        %5752 = vmatpush.xpose.msra.mxu0 0.0
        %5753 = vmatpush.xpose.msra.mxu0 0.0
        %5754 = vmatpush.xpose.msra.mxu0 0.0
        %5755 = vmatpush.xpose.msra.mxu0 %v5733
        %5756 = vmatmul.f32.gmra.mxu0 %v5729
        %v5757 = vpop.f32.mrf.mxu0
        %v5758 = vadd.f32 0.0, %v5757
        %5759 = vdwg.mxu0
        %5760 = vmatpush.xpose.msra.mxu0 0.0
        %5761 = vmatpush.xpose.msra.mxu0 0.0
        %5762 = vmatpush.xpose.msra.mxu0 0.0
        %5763 = vmatpush.xpose.msra.mxu0 0.0
        %5764 = vmatpush.xpose.msra.mxu0 0.0
        %5765 = vmatpush.xpose.msra.mxu0 0.0
        %5766 = vmatpush.xpose.msra.mxu0 0.0
        %5767 = vmatpush.xpose.msra.mxu0 0.0
        %5768 = vmatpush.xpose.msra.mxu0 0.0
        %5769 = vmatpush.xpose.msra.mxu0 0.0
        %5770 = vmatpush.xpose.msra.mxu0 0.0
        %5771 = vmatpush.xpose.msra.mxu0 0.0
        %5772 = vmatpush.xpose.msra.mxu0 0.0
        %5773 = vmatpush.xpose.msra.mxu0 0.0
        %5774 = vmatpush.xpose.msra.mxu0 0.0
        %5775 = vmatpush.xpose.msra.mxu0 %v5738
        %5776 = vmatmul.f32.gmra.mxu0 %v5736
        %v5777 = vpop.f32.mrf.mxu0
        %v5778 = vadd.f32 %v5758, %v5777
        %5779 = vdwg.mxu0
        %5780 = vst [vmem:[#allocation1] ss:$4 sm:$0xff] %v5624
        %v5781 = vld.sshfl [vmem:[#allocation1] sm:$0xff pattern:$0x73625140]
        %v5782 = vld.sshfl [vmem:[#allocation1 + $0x8] sm:$0xff pattern:$0x73625140]
        %5784 = vst [vmem:[#allocation1] ss:$4 sm:$0xff] %v5645
        %v5785 = vld.sshfl [vmem:[#allocation1] sm:$0xff pattern:$0x73625140]
        %v5786 = vld.sshfl [vmem:[#allocation1 + $0x8] sm:$0xff pattern:$0x73625140]
        %v5788 = vsel %vm5683, %v5782, 0
        %v5790 = vsel %vm5683, %v5786, 0
        %5792 = vmatpush.xpose.msra.mxu0 0.0
        %5793 = vmatpush.xpose.msra.mxu0 0.0
        %5794 = vmatpush.xpose.msra.mxu0 0.0
        %5795 = vmatpush.xpose.msra.mxu0 0.0
        %5796 = vmatpush.xpose.msra.mxu0 0.0
        %5797 = vmatpush.xpose.msra.mxu0 0.0
        %5798 = vmatpush.xpose.msra.mxu0 0.0
        %5799 = vmatpush.xpose.msra.mxu0 0.0
        %5800 = vmatpush.xpose.msra.mxu0 0.0
        %5801 = vmatpush.xpose.msra.mxu0 0.0
        %5802 = vmatpush.xpose.msra.mxu0 0.0
        %5803 = vmatpush.xpose.msra.mxu0 0.0
        %5804 = vmatpush.xpose.msra.mxu0 0.0
        %5805 = vmatpush.xpose.msra.mxu0 0.0
        %5806 = vmatpush.xpose.msra.mxu0 0.0
        %5807 = vmatpush.xpose.msra.mxu0 %v5785
        %5808 = vmatmul.f32.gmra.mxu0 %v5781
        %v5809 = vpop.f32.mrf.mxu0
        %v5810 = vadd.f32 0.0, %v5809
        %5811 = vdwg.mxu0
        %5812 = vmatpush.xpose.msra.mxu0 0.0
        %5813 = vmatpush.xpose.msra.mxu0 0.0
        %5814 = vmatpush.xpose.msra.mxu0 0.0
        %5815 = vmatpush.xpose.msra.mxu0 0.0
        %5816 = vmatpush.xpose.msra.mxu0 0.0
        %5817 = vmatpush.xpose.msra.mxu0 0.0
        %5818 = vmatpush.xpose.msra.mxu0 0.0
        %5819 = vmatpush.xpose.msra.mxu0 0.0
        %5820 = vmatpush.xpose.msra.mxu0 0.0
        %5821 = vmatpush.xpose.msra.mxu0 0.0
        %5822 = vmatpush.xpose.msra.mxu0 0.0
        %5823 = vmatpush.xpose.msra.mxu0 0.0
        %5824 = vmatpush.xpose.msra.mxu0 0.0
        %5825 = vmatpush.xpose.msra.mxu0 0.0
        %5826 = vmatpush.xpose.msra.mxu0 0.0
        %5827 = vmatpush.xpose.msra.mxu0 %v5790
        %5828 = vmatmul.f32.gmra.mxu0 %v5788
        %v5829 = vpop.f32.mrf.mxu0
        %v5830 = vadd.f32 %v5810, %v5829
        %5831 = vdwg.mxu0
        %5832 = vst [vmem:[#allocation1] ss:$4 sm:$0xff] %v5627
        %v5833 = vld.sshfl [vmem:[#allocation1] sm:$0xff pattern:$0x73625140]
        %v5834 = vld.sshfl [vmem:[#allocation1 + $0x8] sm:$0xff pattern:$0x73625140]
        %5836 = vst [vmem:[#allocation1] ss:$4 sm:$0xff] %v5647
        %v5837 = vld.sshfl [vmem:[#allocation1] sm:$0xff pattern:$0x73625140]
        %v5838 = vld.sshfl [vmem:[#allocation1 + $0x8] sm:$0xff pattern:$0x73625140]
        %v5840 = vsel %vm5683, %v5834, 0
        %v5842 = vsel %vm5683, %v5838, 0
        %5844 = vmatpush.xpose.msra.mxu0 0.0
        %5845 = vmatpush.xpose.msra.mxu0 0.0
        %5846 = vmatpush.xpose.msra.mxu0 0.0
        %5847 = vmatpush.xpose.msra.mxu0 0.0
        %5848 = vmatpush.xpose.msra.mxu0 0.0
        %5849 = vmatpush.xpose.msra.mxu0 0.0
        %5850 = vmatpush.xpose.msra.mxu0 0.0
        %5851 = vmatpush.xpose.msra.mxu0 0.0
        %5852 = vmatpush.xpose.msra.mxu0 0.0
        %5853 = vmatpush.xpose.msra.mxu0 0.0
        %5854 = vmatpush.xpose.msra.mxu0 0.0
        %5855 = vmatpush.xpose.msra.mxu0 0.0
        %5856 = vmatpush.xpose.msra.mxu0 0.0
        %5857 = vmatpush.xpose.msra.mxu0 0.0
        %5858 = vmatpush.xpose.msra.mxu0 0.0
        %5859 = vmatpush.xpose.msra.mxu0 %v5837
        %5860 = vmatmul.f32.gmra.mxu0 %v5833
        %v5861 = vpop.f32.mrf.mxu0
        %v5862 = vadd.f32 0.0, %v5861
        %5863 = vdwg.mxu0
        %5864 = vmatpush.xpose.msra.mxu0 0.0
        %5865 = vmatpush.xpose.msra.mxu0 0.0
        %5866 = vmatpush.xpose.msra.mxu0 0.0
        %5867 = vmatpush.xpose.msra.mxu0 0.0
        %5868 = vmatpush.xpose.msra.mxu0 0.0
        %5869 = vmatpush.xpose.msra.mxu0 0.0
        %5870 = vmatpush.xpose.msra.mxu0 0.0
        %5871 = vmatpush.xpose.msra.mxu0 0.0
        %5872 = vmatpush.xpose.msra.mxu0 0.0
        %5873 = vmatpush.xpose.msra.mxu0 0.0
        %5874 = vmatpush.xpose.msra.mxu0 0.0
        %5875 = vmatpush.xpose.msra.mxu0 0.0
        %5876 = vmatpush.xpose.msra.mxu0 0.0
        %5877 = vmatpush.xpose.msra.mxu0 0.0
        %5878 = vmatpush.xpose.msra.mxu0 0.0
        %5879 = vmatpush.xpose.msra.mxu0 %v5842
        %5880 = vmatmul.f32.gmra.mxu0 %v5840
        %v5881 = vpop.f32.mrf.mxu0
        %v5882 = vadd.f32 %v5862, %v5881
        %5883 = vdwg.mxu0
        %5884 = vst [vmem:[#allocation1] ss:$4 sm:$0xff] %v5628
        %v5885 = vld.sshfl [vmem:[#allocation1] sm:$0xff pattern:$0x73625140]
        %v5886 = vld.sshfl [vmem:[#allocation1 + $0x8] sm:$0xff pattern:$0x73625140]
        %5888 = vst [vmem:[#allocation1] ss:$4 sm:$0xff] %v5648
        %v5889 = vld.sshfl [vmem:[#allocation1] sm:$0xff pattern:$0x73625140]
        %v5890 = vld.sshfl [vmem:[#allocation1 + $0x8] sm:$0xff pattern:$0x73625140]
        %v5892 = vsel %vm5683, %v5886, 0
        %v5894 = vsel %vm5683, %v5890, 0
        %5896 = vmatpush.xpose.msra.mxu0 0.0
        %5897 = vmatpush.xpose.msra.mxu0 0.0
        %5898 = vmatpush.xpose.msra.mxu0 0.0
        %5899 = vmatpush.xpose.msra.mxu0 0.0
        %5900 = vmatpush.xpose.msra.mxu0 0.0
        %5901 = vmatpush.xpose.msra.mxu0 0.0
        %5902 = vmatpush.xpose.msra.mxu0 0.0
        %5903 = vmatpush.xpose.msra.mxu0 0.0
        %5904 = vmatpush.xpose.msra.mxu0 0.0
        %5905 = vmatpush.xpose.msra.mxu0 0.0
        %5906 = vmatpush.xpose.msra.mxu0 0.0
        %5907 = vmatpush.xpose.msra.mxu0 0.0
        %5908 = vmatpush.xpose.msra.mxu0 0.0
        %5909 = vmatpush.xpose.msra.mxu0 0.0
        %5910 = vmatpush.xpose.msra.mxu0 0.0
        %5911 = vmatpush.xpose.msra.mxu0 %v5889
        %5912 = vmatmul.f32.gmra.mxu0 %v5885
        %v5913 = vpop.f32.mrf.mxu0
        %v5914 = vadd.f32 0.0, %v5913
        %5915 = vdwg.mxu0
        %5916 = vmatpush.xpose.msra.mxu0 0.0
        %5917 = vmatpush.xpose.msra.mxu0 0.0
        %5918 = vmatpush.xpose.msra.mxu0 0.0
        %5919 = vmatpush.xpose.msra.mxu0 0.0
        %5920 = vmatpush.xpose.msra.mxu0 0.0
        %5921 = vmatpush.xpose.msra.mxu0 0.0
        %5922 = vmatpush.xpose.msra.mxu0 0.0
        %5923 = vmatpush.xpose.msra.mxu0 0.0
        %5924 = vmatpush.xpose.msra.mxu0 0.0
        %5925 = vmatpush.xpose.msra.mxu0 0.0
        %5926 = vmatpush.xpose.msra.mxu0 0.0
        %5927 = vmatpush.xpose.msra.mxu0 0.0
        %5928 = vmatpush.xpose.msra.mxu0 0.0
        %5929 = vmatpush.xpose.msra.mxu0 0.0
        %5930 = vmatpush.xpose.msra.mxu0 0.0
        %5931 = vmatpush.xpose.msra.mxu0 %v5894
        %5932 = vmatmul.f32.gmra.mxu0 %v5892
        %v5933 = vpop.f32.mrf.mxu0
        %v5934 = vadd.f32 %v5914, %v5933
        %5935 = vdwg.mxu0
        %5936 = vst [vmem:[#allocation1] ss:$4 sm:$0xff] %v5630
        %v5937 = vld.sshfl [vmem:[#allocation1] sm:$0xff pattern:$0x73625140]
        %v5938 = vld.sshfl [vmem:[#allocation1 + $0x8] sm:$0xff pattern:$0x73625140]
        %5940 = vst [vmem:[#allocation1] ss:$4 sm:$0xff] %v5650
        %v5941 = vld.sshfl [vmem:[#allocation1] sm:$0xff pattern:$0x73625140]
        %v5942 = vld.sshfl [vmem:[#allocation1 + $0x8] sm:$0xff pattern:$0x73625140]
        %v5944 = vsel %vm5683, %v5938, 0
        %v5946 = vsel %vm5683, %v5942, 0
        %5948 = vmatpush.xpose.msra.mxu0 0.0
        %5949 = vmatpush.xpose.msra.mxu0 0.0
        %5950 = vmatpush.xpose.msra.mxu0 0.0
        %5951 = vmatpush.xpose.msra.mxu0 0.0
        %5952 = vmatpush.xpose.msra.mxu0 0.0
        %5953 = vmatpush.xpose.msra.mxu0 0.0
        %5954 = vmatpush.xpose.msra.mxu0 0.0
        %5955 = vmatpush.xpose.msra.mxu0 0.0
        %5956 = vmatpush.xpose.msra.mxu0 0.0
        %5957 = vmatpush.xpose.msra.mxu0 0.0
        %5958 = vmatpush.xpose.msra.mxu0 0.0
        %5959 = vmatpush.xpose.msra.mxu0 0.0
        %5960 = vmatpush.xpose.msra.mxu0 0.0
        %5961 = vmatpush.xpose.msra.mxu0 0.0
        %5962 = vmatpush.xpose.msra.mxu0 0.0
        %5963 = vmatpush.xpose.msra.mxu0 %v5941
        %5964 = vmatmul.f32.gmra.mxu0 %v5937
        %v5965 = vpop.f32.mrf.mxu0
        %v5966 = vadd.f32 0.0, %v5965
        %5967 = vdwg.mxu0
        %5968 = vmatpush.xpose.msra.mxu0 0.0
        %5969 = vmatpush.xpose.msra.mxu0 0.0
        %5970 = vmatpush.xpose.msra.mxu0 0.0
        %5971 = vmatpush.xpose.msra.mxu0 0.0
        %5972 = vmatpush.xpose.msra.mxu0 0.0
        %5973 = vmatpush.xpose.msra.mxu0 0.0
        %5974 = vmatpush.xpose.msra.mxu0 0.0
        %5975 = vmatpush.xpose.msra.mxu0 0.0
        %5976 = vmatpush.xpose.msra.mxu0 0.0
        %5977 = vmatpush.xpose.msra.mxu0 0.0
        %5978 = vmatpush.xpose.msra.mxu0 0.0
        %5979 = vmatpush.xpose.msra.mxu0 0.0
        %5980 = vmatpush.xpose.msra.mxu0 0.0
        %5981 = vmatpush.xpose.msra.mxu0 0.0
        %5982 = vmatpush.xpose.msra.mxu0 0.0
        %5983 = vmatpush.xpose.msra.mxu0 %v5946
        %5984 = vmatmul.f32.gmra.mxu0 %v5944
        %v5985 = vpop.f32.mrf.mxu0
        %v5986 = vadd.f32 %v5966, %v5985
        %5987 = vdwg.mxu0
        %5988 = vst [vmem:[#allocation1] ss:$4 sm:$0xff] %v5632
        %v5989 = vld.sshfl [vmem:[#allocation1] sm:$0xff pattern:$0x73625140]
        %v5990 = vld.sshfl [vmem:[#allocation1 + $0x8] sm:$0xff pattern:$0x73625140]
        %5992 = vst [vmem:[#allocation1] ss:$4 sm:$0xff] %v5652
        %v5993 = vld.sshfl [vmem:[#allocation1] sm:$0xff pattern:$0x73625140]
        %v5994 = vld.sshfl [vmem:[#allocation1 + $0x8] sm:$0xff pattern:$0x73625140]
        %v5996 = vsel %vm5683, %v5990, 0
        %v5998 = vsel %vm5683, %v5994, 0
        %6000 = vmatpush.xpose.msra.mxu0 0.0
        %6001 = vmatpush.xpose.msra.mxu0 0.0
        %6002 = vmatpush.xpose.msra.mxu0 0.0
        %6003 = vmatpush.xpose.msra.mxu0 0.0
        %6004 = vmatpush.xpose.msra.mxu0 0.0
        %6005 = vmatpush.xpose.msra.mxu0 0.0
        %6006 = vmatpush.xpose.msra.mxu0 0.0
        %6007 = vmatpush.xpose.msra.mxu0 0.0
        %6008 = vmatpush.xpose.msra.mxu0 0.0
        %6009 = vmatpush.xpose.msra.mxu0 0.0
        %6010 = vmatpush.xpose.msra.mxu0 0.0
        %6011 = vmatpush.xpose.msra.mxu0 0.0
        %6012 = vmatpush.xpose.msra.mxu0 0.0
        %6013 = vmatpush.xpose.msra.mxu0 0.0
        %6014 = vmatpush.xpose.msra.mxu0 0.0
        %6015 = vmatpush.xpose.msra.mxu0 %v5993
        %6016 = vmatmul.f32.gmra.mxu0 %v5989
        %v6017 = vpop.f32.mrf.mxu0
        %v6018 = vadd.f32 0.0, %v6017
        %6019 = vdwg.mxu0
        %6020 = vmatpush.xpose.msra.mxu0 0.0
        %6021 = vmatpush.xpose.msra.mxu0 0.0
        %6022 = vmatpush.xpose.msra.mxu0 0.0
        %6023 = vmatpush.xpose.msra.mxu0 0.0
        %6024 = vmatpush.xpose.msra.mxu0 0.0
        %6025 = vmatpush.xpose.msra.mxu0 0.0
        %6026 = vmatpush.xpose.msra.mxu0 0.0
        %6027 = vmatpush.xpose.msra.mxu0 0.0
        %6028 = vmatpush.xpose.msra.mxu0 0.0
        %6029 = vmatpush.xpose.msra.mxu0 0.0
        %6030 = vmatpush.xpose.msra.mxu0 0.0
        %6031 = vmatpush.xpose.msra.mxu0 0.0
        %6032 = vmatpush.xpose.msra.mxu0 0.0
        %6033 = vmatpush.xpose.msra.mxu0 0.0
        %6034 = vmatpush.xpose.msra.mxu0 0.0
        %6035 = vmatpush.xpose.msra.mxu0 %v5998
        %6036 = vmatmul.f32.gmra.mxu0 %v5996
        %v6037 = vpop.f32.mrf.mxu0
        %v6038 = vadd.f32 %v6018, %v6037
        %6039 = vdwg.mxu0
        %6040 = vst [vmem:[#allocation1] ss:$4 sm:$0xff] %v5634
        %v6041 = vld.sshfl [vmem:[#allocation1] sm:$0xff pattern:$0x73625140]
        %v6042 = vld.sshfl [vmem:[#allocation1 + $0x8] sm:$0xff pattern:$0x73625140]
        %6044 = vst [vmem:[#allocation1] ss:$4 sm:$0xff] %v5654
        %v6045 = vld.sshfl [vmem:[#allocation1] sm:$0xff pattern:$0x73625140]
        %v6046 = vld.sshfl [vmem:[#allocation1 + $0x8] sm:$0xff pattern:$0x73625140]
        %v6048 = vsel %vm5683, %v6042, 0
        %v6050 = vsel %vm5683, %v6046, 0
        %6052 = vmatpush.xpose.msra.mxu0 0.0
        %6053 = vmatpush.xpose.msra.mxu0 0.0
        %6054 = vmatpush.xpose.msra.mxu0 0.0
        %6055 = vmatpush.xpose.msra.mxu0 0.0
        %6056 = vmatpush.xpose.msra.mxu0 0.0
        %6057 = vmatpush.xpose.msra.mxu0 0.0
        %6058 = vmatpush.xpose.msra.mxu0 0.0
        %6059 = vmatpush.xpose.msra.mxu0 0.0
        %6060 = vmatpush.xpose.msra.mxu0 0.0
        %6061 = vmatpush.xpose.msra.mxu0 0.0
        %6062 = vmatpush.xpose.msra.mxu0 0.0
        %6063 = vmatpush.xpose.msra.mxu0 0.0
        %6064 = vmatpush.xpose.msra.mxu0 0.0
        %6065 = vmatpush.xpose.msra.mxu0 0.0
        %6066 = vmatpush.xpose.msra.mxu0 0.0
        %6067 = vmatpush.xpose.msra.mxu0 %v6045
        %6068 = vmatmul.f32.gmra.mxu0 %v6041
        %v6069 = vpop.f32.mrf.mxu0
        %v6070 = vadd.f32 0.0, %v6069
        %6071 = vdwg.mxu0
        %6072 = vmatpush.xpose.msra.mxu0 0.0
        %6073 = vmatpush.xpose.msra.mxu0 0.0
        %6074 = vmatpush.xpose.msra.mxu0 0.0
        %6075 = vmatpush.xpose.msra.mxu0 0.0
        %6076 = vmatpush.xpose.msra.mxu0 0.0
        %6077 = vmatpush.xpose.msra.mxu0 0.0
        %6078 = vmatpush.xpose.msra.mxu0 0.0
        %6079 = vmatpush.xpose.msra.mxu0 0.0
        %6080 = vmatpush.xpose.msra.mxu0 0.0
        %6081 = vmatpush.xpose.msra.mxu0 0.0
        %6082 = vmatpush.xpose.msra.mxu0 0.0
        %6083 = vmatpush.xpose.msra.mxu0 0.0
        %6084 = vmatpush.xpose.msra.mxu0 0.0
        %6085 = vmatpush.xpose.msra.mxu0 0.0
        %6086 = vmatpush.xpose.msra.mxu0 0.0
        %6087 = vmatpush.xpose.msra.mxu0 %v6050
        %6088 = vmatmul.f32.gmra.mxu0 %v6048
        %v6089 = vpop.f32.mrf.mxu0
        %v6090 = vadd.f32 %v6070, %v6089
        %6091 = vdwg.mxu0
        %vm6092 = vcmask 9216
        %v6093 = vsel %vm6092, %v5726, -inf
        %6094 = vmax.xlane.f32.xlu0 %v6093
        %v6095 = vpop.xlane.xlu0 %6094
        %v6096 = vsel %vm6092, %v5778, -inf
        %6097 = vmax.xlane.f32.xlu0 %v6096
        %v6098 = vpop.xlane.xlu0 %6097
        %v6099 = vsel %vm6092, %v5830, -inf
        %6100 = vmax.xlane.f32.xlu0 %v6099
        %v6101 = vpop.xlane.xlu0 %6100
        %v6102 = vsel %vm6092, %v5882, -inf
        %6103 = vmax.xlane.f32.xlu0 %v6102
        %v6104 = vpop.xlane.xlu0 %6103
        %v6105 = vsel %vm6092, %v5934, -inf
        %6106 = vmax.xlane.f32.xlu0 %v6105
        %v6107 = vpop.xlane.xlu0 %6106
        %v6108 = vsel %vm6092, %v5986, -inf
        %6109 = vmax.xlane.f32.xlu0 %v6108
        %v6110 = vpop.xlane.xlu0 %6109
        %v6111 = vsel %vm6092, %v6038, -inf
        %6112 = vmax.xlane.f32.xlu0 %v6111
        %v6113 = vpop.xlane.xlu0 %6112
        %v6114 = vsel %vm6092, %v6090, -inf
        %6115 = vmax.xlane.f32.xlu0 %v6114
        %v6116 = vpop.xlane.xlu0 %6115
        %v6117 = vsub.f32 %v5726, %v6095
        %v6118 = vsub.f32 %v5778, %v6098
        %v6119 = vsub.f32 %v5830, %v6101
        %v6120 = vsub.f32 %v5882, %v6104
        %v6121 = vsub.f32 %v5934, %v6107
        %v6122 = vsub.f32 %v5986, %v6110
        %v6123 = vsub.f32 %v6038, %v6113
        %v6124 = vsub.f32 %v6090, %v6116
        %v6125 = vmul.f32 %v6117, 1.442695
        %v6126 = vpow.pop %v6125
        %v6127 = vmul.f32 %v6118, 1.442695
        %v6128 = vpow.pop %v6127
        %v6129 = vmul.f32 %v6119, 1.442695
        %v6130 = vpow.pop %v6129
        %v6131 = vmul.f32 %v6120, 1.442695
        %v6132 = vpow.pop %v6131
        %v6133 = vmul.f32 %v6121, 1.442695
        %v6134 = vpow.pop %v6133
        %v6135 = vmul.f32 %v6122, 1.442695
        %v6136 = vpow.pop %v6135
        %v6137 = vmul.f32 %v6123, 1.442695
        %v6138 = vpow.pop %v6137
        %v6139 = vmul.f32 %v6124, 1.442695
        %v6140 = vpow.pop %v6139
        %v6141 = vsel %vm6092, %v6126, 0.0
        %6142 = vadd.xlane.f32.xlu0 %v6141
        %v6143 = vpop.xlane.xlu0 %6142
        %v6144 = vsel %vm6092, %v6128, 0.0
        %6145 = vadd.xlane.f32.xlu0 %v6144
        %v6146 = vpop.xlane.xlu0 %6145
        %v6147 = vsel %vm6092, %v6130, 0.0
        %6148 = vadd.xlane.f32.xlu0 %v6147
        %v6149 = vpop.xlane.xlu0 %6148
        %v6150 = vsel %vm6092, %v6132, 0.0
        %6151 = vadd.xlane.f32.xlu0 %v6150
        %v6152 = vpop.xlane.xlu0 %6151
        %v6153 = vsel %vm6092, %v6134, 0.0
        %6154 = vadd.xlane.f32.xlu0 %v6153
        %v6155 = vpop.xlane.xlu0 %6154
        %v6156 = vsel %vm6092, %v6136, 0.0
        %6157 = vadd.xlane.f32.xlu0 %v6156
        %v6158 = vpop.xlane.xlu0 %6157
        %v6159 = vsel %vm6092, %v6138, 0.0
        %6160 = vadd.xlane.f32.xlu0 %v6159
        %v6161 = vpop.xlane.xlu0 %6160
        %v6162 = vsel %vm6092, %v6140, 0.0
        %6163 = vadd.xlane.f32.xlu0 %v6162
        %v6164 = vpop.xlane.xlu0 %6163
        %v6165 = vrcp.pop %v6143
        %v6166 = vmul.f32 %v6143, %v6165
        %v6167 = vsub.f32 1.0, %v6166
        %v6168 = vmul.f32 %v6165, %v6167
        %v6169 = vadd.f32 %v6165, %v6168
        %vm6170 = vweird.f32 %v6143
        %vm6171 = vweird.f32 %v6165
        %vm6172 = vmor %vm6170, %vm6171
        %v6173 = vsel %vm6172, %v6165, %v6169
        %v6174 = vand.u32 2147483647, %v6143
        %vm6175 = vcmp.eq.f32.partialorder %v6174, 8.507059e+37
        %v6176 = vand.u32 %v6143, 2147483648
        %v6177 = vor.u32 1.1754944e-38, %v6176
        %v6178 = vsel %vm6175, %v6177, %v6173
        %v6179 = vmul.f32 %v6126, %v6178
        %v6180 = vrcp.pop %v6146
        %v6181 = vmul.f32 %v6146, %v6180
        %v6182 = vsub.f32 1.0, %v6181
        %v6183 = vmul.f32 %v6180, %v6182
        %v6184 = vadd.f32 %v6180, %v6183
        %vm6185 = vweird.f32 %v6146
        %vm6186 = vweird.f32 %v6180
        %vm6187 = vmor %vm6185, %vm6186
        %v6188 = vsel %vm6187, %v6180, %v6184
        %v6189 = vand.u32 2147483647, %v6146
        %vm6190 = vcmp.eq.f32.partialorder %v6189, 8.507059e+37
        %v6191 = vand.u32 %v6146, 2147483648
        %v6192 = vor.u32 1.1754944e-38, %v6191
        %v6193 = vsel %vm6190, %v6192, %v6188
        %v6194 = vmul.f32 %v6128, %v6193
        %v6195 = vrcp.pop %v6149
        %v6196 = vmul.f32 %v6149, %v6195
        %v6197 = vsub.f32 1.0, %v6196
        %v6198 = vmul.f32 %v6195, %v6197
        %v6199 = vadd.f32 %v6195, %v6198
        %vm6200 = vweird.f32 %v6149
        %vm6201 = vweird.f32 %v6195
        %vm6202 = vmor %vm6200, %vm6201
        %v6203 = vsel %vm6202, %v6195, %v6199
        %v6204 = vand.u32 2147483647, %v6149
        %vm6205 = vcmp.eq.f32.partialorder %v6204, 8.507059e+37
        %v6206 = vand.u32 %v6149, 2147483648
        %v6207 = vor.u32 1.1754944e-38, %v6206
        %v6208 = vsel %vm6205, %v6207, %v6203
        %v6209 = vmul.f32 %v6130, %v6208
        %v6210 = vrcp.pop %v6152
        %v6211 = vmul.f32 %v6152, %v6210
        %v6212 = vsub.f32 1.0, %v6211
        %v6213 = vmul.f32 %v6210, %v6212
        %v6214 = vadd.f32 %v6210, %v6213
        %vm6215 = vweird.f32 %v6152
        %vm6216 = vweird.f32 %v6210
        %vm6217 = vmor %vm6215, %vm6216
        %v6218 = vsel %vm6217, %v6210, %v6214
        %v6219 = vand.u32 2147483647, %v6152
        %vm6220 = vcmp.eq.f32.partialorder %v6219, 8.507059e+37
        %v6221 = vand.u32 %v6152, 2147483648
        %v6222 = vor.u32 1.1754944e-38, %v6221
        %v6223 = vsel %vm6220, %v6222, %v6218
        %v6224 = vmul.f32 %v6132, %v6223
        %v6225 = vrcp.pop %v6155
        %v6226 = vmul.f32 %v6155, %v6225
        %v6227 = vsub.f32 1.0, %v6226
        %v6228 = vmul.f32 %v6225, %v6227
        %v6229 = vadd.f32 %v6225, %v6228
        %vm6230 = vweird.f32 %v6155
        %vm6231 = vweird.f32 %v6225
        %vm6232 = vmor %vm6230, %vm6231
        %v6233 = vsel %vm6232, %v6225, %v6229
        %v6234 = vand.u32 2147483647, %v6155
        %vm6235 = vcmp.eq.f32.partialorder %v6234, 8.507059e+37
        %v6236 = vand.u32 %v6155, 2147483648
        %v6237 = vor.u32 1.1754944e-38, %v6236
        %v6238 = vsel %vm6235, %v6237, %v6233
        %v6239 = vmul.f32 %v6134, %v6238
        %v6240 = vrcp.pop %v6158
        %v6241 = vmul.f32 %v6158, %v6240
        %v6242 = vsub.f32 1.0, %v6241
        %v6243 = vmul.f32 %v6240, %v6242
        %v6244 = vadd.f32 %v6240, %v6243
        %vm6245 = vweird.f32 %v6158
        %vm6246 = vweird.f32 %v6240
        %vm6247 = vmor %vm6245, %vm6246
        %v6248 = vsel %vm6247, %v6240, %v6244
        %v6249 = vand.u32 2147483647, %v6158
        %vm6250 = vcmp.eq.f32.partialorder %v6249, 8.507059e+37
        %v6251 = vand.u32 %v6158, 2147483648
        %v6252 = vor.u32 1.1754944e-38, %v6251
        %v6253 = vsel %vm6250, %v6252, %v6248
        %v6254 = vmul.f32 %v6136, %v6253
        %v6255 = vrcp.pop %v6161
        %v6256 = vmul.f32 %v6161, %v6255
        %v6257 = vsub.f32 1.0, %v6256
        %v6258 = vmul.f32 %v6255, %v6257
        %v6259 = vadd.f32 %v6255, %v6258
        %vm6260 = vweird.f32 %v6161
        %vm6261 = vweird.f32 %v6255
        %vm6262 = vmor %vm6260, %vm6261
        %v6263 = vsel %vm6262, %v6255, %v6259
        %v6264 = vand.u32 2147483647, %v6161
        %vm6265 = vcmp.eq.f32.partialorder %v6264, 8.507059e+37
        %v6266 = vand.u32 %v6161, 2147483648
        %v6267 = vor.u32 1.1754944e-38, %v6266
        %v6268 = vsel %vm6265, %v6267, %v6263
        %v6269 = vmul.f32 %v6138, %v6268
        %v6270 = vrcp.pop %v6164
        %v6271 = vmul.f32 %v6164, %v6270
        %v6272 = vsub.f32 1.0, %v6271
        %v6273 = vmul.f32 %v6270, %v6272
        %v6274 = vadd.f32 %v6270, %v6273
        %vm6275 = vweird.f32 %v6164
        %vm6276 = vweird.f32 %v6270
        %vm6277 = vmor %vm6275, %vm6276
        %v6278 = vsel %vm6277, %v6270, %v6274
        %v6279 = vand.u32 2147483647, %v6164
        %vm6280 = vcmp.eq.f32.partialorder %v6279, 8.507059e+37
        %v6281 = vand.u32 %v6164, 2147483648
        %v6282 = vor.u32 1.1754944e-38, %v6281
        %v6283 = vsel %vm6280, %v6282, %v6278
        %v6284 = vmul.f32 %v6140, %v6283
        %6285 = vst [vmem:[#allocation1] ss:$4 sm:$0xff] %v5661
        %v6286 = vld.sshfl [vmem:[#allocation1] sm:$0xff pattern:$0x73625140]
        %v6287 = vld.sshfl [vmem:[#allocation1 + $0x8] sm:$0xff pattern:$0x73625140]
        %vm6288 = vcmask 15360
        %v6290 = vsel %vm6288, %v6179, 0
        %v6292 = vsel %vm5617, %v6286, 0
        %v6294 = vsel %vm5617, %v6287, 0
        %6296 = vmatpush.msra.mxu0 0.0
        %6297 = vmatpush.msra.mxu0 0.0
        %6298 = vmatpush.msra.mxu0 0.0
        %6299 = vmatpush.msra.mxu0 0.0
        %6300 = vmatpush.msra.mxu0 0.0
        %6301 = vmatpush.msra.mxu0 0.0
        %6302 = vmatpush.msra.mxu0 0.0
        %6303 = vmatpush.msra.mxu0 0.0
        %6304 = vmatpush.msra.mxu0 0.0
        %6305 = vmatpush.msra.mxu0 0.0
        %6306 = vmatpush.msra.mxu0 0.0
        %6307 = vmatpush.msra.mxu0 0.0
        %6308 = vmatpush.msra.mxu0 0.0
        %6309 = vmatpush.msra.mxu0 0.0
        %6310 = vmatpush.msra.mxu0 0.0
        %6311 = vmatpush.msra.mxu0 %v6292
        %6312 = vmatmul.f32.gmra.mxu0 %v6290
        %v6313 = vpop.f32.mrf.mxu0
        %v6314 = vadd.f32 0.0, %v6313
        %6315 = vdwg.mxu0
        %6316 = vmatpush.msra.mxu0 0.0
        %6317 = vmatpush.msra.mxu0 0.0
        %6318 = vmatpush.msra.mxu0 0.0
        %6319 = vmatpush.msra.mxu0 0.0
        %6320 = vmatpush.msra.mxu0 0.0
        %6321 = vmatpush.msra.mxu0 0.0
        %6322 = vmatpush.msra.mxu0 0.0
        %6323 = vmatpush.msra.mxu0 0.0
        %6324 = vmatpush.msra.mxu0 0.0
        %6325 = vmatpush.msra.mxu0 0.0
        %6326 = vmatpush.msra.mxu0 0.0
        %6327 = vmatpush.msra.mxu0 0.0
        %6328 = vmatpush.msra.mxu0 0.0
        %6329 = vmatpush.msra.mxu0 0.0
        %6330 = vmatpush.msra.mxu0 0.0
        %6331 = vmatpush.msra.mxu0 %v6294
        %6332 = vmatmul.f32.gmra.mxu0 %v6290
        %v6333 = vpop.f32.mrf.mxu0
        %v6334 = vadd.f32 0.0, %v6333
        %6335 = vdwg.mxu0
        %6336 = vst [vmem:[#allocation1] ss:$4 sm:$0xff] %v5663
        %v6337 = vld.sshfl [vmem:[#allocation1] sm:$0xff pattern:$0x73625140]
        %v6338 = vld.sshfl [vmem:[#allocation1 + $0x8] sm:$0xff pattern:$0x73625140]
        %v6340 = vsel %vm6288, %v6194, 0
        %v6342 = vsel %vm5617, %v6337, 0
        %v6344 = vsel %vm5617, %v6338, 0
        %6346 = vmatpush.msra.mxu0 0.0
        %6347 = vmatpush.msra.mxu0 0.0
        %6348 = vmatpush.msra.mxu0 0.0
        %6349 = vmatpush.msra.mxu0 0.0
        %6350 = vmatpush.msra.mxu0 0.0
        %6351 = vmatpush.msra.mxu0 0.0
        %6352 = vmatpush.msra.mxu0 0.0
        %6353 = vmatpush.msra.mxu0 0.0
        %6354 = vmatpush.msra.mxu0 0.0
        %6355 = vmatpush.msra.mxu0 0.0
        %6356 = vmatpush.msra.mxu0 0.0
        %6357 = vmatpush.msra.mxu0 0.0
        %6358 = vmatpush.msra.mxu0 0.0
        %6359 = vmatpush.msra.mxu0 0.0
        %6360 = vmatpush.msra.mxu0 0.0
        %6361 = vmatpush.msra.mxu0 %v6342
        %6362 = vmatmul.f32.gmra.mxu0 %v6340
        %v6363 = vpop.f32.mrf.mxu0
        %v6364 = vadd.f32 0.0, %v6363
        %6365 = vdwg.mxu0
        %6366 = vmatpush.msra.mxu0 0.0
        %6367 = vmatpush.msra.mxu0 0.0
        %6368 = vmatpush.msra.mxu0 0.0
        %6369 = vmatpush.msra.mxu0 0.0
        %6370 = vmatpush.msra.mxu0 0.0
        %6371 = vmatpush.msra.mxu0 0.0
        %6372 = vmatpush.msra.mxu0 0.0
        %6373 = vmatpush.msra.mxu0 0.0
        %6374 = vmatpush.msra.mxu0 0.0
        %6375 = vmatpush.msra.mxu0 0.0
        %6376 = vmatpush.msra.mxu0 0.0
        %6377 = vmatpush.msra.mxu0 0.0
        %6378 = vmatpush.msra.mxu0 0.0
        %6379 = vmatpush.msra.mxu0 0.0
        %6380 = vmatpush.msra.mxu0 0.0
        %6381 = vmatpush.msra.mxu0 %v6344
        %6382 = vmatmul.f32.gmra.mxu0 %v6340
        %v6383 = vpop.f32.mrf.mxu0
        %v6384 = vadd.f32 0.0, %v6383
        %6385 = vdwg.mxu0
        %6386 = vst [vmem:[#allocation1] ss:$4 sm:$0xff] %v5665
        %v6387 = vld.sshfl [vmem:[#allocation1] sm:$0xff pattern:$0x73625140]
        %v6388 = vld.sshfl [vmem:[#allocation1 + $0x8] sm:$0xff pattern:$0x73625140]
        %v6390 = vsel %vm6288, %v6209, 0
        %v6392 = vsel %vm5617, %v6387, 0
        %v6394 = vsel %vm5617, %v6388, 0
        %6396 = vmatpush.msra.mxu0 0.0
        %6397 = vmatpush.msra.mxu0 0.0
        %6398 = vmatpush.msra.mxu0 0.0
        %6399 = vmatpush.msra.mxu0 0.0
        %6400 = vmatpush.msra.mxu0 0.0
        %6401 = vmatpush.msra.mxu0 0.0
        %6402 = vmatpush.msra.mxu0 0.0
        %6403 = vmatpush.msra.mxu0 0.0
        %6404 = vmatpush.msra.mxu0 0.0
        %6405 = vmatpush.msra.mxu0 0.0
        %6406 = vmatpush.msra.mxu0 0.0
        %6407 = vmatpush.msra.mxu0 0.0
        %6408 = vmatpush.msra.mxu0 0.0
        %6409 = vmatpush.msra.mxu0 0.0
        %6410 = vmatpush.msra.mxu0 0.0
        %6411 = vmatpush.msra.mxu0 %v6392
        %6412 = vmatmul.f32.gmra.mxu0 %v6390
        %v6413 = vpop.f32.mrf.mxu0
        %v6414 = vadd.f32 0.0, %v6413
        %6415 = vdwg.mxu0
        %6416 = vmatpush.msra.mxu0 0.0
        %6417 = vmatpush.msra.mxu0 0.0
        %6418 = vmatpush.msra.mxu0 0.0
        %6419 = vmatpush.msra.mxu0 0.0
        %6420 = vmatpush.msra.mxu0 0.0
        %6421 = vmatpush.msra.mxu0 0.0
        %6422 = vmatpush.msra.mxu0 0.0
        %6423 = vmatpush.msra.mxu0 0.0
        %6424 = vmatpush.msra.mxu0 0.0
        %6425 = vmatpush.msra.mxu0 0.0
        %6426 = vmatpush.msra.mxu0 0.0
        %6427 = vmatpush.msra.mxu0 0.0
        %6428 = vmatpush.msra.mxu0 0.0
        %6429 = vmatpush.msra.mxu0 0.0
        %6430 = vmatpush.msra.mxu0 0.0
        %6431 = vmatpush.msra.mxu0 %v6394
        %6432 = vmatmul.f32.gmra.mxu0 %v6390
        %v6433 = vpop.f32.mrf.mxu0
        %v6434 = vadd.f32 0.0, %v6433
        %6435 = vdwg.mxu0
        %6436 = vst [vmem:[#allocation1] ss:$4 sm:$0xff] %v5667
        %v6437 = vld.sshfl [vmem:[#allocation1] sm:$0xff pattern:$0x73625140]
        %v6438 = vld.sshfl [vmem:[#allocation1 + $0x8] sm:$0xff pattern:$0x73625140]
        %v6440 = vsel %vm6288, %v6224, 0
        %v6442 = vsel %vm5617, %v6437, 0
        %v6444 = vsel %vm5617, %v6438, 0
        %6446 = vmatpush.msra.mxu0 0.0
        %6447 = vmatpush.msra.mxu0 0.0
        %6448 = vmatpush.msra.mxu0 0.0
        %6449 = vmatpush.msra.mxu0 0.0
        %6450 = vmatpush.msra.mxu0 0.0
        %6451 = vmatpush.msra.mxu0 0.0
        %6452 = vmatpush.msra.mxu0 0.0
        %6453 = vmatpush.msra.mxu0 0.0
        %6454 = vmatpush.msra.mxu0 0.0
        %6455 = vmatpush.msra.mxu0 0.0
        %6456 = vmatpush.msra.mxu0 0.0
        %6457 = vmatpush.msra.mxu0 0.0
        %6458 = vmatpush.msra.mxu0 0.0
        %6459 = vmatpush.msra.mxu0 0.0
        %6460 = vmatpush.msra.mxu0 0.0
        %6461 = vmatpush.msra.mxu0 %v6442
        %6462 = vmatmul.f32.gmra.mxu0 %v6440
        %v6463 = vpop.f32.mrf.mxu0
        %v6464 = vadd.f32 0.0, %v6463
        %6465 = vdwg.mxu0
        %6466 = vmatpush.msra.mxu0 0.0
        %6467 = vmatpush.msra.mxu0 0.0
        %6468 = vmatpush.msra.mxu0 0.0
        %6469 = vmatpush.msra.mxu0 0.0
        %6470 = vmatpush.msra.mxu0 0.0
        %6471 = vmatpush.msra.mxu0 0.0
        %6472 = vmatpush.msra.mxu0 0.0
        %6473 = vmatpush.msra.mxu0 0.0
        %6474 = vmatpush.msra.mxu0 0.0
        %6475 = vmatpush.msra.mxu0 0.0
        %6476 = vmatpush.msra.mxu0 0.0
        %6477 = vmatpush.msra.mxu0 0.0
        %6478 = vmatpush.msra.mxu0 0.0
        %6479 = vmatpush.msra.mxu0 0.0
        %6480 = vmatpush.msra.mxu0 0.0
        %6481 = vmatpush.msra.mxu0 %v6444
        %6482 = vmatmul.f32.gmra.mxu0 %v6440
        %v6483 = vpop.f32.mrf.mxu0
        %v6484 = vadd.f32 0.0, %v6483
        %6485 = vdwg.mxu0
        %6486 = vst [vmem:[#allocation1] ss:$4 sm:$0xff] %v5668
        %v6487 = vld.sshfl [vmem:[#allocation1] sm:$0xff pattern:$0x73625140]
        %v6488 = vld.sshfl [vmem:[#allocation1 + $0x8] sm:$0xff pattern:$0x73625140]
        %v6490 = vsel %vm6288, %v6239, 0
        %v6492 = vsel %vm5617, %v6487, 0
        %v6494 = vsel %vm5617, %v6488, 0
        %6496 = vmatpush.msra.mxu0 0.0
        %6497 = vmatpush.msra.mxu0 0.0
        %6498 = vmatpush.msra.mxu0 0.0
        %6499 = vmatpush.msra.mxu0 0.0
        %6500 = vmatpush.msra.mxu0 0.0
        %6501 = vmatpush.msra.mxu0 0.0
        %6502 = vmatpush.msra.mxu0 0.0
        %6503 = vmatpush.msra.mxu0 0.0
        %6504 = vmatpush.msra.mxu0 0.0
        %6505 = vmatpush.msra.mxu0 0.0
        %6506 = vmatpush.msra.mxu0 0.0
        %6507 = vmatpush.msra.mxu0 0.0
        %6508 = vmatpush.msra.mxu0 0.0
        %6509 = vmatpush.msra.mxu0 0.0
        %6510 = vmatpush.msra.mxu0 0.0
        %6511 = vmatpush.msra.mxu0 %v6492
        %6512 = vmatmul.f32.gmra.mxu0 %v6490
        %v6513 = vpop.f32.mrf.mxu0
        %v6514 = vadd.f32 0.0, %v6513
        %6515 = vdwg.mxu0
        %6516 = vmatpush.msra.mxu0 0.0
        %6517 = vmatpush.msra.mxu0 0.0
        %6518 = vmatpush.msra.mxu0 0.0
        %6519 = vmatpush.msra.mxu0 0.0
        %6520 = vmatpush.msra.mxu0 0.0
        %6521 = vmatpush.msra.mxu0 0.0
        %6522 = vmatpush.msra.mxu0 0.0
        %6523 = vmatpush.msra.mxu0 0.0
        %6524 = vmatpush.msra.mxu0 0.0
        %6525 = vmatpush.msra.mxu0 0.0
        %6526 = vmatpush.msra.mxu0 0.0
        %6527 = vmatpush.msra.mxu0 0.0
        %6528 = vmatpush.msra.mxu0 0.0
        %6529 = vmatpush.msra.mxu0 0.0
        %6530 = vmatpush.msra.mxu0 0.0
        %6531 = vmatpush.msra.mxu0 %v6494
        %6532 = vmatmul.f32.gmra.mxu0 %v6490
        %v6533 = vpop.f32.mrf.mxu0
        %v6534 = vadd.f32 0.0, %v6533
        %6535 = vdwg.mxu0
        %6536 = vst [vmem:[#allocation1] ss:$4 sm:$0xff] %v5670
        %v6537 = vld.sshfl [vmem:[#allocation1] sm:$0xff pattern:$0x73625140]
        %v6538 = vld.sshfl [vmem:[#allocation1 + $0x8] sm:$0xff pattern:$0x73625140]
        %v6540 = vsel %vm6288, %v6254, 0
        %v6542 = vsel %vm5617, %v6537, 0
        %v6544 = vsel %vm5617, %v6538, 0
        %6546 = vmatpush.msra.mxu0 0.0
        %6547 = vmatpush.msra.mxu0 0.0
        %6548 = vmatpush.msra.mxu0 0.0
        %6549 = vmatpush.msra.mxu0 0.0
        %6550 = vmatpush.msra.mxu0 0.0
        %6551 = vmatpush.msra.mxu0 0.0
        %6552 = vmatpush.msra.mxu0 0.0
        %6553 = vmatpush.msra.mxu0 0.0
        %6554 = vmatpush.msra.mxu0 0.0
        %6555 = vmatpush.msra.mxu0 0.0
        %6556 = vmatpush.msra.mxu0 0.0
        %6557 = vmatpush.msra.mxu0 0.0
        %6558 = vmatpush.msra.mxu0 0.0
        %6559 = vmatpush.msra.mxu0 0.0
        %6560 = vmatpush.msra.mxu0 0.0
        %6561 = vmatpush.msra.mxu0 %v6542
        %6562 = vmatmul.f32.gmra.mxu0 %v6540
        %v6563 = vpop.f32.mrf.mxu0
        %v6564 = vadd.f32 0.0, %v6563
        %6565 = vdwg.mxu0
        %6566 = vmatpush.msra.mxu0 0.0
        %6567 = vmatpush.msra.mxu0 0.0
        %6568 = vmatpush.msra.mxu0 0.0
        %6569 = vmatpush.msra.mxu0 0.0
        %6570 = vmatpush.msra.mxu0 0.0
        %6571 = vmatpush.msra.mxu0 0.0
        %6572 = vmatpush.msra.mxu0 0.0
        %6573 = vmatpush.msra.mxu0 0.0
        %6574 = vmatpush.msra.mxu0 0.0
        %6575 = vmatpush.msra.mxu0 0.0
        %6576 = vmatpush.msra.mxu0 0.0
        %6577 = vmatpush.msra.mxu0 0.0
        %6578 = vmatpush.msra.mxu0 0.0
        %6579 = vmatpush.msra.mxu0 0.0
        %6580 = vmatpush.msra.mxu0 0.0
        %6581 = vmatpush.msra.mxu0 %v6544
        %6582 = vmatmul.f32.gmra.mxu0 %v6540
        %v6583 = vpop.f32.mrf.mxu0
        %v6584 = vadd.f32 0.0, %v6583
        %6585 = vdwg.mxu0
        %6586 = vst [vmem:[#allocation1] ss:$4 sm:$0xff] %v5672
        %v6587 = vld.sshfl [vmem:[#allocation1] sm:$0xff pattern:$0x73625140]
        %v6588 = vld.sshfl [vmem:[#allocation1 + $0x8] sm:$0xff pattern:$0x73625140]
        %v6590 = vsel %vm6288, %v6269, 0
        %v6592 = vsel %vm5617, %v6587, 0
        %v6594 = vsel %vm5617, %v6588, 0
        %6596 = vmatpush.msra.mxu0 0.0
        %6597 = vmatpush.msra.mxu0 0.0
        %6598 = vmatpush.msra.mxu0 0.0
        %6599 = vmatpush.msra.mxu0 0.0
        %6600 = vmatpush.msra.mxu0 0.0
        %6601 = vmatpush.msra.mxu0 0.0
        %6602 = vmatpush.msra.mxu0 0.0
        %6603 = vmatpush.msra.mxu0 0.0
        %6604 = vmatpush.msra.mxu0 0.0
        %6605 = vmatpush.msra.mxu0 0.0
        %6606 = vmatpush.msra.mxu0 0.0
        %6607 = vmatpush.msra.mxu0 0.0
        %6608 = vmatpush.msra.mxu0 0.0
        %6609 = vmatpush.msra.mxu0 0.0
        %6610 = vmatpush.msra.mxu0 0.0
        %6611 = vmatpush.msra.mxu0 %v6592
        %6612 = vmatmul.f32.gmra.mxu0 %v6590
        %v6613 = vpop.f32.mrf.mxu0
        %v6614 = vadd.f32 0.0, %v6613
        %6615 = vdwg.mxu0
        %6616 = vmatpush.msra.mxu0 0.0
        %6617 = vmatpush.msra.mxu0 0.0
        %6618 = vmatpush.msra.mxu0 0.0
        %6619 = vmatpush.msra.mxu0 0.0
        %6620 = vmatpush.msra.mxu0 0.0
        %6621 = vmatpush.msra.mxu0 0.0
        %6622 = vmatpush.msra.mxu0 0.0
        %6623 = vmatpush.msra.mxu0 0.0
        %6624 = vmatpush.msra.mxu0 0.0
        %6625 = vmatpush.msra.mxu0 0.0
        %6626 = vmatpush.msra.mxu0 0.0
        %6627 = vmatpush.msra.mxu0 0.0
        %6628 = vmatpush.msra.mxu0 0.0
        %6629 = vmatpush.msra.mxu0 0.0
        %6630 = vmatpush.msra.mxu0 0.0
        %6631 = vmatpush.msra.mxu0 %v6594
        %6632 = vmatmul.f32.gmra.mxu0 %v6590
        %v6633 = vpop.f32.mrf.mxu0
        %v6634 = vadd.f32 0.0, %v6633
        %6635 = vdwg.mxu0
        %6636 = vst [vmem:[#allocation1] ss:$4 sm:$0xff] %v5674
        %v6637 = vld.sshfl [vmem:[#allocation1] sm:$0xff pattern:$0x73625140]
        %v6638 = vld.sshfl [vmem:[#allocation1 + $0x8] sm:$0xff pattern:$0x73625140]
        %v6640 = vsel %vm6288, %v6284, 0
        %v6642 = vsel %vm5617, %v6637, 0
        %v6644 = vsel %vm5617, %v6638, 0
        %6646 = vmatpush.msra.mxu0 0.0
        %6647 = vmatpush.msra.mxu0 0.0
        %6648 = vmatpush.msra.mxu0 0.0
        %6649 = vmatpush.msra.mxu0 0.0
        %6650 = vmatpush.msra.mxu0 0.0
        %6651 = vmatpush.msra.mxu0 0.0
        %6652 = vmatpush.msra.mxu0 0.0
        %6653 = vmatpush.msra.mxu0 0.0
        %6654 = vmatpush.msra.mxu0 0.0
        %6655 = vmatpush.msra.mxu0 0.0
        %6656 = vmatpush.msra.mxu0 0.0
        %6657 = vmatpush.msra.mxu0 0.0
        %6658 = vmatpush.msra.mxu0 0.0
        %6659 = vmatpush.msra.mxu0 0.0
        %6660 = vmatpush.msra.mxu0 0.0
        %6661 = vmatpush.msra.mxu0 %v6642
        %6662 = vmatmul.f32.gmra.mxu0 %v6640
        %v6663 = vpop.f32.mrf.mxu0
        %v6664 = vadd.f32 0.0, %v6663
        %6665 = vdwg.mxu0
        %6666 = vmatpush.msra.mxu0 0.0
        %6667 = vmatpush.msra.mxu0 0.0
        %6668 = vmatpush.msra.mxu0 0.0
        %6669 = vmatpush.msra.mxu0 0.0
        %6670 = vmatpush.msra.mxu0 0.0
        %6671 = vmatpush.msra.mxu0 0.0
        %6672 = vmatpush.msra.mxu0 0.0
        %6673 = vmatpush.msra.mxu0 0.0
        %6674 = vmatpush.msra.mxu0 0.0
        %6675 = vmatpush.msra.mxu0 0.0
        %6676 = vmatpush.msra.mxu0 0.0
        %6677 = vmatpush.msra.mxu0 0.0
        %6678 = vmatpush.msra.mxu0 0.0
        %6679 = vmatpush.msra.mxu0 0.0
        %6680 = vmatpush.msra.mxu0 0.0
        %6681 = vmatpush.msra.mxu0 %v6644
        %6682 = vmatmul.f32.gmra.mxu0 %v6640
        %v6683 = vpop.f32.mrf.mxu0
        %v6684 = vadd.f32 0.0, %v6683
        %6685 = vdwg.mxu0
        %v6702 = vrot.slane %v6334, 6
        %v6703 = vrot.slane %v6384, 6
        %v6704 = vrot.slane %v6434, 6
        %v6705 = vrot.slane %v6484, 6
        %v6706 = vrot.slane %v6534, 6
        %v6707 = vrot.slane %v6584, 6
        %v6708 = vrot.slane %v6634, 6
        %v6709 = vrot.slane %v6684, 6
        %v6710 = vsel %vm5617, %v6314, %v6702
        %v6711 = vsel %vm5617, %v6364, %v6703
        %v6712 = vsel %vm5617, %v6414, %v6704
        %v6713 = vsel %vm5617, %v6464, %v6705
        %v6714 = vsel %vm5617, %v6514, %v6706
        %v6715 = vsel %vm5617, %v6564, %v6707
        %v6716 = vsel %vm5617, %v6614, %v6708
        %v6717 = vsel %vm5617, %v6664, %v6709
        %v6720 = vrot.slane %v5103, 6
        %v6721 = vrot.slane %v5105, 6
        %v6722 = vsel %vm5617, %v5019, %v6720
        %v6723 = vsel %vm5619, %v5019, %v6720
        %v6724 = vrot.slane %v6723, 2
        %v6725 = vsel %vm5622, %v5019, %v6720
        %v6726 = vrot.slane %v6725, 4
        %v6727 = vsel %vm5625, %v6720, %v5019
        %v6728 = vrot.slane %v6727, 6
        %v6729 = vsel %vm5617, %v5021, %v6721
        %v6730 = vsel %vm5619, %v5021, %v6721
        %v6731 = vrot.slane %v6730, 2
        %v6732 = vsel %vm5622, %v5021, %v6721
        %v6733 = vrot.slane %v6732, 4
        %v6734 = vsel %vm5625, %v6721, %v5021
        %v6735 = vrot.slane %v6734, 6
        %v6738 = vrot.slane %v5355, 6
        %v6739 = vrot.slane %v5357, 6
        %v6740 = vsel %vm5617, %v5271, %v6738
        %v6741 = vsel %vm5619, %v5271, %v6738
        %v6742 = vrot.slane %v6741, 2
        %v6743 = vsel %vm5622, %v5271, %v6738
        %v6744 = vrot.slane %v6743, 4
        %v6745 = vsel %vm5625, %v6738, %v5271
        %v6746 = vrot.slane %v6745, 6
        %v6747 = vsel %vm5617, %v5273, %v6739
        %v6748 = vsel %vm5619, %v5273, %v6739
        %v6749 = vrot.slane %v6748, 2
        %v6750 = vsel %vm5622, %v5273, %v6739
        %v6751 = vrot.slane %v6750, 4
        %v6752 = vsel %vm5625, %v6739, %v5273
        %v6753 = vrot.slane %v6752, 6
        %v6756 = vrot.slane %v5607, 6
        %v6757 = vrot.slane %v5609, 6
        %v6758 = vsel %vm5617, %v5523, %v6756
        %v6759 = vsel %vm5619, %v5523, %v6756
        %v6760 = vrot.slane %v6759, 2
        %v6761 = vsel %vm5622, %v5523, %v6756
        %v6762 = vrot.slane %v6761, 4
        %v6763 = vsel %vm5625, %v6756, %v5523
        %v6764 = vrot.slane %v6763, 6
        %v6765 = vsel %vm5617, %v5525, %v6757
        %v6766 = vsel %vm5619, %v5525, %v6757
        %v6767 = vrot.slane %v6766, 2
        %v6768 = vsel %vm5622, %v5525, %v6757
        %v6769 = vrot.slane %v6768, 4
        %v6770 = vsel %vm5625, %v6757, %v5525
        %v6771 = vrot.slane %v6770, 6
        %6772 = vst [vmem:[#allocation1] ss:$4 sm:$0xff] %v6722
        %v6773 = vld.sshfl [vmem:[#allocation1] sm:$0xff pattern:$0x73625140]
        %v6774 = vld.sshfl [vmem:[#allocation1 + $0x8] sm:$0xff pattern:$0x73625140]
        %6775 = vrot.lane.b32.xlu0 %v6773, 64
        %v6776 = vpop.permute.xlu0 %6775
        %6777 = vrot.lane.b32.xlu0 %v6774, 64
        %v6778 = vpop.permute.xlu0 %6777
        %v6779 = vsel %vm5683, %v6776, %v6778
        %6781 = vst [vmem:[#allocation1] ss:$4 sm:$0xff] %v6740
        %v6782 = vld.sshfl [vmem:[#allocation1] sm:$0xff pattern:$0x73625140]
        %v6783 = vld.sshfl [vmem:[#allocation1 + $0x8] sm:$0xff pattern:$0x73625140]
        %6784 = vrot.lane.b32.xlu0 %v6782, 64
        %v6785 = vpop.permute.xlu0 %6784
        %6786 = vrot.lane.b32.xlu0 %v6783, 64
        %v6787 = vpop.permute.xlu0 %6786
        %v6788 = vsel %vm5683, %v6785, %v6787
        %v6790 = vsel %vm5683, %v6778, 0
        %v6792 = vsel %vm5683, %v6787, 0
        %6794 = vmatpush.xpose.msra.mxu0 0.0
        %6795 = vmatpush.xpose.msra.mxu0 0.0
        %6796 = vmatpush.xpose.msra.mxu0 0.0
        %6797 = vmatpush.xpose.msra.mxu0 0.0
        %6798 = vmatpush.xpose.msra.mxu0 0.0
        %6799 = vmatpush.xpose.msra.mxu0 0.0
        %6800 = vmatpush.xpose.msra.mxu0 0.0
        %6801 = vmatpush.xpose.msra.mxu0 0.0
        %6802 = vmatpush.xpose.msra.mxu0 0.0
        %6803 = vmatpush.xpose.msra.mxu0 0.0
        %6804 = vmatpush.xpose.msra.mxu0 0.0
        %6805 = vmatpush.xpose.msra.mxu0 0.0
        %6806 = vmatpush.xpose.msra.mxu0 0.0
        %6807 = vmatpush.xpose.msra.mxu0 0.0
        %6808 = vmatpush.xpose.msra.mxu0 0.0
        %6809 = vmatpush.xpose.msra.mxu0 %v6788
        %6810 = vmatmul.f32.gmra.mxu0 %v6779
        %v6811 = vpop.f32.mrf.mxu0
        %v6812 = vadd.f32 0.0, %v6811
        %6813 = vdwg.mxu0
        %6814 = vmatpush.xpose.msra.mxu0 0.0
        %6815 = vmatpush.xpose.msra.mxu0 0.0
        %6816 = vmatpush.xpose.msra.mxu0 0.0
        %6817 = vmatpush.xpose.msra.mxu0 0.0
        %6818 = vmatpush.xpose.msra.mxu0 0.0
        %6819 = vmatpush.xpose.msra.mxu0 0.0
        %6820 = vmatpush.xpose.msra.mxu0 0.0
        %6821 = vmatpush.xpose.msra.mxu0 0.0
        %6822 = vmatpush.xpose.msra.mxu0 0.0
        %6823 = vmatpush.xpose.msra.mxu0 0.0
        %6824 = vmatpush.xpose.msra.mxu0 0.0
        %6825 = vmatpush.xpose.msra.mxu0 0.0
        %6826 = vmatpush.xpose.msra.mxu0 0.0
        %6827 = vmatpush.xpose.msra.mxu0 0.0
        %6828 = vmatpush.xpose.msra.mxu0 0.0
        %6829 = vmatpush.xpose.msra.mxu0 %v6792
        %6830 = vmatmul.f32.gmra.mxu0 %v6790
        %v6831 = vpop.f32.mrf.mxu0
        %v6832 = vadd.f32 %v6812, %v6831
        %6833 = vdwg.mxu0
        %6834 = vst [vmem:[#allocation1] ss:$4 sm:$0xff] %v6724
        %v6835 = vld.sshfl [vmem:[#allocation1] sm:$0xff pattern:$0x73625140]
        %v6836 = vld.sshfl [vmem:[#allocation1 + $0x8] sm:$0xff pattern:$0x73625140]
        %6837 = vrot.lane.b32.xlu0 %v6835, 64
        %v6838 = vpop.permute.xlu0 %6837
        %6839 = vrot.lane.b32.xlu0 %v6836, 64
        %v6840 = vpop.permute.xlu0 %6839
        %v6841 = vsel %vm5683, %v6838, %v6840
        %6843 = vst [vmem:[#allocation1] ss:$4 sm:$0xff] %v6742
        %v6844 = vld.sshfl [vmem:[#allocation1] sm:$0xff pattern:$0x73625140]
        %v6845 = vld.sshfl [vmem:[#allocation1 + $0x8] sm:$0xff pattern:$0x73625140]
        %6846 = vrot.lane.b32.xlu0 %v6844, 64
        %v6847 = vpop.permute.xlu0 %6846
        %6848 = vrot.lane.b32.xlu0 %v6845, 64
        %v6849 = vpop.permute.xlu0 %6848
        %v6850 = vsel %vm5683, %v6847, %v6849
        %v6852 = vsel %vm5683, %v6840, 0
        %v6854 = vsel %vm5683, %v6849, 0
        %6856 = vmatpush.xpose.msra.mxu0 0.0
        %6857 = vmatpush.xpose.msra.mxu0 0.0
        %6858 = vmatpush.xpose.msra.mxu0 0.0
        %6859 = vmatpush.xpose.msra.mxu0 0.0
        %6860 = vmatpush.xpose.msra.mxu0 0.0
        %6861 = vmatpush.xpose.msra.mxu0 0.0
        %6862 = vmatpush.xpose.msra.mxu0 0.0
        %6863 = vmatpush.xpose.msra.mxu0 0.0
        %6864 = vmatpush.xpose.msra.mxu0 0.0
        %6865 = vmatpush.xpose.msra.mxu0 0.0
        %6866 = vmatpush.xpose.msra.mxu0 0.0
        %6867 = vmatpush.xpose.msra.mxu0 0.0
        %6868 = vmatpush.xpose.msra.mxu0 0.0
        %6869 = vmatpush.xpose.msra.mxu0 0.0
        %6870 = vmatpush.xpose.msra.mxu0 0.0
        %6871 = vmatpush.xpose.msra.mxu0 %v6850
        %6872 = vmatmul.f32.gmra.mxu0 %v6841
        %v6873 = vpop.f32.mrf.mxu0
        %v6874 = vadd.f32 0.0, %v6873
        %6875 = vdwg.mxu0
        %6876 = vmatpush.xpose.msra.mxu0 0.0
        %6877 = vmatpush.xpose.msra.mxu0 0.0
        %6878 = vmatpush.xpose.msra.mxu0 0.0
        %6879 = vmatpush.xpose.msra.mxu0 0.0
        %6880 = vmatpush.xpose.msra.mxu0 0.0
        %6881 = vmatpush.xpose.msra.mxu0 0.0
        %6882 = vmatpush.xpose.msra.mxu0 0.0
        %6883 = vmatpush.xpose.msra.mxu0 0.0
        %6884 = vmatpush.xpose.msra.mxu0 0.0
        %6885 = vmatpush.xpose.msra.mxu0 0.0
        %6886 = vmatpush.xpose.msra.mxu0 0.0
        %6887 = vmatpush.xpose.msra.mxu0 0.0
        %6888 = vmatpush.xpose.msra.mxu0 0.0
        %6889 = vmatpush.xpose.msra.mxu0 0.0
        %6890 = vmatpush.xpose.msra.mxu0 0.0
        %6891 = vmatpush.xpose.msra.mxu0 %v6854
        %6892 = vmatmul.f32.gmra.mxu0 %v6852
        %v6893 = vpop.f32.mrf.mxu0
        %v6894 = vadd.f32 %v6874, %v6893
        %6895 = vdwg.mxu0
        %6896 = vst [vmem:[#allocation1] ss:$4 sm:$0xff] %v6726
        %v6897 = vld.sshfl [vmem:[#allocation1] sm:$0xff pattern:$0x73625140]
        %v6898 = vld.sshfl [vmem:[#allocation1 + $0x8] sm:$0xff pattern:$0x73625140]
        %6899 = vrot.lane.b32.xlu0 %v6897, 64
        %v6900 = vpop.permute.xlu0 %6899
        %6901 = vrot.lane.b32.xlu0 %v6898, 64
        %v6902 = vpop.permute.xlu0 %6901
        %v6903 = vsel %vm5683, %v6900, %v6902
        %6905 = vst [vmem:[#allocation1] ss:$4 sm:$0xff] %v6744
        %v6906 = vld.sshfl [vmem:[#allocation1] sm:$0xff pattern:$0x73625140]
        %v6907 = vld.sshfl [vmem:[#allocation1 + $0x8] sm:$0xff pattern:$0x73625140]
        %6908 = vrot.lane.b32.xlu0 %v6906, 64
        %v6909 = vpop.permute.xlu0 %6908
        %6910 = vrot.lane.b32.xlu0 %v6907, 64
        %v6911 = vpop.permute.xlu0 %6910
        %v6912 = vsel %vm5683, %v6909, %v6911
        %v6914 = vsel %vm5683, %v6902, 0
        %v6916 = vsel %vm5683, %v6911, 0
        %6918 = vmatpush.xpose.msra.mxu0 0.0
        %6919 = vmatpush.xpose.msra.mxu0 0.0
        %6920 = vmatpush.xpose.msra.mxu0 0.0
        %6921 = vmatpush.xpose.msra.mxu0 0.0
        %6922 = vmatpush.xpose.msra.mxu0 0.0
        %6923 = vmatpush.xpose.msra.mxu0 0.0
        %6924 = vmatpush.xpose.msra.mxu0 0.0
        %6925 = vmatpush.xpose.msra.mxu0 0.0
        %6926 = vmatpush.xpose.msra.mxu0 0.0
        %6927 = vmatpush.xpose.msra.mxu0 0.0
        %6928 = vmatpush.xpose.msra.mxu0 0.0
        %6929 = vmatpush.xpose.msra.mxu0 0.0
        %6930 = vmatpush.xpose.msra.mxu0 0.0
        %6931 = vmatpush.xpose.msra.mxu0 0.0
        %6932 = vmatpush.xpose.msra.mxu0 0.0
        %6933 = vmatpush.xpose.msra.mxu0 %v6912
        %6934 = vmatmul.f32.gmra.mxu0 %v6903
        %v6935 = vpop.f32.mrf.mxu0
        %v6936 = vadd.f32 0.0, %v6935
        %6937 = vdwg.mxu0
        %6938 = vmatpush.xpose.msra.mxu0 0.0
        %6939 = vmatpush.xpose.msra.mxu0 0.0
        %6940 = vmatpush.xpose.msra.mxu0 0.0
        %6941 = vmatpush.xpose.msra.mxu0 0.0
        %6942 = vmatpush.xpose.msra.mxu0 0.0
        %6943 = vmatpush.xpose.msra.mxu0 0.0
        %6944 = vmatpush.xpose.msra.mxu0 0.0
        %6945 = vmatpush.xpose.msra.mxu0 0.0
        %6946 = vmatpush.xpose.msra.mxu0 0.0
        %6947 = vmatpush.xpose.msra.mxu0 0.0
        %6948 = vmatpush.xpose.msra.mxu0 0.0
        %6949 = vmatpush.xpose.msra.mxu0 0.0
        %6950 = vmatpush.xpose.msra.mxu0 0.0
        %6951 = vmatpush.xpose.msra.mxu0 0.0
        %6952 = vmatpush.xpose.msra.mxu0 0.0
        %6953 = vmatpush.xpose.msra.mxu0 %v6916
        %6954 = vmatmul.f32.gmra.mxu0 %v6914
        %v6955 = vpop.f32.mrf.mxu0
        %v6956 = vadd.f32 %v6936, %v6955
        %6957 = vdwg.mxu0
        %6958 = vst [vmem:[#allocation1] ss:$4 sm:$0xff] %v6728
        %v6959 = vld.sshfl [vmem:[#allocation1] sm:$0xff pattern:$0x73625140]
        %v6960 = vld.sshfl [vmem:[#allocation1 + $0x8] sm:$0xff pattern:$0x73625140]
        %6961 = vrot.lane.b32.xlu0 %v6959, 64
        %v6962 = vpop.permute.xlu0 %6961
        %6963 = vrot.lane.b32.xlu0 %v6960, 64
        %v6964 = vpop.permute.xlu0 %6963
        %v6965 = vsel %vm5683, %v6962, %v6964
        %6967 = vst [vmem:[#allocation1] ss:$4 sm:$0xff] %v6746
        %v6968 = vld.sshfl [vmem:[#allocation1] sm:$0xff pattern:$0x73625140]
        %v6969 = vld.sshfl [vmem:[#allocation1 + $0x8] sm:$0xff pattern:$0x73625140]
        %6970 = vrot.lane.b32.xlu0 %v6968, 64
        %v6971 = vpop.permute.xlu0 %6970
        %6972 = vrot.lane.b32.xlu0 %v6969, 64
        %v6973 = vpop.permute.xlu0 %6972
        %v6974 = vsel %vm5683, %v6971, %v6973
        %v6976 = vsel %vm5683, %v6964, 0
        %v6978 = vsel %vm5683, %v6973, 0
        %6980 = vmatpush.xpose.msra.mxu0 0.0
        %6981 = vmatpush.xpose.msra.mxu0 0.0
        %6982 = vmatpush.xpose.msra.mxu0 0.0
        %6983 = vmatpush.xpose.msra.mxu0 0.0
        %6984 = vmatpush.xpose.msra.mxu0 0.0
        %6985 = vmatpush.xpose.msra.mxu0 0.0
        %6986 = vmatpush.xpose.msra.mxu0 0.0
        %6987 = vmatpush.xpose.msra.mxu0 0.0
        %6988 = vmatpush.xpose.msra.mxu0 0.0
        %6989 = vmatpush.xpose.msra.mxu0 0.0
        %6990 = vmatpush.xpose.msra.mxu0 0.0
        %6991 = vmatpush.xpose.msra.mxu0 0.0
        %6992 = vmatpush.xpose.msra.mxu0 0.0
        %6993 = vmatpush.xpose.msra.mxu0 0.0
        %6994 = vmatpush.xpose.msra.mxu0 0.0
        %6995 = vmatpush.xpose.msra.mxu0 %v6974
        %6996 = vmatmul.f32.gmra.mxu0 %v6965
        %v6997 = vpop.f32.mrf.mxu0
        %v6998 = vadd.f32 0.0, %v6997
        %6999 = vdwg.mxu0
        %7000 = vmatpush.xpose.msra.mxu0 0.0
        %7001 = vmatpush.xpose.msra.mxu0 0.0
        %7002 = vmatpush.xpose.msra.mxu0 0.0
        %7003 = vmatpush.xpose.msra.mxu0 0.0
        %7004 = vmatpush.xpose.msra.mxu0 0.0
        %7005 = vmatpush.xpose.msra.mxu0 0.0
        %7006 = vmatpush.xpose.msra.mxu0 0.0
        %7007 = vmatpush.xpose.msra.mxu0 0.0
        %7008 = vmatpush.xpose.msra.mxu0 0.0
        %7009 = vmatpush.xpose.msra.mxu0 0.0
        %7010 = vmatpush.xpose.msra.mxu0 0.0
        %7011 = vmatpush.xpose.msra.mxu0 0.0
        %7012 = vmatpush.xpose.msra.mxu0 0.0
        %7013 = vmatpush.xpose.msra.mxu0 0.0
        %7014 = vmatpush.xpose.msra.mxu0 0.0
        %7015 = vmatpush.xpose.msra.mxu0 %v6978
        %7016 = vmatmul.f32.gmra.mxu0 %v6976
        %v7017 = vpop.f32.mrf.mxu0
        %v7018 = vadd.f32 %v6998, %v7017
        %7019 = vdwg.mxu0
        %7020 = vst [vmem:[#allocation1] ss:$4 sm:$0xff] %v6729
        %v7021 = vld.sshfl [vmem:[#allocation1] sm:$0xff pattern:$0x73625140]
        %v7022 = vld.sshfl [vmem:[#allocation1 + $0x8] sm:$0xff pattern:$0x73625140]
        %7023 = vrot.lane.b32.xlu0 %v7021, 64
        %v7024 = vpop.permute.xlu0 %7023
        %7025 = vrot.lane.b32.xlu0 %v7022, 64
        %v7026 = vpop.permute.xlu0 %7025
        %v7027 = vsel %vm5683, %v7024, %v7026
        %7029 = vst [vmem:[#allocation1] ss:$4 sm:$0xff] %v6747
        %v7030 = vld.sshfl [vmem:[#allocation1] sm:$0xff pattern:$0x73625140]
        %v7031 = vld.sshfl [vmem:[#allocation1 + $0x8] sm:$0xff pattern:$0x73625140]
        %7032 = vrot.lane.b32.xlu0 %v7030, 64
        %v7033 = vpop.permute.xlu0 %7032
        %7034 = vrot.lane.b32.xlu0 %v7031, 64
        %v7035 = vpop.permute.xlu0 %7034
        %v7036 = vsel %vm5683, %v7033, %v7035
        %v7038 = vsel %vm5683, %v7026, 0
        %v7040 = vsel %vm5683, %v7035, 0
        %7042 = vmatpush.xpose.msra.mxu0 0.0
        %7043 = vmatpush.xpose.msra.mxu0 0.0
        %7044 = vmatpush.xpose.msra.mxu0 0.0
        %7045 = vmatpush.xpose.msra.mxu0 0.0
        %7046 = vmatpush.xpose.msra.mxu0 0.0
        %7047 = vmatpush.xpose.msra.mxu0 0.0
        %7048 = vmatpush.xpose.msra.mxu0 0.0
        %7049 = vmatpush.xpose.msra.mxu0 0.0
        %7050 = vmatpush.xpose.msra.mxu0 0.0
        %7051 = vmatpush.xpose.msra.mxu0 0.0
        %7052 = vmatpush.xpose.msra.mxu0 0.0
        %7053 = vmatpush.xpose.msra.mxu0 0.0
        %7054 = vmatpush.xpose.msra.mxu0 0.0
        %7055 = vmatpush.xpose.msra.mxu0 0.0
        %7056 = vmatpush.xpose.msra.mxu0 0.0
        %7057 = vmatpush.xpose.msra.mxu0 %v7036
        %7058 = vmatmul.f32.gmra.mxu0 %v7027
        %v7059 = vpop.f32.mrf.mxu0
        %v7060 = vadd.f32 0.0, %v7059
        %7061 = vdwg.mxu0
        %7062 = vmatpush.xpose.msra.mxu0 0.0
        %7063 = vmatpush.xpose.msra.mxu0 0.0
        %7064 = vmatpush.xpose.msra.mxu0 0.0
        %7065 = vmatpush.xpose.msra.mxu0 0.0
        %7066 = vmatpush.xpose.msra.mxu0 0.0
        %7067 = vmatpush.xpose.msra.mxu0 0.0
        %7068 = vmatpush.xpose.msra.mxu0 0.0
        %7069 = vmatpush.xpose.msra.mxu0 0.0
        %7070 = vmatpush.xpose.msra.mxu0 0.0
        %7071 = vmatpush.xpose.msra.mxu0 0.0
        %7072 = vmatpush.xpose.msra.mxu0 0.0
        %7073 = vmatpush.xpose.msra.mxu0 0.0
        %7074 = vmatpush.xpose.msra.mxu0 0.0
        %7075 = vmatpush.xpose.msra.mxu0 0.0
        %7076 = vmatpush.xpose.msra.mxu0 0.0
        %7077 = vmatpush.xpose.msra.mxu0 %v7040
        %7078 = vmatmul.f32.gmra.mxu0 %v7038
        %v7079 = vpop.f32.mrf.mxu0
        %v7080 = vadd.f32 %v7060, %v7079
        %7081 = vdwg.mxu0
        %7082 = vst [vmem:[#allocation1] ss:$4 sm:$0xff] %v6731
        %v7083 = vld.sshfl [vmem:[#allocation1] sm:$0xff pattern:$0x73625140]
        %v7084 = vld.sshfl [vmem:[#allocation1 + $0x8] sm:$0xff pattern:$0x73625140]
        %7085 = vrot.lane.b32.xlu0 %v7083, 64
        %v7086 = vpop.permute.xlu0 %7085
        %7087 = vrot.lane.b32.xlu0 %v7084, 64
        %v7088 = vpop.permute.xlu0 %7087
        %v7089 = vsel %vm5683, %v7086, %v7088
        %7091 = vst [vmem:[#allocation1] ss:$4 sm:$0xff] %v6749
        %v7092 = vld.sshfl [vmem:[#allocation1] sm:$0xff pattern:$0x73625140]
        %v7093 = vld.sshfl [vmem:[#allocation1 + $0x8] sm:$0xff pattern:$0x73625140]
        %7094 = vrot.lane.b32.xlu0 %v7092, 64
        %v7095 = vpop.permute.xlu0 %7094
        %7096 = vrot.lane.b32.xlu0 %v7093, 64
        %v7097 = vpop.permute.xlu0 %7096
        %v7098 = vsel %vm5683, %v7095, %v7097
        %v7100 = vsel %vm5683, %v7088, 0
        %v7102 = vsel %vm5683, %v7097, 0
        %7104 = vmatpush.xpose.msra.mxu0 0.0
        %7105 = vmatpush.xpose.msra.mxu0 0.0
        %7106 = vmatpush.xpose.msra.mxu0 0.0
        %7107 = vmatpush.xpose.msra.mxu0 0.0
        %7108 = vmatpush.xpose.msra.mxu0 0.0
        %7109 = vmatpush.xpose.msra.mxu0 0.0
        %7110 = vmatpush.xpose.msra.mxu0 0.0
        %7111 = vmatpush.xpose.msra.mxu0 0.0
        %7112 = vmatpush.xpose.msra.mxu0 0.0
        %7113 = vmatpush.xpose.msra.mxu0 0.0
        %7114 = vmatpush.xpose.msra.mxu0 0.0
        %7115 = vmatpush.xpose.msra.mxu0 0.0
        %7116 = vmatpush.xpose.msra.mxu0 0.0
        %7117 = vmatpush.xpose.msra.mxu0 0.0
        %7118 = vmatpush.xpose.msra.mxu0 0.0
        %7119 = vmatpush.xpose.msra.mxu0 %v7098
        %7120 = vmatmul.f32.gmra.mxu0 %v7089
        %v7121 = vpop.f32.mrf.mxu0
        %v7122 = vadd.f32 0.0, %v7121
        %7123 = vdwg.mxu0
        %7124 = vmatpush.xpose.msra.mxu0 0.0
        %7125 = vmatpush.xpose.msra.mxu0 0.0
        %7126 = vmatpush.xpose.msra.mxu0 0.0
        %7127 = vmatpush.xpose.msra.mxu0 0.0
        %7128 = vmatpush.xpose.msra.mxu0 0.0
        %7129 = vmatpush.xpose.msra.mxu0 0.0
        %7130 = vmatpush.xpose.msra.mxu0 0.0
        %7131 = vmatpush.xpose.msra.mxu0 0.0
        %7132 = vmatpush.xpose.msra.mxu0 0.0
        %7133 = vmatpush.xpose.msra.mxu0 0.0
        %7134 = vmatpush.xpose.msra.mxu0 0.0
        %7135 = vmatpush.xpose.msra.mxu0 0.0
        %7136 = vmatpush.xpose.msra.mxu0 0.0
        %7137 = vmatpush.xpose.msra.mxu0 0.0
        %7138 = vmatpush.xpose.msra.mxu0 0.0
        %7139 = vmatpush.xpose.msra.mxu0 %v7102
        %7140 = vmatmul.f32.gmra.mxu0 %v7100
        %v7141 = vpop.f32.mrf.mxu0
        %v7142 = vadd.f32 %v7122, %v7141
        %7143 = vdwg.mxu0
        %7144 = vst [vmem:[#allocation1] ss:$4 sm:$0xff] %v6733
        %v7145 = vld.sshfl [vmem:[#allocation1] sm:$0xff pattern:$0x73625140]
        %v7146 = vld.sshfl [vmem:[#allocation1 + $0x8] sm:$0xff pattern:$0x73625140]
        %7147 = vrot.lane.b32.xlu0 %v7145, 64
        %v7148 = vpop.permute.xlu0 %7147
        %7149 = vrot.lane.b32.xlu0 %v7146, 64
        %v7150 = vpop.permute.xlu0 %7149
        %v7151 = vsel %vm5683, %v7148, %v7150
        %7153 = vst [vmem:[#allocation1] ss:$4 sm:$0xff] %v6751
        %v7154 = vld.sshfl [vmem:[#allocation1] sm:$0xff pattern:$0x73625140]
        %v7155 = vld.sshfl [vmem:[#allocation1 + $0x8] sm:$0xff pattern:$0x73625140]
        %7156 = vrot.lane.b32.xlu0 %v7154, 64
        %v7157 = vpop.permute.xlu0 %7156
        %7158 = vrot.lane.b32.xlu0 %v7155, 64
        %v7159 = vpop.permute.xlu0 %7158
        %v7160 = vsel %vm5683, %v7157, %v7159
        %v7162 = vsel %vm5683, %v7150, 0
        %v7164 = vsel %vm5683, %v7159, 0
        %7166 = vmatpush.xpose.msra.mxu0 0.0
        %7167 = vmatpush.xpose.msra.mxu0 0.0
        %7168 = vmatpush.xpose.msra.mxu0 0.0
        %7169 = vmatpush.xpose.msra.mxu0 0.0
        %7170 = vmatpush.xpose.msra.mxu0 0.0
        %7171 = vmatpush.xpose.msra.mxu0 0.0
        %7172 = vmatpush.xpose.msra.mxu0 0.0
        %7173 = vmatpush.xpose.msra.mxu0 0.0
        %7174 = vmatpush.xpose.msra.mxu0 0.0
        %7175 = vmatpush.xpose.msra.mxu0 0.0
        %7176 = vmatpush.xpose.msra.mxu0 0.0
        %7177 = vmatpush.xpose.msra.mxu0 0.0
        %7178 = vmatpush.xpose.msra.mxu0 0.0
        %7179 = vmatpush.xpose.msra.mxu0 0.0
        %7180 = vmatpush.xpose.msra.mxu0 0.0
        %7181 = vmatpush.xpose.msra.mxu0 %v7160
        %7182 = vmatmul.f32.gmra.mxu0 %v7151
        %v7183 = vpop.f32.mrf.mxu0
        %v7184 = vadd.f32 0.0, %v7183
        %7185 = vdwg.mxu0
        %7186 = vmatpush.xpose.msra.mxu0 0.0
        %7187 = vmatpush.xpose.msra.mxu0 0.0
        %7188 = vmatpush.xpose.msra.mxu0 0.0
        %7189 = vmatpush.xpose.msra.mxu0 0.0
        %7190 = vmatpush.xpose.msra.mxu0 0.0
        %7191 = vmatpush.xpose.msra.mxu0 0.0
        %7192 = vmatpush.xpose.msra.mxu0 0.0
        %7193 = vmatpush.xpose.msra.mxu0 0.0
        %7194 = vmatpush.xpose.msra.mxu0 0.0
        %7195 = vmatpush.xpose.msra.mxu0 0.0
        %7196 = vmatpush.xpose.msra.mxu0 0.0
        %7197 = vmatpush.xpose.msra.mxu0 0.0
        %7198 = vmatpush.xpose.msra.mxu0 0.0
        %7199 = vmatpush.xpose.msra.mxu0 0.0
        %7200 = vmatpush.xpose.msra.mxu0 0.0
        %7201 = vmatpush.xpose.msra.mxu0 %v7164
        %7202 = vmatmul.f32.gmra.mxu0 %v7162
        %v7203 = vpop.f32.mrf.mxu0
        %v7204 = vadd.f32 %v7184, %v7203
        %7205 = vdwg.mxu0
        %7206 = vst [vmem:[#allocation1] ss:$4 sm:$0xff] %v6735
        %v7207 = vld.sshfl [vmem:[#allocation1] sm:$0xff pattern:$0x73625140]
        %v7208 = vld.sshfl [vmem:[#allocation1 + $0x8] sm:$0xff pattern:$0x73625140]
        %7209 = vrot.lane.b32.xlu0 %v7207, 64
        %v7210 = vpop.permute.xlu0 %7209
        %7211 = vrot.lane.b32.xlu0 %v7208, 64
        %v7212 = vpop.permute.xlu0 %7211
        %v7213 = vsel %vm5683, %v7210, %v7212
        %7215 = vst [vmem:[#allocation1] ss:$4 sm:$0xff] %v6753
        %v7216 = vld.sshfl [vmem:[#allocation1] sm:$0xff pattern:$0x73625140]
        %v7217 = vld.sshfl [vmem:[#allocation1 + $0x8] sm:$0xff pattern:$0x73625140]
        %7218 = vrot.lane.b32.xlu0 %v7216, 64
        %v7219 = vpop.permute.xlu0 %7218
        %7220 = vrot.lane.b32.xlu0 %v7217, 64
        %v7221 = vpop.permute.xlu0 %7220
        %v7222 = vsel %vm5683, %v7219, %v7221
        %v7224 = vsel %vm5683, %v7212, 0
        %v7226 = vsel %vm5683, %v7221, 0
        %7228 = vmatpush.xpose.msra.mxu0 0.0
        %7229 = vmatpush.xpose.msra.mxu0 0.0
        %7230 = vmatpush.xpose.msra.mxu0 0.0
        %7231 = vmatpush.xpose.msra.mxu0 0.0
        %7232 = vmatpush.xpose.msra.mxu0 0.0
        %7233 = vmatpush.xpose.msra.mxu0 0.0
        %7234 = vmatpush.xpose.msra.mxu0 0.0
        %7235 = vmatpush.xpose.msra.mxu0 0.0
        %7236 = vmatpush.xpose.msra.mxu0 0.0
        %7237 = vmatpush.xpose.msra.mxu0 0.0
        %7238 = vmatpush.xpose.msra.mxu0 0.0
        %7239 = vmatpush.xpose.msra.mxu0 0.0
        %7240 = vmatpush.xpose.msra.mxu0 0.0
        %7241 = vmatpush.xpose.msra.mxu0 0.0
        %7242 = vmatpush.xpose.msra.mxu0 0.0
        %7243 = vmatpush.xpose.msra.mxu0 %v7222
        %7244 = vmatmul.f32.gmra.mxu0 %v7213
        %v7245 = vpop.f32.mrf.mxu0
        %v7246 = vadd.f32 0.0, %v7245
        %7247 = vdwg.mxu0
        %7248 = vmatpush.xpose.msra.mxu0 0.0
        %7249 = vmatpush.xpose.msra.mxu0 0.0
        %7250 = vmatpush.xpose.msra.mxu0 0.0
        %7251 = vmatpush.xpose.msra.mxu0 0.0
        %7252 = vmatpush.xpose.msra.mxu0 0.0
        %7253 = vmatpush.xpose.msra.mxu0 0.0
        %7254 = vmatpush.xpose.msra.mxu0 0.0
        %7255 = vmatpush.xpose.msra.mxu0 0.0
        %7256 = vmatpush.xpose.msra.mxu0 0.0
        %7257 = vmatpush.xpose.msra.mxu0 0.0
        %7258 = vmatpush.xpose.msra.mxu0 0.0
        %7259 = vmatpush.xpose.msra.mxu0 0.0
        %7260 = vmatpush.xpose.msra.mxu0 0.0
        %7261 = vmatpush.xpose.msra.mxu0 0.0
        %7262 = vmatpush.xpose.msra.mxu0 0.0
        %7263 = vmatpush.xpose.msra.mxu0 %v7226
        %7264 = vmatmul.f32.gmra.mxu0 %v7224
        %v7265 = vpop.f32.mrf.mxu0
        %v7266 = vadd.f32 %v7246, %v7265
        %7267 = vdwg.mxu0
        %v7268 = vsel %vm6092, %v6832, -inf
        %7269 = vmax.xlane.f32.xlu0 %v7268
        %v7270 = vpop.xlane.xlu0 %7269
        %v7271 = vsel %vm6092, %v6894, -inf
        %7272 = vmax.xlane.f32.xlu0 %v7271
        %v7273 = vpop.xlane.xlu0 %7272
        %v7274 = vsel %vm6092, %v6956, -inf
        %7275 = vmax.xlane.f32.xlu0 %v7274
        %v7276 = vpop.xlane.xlu0 %7275
        %v7277 = vsel %vm6092, %v7018, -inf
        %7278 = vmax.xlane.f32.xlu0 %v7277
        %v7279 = vpop.xlane.xlu0 %7278
        %v7280 = vsel %vm6092, %v7080, -inf
        %7281 = vmax.xlane.f32.xlu0 %v7280
        %v7282 = vpop.xlane.xlu0 %7281
        %v7283 = vsel %vm6092, %v7142, -inf
        %7284 = vmax.xlane.f32.xlu0 %v7283
        %v7285 = vpop.xlane.xlu0 %7284
        %v7286 = vsel %vm6092, %v7204, -inf
        %7287 = vmax.xlane.f32.xlu0 %v7286
        %v7288 = vpop.xlane.xlu0 %7287
        %v7289 = vsel %vm6092, %v7266, -inf
        %7290 = vmax.xlane.f32.xlu0 %v7289
        %v7291 = vpop.xlane.xlu0 %7290
        %v7292 = vsub.f32 %v6832, %v7270
        %v7293 = vsub.f32 %v6894, %v7273
        %v7294 = vsub.f32 %v6956, %v7276
        %v7295 = vsub.f32 %v7018, %v7279
        %v7296 = vsub.f32 %v7080, %v7282
        %v7297 = vsub.f32 %v7142, %v7285
        %v7298 = vsub.f32 %v7204, %v7288
        %v7299 = vsub.f32 %v7266, %v7291
        %v7300 = vmul.f32 %v7292, 1.442695
        %v7301 = vpow.pop %v7300
        %v7302 = vmul.f32 %v7293, 1.442695
        %v7303 = vpow.pop %v7302
        %v7304 = vmul.f32 %v7294, 1.442695
        %v7305 = vpow.pop %v7304
        %v7306 = vmul.f32 %v7295, 1.442695
        %v7307 = vpow.pop %v7306
        %v7308 = vmul.f32 %v7296, 1.442695
        %v7309 = vpow.pop %v7308
        %v7310 = vmul.f32 %v7297, 1.442695
        %v7311 = vpow.pop %v7310
        %v7312 = vmul.f32 %v7298, 1.442695
        %v7313 = vpow.pop %v7312
        %v7314 = vmul.f32 %v7299, 1.442695
        %v7315 = vpow.pop %v7314
        %v7316 = vsel %vm6092, %v7301, 0.0
        %7317 = vadd.xlane.f32.xlu0 %v7316
        %v7318 = vpop.xlane.xlu0 %7317
        %v7319 = vsel %vm6092, %v7303, 0.0
        %7320 = vadd.xlane.f32.xlu0 %v7319
        %v7321 = vpop.xlane.xlu0 %7320
        %v7322 = vsel %vm6092, %v7305, 0.0
        %7323 = vadd.xlane.f32.xlu0 %v7322
        %v7324 = vpop.xlane.xlu0 %7323
        %v7325 = vsel %vm6092, %v7307, 0.0
        %7326 = vadd.xlane.f32.xlu0 %v7325
        %v7327 = vpop.xlane.xlu0 %7326
        %v7328 = vsel %vm6092, %v7309, 0.0
        %7329 = vadd.xlane.f32.xlu0 %v7328
        %v7330 = vpop.xlane.xlu0 %7329
        %v7331 = vsel %vm6092, %v7311, 0.0
        %7332 = vadd.xlane.f32.xlu0 %v7331
        %v7333 = vpop.xlane.xlu0 %7332
        %v7334 = vsel %vm6092, %v7313, 0.0
        %7335 = vadd.xlane.f32.xlu0 %v7334
        %v7336 = vpop.xlane.xlu0 %7335
        %v7337 = vsel %vm6092, %v7315, 0.0
        %7338 = vadd.xlane.f32.xlu0 %v7337
        %v7339 = vpop.xlane.xlu0 %7338
        %v7340 = vrcp.pop %v7318
        %v7341 = vmul.f32 %v7318, %v7340
        %v7342 = vsub.f32 1.0, %v7341
        %v7343 = vmul.f32 %v7340, %v7342
        %v7344 = vadd.f32 %v7340, %v7343
        %vm7345 = vweird.f32 %v7318
        %vm7346 = vweird.f32 %v7340
        %vm7347 = vmor %vm7345, %vm7346
        %v7348 = vsel %vm7347, %v7340, %v7344
        %v7349 = vand.u32 2147483647, %v7318
        %vm7350 = vcmp.eq.f32.partialorder %v7349, 8.507059e+37
        %v7351 = vand.u32 %v7318, 2147483648
        %v7352 = vor.u32 1.1754944e-38, %v7351
        %v7353 = vsel %vm7350, %v7352, %v7348
        %v7354 = vmul.f32 %v7301, %v7353
        %v7355 = vrcp.pop %v7321
        %v7356 = vmul.f32 %v7321, %v7355
        %v7357 = vsub.f32 1.0, %v7356
        %v7358 = vmul.f32 %v7355, %v7357
        %v7359 = vadd.f32 %v7355, %v7358
        %vm7360 = vweird.f32 %v7321
        %vm7361 = vweird.f32 %v7355
        %vm7362 = vmor %vm7360, %vm7361
        %v7363 = vsel %vm7362, %v7355, %v7359
        %v7364 = vand.u32 2147483647, %v7321
        %vm7365 = vcmp.eq.f32.partialorder %v7364, 8.507059e+37
        %v7366 = vand.u32 %v7321, 2147483648
        %v7367 = vor.u32 1.1754944e-38, %v7366
        %v7368 = vsel %vm7365, %v7367, %v7363
        %v7369 = vmul.f32 %v7303, %v7368
        %v7370 = vrcp.pop %v7324
        %v7371 = vmul.f32 %v7324, %v7370
        %v7372 = vsub.f32 1.0, %v7371
        %v7373 = vmul.f32 %v7370, %v7372
        %v7374 = vadd.f32 %v7370, %v7373
        %vm7375 = vweird.f32 %v7324
        %vm7376 = vweird.f32 %v7370
        %vm7377 = vmor %vm7375, %vm7376
        %v7378 = vsel %vm7377, %v7370, %v7374
        %v7379 = vand.u32 2147483647, %v7324
        %vm7380 = vcmp.eq.f32.partialorder %v7379, 8.507059e+37
        %v7381 = vand.u32 %v7324, 2147483648
        %v7382 = vor.u32 1.1754944e-38, %v7381
        %v7383 = vsel %vm7380, %v7382, %v7378
        %v7384 = vmul.f32 %v7305, %v7383
        %v7385 = vrcp.pop %v7327
        %v7386 = vmul.f32 %v7327, %v7385
        %v7387 = vsub.f32 1.0, %v7386
        %v7388 = vmul.f32 %v7385, %v7387
        %v7389 = vadd.f32 %v7385, %v7388
        %vm7390 = vweird.f32 %v7327
        %vm7391 = vweird.f32 %v7385
        %vm7392 = vmor %vm7390, %vm7391
        %v7393 = vsel %vm7392, %v7385, %v7389
        %v7394 = vand.u32 2147483647, %v7327
        %vm7395 = vcmp.eq.f32.partialorder %v7394, 8.507059e+37
        %v7396 = vand.u32 %v7327, 2147483648
        %v7397 = vor.u32 1.1754944e-38, %v7396
        %v7398 = vsel %vm7395, %v7397, %v7393
        %v7399 = vmul.f32 %v7307, %v7398
        %v7400 = vrcp.pop %v7330
        %v7401 = vmul.f32 %v7330, %v7400
        %v7402 = vsub.f32 1.0, %v7401
        %v7403 = vmul.f32 %v7400, %v7402
        %v7404 = vadd.f32 %v7400, %v7403
        %vm7405 = vweird.f32 %v7330
        %vm7406 = vweird.f32 %v7400
        %vm7407 = vmor %vm7405, %vm7406
        %v7408 = vsel %vm7407, %v7400, %v7404
        %v7409 = vand.u32 2147483647, %v7330
        %vm7410 = vcmp.eq.f32.partialorder %v7409, 8.507059e+37
        %v7411 = vand.u32 %v7330, 2147483648
        %v7412 = vor.u32 1.1754944e-38, %v7411
        %v7413 = vsel %vm7410, %v7412, %v7408
        %v7414 = vmul.f32 %v7309, %v7413
        %v7415 = vrcp.pop %v7333
        %v7416 = vmul.f32 %v7333, %v7415
        %v7417 = vsub.f32 1.0, %v7416
        %v7418 = vmul.f32 %v7415, %v7417
        %v7419 = vadd.f32 %v7415, %v7418
        %vm7420 = vweird.f32 %v7333
        %vm7421 = vweird.f32 %v7415
        %vm7422 = vmor %vm7420, %vm7421
        %v7423 = vsel %vm7422, %v7415, %v7419
        %v7424 = vand.u32 2147483647, %v7333
        %vm7425 = vcmp.eq.f32.partialorder %v7424, 8.507059e+37
        %v7426 = vand.u32 %v7333, 2147483648
        %v7427 = vor.u32 1.1754944e-38, %v7426
        %v7428 = vsel %vm7425, %v7427, %v7423
        %v7429 = vmul.f32 %v7311, %v7428
        %v7430 = vrcp.pop %v7336
        %v7431 = vmul.f32 %v7336, %v7430
        %v7432 = vsub.f32 1.0, %v7431
        %v7433 = vmul.f32 %v7430, %v7432
        %v7434 = vadd.f32 %v7430, %v7433
        %vm7435 = vweird.f32 %v7336
        %vm7436 = vweird.f32 %v7430
        %vm7437 = vmor %vm7435, %vm7436
        %v7438 = vsel %vm7437, %v7430, %v7434
        %v7439 = vand.u32 2147483647, %v7336
        %vm7440 = vcmp.eq.f32.partialorder %v7439, 8.507059e+37
        %v7441 = vand.u32 %v7336, 2147483648
        %v7442 = vor.u32 1.1754944e-38, %v7441
        %v7443 = vsel %vm7440, %v7442, %v7438
        %v7444 = vmul.f32 %v7313, %v7443
        %v7445 = vrcp.pop %v7339
        %v7446 = vmul.f32 %v7339, %v7445
        %v7447 = vsub.f32 1.0, %v7446
        %v7448 = vmul.f32 %v7445, %v7447
        %v7449 = vadd.f32 %v7445, %v7448
        %vm7450 = vweird.f32 %v7339
        %vm7451 = vweird.f32 %v7445
        %vm7452 = vmor %vm7450, %vm7451
        %v7453 = vsel %vm7452, %v7445, %v7449
        %v7454 = vand.u32 2147483647, %v7339
        %vm7455 = vcmp.eq.f32.partialorder %v7454, 8.507059e+37
        %v7456 = vand.u32 %v7339, 2147483648
        %v7457 = vor.u32 1.1754944e-38, %v7456
        %v7458 = vsel %vm7455, %v7457, %v7453
        %v7459 = vmul.f32 %v7315, %v7458
        %7460 = vst [vmem:[#allocation1] ss:$4 sm:$0xff] %v6758
        %v7461 = vld.sshfl [vmem:[#allocation1] sm:$0xff pattern:$0x73625140]
        %v7462 = vld.sshfl [vmem:[#allocation1 + $0x8] sm:$0xff pattern:$0x73625140]
        %7463 = vrot.lane.b32.xlu0 %v7461, 64
        %v7464 = vpop.permute.xlu0 %7463
        %7465 = vrot.lane.b32.xlu0 %v7462, 64
        %v7466 = vpop.permute.xlu0 %7465
        %v7467 = vsel %vm5683, %v7464, %v7466
        %v7469 = vsel %vm6288, %v7354, 0
        %v7471 = vsel %vm5617, %v7467, 0
        %v7473 = vsel %vm5617, %v7466, 0
        %7475 = vmatpush.msra.mxu0 0.0
        %7476 = vmatpush.msra.mxu0 0.0
        %7477 = vmatpush.msra.mxu0 0.0
        %7478 = vmatpush.msra.mxu0 0.0
        %7479 = vmatpush.msra.mxu0 0.0
        %7480 = vmatpush.msra.mxu0 0.0
        %7481 = vmatpush.msra.mxu0 0.0
        %7482 = vmatpush.msra.mxu0 0.0
        %7483 = vmatpush.msra.mxu0 0.0
        %7484 = vmatpush.msra.mxu0 0.0
        %7485 = vmatpush.msra.mxu0 0.0
        %7486 = vmatpush.msra.mxu0 0.0
        %7487 = vmatpush.msra.mxu0 0.0
        %7488 = vmatpush.msra.mxu0 0.0
        %7489 = vmatpush.msra.mxu0 0.0
        %7490 = vmatpush.msra.mxu0 %v7471
        %7491 = vmatmul.f32.gmra.mxu0 %v7469
        %v7492 = vpop.f32.mrf.mxu0
        %v7493 = vadd.f32 0.0, %v7492
        %7494 = vdwg.mxu0
        %7495 = vmatpush.msra.mxu0 0.0
        %7496 = vmatpush.msra.mxu0 0.0
        %7497 = vmatpush.msra.mxu0 0.0
        %7498 = vmatpush.msra.mxu0 0.0
        %7499 = vmatpush.msra.mxu0 0.0
        %7500 = vmatpush.msra.mxu0 0.0
        %7501 = vmatpush.msra.mxu0 0.0
        %7502 = vmatpush.msra.mxu0 0.0
        %7503 = vmatpush.msra.mxu0 0.0
        %7504 = vmatpush.msra.mxu0 0.0
        %7505 = vmatpush.msra.mxu0 0.0
        %7506 = vmatpush.msra.mxu0 0.0
        %7507 = vmatpush.msra.mxu0 0.0
        %7508 = vmatpush.msra.mxu0 0.0
        %7509 = vmatpush.msra.mxu0 0.0
        %7510 = vmatpush.msra.mxu0 %v7473
        %7511 = vmatmul.f32.gmra.mxu0 %v7469
        %v7512 = vpop.f32.mrf.mxu0
        %v7513 = vadd.f32 0.0, %v7512
        %7514 = vdwg.mxu0
        %7515 = vst [vmem:[#allocation1] ss:$4 sm:$0xff] %v6760
        %v7516 = vld.sshfl [vmem:[#allocation1] sm:$0xff pattern:$0x73625140]
        %v7517 = vld.sshfl [vmem:[#allocation1 + $0x8] sm:$0xff pattern:$0x73625140]
        %7518 = vrot.lane.b32.xlu0 %v7516, 64
        %v7519 = vpop.permute.xlu0 %7518
        %7520 = vrot.lane.b32.xlu0 %v7517, 64
        %v7521 = vpop.permute.xlu0 %7520
        %v7522 = vsel %vm5683, %v7519, %v7521
        %v7524 = vsel %vm6288, %v7369, 0
        %v7526 = vsel %vm5617, %v7522, 0
        %v7528 = vsel %vm5617, %v7521, 0
        %7530 = vmatpush.msra.mxu0 0.0
        %7531 = vmatpush.msra.mxu0 0.0
        %7532 = vmatpush.msra.mxu0 0.0
        %7533 = vmatpush.msra.mxu0 0.0
        %7534 = vmatpush.msra.mxu0 0.0
        %7535 = vmatpush.msra.mxu0 0.0
        %7536 = vmatpush.msra.mxu0 0.0
        %7537 = vmatpush.msra.mxu0 0.0
        %7538 = vmatpush.msra.mxu0 0.0
        %7539 = vmatpush.msra.mxu0 0.0
        %7540 = vmatpush.msra.mxu0 0.0
        %7541 = vmatpush.msra.mxu0 0.0
        %7542 = vmatpush.msra.mxu0 0.0
        %7543 = vmatpush.msra.mxu0 0.0
        %7544 = vmatpush.msra.mxu0 0.0
        %7545 = vmatpush.msra.mxu0 %v7526
        %7546 = vmatmul.f32.gmra.mxu0 %v7524
        %v7547 = vpop.f32.mrf.mxu0
        %v7548 = vadd.f32 0.0, %v7547
        %7549 = vdwg.mxu0
        %7550 = vmatpush.msra.mxu0 0.0
        %7551 = vmatpush.msra.mxu0 0.0
        %7552 = vmatpush.msra.mxu0 0.0
        %7553 = vmatpush.msra.mxu0 0.0
        %7554 = vmatpush.msra.mxu0 0.0
        %7555 = vmatpush.msra.mxu0 0.0
        %7556 = vmatpush.msra.mxu0 0.0
        %7557 = vmatpush.msra.mxu0 0.0
        %7558 = vmatpush.msra.mxu0 0.0
        %7559 = vmatpush.msra.mxu0 0.0
        %7560 = vmatpush.msra.mxu0 0.0
        %7561 = vmatpush.msra.mxu0 0.0
        %7562 = vmatpush.msra.mxu0 0.0
        %7563 = vmatpush.msra.mxu0 0.0
        %7564 = vmatpush.msra.mxu0 0.0
        %7565 = vmatpush.msra.mxu0 %v7528
        %7566 = vmatmul.f32.gmra.mxu0 %v7524
        %v7567 = vpop.f32.mrf.mxu0
        %v7568 = vadd.f32 0.0, %v7567
        %7569 = vdwg.mxu0
        %7570 = vst [vmem:[#allocation1] ss:$4 sm:$0xff] %v6762
        %v7571 = vld.sshfl [vmem:[#allocation1] sm:$0xff pattern:$0x73625140]
        %v7572 = vld.sshfl [vmem:[#allocation1 + $0x8] sm:$0xff pattern:$0x73625140]
        %7573 = vrot.lane.b32.xlu0 %v7571, 64
        %v7574 = vpop.permute.xlu0 %7573
        %7575 = vrot.lane.b32.xlu0 %v7572, 64
        %v7576 = vpop.permute.xlu0 %7575
        %v7577 = vsel %vm5683, %v7574, %v7576
        %v7579 = vsel %vm6288, %v7384, 0
        %v7581 = vsel %vm5617, %v7577, 0
        %v7583 = vsel %vm5617, %v7576, 0
        %7585 = vmatpush.msra.mxu0 0.0
        %7586 = vmatpush.msra.mxu0 0.0
        %7587 = vmatpush.msra.mxu0 0.0
        %7588 = vmatpush.msra.mxu0 0.0
        %7589 = vmatpush.msra.mxu0 0.0
        %7590 = vmatpush.msra.mxu0 0.0
        %7591 = vmatpush.msra.mxu0 0.0
        %7592 = vmatpush.msra.mxu0 0.0
        %7593 = vmatpush.msra.mxu0 0.0
        %7594 = vmatpush.msra.mxu0 0.0
        %7595 = vmatpush.msra.mxu0 0.0
        %7596 = vmatpush.msra.mxu0 0.0
        %7597 = vmatpush.msra.mxu0 0.0
        %7598 = vmatpush.msra.mxu0 0.0
        %7599 = vmatpush.msra.mxu0 0.0
        %7600 = vmatpush.msra.mxu0 %v7581
        %7601 = vmatmul.f32.gmra.mxu0 %v7579
        %v7602 = vpop.f32.mrf.mxu0
        %v7603 = vadd.f32 0.0, %v7602
        %7604 = vdwg.mxu0
        %7605 = vmatpush.msra.mxu0 0.0
        %7606 = vmatpush.msra.mxu0 0.0
        %7607 = vmatpush.msra.mxu0 0.0
        %7608 = vmatpush.msra.mxu0 0.0
        %7609 = vmatpush.msra.mxu0 0.0
        %7610 = vmatpush.msra.mxu0 0.0
        %7611 = vmatpush.msra.mxu0 0.0
        %7612 = vmatpush.msra.mxu0 0.0
        %7613 = vmatpush.msra.mxu0 0.0
        %7614 = vmatpush.msra.mxu0 0.0
        %7615 = vmatpush.msra.mxu0 0.0
        %7616 = vmatpush.msra.mxu0 0.0
        %7617 = vmatpush.msra.mxu0 0.0
        %7618 = vmatpush.msra.mxu0 0.0
        %7619 = vmatpush.msra.mxu0 0.0
        %7620 = vmatpush.msra.mxu0 %v7583
        %7621 = vmatmul.f32.gmra.mxu0 %v7579
        %v7622 = vpop.f32.mrf.mxu0
        %v7623 = vadd.f32 0.0, %v7622
        %7624 = vdwg.mxu0
        %7625 = vst [vmem:[#allocation1] ss:$4 sm:$0xff] %v6764
        %v7626 = vld.sshfl [vmem:[#allocation1] sm:$0xff pattern:$0x73625140]
        %v7627 = vld.sshfl [vmem:[#allocation1 + $0x8] sm:$0xff pattern:$0x73625140]
        %7628 = vrot.lane.b32.xlu0 %v7626, 64
        %v7629 = vpop.permute.xlu0 %7628
        %7630 = vrot.lane.b32.xlu0 %v7627, 64
        %v7631 = vpop.permute.xlu0 %7630
        %v7632 = vsel %vm5683, %v7629, %v7631
        %v7634 = vsel %vm6288, %v7399, 0
        %v7636 = vsel %vm5617, %v7632, 0
        %v7638 = vsel %vm5617, %v7631, 0
        %7640 = vmatpush.msra.mxu0 0.0
        %7641 = vmatpush.msra.mxu0 0.0
        %7642 = vmatpush.msra.mxu0 0.0
        %7643 = vmatpush.msra.mxu0 0.0
        %7644 = vmatpush.msra.mxu0 0.0
        %7645 = vmatpush.msra.mxu0 0.0
        %7646 = vmatpush.msra.mxu0 0.0
        %7647 = vmatpush.msra.mxu0 0.0
        %7648 = vmatpush.msra.mxu0 0.0
        %7649 = vmatpush.msra.mxu0 0.0
        %7650 = vmatpush.msra.mxu0 0.0
        %7651 = vmatpush.msra.mxu0 0.0
        %7652 = vmatpush.msra.mxu0 0.0
        %7653 = vmatpush.msra.mxu0 0.0
        %7654 = vmatpush.msra.mxu0 0.0
        %7655 = vmatpush.msra.mxu0 %v7636
        %7656 = vmatmul.f32.gmra.mxu0 %v7634
        %v7657 = vpop.f32.mrf.mxu0
        %v7658 = vadd.f32 0.0, %v7657
        %7659 = vdwg.mxu0
        %7660 = vmatpush.msra.mxu0 0.0
        %7661 = vmatpush.msra.mxu0 0.0
        %7662 = vmatpush.msra.mxu0 0.0
        %7663 = vmatpush.msra.mxu0 0.0
        %7664 = vmatpush.msra.mxu0 0.0
        %7665 = vmatpush.msra.mxu0 0.0
        %7666 = vmatpush.msra.mxu0 0.0
        %7667 = vmatpush.msra.mxu0 0.0
        %7668 = vmatpush.msra.mxu0 0.0
        %7669 = vmatpush.msra.mxu0 0.0
        %7670 = vmatpush.msra.mxu0 0.0
        %7671 = vmatpush.msra.mxu0 0.0
        %7672 = vmatpush.msra.mxu0 0.0
        %7673 = vmatpush.msra.mxu0 0.0
        %7674 = vmatpush.msra.mxu0 0.0
        %7675 = vmatpush.msra.mxu0 %v7638
        %7676 = vmatmul.f32.gmra.mxu0 %v7634
        %v7677 = vpop.f32.mrf.mxu0
        %v7678 = vadd.f32 0.0, %v7677
        %7679 = vdwg.mxu0
        %7680 = vst [vmem:[#allocation1] ss:$4 sm:$0xff] %v6765
        %v7681 = vld.sshfl [vmem:[#allocation1] sm:$0xff pattern:$0x73625140]
        %v7682 = vld.sshfl [vmem:[#allocation1 + $0x8] sm:$0xff pattern:$0x73625140]
        %7683 = vrot.lane.b32.xlu0 %v7681, 64
        %v7684 = vpop.permute.xlu0 %7683
        %7685 = vrot.lane.b32.xlu0 %v7682, 64
        %v7686 = vpop.permute.xlu0 %7685
        %v7687 = vsel %vm5683, %v7684, %v7686
        %v7689 = vsel %vm6288, %v7414, 0
        %v7691 = vsel %vm5617, %v7687, 0
        %v7693 = vsel %vm5617, %v7686, 0
        %7695 = vmatpush.msra.mxu0 0.0
        %7696 = vmatpush.msra.mxu0 0.0
        %7697 = vmatpush.msra.mxu0 0.0
        %7698 = vmatpush.msra.mxu0 0.0
        %7699 = vmatpush.msra.mxu0 0.0
        %7700 = vmatpush.msra.mxu0 0.0
        %7701 = vmatpush.msra.mxu0 0.0
        %7702 = vmatpush.msra.mxu0 0.0
        %7703 = vmatpush.msra.mxu0 0.0
        %7704 = vmatpush.msra.mxu0 0.0
        %7705 = vmatpush.msra.mxu0 0.0
        %7706 = vmatpush.msra.mxu0 0.0
        %7707 = vmatpush.msra.mxu0 0.0
        %7708 = vmatpush.msra.mxu0 0.0
        %7709 = vmatpush.msra.mxu0 0.0
        %7710 = vmatpush.msra.mxu0 %v7691
        %7711 = vmatmul.f32.gmra.mxu0 %v7689
        %v7712 = vpop.f32.mrf.mxu0
        %v7713 = vadd.f32 0.0, %v7712
        %7714 = vdwg.mxu0
        %7715 = vmatpush.msra.mxu0 0.0
        %7716 = vmatpush.msra.mxu0 0.0
        %7717 = vmatpush.msra.mxu0 0.0
        %7718 = vmatpush.msra.mxu0 0.0
        %7719 = vmatpush.msra.mxu0 0.0
        %7720 = vmatpush.msra.mxu0 0.0
        %7721 = vmatpush.msra.mxu0 0.0
        %7722 = vmatpush.msra.mxu0 0.0
        %7723 = vmatpush.msra.mxu0 0.0
        %7724 = vmatpush.msra.mxu0 0.0
        %7725 = vmatpush.msra.mxu0 0.0
        %7726 = vmatpush.msra.mxu0 0.0
        %7727 = vmatpush.msra.mxu0 0.0
        %7728 = vmatpush.msra.mxu0 0.0
        %7729 = vmatpush.msra.mxu0 0.0
        %7730 = vmatpush.msra.mxu0 %v7693
        %7731 = vmatmul.f32.gmra.mxu0 %v7689
        %v7732 = vpop.f32.mrf.mxu0
        %v7733 = vadd.f32 0.0, %v7732
        %7734 = vdwg.mxu0
        %7735 = vst [vmem:[#allocation1] ss:$4 sm:$0xff] %v6767
        %v7736 = vld.sshfl [vmem:[#allocation1] sm:$0xff pattern:$0x73625140]
        %v7737 = vld.sshfl [vmem:[#allocation1 + $0x8] sm:$0xff pattern:$0x73625140]
        %7738 = vrot.lane.b32.xlu0 %v7736, 64
        %v7739 = vpop.permute.xlu0 %7738
        %7740 = vrot.lane.b32.xlu0 %v7737, 64
        %v7741 = vpop.permute.xlu0 %7740
        %v7742 = vsel %vm5683, %v7739, %v7741
        %v7744 = vsel %vm6288, %v7429, 0
        %v7746 = vsel %vm5617, %v7742, 0
        %v7748 = vsel %vm5617, %v7741, 0
        %7750 = vmatpush.msra.mxu0 0.0
        %7751 = vmatpush.msra.mxu0 0.0
        %7752 = vmatpush.msra.mxu0 0.0
        %7753 = vmatpush.msra.mxu0 0.0
        %7754 = vmatpush.msra.mxu0 0.0
        %7755 = vmatpush.msra.mxu0 0.0
        %7756 = vmatpush.msra.mxu0 0.0
        %7757 = vmatpush.msra.mxu0 0.0
        %7758 = vmatpush.msra.mxu0 0.0
        %7759 = vmatpush.msra.mxu0 0.0
        %7760 = vmatpush.msra.mxu0 0.0
        %7761 = vmatpush.msra.mxu0 0.0
        %7762 = vmatpush.msra.mxu0 0.0
        %7763 = vmatpush.msra.mxu0 0.0
        %7764 = vmatpush.msra.mxu0 0.0
        %7765 = vmatpush.msra.mxu0 %v7746
        %7766 = vmatmul.f32.gmra.mxu0 %v7744
        %v7767 = vpop.f32.mrf.mxu0
        %v7768 = vadd.f32 0.0, %v7767
        %7769 = vdwg.mxu0
        %7770 = vmatpush.msra.mxu0 0.0
        %7771 = vmatpush.msra.mxu0 0.0
        %7772 = vmatpush.msra.mxu0 0.0
        %7773 = vmatpush.msra.mxu0 0.0
        %7774 = vmatpush.msra.mxu0 0.0
        %7775 = vmatpush.msra.mxu0 0.0
        %7776 = vmatpush.msra.mxu0 0.0
        %7777 = vmatpush.msra.mxu0 0.0
        %7778 = vmatpush.msra.mxu0 0.0
        %7779 = vmatpush.msra.mxu0 0.0
        %7780 = vmatpush.msra.mxu0 0.0
        %7781 = vmatpush.msra.mxu0 0.0
        %7782 = vmatpush.msra.mxu0 0.0
        %7783 = vmatpush.msra.mxu0 0.0
        %7784 = vmatpush.msra.mxu0 0.0
        %7785 = vmatpush.msra.mxu0 %v7748
        %7786 = vmatmul.f32.gmra.mxu0 %v7744
        %v7787 = vpop.f32.mrf.mxu0
        %v7788 = vadd.f32 0.0, %v7787
        %7789 = vdwg.mxu0
        %7790 = vst [vmem:[#allocation1] ss:$4 sm:$0xff] %v6769
        %v7791 = vld.sshfl [vmem:[#allocation1] sm:$0xff pattern:$0x73625140]
        %v7792 = vld.sshfl [vmem:[#allocation1 + $0x8] sm:$0xff pattern:$0x73625140]
        %7793 = vrot.lane.b32.xlu0 %v7791, 64
        %v7794 = vpop.permute.xlu0 %7793
        %7795 = vrot.lane.b32.xlu0 %v7792, 64
        %v7796 = vpop.permute.xlu0 %7795
        %v7797 = vsel %vm5683, %v7794, %v7796
        %v7799 = vsel %vm6288, %v7444, 0
        %v7801 = vsel %vm5617, %v7797, 0
        %v7803 = vsel %vm5617, %v7796, 0
        %7805 = vmatpush.msra.mxu0 0.0
        %7806 = vmatpush.msra.mxu0 0.0
        %7807 = vmatpush.msra.mxu0 0.0
        %7808 = vmatpush.msra.mxu0 0.0
        %7809 = vmatpush.msra.mxu0 0.0
        %7810 = vmatpush.msra.mxu0 0.0
        %7811 = vmatpush.msra.mxu0 0.0
        %7812 = vmatpush.msra.mxu0 0.0
        %7813 = vmatpush.msra.mxu0 0.0
        %7814 = vmatpush.msra.mxu0 0.0
        %7815 = vmatpush.msra.mxu0 0.0
        %7816 = vmatpush.msra.mxu0 0.0
        %7817 = vmatpush.msra.mxu0 0.0
        %7818 = vmatpush.msra.mxu0 0.0
        %7819 = vmatpush.msra.mxu0 0.0
        %7820 = vmatpush.msra.mxu0 %v7801
        %7821 = vmatmul.f32.gmra.mxu0 %v7799
        %v7822 = vpop.f32.mrf.mxu0
        %v7823 = vadd.f32 0.0, %v7822
        %7824 = vdwg.mxu0
        %7825 = vmatpush.msra.mxu0 0.0
        %7826 = vmatpush.msra.mxu0 0.0
        %7827 = vmatpush.msra.mxu0 0.0
        %7828 = vmatpush.msra.mxu0 0.0
        %7829 = vmatpush.msra.mxu0 0.0
        %7830 = vmatpush.msra.mxu0 0.0
        %7831 = vmatpush.msra.mxu0 0.0
        %7832 = vmatpush.msra.mxu0 0.0
        %7833 = vmatpush.msra.mxu0 0.0
        %7834 = vmatpush.msra.mxu0 0.0
        %7835 = vmatpush.msra.mxu0 0.0
        %7836 = vmatpush.msra.mxu0 0.0
        %7837 = vmatpush.msra.mxu0 0.0
        %7838 = vmatpush.msra.mxu0 0.0
        %7839 = vmatpush.msra.mxu0 0.0
        %7840 = vmatpush.msra.mxu0 %v7803
        %7841 = vmatmul.f32.gmra.mxu0 %v7799
        %v7842 = vpop.f32.mrf.mxu0
        %v7843 = vadd.f32 0.0, %v7842
        %7844 = vdwg.mxu0
        %7845 = vst [vmem:[#allocation1] ss:$4 sm:$0xff] %v6771
        %v7846 = vld.sshfl [vmem:[#allocation1] sm:$0xff pattern:$0x73625140]
        %v7847 = vld.sshfl [vmem:[#allocation1 + $0x8] sm:$0xff pattern:$0x73625140]
        %7848 = vrot.lane.b32.xlu0 %v7846, 64
        %v7849 = vpop.permute.xlu0 %7848
        %7850 = vrot.lane.b32.xlu0 %v7847, 64
        %v7851 = vpop.permute.xlu0 %7850
        %v7852 = vsel %vm5683, %v7849, %v7851
        %v7854 = vsel %vm6288, %v7459, 0
        %v7856 = vsel %vm5617, %v7852, 0
        %v7858 = vsel %vm5617, %v7851, 0
        %7860 = vmatpush.msra.mxu0 0.0
        %7861 = vmatpush.msra.mxu0 0.0
        %7862 = vmatpush.msra.mxu0 0.0
        %7863 = vmatpush.msra.mxu0 0.0
        %7864 = vmatpush.msra.mxu0 0.0
        %7865 = vmatpush.msra.mxu0 0.0
        %7866 = vmatpush.msra.mxu0 0.0
        %7867 = vmatpush.msra.mxu0 0.0
        %7868 = vmatpush.msra.mxu0 0.0
        %7869 = vmatpush.msra.mxu0 0.0
        %7870 = vmatpush.msra.mxu0 0.0
        %7871 = vmatpush.msra.mxu0 0.0
        %7872 = vmatpush.msra.mxu0 0.0
        %7873 = vmatpush.msra.mxu0 0.0
        %7874 = vmatpush.msra.mxu0 0.0
        %7875 = vmatpush.msra.mxu0 %v7856
        %7876 = vmatmul.f32.gmra.mxu0 %v7854
        %v7877 = vpop.f32.mrf.mxu0
        %v7878 = vadd.f32 0.0, %v7877
        %7879 = vdwg.mxu0
        %7880 = vmatpush.msra.mxu0 0.0
        %7881 = vmatpush.msra.mxu0 0.0
        %7882 = vmatpush.msra.mxu0 0.0
        %7883 = vmatpush.msra.mxu0 0.0
        %7884 = vmatpush.msra.mxu0 0.0
        %7885 = vmatpush.msra.mxu0 0.0
        %7886 = vmatpush.msra.mxu0 0.0
        %7887 = vmatpush.msra.mxu0 0.0
        %7888 = vmatpush.msra.mxu0 0.0
        %7889 = vmatpush.msra.mxu0 0.0
        %7890 = vmatpush.msra.mxu0 0.0
        %7891 = vmatpush.msra.mxu0 0.0
        %7892 = vmatpush.msra.mxu0 0.0
        %7893 = vmatpush.msra.mxu0 0.0
        %7894 = vmatpush.msra.mxu0 0.0
        %7895 = vmatpush.msra.mxu0 %v7858
        %7896 = vmatmul.f32.gmra.mxu0 %v7854
        %v7897 = vpop.f32.mrf.mxu0
        %v7898 = vadd.f32 0.0, %v7897
        %7899 = vdwg.mxu0
        %v7916 = vrot.slane %v7513, 6
        %v7917 = vrot.slane %v7568, 6
        %v7918 = vrot.slane %v7623, 6
        %v7919 = vrot.slane %v7678, 6
        %v7920 = vrot.slane %v7733, 6
        %v7921 = vrot.slane %v7788, 6
        %v7922 = vrot.slane %v7843, 6
        %v7923 = vrot.slane %v7898, 6
        %v7924 = vsel %vm5617, %v7493, %v7916
        %v7925 = vsel %vm5617, %v7548, %v7917
        %v7926 = vsel %vm5617, %v7603, %v7918
        %v7927 = vsel %vm5617, %v7658, %v7919
        %v7928 = vsel %vm5617, %v7713, %v7920
        %v7929 = vsel %vm5617, %v7768, %v7921
        %v7930 = vsel %vm5617, %v7823, %v7922
        %v7931 = vsel %vm5617, %v7878, %v7923
        %7932 = vst [vmem:[#allocation1] ss:$4 sm:$0xff] %v6710
        %s7933 = scalar_lea.vmem [#allocation1], 1
        %7934 = vst [vmem:[%s7933] ss:$4 sm:$0xff] %v6711
        %s7935 = scalar_lea.vmem [#allocation1], 2
        %7936 = vst [vmem:[%s7935] ss:$4 sm:$0xff] %v6712
        %s7937 = scalar_lea.vmem [#allocation1], 3
        %7938 = vst [vmem:[%s7937] ss:$4 sm:$0xff] %v6713
        %s7939 = scalar_lea.vmem [#allocation1], 32
        %7940 = vst [vmem:[%s7939] ss:$4 sm:$0xff] %v6714
        %s7941 = scalar_lea.vmem [#allocation1], 33
        %7942 = vst [vmem:[%s7941] ss:$4 sm:$0xff] %v6715
        %s7943 = scalar_lea.vmem [#allocation1], 34
        %7944 = vst [vmem:[%s7943] ss:$4 sm:$0xff] %v6716
        %s7945 = scalar_lea.vmem [#allocation1], 35
        %7946 = vst [vmem:[%s7945] ss:$4 sm:$0xff] %v6717
        %v7947 = vld.sshfl [vmem:[#allocation1] sm:$0xff pattern:$0x73625140]
        %v7948 = vld.sshfl [vmem:[#allocation1 + $0x8] sm:$0xff pattern:$0x73625140]
        %v7949 = vld.sshfl [vmem:[#allocation1 + $0x20] sm:$0xff pattern:$0x73625140]
        %v7950 = vld.sshfl [vmem:[#allocation1 + $0x28] sm:$0xff pattern:$0x73625140]
        %7953 = vst [vmem:[#allocation1] ss:$4 sm:$0xff] %v7924
        %s7954 = scalar_lea.vmem [#allocation1], 1
        %7955 = vst [vmem:[%s7954] ss:$4 sm:$0xff] %v7925
        %s7956 = scalar_lea.vmem [#allocation1], 2
        %7957 = vst [vmem:[%s7956] ss:$4 sm:$0xff] %v7926
        %s7958 = scalar_lea.vmem [#allocation1], 3
        %7959 = vst [vmem:[%s7958] ss:$4 sm:$0xff] %v7927
        %s7960 = scalar_lea.vmem [#allocation1], 32
        %7961 = vst [vmem:[%s7960] ss:$4 sm:$0xff] %v7928
        %s7962 = scalar_lea.vmem [#allocation1], 33
        %7963 = vst [vmem:[%s7962] ss:$4 sm:$0xff] %v7929
        %s7964 = scalar_lea.vmem [#allocation1], 34
        %7965 = vst [vmem:[%s7964] ss:$4 sm:$0xff] %v7930
        %s7966 = scalar_lea.vmem [#allocation1], 35
        %7967 = vst [vmem:[%s7966] ss:$4 sm:$0xff] %v7931
        %v7968 = vld.sshfl [vmem:[#allocation1] sm:$0xff pattern:$0x73625140]
        %v7969 = vld.sshfl [vmem:[#allocation1 + $0x8] sm:$0xff pattern:$0x73625140]
        %v7970 = vld.sshfl [vmem:[#allocation1 + $0x20] sm:$0xff pattern:$0x73625140]
        %v7971 = vld.sshfl [vmem:[#allocation1 + $0x28] sm:$0xff pattern:$0x73625140]
        %7972 = vrot.lane.b32.xlu0 %v7968, 64
        %v7973 = vpop.permute.xlu0 %7972
        %7974 = vrot.lane.b32.xlu0 %v7969, 64
        %v7975 = vpop.permute.xlu0 %7974
        %7976 = vrot.lane.b32.xlu0 %v7970, 64
        %v7977 = vpop.permute.xlu0 %7976
        %7978 = vrot.lane.b32.xlu0 %v7971, 64
        %v7979 = vpop.permute.xlu0 %7978
        %v7980 = vsel %vm5683, %v7973, %v7975
        %v7981 = vsel %vm5683, %v7977, %v7979
        %v7984 = vsel %vm5683, %v7948, %v7973
        %v7985 = vsel %vm5683, %v7950, %v7977
        %v7988 = vrot.slane %v7984, 6
        %v7989 = vrot.slane %v7980, 4
        %v7990 = vrot.slane %v7985, 6
        %v7991 = vrot.slane %v7981, 4
        %v7992 = vsel %vm5617, %v7947, %v7988
        %vm7993 = vcmask 1043456
        %v7994 = vsel %vm7993, %v7992, %v7989
        %v7995 = vsel %vm5619, %v7947, %v7988
        %vm7996 = vcmask 1045506
        %v7997 = vsel %vm7996, %v7995, %v7989
        %v7998 = vrot.slane %v7997, 2
        %v7999 = vsel %vm5622, %v7947, %v7988
        %v8000 = vsel %vm7993, %v7989, %v7999
        %v8001 = vrot.slane %v8000, 4
        %v8002 = vsel %vm5625, %v7988, %v7947
        %v8003 = vsel %vm7996, %v7989, %v8002
        %v8004 = vrot.slane %v8003, 6
        %v8005 = vsel %vm5617, %v7949, %v7990
        %v8006 = vsel %vm7993, %v8005, %v7991
        %v8007 = vsel %vm5619, %v7949, %v7990
        %v8008 = vsel %vm7996, %v8007, %v7991
        %v8009 = vrot.slane %v8008, 2
        %v8010 = vsel %vm5622, %v7949, %v7990
        %v8011 = vsel %vm7993, %v7991, %v8010
        %v8012 = vrot.slane %v8011, 4
        %v8013 = vsel %vm5625, %v7990, %v7949
        %v8014 = vsel %vm7996, %v7991, %v8013
        %v8015 = vrot.slane %v8014, 6
        %8016 = vst [vmem:[#allocation1] ss:$4 sm:$0xff] %v7994
        %v8017 = vld.sshfl [vmem:[#allocation1] sm:$0xff pattern:$0x73625140]
        %v8018 = vld.sshfl [vmem:[#allocation1 + $0x8] sm:$0xff pattern:$0x73625140]
        %v8019 = vld.sshfl [vmem:[#allocation1 + $0x10] sm:$0xff pattern:$0x73625140]
        %s8020 = scalar_lea.vmem [#allocation1], 32
        %8021 = vst [vmem:[%s8020] ss:$4 sm:$0xff] %v7998
        %v8022 = vld.sshfl [vmem:[#allocation1 + $0x20] sm:$0xff pattern:$0x73625140]
        %v8023 = vld.sshfl [vmem:[#allocation1 + $0x28] sm:$0xff pattern:$0x73625140]
        %v8024 = vld.sshfl [vmem:[#allocation1 + $0x30] sm:$0xff pattern:$0x73625140]
        %8025 = vst [vmem:[#allocation1] ss:$4 sm:$0xff] %v8001
        %v8026 = vld.sshfl [vmem:[#allocation1] sm:$0xff pattern:$0x73625140]
        %v8027 = vld.sshfl [vmem:[#allocation1 + $0x8] sm:$0xff pattern:$0x73625140]
        %v8028 = vld.sshfl [vmem:[#allocation1 + $0x10] sm:$0xff pattern:$0x73625140]
        %8029 = vst [vmem:[%s8020] ss:$4 sm:$0xff] %v8004
        %v8030 = vld.sshfl [vmem:[#allocation1 + $0x20] sm:$0xff pattern:$0x73625140]
        %v8031 = vld.sshfl [vmem:[#allocation1 + $0x28] sm:$0xff pattern:$0x73625140]
        %v8032 = vld.sshfl [vmem:[#allocation1 + $0x30] sm:$0xff pattern:$0x73625140]
        %8033 = vst [vmem:[#allocation1] ss:$4 sm:$0xff] %v8006
        %v8034 = vld.sshfl [vmem:[#allocation1] sm:$0xff pattern:$0x73625140]
        %v8035 = vld.sshfl [vmem:[#allocation1 + $0x8] sm:$0xff pattern:$0x73625140]
        %v8036 = vld.sshfl [vmem:[#allocation1 + $0x10] sm:$0xff pattern:$0x73625140]
        %8037 = vst [vmem:[%s8020] ss:$4 sm:$0xff] %v8009
        %v8038 = vld.sshfl [vmem:[#allocation1 + $0x20] sm:$0xff pattern:$0x73625140]
        %v8039 = vld.sshfl [vmem:[#allocation1 + $0x28] sm:$0xff pattern:$0x73625140]
        %v8040 = vld.sshfl [vmem:[#allocation1 + $0x30] sm:$0xff pattern:$0x73625140]
        %8041 = vst [vmem:[#allocation1] ss:$4 sm:$0xff] %v8012
        %v8042 = vld.sshfl [vmem:[#allocation1] sm:$0xff pattern:$0x73625140]
        %v8043 = vld.sshfl [vmem:[#allocation1 + $0x8] sm:$0xff pattern:$0x73625140]
        %v8044 = vld.sshfl [vmem:[#allocation1 + $0x10] sm:$0xff pattern:$0x73625140]
        %8045 = vst [vmem:[%s8020] ss:$4 sm:$0xff] %v8015
        %v8046 = vld.sshfl [vmem:[#allocation1 + $0x20] sm:$0xff pattern:$0x73625140]
        %v8047 = vld.sshfl [vmem:[#allocation1 + $0x28] sm:$0xff pattern:$0x73625140]
        %v8048 = vld.sshfl [vmem:[#allocation1 + $0x30] sm:$0xff pattern:$0x73625140]
        %v8073 = vsel %vm5617, %v8017, 0.0
        %v8074 = vsel %vm5617, %v8022, 0.0
        %v8075 = vadd.f32 %v8073, %v8074
        %v8076 = vsel %vm5617, %v8026, 0.0
        %v8077 = vadd.f32 %v8075, %v8076
        %v8078 = vsel %vm5617, %v8030, 0.0
        %v8079 = vadd.f32 %v8077, %v8078
        %v8080 = vsel %vm5617, %v8034, 0.0
        %v8081 = vadd.f32 %v8079, %v8080
        %v8082 = vsel %vm5617, %v8038, 0.0
        %v8083 = vadd.f32 %v8081, %v8082
        %v8084 = vsel %vm5617, %v8042, 0.0
        %v8085 = vadd.f32 %v8083, %v8084
        %v8086 = vsel %vm5617, %v8046, 0.0
        %v8087 = vadd.f32 %v8085, %v8086
        %v8088 = vsel %vm5617, %v8018, 0.0
        %v8089 = vsel %vm5617, %v8023, 0.0
        %v8090 = vadd.f32 %v8088, %v8089
        %v8091 = vsel %vm5617, %v8027, 0.0
        %v8092 = vadd.f32 %v8090, %v8091
        %v8093 = vsel %vm5617, %v8031, 0.0
        %v8094 = vadd.f32 %v8092, %v8093
        %v8095 = vsel %vm5617, %v8035, 0.0
        %v8096 = vadd.f32 %v8094, %v8095
        %v8097 = vsel %vm5617, %v8039, 0.0
        %v8098 = vadd.f32 %v8096, %v8097
        %v8099 = vsel %vm5617, %v8043, 0.0
        %v8100 = vadd.f32 %v8098, %v8099
        %v8101 = vsel %vm5617, %v8047, 0.0
        %v8102 = vadd.f32 %v8100, %v8101
        %v8103 = vsel %vm5617, %v8019, 0.0
        %v8104 = vsel %vm5617, %v8024, 0.0
        %v8105 = vadd.f32 %v8103, %v8104
        %v8106 = vsel %vm5617, %v8028, 0.0
        %v8107 = vadd.f32 %v8105, %v8106
        %v8108 = vsel %vm5617, %v8032, 0.0
        %v8109 = vadd.f32 %v8107, %v8108
        %v8110 = vsel %vm5617, %v8036, 0.0
        %v8111 = vadd.f32 %v8109, %v8110
        %v8112 = vsel %vm5617, %v8040, 0.0
        %v8113 = vadd.f32 %v8111, %v8112
        %v8114 = vsel %vm5617, %v8044, 0.0
        %v8115 = vadd.f32 %v8113, %v8114
        %v8116 = vsel %vm5617, %v8048, 0.0
        %v8117 = vadd.f32 %v8115, %v8116
        %v8118 = vrcp.pop 8.0
        %v8119 = vmul.f32 8.0, %v8118
        %v8120 = vsub.f32 1.0, %v8119
        %v8121 = vmul.f32 %v8118, %v8120
        %v8122 = vadd.f32 %v8118, %v8121
        %vm8123 = vweird.f32 %v8118
        %v8124 = vsel %vm8123, %v8118, %v8122
        %v8125 = vmul.f32 %v8087, %v8124
        %v8126 = vmul.f32 %v8102, %v8124
        %v8127 = vmul.f32 %v8117, %v8124
        %v8128 = vld [vmem:[%s437] sm:$0xff]
        %v8129 = vld [vmem:[%s437 + $0x8] sm:$0xff]
        %v8130 = vld [vmem:[%s437 + $0x10] sm:$0xff]
        %v8131 = vld [vmem:[%s437 + $0x18] sm:$0xff]
        %v8132 = vld [vmem:[%s437 + $0x20] sm:$0xff]
        %v8133 = vld [vmem:[%s437 + $0x28] sm:$0xff]
        %v8134 = vld [vmem:[%s437 + $0x30] sm:$0xff]
        %v8135 = vld [vmem:[%s437 + $0x38] sm:$0xff]
        %v8136 = vld [vmem:[%s437 + $0x40] sm:$0xff]
        %v8137 = vld [vmem:[%s437 + $0x48] sm:$0xff]
        %v8138 = vld [vmem:[%s437 + $0x50] sm:$0xff]
        %v8139 = vld [vmem:[%s437 + $0x58] sm:$0xff]
        %v8140 = vld [vmem:[%s437 + $0x60] sm:$0xff]
        %v8141 = vld [vmem:[%s437 + $0x68] sm:$0xff]
        %v8142 = vld [vmem:[%s437 + $0x70] sm:$0xff]
        %v8143 = vld [vmem:[%s437 + $0x78] sm:$0xff]
        %v8144 = vld [vmem:[%s437 + $0x80] sm:$0xff]
        %v8145 = vld [vmem:[%s437 + $0x88] sm:$0xff]
        %v8146 = vld [vmem:[%s437 + $0x90] sm:$0xff]
        %v8147 = vld [vmem:[%s437 + $0x98] sm:$0xff]
        %v8148 = vld [vmem:[%s437 + $0xa0] sm:$0xff]
        %v8149 = vld [vmem:[%s437 + $0xa8] sm:$0xff]
        %v8150 = vld [vmem:[%s437 + $0xb0] sm:$0xff]
        %v8151 = vld [vmem:[%s437 + $0xb8] sm:$0xff]
        %v8152 = vld [vmem:[%s437 + $0xc0] sm:$0xff]
        %v8153 = vld [vmem:[%s437 + $0xc8] sm:$0xff]
        %v8154 = vld [vmem:[%s437 + $0xd0] sm:$0xff]
        %v8155 = vld [vmem:[%s437 + $0xd8] sm:$0xff]
        %v8156 = vld [vmem:[%s437 + $0xe0] sm:$0xff]
        %v8157 = vld [vmem:[%s437 + $0xe8] sm:$0xff]
        %v8158 = vld [vmem:[%s437 + $0xf0] sm:$0xff]
        %v8159 = vld [vmem:[%s437 + $0xf8] sm:$0xff]
        %v8160 = vld [vmem:[%s437 + $0x100] sm:$0xff]
        %v8161 = vld [vmem:[%s437 + $0x108] sm:$0xff]
        %v8162 = vld [vmem:[%s437 + $0x110] sm:$0xff]
        %v8163 = vld [vmem:[%s437 + $0x118] sm:$0xff]
        %v8164 = vld [vmem:[%s437 + $0x120] sm:$0xff]
        %v8165 = vld [vmem:[%s437 + $0x128] sm:$0xff]
        %v8166 = vld [vmem:[%s437 + $0x130] sm:$0xff]
        %v8167 = vld [vmem:[%s437 + $0x138] sm:$0xff]
        %v8168 = vld [vmem:[%s437 + $0x140] sm:$0xff]
        %v8169 = vld [vmem:[%s437 + $0x148] sm:$0xff]
        %v8170 = vld [vmem:[%s437 + $0x150] sm:$0xff]
        %v8171 = vld [vmem:[%s437 + $0x158] sm:$0xff]
        %v8172 = vld [vmem:[%s437 + $0x160] sm:$0xff]
        %v8173 = vld [vmem:[%s437 + $0x168] sm:$0xff]
        %v8174 = vld [vmem:[%s437 + $0x170] sm:$0xff]
        %v8175 = vld [vmem:[%s437 + $0x178] sm:$0xff]
        %8176 = vmatpush.msra.mxu0 %v8143
        %8177 = vmatpush.msra.mxu0 %v8142
        %8178 = vmatpush.msra.mxu0 %v8141
        %8179 = vmatpush.msra.mxu0 %v8140
        %8180 = vmatpush.msra.mxu0 %v8139
        %8181 = vmatpush.msra.mxu0 %v8138
        %8182 = vmatpush.msra.mxu0 %v8137
        %8183 = vmatpush.msra.mxu0 %v8136
        %8184 = vmatpush.msra.mxu0 %v8135
        %8185 = vmatpush.msra.mxu0 %v8134
        %8186 = vmatpush.msra.mxu0 %v8133
        %8187 = vmatpush.msra.mxu0 %v8132
        %8188 = vmatpush.msra.mxu0 %v8131
        %8189 = vmatpush.msra.mxu0 %v8130
        %8190 = vmatpush.msra.mxu0 %v8129
        %8191 = vmatpush.msra.mxu0 %v8128
        %8192 = vmatmul.f32.gmra.mxu0 %v8125
        %v8193 = vpop.f32.mrf.mxu0
        %v8194 = vadd.f32 0.0, %v8193
        %8195 = vdwg.mxu0
        %8196 = vmatpush.msra.mxu0 %v8159
        %8197 = vmatpush.msra.mxu0 %v8158
        %8198 = vmatpush.msra.mxu0 %v8157
        %8199 = vmatpush.msra.mxu0 %v8156
        %8200 = vmatpush.msra.mxu0 %v8155
        %8201 = vmatpush.msra.mxu0 %v8154
        %8202 = vmatpush.msra.mxu0 %v8153
        %8203 = vmatpush.msra.mxu0 %v8152
        %8204 = vmatpush.msra.mxu0 %v8151
        %8205 = vmatpush.msra.mxu0 %v8150
        %8206 = vmatpush.msra.mxu0 %v8149
        %8207 = vmatpush.msra.mxu0 %v8148
        %8208 = vmatpush.msra.mxu0 %v8147
        %8209 = vmatpush.msra.mxu0 %v8146
        %8210 = vmatpush.msra.mxu0 %v8145
        %8211 = vmatpush.msra.mxu0 %v8144
        %8212 = vmatmul.f32.gmra.mxu0 %v8126
        %v8213 = vpop.f32.mrf.mxu0
        %v8214 = vadd.f32 %v8194, %v8213
        %8215 = vdwg.mxu0
        %8216 = vmatpush.msra.mxu0 %v8175
        %8217 = vmatpush.msra.mxu0 %v8174
        %8218 = vmatpush.msra.mxu0 %v8173
        %8219 = vmatpush.msra.mxu0 %v8172
        %8220 = vmatpush.msra.mxu0 %v8171
        %8221 = vmatpush.msra.mxu0 %v8170
        %8222 = vmatpush.msra.mxu0 %v8169
        %8223 = vmatpush.msra.mxu0 %v8168
        %8224 = vmatpush.msra.mxu0 %v8167
        %8225 = vmatpush.msra.mxu0 %v8166
        %8226 = vmatpush.msra.mxu0 %v8165
        %8227 = vmatpush.msra.mxu0 %v8164
        %8228 = vmatpush.msra.mxu0 %v8163
        %8229 = vmatpush.msra.mxu0 %v8162
        %8230 = vmatpush.msra.mxu0 %v8161
        %8231 = vmatpush.msra.mxu0 %v8160
        %8232 = vmatmul.f32.gmra.mxu0 %v8127
        %v8233 = vpop.f32.mrf.mxu0
        %v8234 = vadd.f32 %v8214, %v8233
        %8235 = vdwg.mxu0
        %8236 = vst.msk [vmem:[%s430] sm:$0x3] %vm6092, %v8234
        %s8237 = sand.u32 %s181, 1
        %s8238 = scalar_lea.sflag [#allocation4], %s8237
        %s8239 = sand.u32 %s181, 1
        %s8240 = smul.addr %s8239, 48
        %s8241 = scalar_lea.vmem [#allocation10], %s8240
        %s8242 = sand.u32 %s207, 1
        %s8243 = scalar_lea.sflag [#allocation12], %s8242
        %s8244 = sand.u32 %s207, 1
        %s8245 = smul.addr %s8244, 2
        %s8246 = scalar_lea.vmem [#allocation11], %s8245
        // Predicated region
        $region65: #{tpu_custom_call.1} parent=43 // pred_check
          %p8247 = pneg %p191
        $region66: #{tpu_custom_call.1} parent=43 // pred_check_branch
          %8249 = sbr.rel (%p8247) target = $region68
        $region67: #{tpu_custom_call.1} parent=43 // pred_region
          %s8250 = smul.u32 3, %s27
          %8252 = vsyncadd %s8238, 0
          %s8253 = smul.addr %s8250, 8
          %s8254 = scalar_lea.hbm %s6, %s8253
          %s8255 = sshll.u32 %s8241, 4
          %s8256 = int_to_ptr.vmem [resolvable:$true] %s8255
          %s8257 = sshll.u32 %s8254, 4
          %s8258 = int_to_ptr.hbm [resolvable:$true] %s8257
          %8263 = dma.vmem_to_hbm [thread:$0]  %s8256, 768, %s8258, %s8238, 384, 768, 24
        $region68: #{tpu_custom_call.1} parent=43 // pred_fallthru
          _
        // Predicated region
        $region69: #{tpu_custom_call.1} parent=43 // pred_check
          %p8264 = pneg %p217
        $region70: #{tpu_custom_call.1} parent=43 // pred_check_branch
          %8266 = sbr.rel (%p8264) target = $region72
        $region71: #{tpu_custom_call.1} parent=43 // pred_region
          %8268 = vsyncadd %s8243, 0
          %s8269 = smul.addr %s27, 2
          %s8270 = scalar_lea.hbm %s7, %s8269
          %s8272 = sshll.u32 %s8246, 4
          %s8273 = int_to_ptr.vmem [resolvable:$true] %s8272
          %s8274 = sshll.u32 %s8270, 4
          %s8275 = int_to_ptr.hbm [resolvable:$true] %s8274
          %8277 = dma.vmem_to_hbm [thread:$0]  %s8273, 32, %s8275, %s8243
        $region72: #{tpu_custom_call.1} parent=43 // pred_fallthru
          _
      $region44: #{tpu_custom_call.1} parent=5 // pred_fallthru
        _
      %p8278 = scmp.le.s32.totalorder 2, %s22
      // Predicated region
      $region73: #{tpu_custom_call.1} parent=5 // pred_check
        %p8279 = pneg %p8278
      $region74: #{tpu_custom_call.1} parent=5 // pred_check_branch
        %8281 = sbr.rel (%p8279) target = $region76
      $region75: #{tpu_custom_call.1} parent=5 // pred_region
        %s8282 = ssub.s32 %s22, 2
        // Predicated region
        $region77: #{tpu_custom_call.1} parent=75 // pred_check
          %p8283 = pneg %p197
        $region78: #{tpu_custom_call.1} parent=75 // pred_check_branch
          %8285 = sbr.rel (%p8283) target = $region80
        $region79: #{tpu_custom_call.1} parent=75 // pred_region
          %s8286 = sand.u32 %s182, 1
          %s8287 = scalar_lea.sflag [#allocation4], %s8286
          %s8288 = sand.u32 %s182, 1
          %s8289 = smul.addr %s8288, 48
          %s8290 = scalar_lea.vmem [#allocation10], %s8289
          %8292 = dma.done %s8287, 768
        $region80: #{tpu_custom_call.1} parent=75 // pred_fallthru
          _
        // Predicated region
        $region81: #{tpu_custom_call.1} parent=75 // pred_check
          %p8293 = pneg %p223
        $region82: #{tpu_custom_call.1} parent=75 // pred_check_branch
          %8295 = sbr.rel (%p8293) target = $region84
        $region83: #{tpu_custom_call.1} parent=75 // pred_region
          %s8296 = sand.u32 %s208, 1
          %s8297 = scalar_lea.sflag [#allocation12], %s8296
          %s8298 = sand.u32 %s208, 1
          %s8299 = smul.addr %s8298, 2
          %s8300 = scalar_lea.vmem [#allocation11], %s8299
          %8302 = dma.done %s8297, 32
        $region84: #{tpu_custom_call.1} parent=75 // pred_fallthru
          _
      $region76: #{tpu_custom_call.1} parent=5 // pred_fallthru
        _
    $region6: #{tpu_custom_call.1} parent=1 // loop_footer
      %s26 = sadd.s32 1, %s22
    $region7: #{tpu_custom_call.1} parent=1 // loop_footer_branch
      %21 = sbr.rel target = $region3
    $region8: #{tpu_custom_call.1} parent=1 // loop_exit
      _
    %8303 = vsyncpa [#allocation3], 1
    %s8304 = scalar_lea.sflag [#allocation3], 1
    %8305 = vsyncpa %s8304, 1
    %8306 = vsyncpa [#allocation6], 1
    %8307 = vsyncpa [#allocation4], 1
    %s8308 = scalar_lea.sflag [#allocation4], 1
    %8309 = vsyncpa %s8308, 1
    %8310 = vsyncpa [#allocation12], 1
    %s8311 = scalar_lea.sflag [#allocation12], 1
    %8312 = vsyncpa %s8311, 1

</llo_original>
